<compile_context>
chip_gen: v7x
topology: tpu7x:2x2x1
jax: 0.10.0
libtpu: 0.0.40
codegen_flags: <defaults>
</compile_context>

<pallas_src>
import math
from functools import partial

import numpy as np
import jax
import jax.numpy as jnp
from jax.experimental import pallas as pl
from jax.experimental.pallas import tpu as pltpu

# ---------------- configuration (small, consistent with the module) ----------
DIM = 32           # dim
NUM_HEADS = 4      # num_heads
WINDOW_SIZE = 4    # window_size
SHIFT_SIZE = 2     # shift_size (SW-MSA branch, so attn_mask is used)
MLP_RATIO = 4.0
H_RES = 8
W_RES = 8
BATCH = 2
HIDDEN = int(DIM * MLP_RATIO)
LN_EPS = 1e-5
NEG_INF = -1e9     # cross-window / cross-image entries of the dense attention bias


# ---------------- plain-JAX glue: window partition / reverse / mask ----------
def window_partition(x, ws):
    B, H, W, C = x.shape
    x = x.reshape(B, H // ws, ws, W // ws, ws, C)
    return jnp.transpose(x, (0, 1, 3, 2, 4, 5)).reshape(-1, ws, ws, C)


def window_reverse(windows, ws, H, W):
    B = windows.shape[0] // (H * W // ws // ws)
    x = windows.reshape(B, H // ws, W // ws, ws, ws, -1)
    return jnp.transpose(x, (0, 1, 3, 2, 4, 5)).reshape(B, H, W, -1)


def build_attn_mask(Hp, Wp, ws, shift):
    # Built from the *padded* resolution (Hp, Wp), matching the windows actually
    # used inside the forward pass.
    img = np.zeros((1, Hp, Wp, 1), dtype=np.float32)
    cnt = 0
    for hs in (slice(0, -ws), slice(-ws, -shift), slice(-shift, None)):
        for wsl in (slice(0, -ws), slice(-ws, -shift), slice(-shift, None)):
            img[:, hs, wsl, :] = cnt
            cnt += 1
    mw = window_partition(jnp.asarray(img), ws).reshape(-1, ws * ws)
    am = mw[:, None, :] - mw[:, :, None]
    return jnp.where(am != 0, -100.0, 0.0).astype(jnp.float32)


# ---------------- parameter init (deterministic, synthetic) ------------------
def init_params(key):
    ks = jax.random.split(key, 10)
    s = 0.02
    p = {}
    p["norm1_g"] = jnp.ones((DIM,), jnp.float32)
    p["norm1_b"] = jnp.zeros((DIM,), jnp.float32)
    p["norm2_g"] = jnp.ones((DIM,), jnp.float32)
    p["norm2_b"] = jnp.zeros((DIM,), jnp.float32)
    p["logit_scale"] = jnp.log(10.0) * jnp.ones((NUM_HEADS,), jnp.float32)
    p["cpb_w1"] = (jax.random.normal(ks[0], (512, 2)) * s).astype(jnp.float32)
    p["cpb_b1"] = jnp.zeros((512,), jnp.float32)
    p["cpb_w2"] = (jax.random.normal(ks[1], (NUM_HEADS, 512)) * s).astype(jnp.float32)
    p["qkv_w"] = (jax.random.normal(ks[2], (3 * DIM, DIM)) * s).astype(jnp.float32)
    p["q_bias"] = (jax.random.normal(ks[3], (DIM,)) * s).astype(jnp.float32)
    p["v_bias"] = (jax.random.normal(ks[4], (DIM,)) * s).astype(jnp.float32)
    p["proj_w"] = (jax.random.normal(ks[5], (DIM, DIM)) * s).astype(jnp.float32)
    p["proj_b"] = (jax.random.normal(ks[6], (DIM,)) * s).astype(jnp.float32)
    p["fc1_w"] = (jax.random.normal(ks[7], (HIDDEN, DIM)) * s).astype(jnp.float32)
    p["fc1_b"] = jnp.zeros((HIDDEN,), jnp.float32)
    p["fc2_w"] = (jax.random.normal(ks[8], (DIM, HIDDEN)) * s).astype(jnp.float32)
    p["fc2_b"] = jnp.zeros((DIM,), jnp.float32)
    return p


# ------------- continuous relative position bias (tiny param-derived glue) ---
def compute_relative_position_bias(p, ws, num_heads):
    rel = jnp.arange(-(ws - 1), ws, dtype=jnp.float32)
    table = jnp.stack(jnp.meshgrid(rel, rel, indexing="ij"), axis=0)          # (2, 2ws-1, 2ws-1)
    table = jnp.transpose(table, (1, 2, 0))[None]                             # (1, 2ws-1, 2ws-1, 2)
    table = table / (ws - 1)
    table = table * 8.0
    table = jnp.sign(table) * jnp.log2(jnp.abs(table) + 1.0) / np.log2(8.0)

    coords = jnp.stack(jnp.meshgrid(jnp.arange(ws), jnp.arange(ws), indexing="ij"))
    cf = coords.reshape(2, -1)
    rc = cf[:, :, None] - cf[:, None, :]
    rc = jnp.transpose(rc, (1, 2, 0))
    idx = (rc[..., 0] + ws - 1) * (2 * ws - 1) + (rc[..., 1] + ws - 1)        # (N, N)

    h1 = jax.nn.relu(table @ p["cpb_w1"].T + p["cpb_b1"])
    bias_table = (h1 @ p["cpb_w2"].T).reshape(-1, num_heads)
    N = ws * ws
    rpb = bias_table[idx.reshape(-1)].reshape(N, N, num_heads)
    rpb = jnp.transpose(rpb, (2, 0, 1))
    return 16.0 * jax.nn.sigmoid(rpb)                                         # (nH, N, N)


# ---------------- Pallas kernel: fused Swin block (whole batch, one step) ----
def swin_block_kernel(num_heads, head_dim,
                      x_ref,         # (BT, C) tokens in window order (also the residual shortcut)
                      bias_ref,      # (nH, BT, BT) block-diag rpb+mask, -1e9 off-window/off-image
                      scale_ref,     # (nH, 1, hd) clamped exp(logit_scale), broadcast over hd
                      wqkv_ref,      # (C, 3C) pre-transposed fused QKV weight
                      qkvb_ref,      # (1, 3C) [q_bias, 0, v_bias]
                      wproj_ref,     # (C, C) pre-transposed proj weight (row block h = head h)
                      pb_ref,        # (1, C) proj bias
                      g1_ref, b1_ref, g2_ref, b2_ref,   # (1, C) LayerNorm params
                      w1_ref, fb1_ref,                  # (C, HIDDEN), (1, HIDDEN)
                      w2_ref, fb2_ref,                  # (HIDDEN, C), (1, C)
                      o_ref):                           # (BT, C)
    x = x_ref[...]                                      # (BT, C)
    C = x.shape[-1]

    def layernorm(t, g, b):
        mu = jnp.mean(t, axis=-1, keepdims=True)
        var = jnp.mean(jnp.square(t - mu), axis=-1, keepdims=True)
        return (t - mu) * jax.lax.rsqrt(var + LN_EPS) * g + b

    # ---- fused QKV projection: one lane-wide matmul (BT, 3C) ----
    qkv = jnp.dot(x, wqkv_ref[...], preferred_element_type=jnp.float32) + qkvb_ref[...]

    # ---- windowed multi-head cosine attention: heads unrolled, all windows of
    #      all images batched through full lane-dense (BT x BT) matmuls with a
    #      block-diagonal additive bias. ----
    proj = jnp.zeros_like(x)
    for h in range(num_heads):
        lo = h * head_dim
        q = qkv[:, lo:lo + head_dim]                    # (BT, hd)
        k = qkv[:, C + lo:C + lo + head_dim]
        v = qkv[:, 2 * C + lo:2 * C + lo + head_dim]
        # cosine normalization (F.normalize eps=1e-12); per-head logit scale folded into qn
        qn = q * (scale_ref[h] /
                  jnp.maximum(jnp.sqrt(jnp.sum(q * q, axis=-1, keepdims=True)), 1e-12))
        kn = k / jnp.maximum(jnp.sqrt(jnp.sum(k * k, axis=-1, keepdims=True)), 1e-12)
        s = jax.lax.dot_general(qn, kn, (((1,), (1,)), ((), ())),
                                preferred_element_type=jnp.float32)           # (BT, BT)
        s = s + bias_ref[h]
        s = s - jnp.max(s, axis=-1, keepdims=True)
        p = jnp.exp(s)
        p = p * pl.reciprocal(jnp.sum(p, axis=-1, keepdims=True), approx=True)
        o_h = jnp.dot(p, v, preferred_element_type=jnp.float32)               # (BT, hd)
        # output projection accumulated per head (avoids lane concat of head outputs)
        proj = proj + jnp.dot(o_h, wproj_ref[lo:lo + head_dim, :],
                              preferred_element_type=jnp.float32)
    attn_out = proj + pb_ref[...]                                             # (BT, C)

    # ---- post-norm residual + MLP + post-norm residual (per-token => safe in
    #      window order) ----
    x1 = x + layernorm(attn_out, g1_ref[...], b1_ref[...])
    hmid = jnp.dot(x1, w1_ref[...], preferred_element_type=jnp.float32) + fb1_ref[...]
    hmid = 0.5 * hmid * (1.0 + jax.lax.erf(hmid * (1.0 / math.sqrt(2.0))))    # exact GELU
    y = jnp.dot(hmid, w2_ref[...], preferred_element_type=jnp.float32) + fb2_ref[...]
    o_ref[...] = x1 + layernorm(y, g2_ref[...], b2_ref[...])


# ---------------- forward pass (wrapper) --------------------------------------
def swin_block_forward(params, x, attn_mask, H, W):
    B, L, C = x.shape
    assert L == H * W
    ws, shift, nH = WINDOW_SIZE, SHIFT_SIZE, NUM_HEADS
    hd = C // nH
    N = ws * ws

    xs = x.reshape(B, H, W, C)
    pad_r = (ws - W % ws) % ws
    pad_b = (ws - H % ws) % ws
    xs = jnp.pad(xs, ((0, 0), (0, pad_b), (0, pad_r), (0, 0)))
    Hp, Wp = H + pad_b, W + pad_r
    nW = (Hp // ws) * (Wp // ws)
    T = nW * N
    BT = B * T

    if shift > 0:
        shifted = jnp.roll(xs, shift=(-shift, -shift), axis=(1, 2))
        assert attn_mask.shape[0] == nW, "attn_mask must be built from padded (Hp, Wp)"
        mask_eff = attn_mask
    else:
        shifted = xs
        mask_eff = None

    # tokens in window order (all images stacked); this also serves as the
    # residual shortcut since SwinV2 attention runs on the raw (un-normed) input.
    x_win = window_partition(shifted, ws).reshape(BT, C)

    # ---- wrapper-side packing: dense block-diag bias, fused/transposed weights ----
    rpb = compute_relative_position_bias(params, ws, nH)              # (nH, N, N)
    if mask_eff is not None:
        per_win = rpb[None] + mask_eff[:, None]                       # (nW, nH, N, N)
    else:
        per_win = jnp.broadcast_to(rpb[None], (nW, nH, N, N))
    bias_dense = jnp.full((nH, BT, BT), NEG_INF, jnp.float32)
    for b in range(B):
        for w in range(nW):
            r0 = (b * nW + w) * N
            bias_dense = bias_dense.at[:, r0:r0 + N, r0:r0 + N].set(per_win[w])

    scale = jnp.exp(jnp.minimum(params["logit_scale"], math.log(1.0 / 0.01)))
    scale_b = jnp.broadcast_to(scale.reshape(nH, 1, 1), (nH, 1, hd)).astype(jnp.float32)

    wqkv_t = params["qkv_w"].T                                        # (C, 3C): [Wq^T | Wk^T | Wv^T]
    qkv_bias = jnp.concatenate(
        [params["q_bias"], jnp.zeros((C,), jnp.float32), params["v_bias"]]).reshape(1, 3 * C)
    wproj_t = params["proj_w"].T                                      # (C, C), row block h = head h
    proj_b = params["proj_b"].reshape(1, C)
    w1_t = params["fc1_w"].T                                          # (C, HIDDEN)
    w2_t = params["fc2_w"].T                                          # (HIDDEN, C)

    kernel = partial(swin_block_kernel, nH, hd)
    out_flat = pl.pallas_call(
        kernel,
        out_shape=jax.ShapeDtypeStruct((BT, C), jnp.float32),
        grid=(1,),
        in_specs=[
            pl.BlockSpec((BT, C), lambda i: (0, 0)),          # x windows (+ shortcut)
            pl.BlockSpec((nH, BT, BT), lambda i: (0, 0, 0)),  # dense additive bias
            pl.BlockSpec((nH, 1, hd), lambda i: (0, 0, 0)),   # per-head logit scale
            pl.BlockSpec((C, 3 * C), lambda i: (0, 0)),       # fused QKV weight^T
            pl.BlockSpec((1, 3 * C), lambda i: (0, 0)),       # fused QKV bias
            pl.BlockSpec((C, C), lambda i: (0, 0)),           # proj^T
            pl.BlockSpec((1, C), lambda i: (0, 0)),           # proj bias
            pl.BlockSpec((1, C), lambda i: (0, 0)),           # norm1 gamma
            pl.BlockSpec((1, C), lambda i: (0, 0)),           # norm1 beta
            pl.BlockSpec((1, C), lambda i: (0, 0)),           # norm2 gamma
            pl.BlockSpec((1, C), lambda i: (0, 0)),           # norm2 beta
            pl.BlockSpec((C, HIDDEN), lambda i: (0, 0)),      # fc1^T
            pl.BlockSpec((1, HIDDEN), lambda i: (0, 0)),      # fc1 bias
            pl.BlockSpec((HIDDEN, C), lambda i: (0, 0)),      # fc2^T
            pl.BlockSpec((1, C), lambda i: (0, 0)),           # fc2 bias
        ],
        out_specs=pl.BlockSpec((BT, C), lambda i: (0, 0)),
        compiler_params=pltpu.CompilerParams(dimension_semantics=("arbitrary",)),
    )(x_win, bias_dense, scale_b, wqkv_t, qkv_bias, wproj_t, proj_b,
      params["norm1_g"].reshape(1, C), params["norm1_b"].reshape(1, C),
      params["norm2_g"].reshape(1, C), params["norm2_b"].reshape(1, C),
      w1_t, params["fc1_b"].reshape(1, HIDDEN),
      w2_t, params["fc2_b"].reshape(1, C))

    # window order -> spatial order (window_reverse + un-shift + crop), plain JAX
    out_w = out_flat.reshape(B * nW, ws, ws, C)
    spat = window_reverse(out_w, ws, Hp, Wp)
    if shift > 0:
        spat = jnp.roll(spat, shift=(shift, shift), axis=(1, 2))
    spat = spat[:, :H, :W, :]
    # TODO(synk): DropPath / Dropout are identity in eval mode (drop_prob=0), so omitted.
    return spat.reshape(B, H * W, C)


# ---------------- main --------------------------------------------------------
if __name__ == "__main__":
    key = jax.random.PRNGKey(0)
    kp, kx = jax.random.split(key)
    params = init_params(kp)

    x = jax.random.normal(kx, (BATCH, H_RES * W_RES, DIM), dtype=jnp.float32)

    # build the shift mask from the *padded* resolution (here padding is zero)
    pad_r = (WINDOW_SIZE - W_RES % WINDOW_SIZE) % WINDOW_SIZE
    pad_b = (WINDOW_SIZE - H_RES % WINDOW_SIZE) % WINDOW_SIZE
    attn_mask = build_attn_mask(H_RES + pad_b, W_RES + pad_r, WINDOW_SIZE, SHIFT_SIZE)

    fwd = jax.jit(swin_block_forward, static_argnums=(3, 4))
    out = jax.block_until_ready(fwd(params, x, attn_mask, H_RES, W_RES))
    assert out.shape == (BATCH, H_RES * W_RES, DIM)
    print("KERNEL_OK")
</pallas_src>

<mosaic_0001>
module attributes {stable_mosaic.version = 11 : i64} {
  func.func @swin_block_kernel(%arg0: i32, %arg1: memref<128x32xf32, #tpu.memory_space<vmem>>, %arg2: memref<4x128x128xf32, #tpu.memory_space<vmem>>, %arg3: memref<4x1x8xf32, #tpu.memory_space<vmem>>, %arg4: memref<32x96xf32, #tpu.memory_space<vmem>>, %arg5: memref<1x96xf32, #tpu.memory_space<vmem>>, %arg6: memref<32x32xf32, #tpu.memory_space<vmem>>, %arg7: memref<1x32xf32, #tpu.memory_space<vmem>>, %arg8: memref<1x32xf32, #tpu.memory_space<vmem>>, %arg9: memref<1x32xf32, #tpu.memory_space<vmem>>, %arg10: memref<1x32xf32, #tpu.memory_space<vmem>>, %arg11: memref<1x32xf32, #tpu.memory_space<vmem>>, %arg12: memref<32x128xf32, #tpu.memory_space<vmem>>, %arg13: memref<1x128xf32, #tpu.memory_space<vmem>>, %arg14: memref<128x32xf32, #tpu.memory_space<vmem>>, %arg15: memref<1x32xf32, #tpu.memory_space<vmem>>, %arg16: memref<128x32xf32, #tpu.memory_space<vmem>>) attributes {dimension_semantics = [#tpu.dimension_semantics<arbitrary>], iteration_bounds = array<i64: 1>, scalar_prefetch = 0 : i64, scratch_operands = 0 : i64, tpu.core_type = #tpu.core_type<tc>, window_params = [{pipeline_mode = #tpu.pipeline_mode<synchronous>, transform_indices = @transform_0, window_bounds = array<i64: 128, 32>}, {pipeline_mode = #tpu.pipeline_mode<synchronous>, transform_indices = @transform_1, window_bounds = array<i64: 4, 128, 128>}, {pipeline_mode = #tpu.pipeline_mode<synchronous>, transform_indices = @transform_2, window_bounds = array<i64: 4, 1, 8>}, {pipeline_mode = #tpu.pipeline_mode<synchronous>, transform_indices = @transform_3, window_bounds = array<i64: 32, 96>}, {pipeline_mode = #tpu.pipeline_mode<synchronous>, transform_indices = @transform_4, window_bounds = array<i64: 1, 96>}, {pipeline_mode = #tpu.pipeline_mode<synchronous>, transform_indices = @transform_5, window_bounds = array<i64: 32, 32>}, {pipeline_mode = #tpu.pipeline_mode<synchronous>, transform_indices = @transform_6, window_bounds = array<i64: 1, 32>}, {pipeline_mode = #tpu.pipeline_mode<synchronous>, transform_indices = @transform_7, window_bounds = array<i64: 1, 32>}, {pipeline_mode = #tpu.pipeline_mode<synchronous>, transform_indices = @transform_8, window_bounds = array<i64: 1, 32>}, {pipeline_mode = #tpu.pipeline_mode<synchronous>, transform_indices = @transform_9, window_bounds = array<i64: 1, 32>}, {pipeline_mode = #tpu.pipeline_mode<synchronous>, transform_indices = @transform_10, window_bounds = array<i64: 1, 32>}, {pipeline_mode = #tpu.pipeline_mode<synchronous>, transform_indices = @transform_11, window_bounds = array<i64: 32, 128>}, {pipeline_mode = #tpu.pipeline_mode<synchronous>, transform_indices = @transform_12, window_bounds = array<i64: 1, 128>}, {pipeline_mode = #tpu.pipeline_mode<synchronous>, transform_indices = @transform_13, window_bounds = array<i64: 128, 32>}, {pipeline_mode = #tpu.pipeline_mode<synchronous>, transform_indices = @transform_14, window_bounds = array<i64: 1, 32>}, {pipeline_mode = #tpu.pipeline_mode<synchronous>, transform_indices = @transform_15, window_bounds = array<i64: 128, 32>}]} {
    %c0 = arith.constant 0 : index
    %c0_0 = arith.constant 0 : index
    %0 = vector.load %arg1[%c0, %c0_0] : memref<128x32xf32, #tpu.memory_space<vmem>>, vector<128x32xf32>
    %c0_1 = arith.constant 0 : index
    %c0_2 = arith.constant 0 : index
    %1 = vector.load %arg4[%c0_1, %c0_2] : memref<32x96xf32, #tpu.memory_space<vmem>>, vector<32x96xf32>
    %cst = arith.constant dense<0.000000e+00> : vector<128x96xf32>
    %2 = tpu.matmul %0, %1, %cst {dimension_numbers = #tpu.dot_dimension_numbers<[1], [0], [0], [1], [0, 0, 1, 1], [], []>} : vector<128x32xf32>, vector<32x96xf32>, vector<128x96xf32> -> vector<128x96xf32>
    %c0_3 = arith.constant 0 : index
    %c0_4 = arith.constant 0 : index
    %3 = vector.load %arg5[%c0_3, %c0_4] : memref<1x96xf32, #tpu.memory_space<vmem>>, vector<1x96xf32>
    %4 = vector.broadcast %3 : vector<1x96xf32> to vector<128x96xf32>
    %5 = arith.addf %2, %4 : vector<128x96xf32>
    %cst_5 = arith.constant 0.000000e+00 : f32
    %6 = vector.broadcast %cst_5 : f32 to vector<128x32xf32>
    %7 = vector.extract_strided_slice %5 {offsets = [0, 0], sizes = [128, 8], strides = [1, 1]} : vector<128x96xf32> to vector<128x8xf32>
    %8 = vector.extract_strided_slice %5 {offsets = [0, 32], sizes = [128, 8], strides = [1, 1]} : vector<128x96xf32> to vector<128x8xf32>
    %9 = vector.extract_strided_slice %5 {offsets = [0, 64], sizes = [128, 8], strides = [1, 1]} : vector<128x96xf32> to vector<128x8xf32>
    %c0_6 = arith.constant 0 : index
    %c0_7 = arith.constant 0 : index
    %c0_8 = arith.constant 0 : index
    %10 = vector.load %arg3[%c0_6, %c0_7, %c0_8] : memref<4x1x8xf32, #tpu.memory_space<vmem>>, vector<1x1x8xf32>
    %11 = vector.shape_cast %10 : vector<1x1x8xf32> to vector<1x8xf32>
    %12 = arith.mulf %7, %7 : vector<128x8xf32>
    %cst_9 = arith.constant dense<0.000000e+00> : vector<128xf32>
    %13 = vector.multi_reduction <add>, %12, %cst_9 [1] : vector<128x8xf32> to vector<128xf32>
    %14 = vector.shape_cast %13 : vector<128xf32> to vector<128x1xf32>
    %15 = math.sqrt %14 : vector<128x1xf32>
    %cst_10 = arith.constant 9.99999996E-13 : f32
    %16 = vector.broadcast %cst_10 : f32 to vector<128x1xf32>
    %17 = arith.maximumf %15, %16 : vector<128x1xf32>
    %18 = vector.broadcast %11 : vector<1x8xf32> to vector<128x8xf32>
    %19 = vector.broadcast %17 : vector<128x1xf32> to vector<128x8xf32>
    %20 = arith.divf %18, %19 : vector<128x8xf32>
    %21 = arith.mulf %7, %20 : vector<128x8xf32>
    %22 = arith.mulf %8, %8 : vector<128x8xf32>
    %cst_11 = arith.constant dense<0.000000e+00> : vector<128xf32>
    %23 = vector.multi_reduction <add>, %22, %cst_11 [1] : vector<128x8xf32> to vector<128xf32>
    %24 = vector.shape_cast %23 : vector<128xf32> to vector<128x1xf32>
    %25 = math.sqrt %24 : vector<128x1xf32>
    %cst_12 = arith.constant 9.99999996E-13 : f32
    %26 = vector.broadcast %cst_12 : f32 to vector<128x1xf32>
    %27 = arith.maximumf %25, %26 : vector<128x1xf32>
    %28 = vector.broadcast %27 : vector<128x1xf32> to vector<128x8xf32>
    %29 = arith.divf %8, %28 : vector<128x8xf32>
    %cst_13 = arith.constant dense<0.000000e+00> : vector<128x128xf32>
    %30 = tpu.matmul %21, %29, %cst_13 {dimension_numbers = #tpu.dot_dimension_numbers<[1], [1], [0], [0], [0, 0, 1, 0], [], []>} : vector<128x8xf32>, vector<128x8xf32>, vector<128x128xf32> -> vector<128x128xf32>
    %c0_14 = arith.constant 0 : index
    %c0_15 = arith.constant 0 : index
    %c0_16 = arith.constant 0 : index
    %31 = vector.load %arg2[%c0_14, %c0_15, %c0_16] : memref<4x128x128xf32, #tpu.memory_space<vmem>>, vector<1x128x128xf32>
    %32 = vector.shape_cast %31 : vector<1x128x128xf32> to vector<128x128xf32>
    %33 = arith.addf %30, %32 : vector<128x128xf32>
    %cst_17 = arith.constant dense<0xFF800000> : vector<128xf32>
    %34 = vector.multi_reduction <maximumf>, %33, %cst_17 [1] : vector<128x128xf32> to vector<128xf32>
    %35 = vector.shape_cast %34 : vector<128xf32> to vector<128x1xf32>
    %36 = vector.broadcast %35 : vector<128x1xf32> to vector<128x128xf32>
    %37 = arith.subf %33, %36 : vector<128x128xf32>
    %38 = math.exp %37 : vector<128x128xf32>
    %cst_18 = arith.constant dense<0.000000e+00> : vector<128xf32>
    %39 = vector.multi_reduction <add>, %38, %cst_18 [1] : vector<128x128xf32> to vector<128xf32>
    %40 = vector.shape_cast %39 : vector<128xf32> to vector<128x1xf32>
    %41 = tpu.reciprocal %40 {approx = true} : vector<128x1xf32> -> vector<128x1xf32>
    %42 = vector.broadcast %41 : vector<128x1xf32> to vector<128x128xf32>
    %43 = arith.mulf %38, %42 : vector<128x128xf32>
    %cst_19 = arith.constant dense<0.000000e+00> : vector<128x8xf32>
    %44 = tpu.matmul %43, %9, %cst_19 {dimension_numbers = #tpu.dot_dimension_numbers<[1], [0], [0], [1], [0, 0, 1, 1], [], []>} : vector<128x128xf32>, vector<128x8xf32>, vector<128x8xf32> -> vector<128x8xf32>
    %c0_20 = arith.constant 0 : index
    %c0_21 = arith.constant 0 : index
    %45 = vector.load %arg6[%c0_20, %c0_21] : memref<32x32xf32, #tpu.memory_space<vmem>>, vector<8x32xf32>
    %cst_22 = arith.constant dense<0.000000e+00> : vector<128x32xf32>
    %46 = tpu.matmul %44, %45, %cst_22 {dimension_numbers = #tpu.dot_dimension_numbers<[1], [0], [0], [1], [0, 0, 1, 1], [], []>} : vector<128x8xf32>, vector<8x32xf32>, vector<128x32xf32> -> vector<128x32xf32>
    %47 = arith.addf %6, %46 : vector<128x32xf32>
    %48 = vector.extract_strided_slice %5 {offsets = [0, 8], sizes = [128, 8], strides = [1, 1]} : vector<128x96xf32> to vector<128x8xf32>
    %49 = vector.extract_strided_slice %5 {offsets = [0, 40], sizes = [128, 8], strides = [1, 1]} : vector<128x96xf32> to vector<128x8xf32>
    %50 = vector.extract_strided_slice %5 {offsets = [0, 72], sizes = [128, 8], strides = [1, 1]} : vector<128x96xf32> to vector<128x8xf32>
    %c1 = arith.constant 1 : index
    %c0_23 = arith.constant 0 : index
    %c0_24 = arith.constant 0 : index
    %51 = vector.load %arg3[%c1, %c0_23, %c0_24] : memref<4x1x8xf32, #tpu.memory_space<vmem>>, vector<1x1x8xf32>
    %52 = vector.shape_cast %51 : vector<1x1x8xf32> to vector<1x8xf32>
    %53 = arith.mulf %48, %48 : vector<128x8xf32>
    %cst_25 = arith.constant dense<0.000000e+00> : vector<128xf32>
    %54 = vector.multi_reduction <add>, %53, %cst_25 [1] : vector<128x8xf32> to vector<128xf32>
    %55 = vector.shape_cast %54 : vector<128xf32> to vector<128x1xf32>
    %56 = math.sqrt %55 : vector<128x1xf32>
    %cst_26 = arith.constant 9.99999996E-13 : f32
    %57 = vector.broadcast %cst_26 : f32 to vector<128x1xf32>
    %58 = arith.maximumf %56, %57 : vector<128x1xf32>
    %59 = vector.broadcast %52 : vector<1x8xf32> to vector<128x8xf32>
    %60 = vector.broadcast %58 : vector<128x1xf32> to vector<128x8xf32>
    %61 = arith.divf %59, %60 : vector<128x8xf32>
    %62 = arith.mulf %48, %61 : vector<128x8xf32>
    %63 = arith.mulf %49, %49 : vector<128x8xf32>
    %cst_27 = arith.constant dense<0.000000e+00> : vector<128xf32>
    %64 = vector.multi_reduction <add>, %63, %cst_27 [1] : vector<128x8xf32> to vector<128xf32>
    %65 = vector.shape_cast %64 : vector<128xf32> to vector<128x1xf32>
    %66 = math.sqrt %65 : vector<128x1xf32>
    %cst_28 = arith.constant 9.99999996E-13 : f32
    %67 = vector.broadcast %cst_28 : f32 to vector<128x1xf32>
    %68 = arith.maximumf %66, %67 : vector<128x1xf32>
    %69 = vector.broadcast %68 : vector<128x1xf32> to vector<128x8xf32>
    %70 = arith.divf %49, %69 : vector<128x8xf32>
    %cst_29 = arith.constant dense<0.000000e+00> : vector<128x128xf32>
    %71 = tpu.matmul %62, %70, %cst_29 {dimension_numbers = #tpu.dot_dimension_numbers<[1], [1], [0], [0], [0, 0, 1, 0], [], []>} : vector<128x8xf32>, vector<128x8xf32>, vector<128x128xf32> -> vector<128x128xf32>
    %c1_30 = arith.constant 1 : index
    %c0_31 = arith.constant 0 : index
    %c0_32 = arith.constant 0 : index
    %72 = vector.load %arg2[%c1_30, %c0_31, %c0_32] : memref<4x128x128xf32, #tpu.memory_space<vmem>>, vector<1x128x128xf32>
    %73 = vector.shape_cast %72 : vector<1x128x128xf32> to vector<128x128xf32>
    %74 = arith.addf %71, %73 : vector<128x128xf32>
    %cst_33 = arith.constant dense<0xFF800000> : vector<128xf32>
    %75 = vector.multi_reduction <maximumf>, %74, %cst_33 [1] : vector<128x128xf32> to vector<128xf32>
    %76 = vector.shape_cast %75 : vector<128xf32> to vector<128x1xf32>
    %77 = vector.broadcast %76 : vector<128x1xf32> to vector<128x128xf32>
    %78 = arith.subf %74, %77 : vector<128x128xf32>
    %79 = math.exp %78 : vector<128x128xf32>
    %cst_34 = arith.constant dense<0.000000e+00> : vector<128xf32>
    %80 = vector.multi_reduction <add>, %79, %cst_34 [1] : vector<128x128xf32> to vector<128xf32>
    %81 = vector.shape_cast %80 : vector<128xf32> to vector<128x1xf32>
    %82 = tpu.reciprocal %81 {approx = true} : vector<128x1xf32> -> vector<128x1xf32>
    %83 = vector.broadcast %82 : vector<128x1xf32> to vector<128x128xf32>
    %84 = arith.mulf %79, %83 : vector<128x128xf32>
    %cst_35 = arith.constant dense<0.000000e+00> : vector<128x8xf32>
    %85 = tpu.matmul %84, %50, %cst_35 {dimension_numbers = #tpu.dot_dimension_numbers<[1], [0], [0], [1], [0, 0, 1, 1], [], []>} : vector<128x128xf32>, vector<128x8xf32>, vector<128x8xf32> -> vector<128x8xf32>
    %c8 = arith.constant 8 : index
    %c0_36 = arith.constant 0 : index
    %86 = vector.load %arg6[%c8, %c0_36] : memref<32x32xf32, #tpu.memory_space<vmem>>, vector<8x32xf32>
    %cst_37 = arith.constant dense<0.000000e+00> : vector<128x32xf32>
    %87 = tpu.matmul %85, %86, %cst_37 {dimension_numbers = #tpu.dot_dimension_numbers<[1], [0], [0], [1], [0, 0, 1, 1], [], []>} : vector<128x8xf32>, vector<8x32xf32>, vector<128x32xf32> -> vector<128x32xf32>
    %88 = arith.addf %47, %87 : vector<128x32xf32>
    %89 = vector.extract_strided_slice %5 {offsets = [0, 16], sizes = [128, 8], strides = [1, 1]} : vector<128x96xf32> to vector<128x8xf32>
    %90 = vector.extract_strided_slice %5 {offsets = [0, 48], sizes = [128, 8], strides = [1, 1]} : vector<128x96xf32> to vector<128x8xf32>
    %91 = vector.extract_strided_slice %5 {offsets = [0, 80], sizes = [128, 8], strides = [1, 1]} : vector<128x96xf32> to vector<128x8xf32>
    %c2 = arith.constant 2 : index
    %c0_38 = arith.constant 0 : index
    %c0_39 = arith.constant 0 : index
    %92 = vector.load %arg3[%c2, %c0_38, %c0_39] : memref<4x1x8xf32, #tpu.memory_space<vmem>>, vector<1x1x8xf32>
    %93 = vector.shape_cast %92 : vector<1x1x8xf32> to vector<1x8xf32>
    %94 = arith.mulf %89, %89 : vector<128x8xf32>
    %cst_40 = arith.constant dense<0.000000e+00> : vector<128xf32>
    %95 = vector.multi_reduction <add>, %94, %cst_40 [1] : vector<128x8xf32> to vector<128xf32>
    %96 = vector.shape_cast %95 : vector<128xf32> to vector<128x1xf32>
    %97 = math.sqrt %96 : vector<128x1xf32>
    %cst_41 = arith.constant 9.99999996E-13 : f32
    %98 = vector.broadcast %cst_41 : f32 to vector<128x1xf32>
    %99 = arith.maximumf %97, %98 : vector<128x1xf32>
    %100 = vector.broadcast %93 : vector<1x8xf32> to vector<128x8xf32>
    %101 = vector.broadcast %99 : vector<128x1xf32> to vector<128x8xf32>
    %102 = arith.divf %100, %101 : vector<128x8xf32>
    %103 = arith.mulf %89, %102 : vector<128x8xf32>
    %104 = arith.mulf %90, %90 : vector<128x8xf32>
    %cst_42 = arith.constant dense<0.000000e+00> : vector<128xf32>
    %105 = vector.multi_reduction <add>, %104, %cst_42 [1] : vector<128x8xf32> to vector<128xf32>
    %106 = vector.shape_cast %105 : vector<128xf32> to vector<128x1xf32>
    %107 = math.sqrt %106 : vector<128x1xf32>
    %cst_43 = arith.constant 9.99999996E-13 : f32
    %108 = vector.broadcast %cst_43 : f32 to vector<128x1xf32>
    %109 = arith.maximumf %107, %108 : vector<128x1xf32>
    %110 = vector.broadcast %109 : vector<128x1xf32> to vector<128x8xf32>
    %111 = arith.divf %90, %110 : vector<128x8xf32>
    %cst_44 = arith.constant dense<0.000000e+00> : vector<128x128xf32>
    %112 = tpu.matmul %103, %111, %cst_44 {dimension_numbers = #tpu.dot_dimension_numbers<[1], [1], [0], [0], [0, 0, 1, 0], [], []>} : vector<128x8xf32>, vector<128x8xf32>, vector<128x128xf32> -> vector<128x128xf32>
    %c2_45 = arith.constant 2 : index
    %c0_46 = arith.constant 0 : index
    %c0_47 = arith.constant 0 : index
    %113 = vector.load %arg2[%c2_45, %c0_46, %c0_47] : memref<4x128x128xf32, #tpu.memory_space<vmem>>, vector<1x128x128xf32>
    %114 = vector.shape_cast %113 : vector<1x128x128xf32> to vector<128x128xf32>
    %115 = arith.addf %112, %114 : vector<128x128xf32>
    %cst_48 = arith.constant dense<0xFF800000> : vector<128xf32>
    %116 = vector.multi_reduction <maximumf>, %115, %cst_48 [1] : vector<128x128xf32> to vector<128xf32>
    %117 = vector.shape_cast %116 : vector<128xf32> to vector<128x1xf32>
    %118 = vector.broadcast %117 : vector<128x1xf32> to vector<128x128xf32>
    %119 = arith.subf %115, %118 : vector<128x128xf32>
    %120 = math.exp %119 : vector<128x128xf32>
    %cst_49 = arith.constant dense<0.000000e+00> : vector<128xf32>
    %121 = vector.multi_reduction <add>, %120, %cst_49 [1] : vector<128x128xf32> to vector<128xf32>
    %122 = vector.shape_cast %121 : vector<128xf32> to vector<128x1xf32>
    %123 = tpu.reciprocal %122 {approx = true} : vector<128x1xf32> -> vector<128x1xf32>
    %124 = vector.broadcast %123 : vector<128x1xf32> to vector<128x128xf32>
    %125 = arith.mulf %120, %124 : vector<128x128xf32>
    %cst_50 = arith.constant dense<0.000000e+00> : vector<128x8xf32>
    %126 = tpu.matmul %125, %91, %cst_50 {dimension_numbers = #tpu.dot_dimension_numbers<[1], [0], [0], [1], [0, 0, 1, 1], [], []>} : vector<128x128xf32>, vector<128x8xf32>, vector<128x8xf32> -> vector<128x8xf32>
    %c16 = arith.constant 16 : index
    %c0_51 = arith.constant 0 : index
    %127 = vector.load %arg6[%c16, %c0_51] : memref<32x32xf32, #tpu.memory_space<vmem>>, vector<8x32xf32>
    %cst_52 = arith.constant dense<0.000000e+00> : vector<128x32xf32>
    %128 = tpu.matmul %126, %127, %cst_52 {dimension_numbers = #tpu.dot_dimension_numbers<[1], [0], [0], [1], [0, 0, 1, 1], [], []>} : vector<128x8xf32>, vector<8x32xf32>, vector<128x32xf32> -> vector<128x32xf32>
    %129 = arith.addf %88, %128 : vector<128x32xf32>
    %130 = vector.extract_strided_slice %5 {offsets = [0, 24], sizes = [128, 8], strides = [1, 1]} : vector<128x96xf32> to vector<128x8xf32>
    %131 = vector.extract_strided_slice %5 {offsets = [0, 56], sizes = [128, 8], strides = [1, 1]} : vector<128x96xf32> to vector<128x8xf32>
    %132 = vector.extract_strided_slice %5 {offsets = [0, 88], sizes = [128, 8], strides = [1, 1]} : vector<128x96xf32> to vector<128x8xf32>
    %c3 = arith.constant 3 : index
    %c0_53 = arith.constant 0 : index
    %c0_54 = arith.constant 0 : index
    %133 = vector.load %arg3[%c3, %c0_53, %c0_54] : memref<4x1x8xf32, #tpu.memory_space<vmem>>, vector<1x1x8xf32>
    %134 = vector.shape_cast %133 : vector<1x1x8xf32> to vector<1x8xf32>
    %135 = arith.mulf %130, %130 : vector<128x8xf32>
    %cst_55 = arith.constant dense<0.000000e+00> : vector<128xf32>
    %136 = vector.multi_reduction <add>, %135, %cst_55 [1] : vector<128x8xf32> to vector<128xf32>
    %137 = vector.shape_cast %136 : vector<128xf32> to vector<128x1xf32>
    %138 = math.sqrt %137 : vector<128x1xf32>
    %cst_56 = arith.constant 9.99999996E-13 : f32
    %139 = vector.broadcast %cst_56 : f32 to vector<128x1xf32>
    %140 = arith.maximumf %138, %139 : vector<128x1xf32>
    %141 = vector.broadcast %134 : vector<1x8xf32> to vector<128x8xf32>
    %142 = vector.broadcast %140 : vector<128x1xf32> to vector<128x8xf32>
    %143 = arith.divf %141, %142 : vector<128x8xf32>
    %144 = arith.mulf %130, %143 : vector<128x8xf32>
    %145 = arith.mulf %131, %131 : vector<128x8xf32>
    %cst_57 = arith.constant dense<0.000000e+00> : vector<128xf32>
    %146 = vector.multi_reduction <add>, %145, %cst_57 [1] : vector<128x8xf32> to vector<128xf32>
    %147 = vector.shape_cast %146 : vector<128xf32> to vector<128x1xf32>
    %148 = math.sqrt %147 : vector<128x1xf32>
    %cst_58 = arith.constant 9.99999996E-13 : f32
    %149 = vector.broadcast %cst_58 : f32 to vector<128x1xf32>
    %150 = arith.maximumf %148, %149 : vector<128x1xf32>
    %151 = vector.broadcast %150 : vector<128x1xf32> to vector<128x8xf32>
    %152 = arith.divf %131, %151 : vector<128x8xf32>
    %cst_59 = arith.constant dense<0.000000e+00> : vector<128x128xf32>
    %153 = tpu.matmul %144, %152, %cst_59 {dimension_numbers = #tpu.dot_dimension_numbers<[1], [1], [0], [0], [0, 0, 1, 0], [], []>} : vector<128x8xf32>, vector<128x8xf32>, vector<128x128xf32> -> vector<128x128xf32>
    %c3_60 = arith.constant 3 : index
    %c0_61 = arith.constant 0 : index
    %c0_62 = arith.constant 0 : index
    %154 = vector.load %arg2[%c3_60, %c0_61, %c0_62] : memref<4x128x128xf32, #tpu.memory_space<vmem>>, vector<1x128x128xf32>
    %155 = vector.shape_cast %154 : vector<1x128x128xf32> to vector<128x128xf32>
    %156 = arith.addf %153, %155 : vector<128x128xf32>
    %cst_63 = arith.constant dense<0xFF800000> : vector<128xf32>
    %157 = vector.multi_reduction <maximumf>, %156, %cst_63 [1] : vector<128x128xf32> to vector<128xf32>
    %158 = vector.shape_cast %157 : vector<128xf32> to vector<128x1xf32>
    %159 = vector.broadcast %158 : vector<128x1xf32> to vector<128x128xf32>
    %160 = arith.subf %156, %159 : vector<128x128xf32>
    %161 = math.exp %160 : vector<128x128xf32>
    %cst_64 = arith.constant dense<0.000000e+00> : vector<128xf32>
    %162 = vector.multi_reduction <add>, %161, %cst_64 [1] : vector<128x128xf32> to vector<128xf32>
    %163 = vector.shape_cast %162 : vector<128xf32> to vector<128x1xf32>
    %164 = tpu.reciprocal %163 {approx = true} : vector<128x1xf32> -> vector<128x1xf32>
    %165 = vector.broadcast %164 : vector<128x1xf32> to vector<128x128xf32>
    %166 = arith.mulf %161, %165 : vector<128x128xf32>
    %cst_65 = arith.constant dense<0.000000e+00> : vector<128x8xf32>
    %167 = tpu.matmul %166, %132, %cst_65 {dimension_numbers = #tpu.dot_dimension_numbers<[1], [0], [0], [1], [0, 0, 1, 1], [], []>} : vector<128x128xf32>, vector<128x8xf32>, vector<128x8xf32> -> vector<128x8xf32>
    %c24 = arith.constant 24 : index
    %c0_66 = arith.constant 0 : index
    %168 = vector.load %arg6[%c24, %c0_66] : memref<32x32xf32, #tpu.memory_space<vmem>>, vector<8x32xf32>
    %cst_67 = arith.constant dense<0.000000e+00> : vector<128x32xf32>
    %169 = tpu.matmul %167, %168, %cst_67 {dimension_numbers = #tpu.dot_dimension_numbers<[1], [0], [0], [1], [0, 0, 1, 1], [], []>} : vector<128x8xf32>, vector<8x32xf32>, vector<128x32xf32> -> vector<128x32xf32>
    %170 = arith.addf %129, %169 : vector<128x32xf32>
    %c0_68 = arith.constant 0 : index
    %c0_69 = arith.constant 0 : index
    %171 = vector.load %arg7[%c0_68, %c0_69] : memref<1x32xf32, #tpu.memory_space<vmem>>, vector<1x32xf32>
    %172 = vector.broadcast %171 : vector<1x32xf32> to vector<128x32xf32>
    %173 = arith.addf %170, %172 : vector<128x32xf32>
    %c0_70 = arith.constant 0 : index
    %c0_71 = arith.constant 0 : index
    %174 = vector.load %arg8[%c0_70, %c0_71] : memref<1x32xf32, #tpu.memory_space<vmem>>, vector<1x32xf32>
    %c0_72 = arith.constant 0 : index
    %c0_73 = arith.constant 0 : index
    %175 = vector.load %arg9[%c0_72, %c0_73] : memref<1x32xf32, #tpu.memory_space<vmem>>, vector<1x32xf32>
    %cst_74 = arith.constant dense<0.000000e+00> : vector<128xf32>
    %176 = vector.multi_reduction <add>, %173, %cst_74 [1] : vector<128x32xf32> to vector<128xf32>
    %177 = vector.shape_cast %176 : vector<128xf32> to vector<128x1xf32>
    %cst_75 = arith.constant 3.200000e+01 : f32
    %178 = vector.broadcast %cst_75 : f32 to vector<128x1xf32>
    %179 = arith.divf %177, %178 : vector<128x1xf32>
    %180 = vector.broadcast %179 : vector<128x1xf32> to vector<128x32xf32>
    %181 = arith.subf %173, %180 : vector<128x32xf32>
    %182 = arith.mulf %181, %181 : vector<128x32xf32>
    %cst_76 = arith.constant dense<0.000000e+00> : vector<128xf32>
    %183 = vector.multi_reduction <add>, %182, %cst_76 [1] : vector<128x32xf32> to vector<128xf32>
    %184 = vector.shape_cast %183 : vector<128xf32> to vector<128x1xf32>
    %cst_77 = arith.constant 3.200000e+01 : f32
    %185 = vector.broadcast %cst_77 : f32 to vector<128x1xf32>
    %186 = arith.divf %184, %185 : vector<128x1xf32>
    %187 = vector.broadcast %179 : vector<128x1xf32> to vector<128x32xf32>
    %188 = arith.subf %173, %187 : vector<128x32xf32>
    %cst_78 = arith.constant 9.99999974E-6 : f32
    %189 = vector.broadcast %cst_78 : f32 to vector<128x1xf32>
    %190 = arith.addf %186, %189 : vector<128x1xf32>
    %191 = math.rsqrt %190 : vector<128x1xf32>
    %192 = vector.broadcast %191 : vector<128x1xf32> to vector<128x32xf32>
    %193 = arith.mulf %188, %192 : vector<128x32xf32>
    %194 = vector.broadcast %174 : vector<1x32xf32> to vector<128x32xf32>
    %195 = arith.mulf %193, %194 : vector<128x32xf32>
    %196 = vector.broadcast %175 : vector<1x32xf32> to vector<128x32xf32>
    %197 = arith.addf %195, %196 : vector<128x32xf32>
    %198 = arith.addf %0, %197 : vector<128x32xf32>
    %c0_79 = arith.constant 0 : index
    %c0_80 = arith.constant 0 : index
    %199 = vector.load %arg12[%c0_79, %c0_80] : memref<32x128xf32, #tpu.memory_space<vmem>>, vector<32x128xf32>
    %cst_81 = arith.constant dense<0.000000e+00> : vector<128x128xf32>
    %200 = tpu.matmul %198, %199, %cst_81 {dimension_numbers = #tpu.dot_dimension_numbers<[1], [0], [0], [1], [0, 0, 1, 1], [], []>} : vector<128x32xf32>, vector<32x128xf32>, vector<128x128xf32> -> vector<128x128xf32>
    %c0_82 = arith.constant 0 : index
    %c0_83 = arith.constant 0 : index
    %201 = vector.load %arg13[%c0_82, %c0_83] : memref<1x128xf32, #tpu.memory_space<vmem>>, vector<1x128xf32>
    %202 = vector.broadcast %201 : vector<1x128xf32> to vector<128x128xf32>
    %203 = arith.addf %200, %202 : vector<128x128xf32>
    %cst_84 = arith.constant 5.000000e-01 : f32
    %204 = vector.broadcast %cst_84 : f32 to vector<128x128xf32>
    %205 = arith.mulf %204, %203 : vector<128x128xf32>
    %cst_85 = arith.constant 0.707106769 : f32
    %206 = vector.broadcast %cst_85 : f32 to vector<128x128xf32>
    %207 = arith.mulf %203, %206 : vector<128x128xf32>
    %208 = math.erf %207 : vector<128x128xf32>
    %cst_86 = arith.constant 1.000000e+00 : f32
    %209 = vector.broadcast %cst_86 : f32 to vector<128x128xf32>
    %210 = arith.addf %209, %208 : vector<128x128xf32>
    %211 = arith.mulf %205, %210 : vector<128x128xf32>
    %c0_87 = arith.constant 0 : index
    %c0_88 = arith.constant 0 : index
    %212 = vector.load %arg14[%c0_87, %c0_88] : memref<128x32xf32, #tpu.memory_space<vmem>>, vector<128x32xf32>
    %cst_89 = arith.constant dense<0.000000e+00> : vector<128x32xf32>
    %213 = tpu.matmul %211, %212, %cst_89 {dimension_numbers = #tpu.dot_dimension_numbers<[1], [0], [0], [1], [0, 0, 1, 1], [], []>} : vector<128x128xf32>, vector<128x32xf32>, vector<128x32xf32> -> vector<128x32xf32>
    %c0_90 = arith.constant 0 : index
    %c0_91 = arith.constant 0 : index
    %214 = vector.load %arg15[%c0_90, %c0_91] : memref<1x32xf32, #tpu.memory_space<vmem>>, vector<1x32xf32>
    %215 = vector.broadcast %214 : vector<1x32xf32> to vector<128x32xf32>
    %216 = arith.addf %213, %215 : vector<128x32xf32>
    %c0_92 = arith.constant 0 : index
    %c0_93 = arith.constant 0 : index
    %217 = vector.load %arg10[%c0_92, %c0_93] : memref<1x32xf32, #tpu.memory_space<vmem>>, vector<1x32xf32>
    %c0_94 = arith.constant 0 : index
    %c0_95 = arith.constant 0 : index
    %218 = vector.load %arg11[%c0_94, %c0_95] : memref<1x32xf32, #tpu.memory_space<vmem>>, vector<1x32xf32>
    %cst_96 = arith.constant dense<0.000000e+00> : vector<128xf32>
    %219 = vector.multi_reduction <add>, %216, %cst_96 [1] : vector<128x32xf32> to vector<128xf32>
    %220 = vector.shape_cast %219 : vector<128xf32> to vector<128x1xf32>
    %cst_97 = arith.constant 3.200000e+01 : f32
    %221 = vector.broadcast %cst_97 : f32 to vector<128x1xf32>
    %222 = arith.divf %220, %221 : vector<128x1xf32>
    %223 = vector.broadcast %222 : vector<128x1xf32> to vector<128x32xf32>
    %224 = arith.subf %216, %223 : vector<128x32xf32>
    %225 = arith.mulf %224, %224 : vector<128x32xf32>
    %cst_98 = arith.constant dense<0.000000e+00> : vector<128xf32>
    %226 = vector.multi_reduction <add>, %225, %cst_98 [1] : vector<128x32xf32> to vector<128xf32>
    %227 = vector.shape_cast %226 : vector<128xf32> to vector<128x1xf32>
    %cst_99 = arith.constant 3.200000e+01 : f32
    %228 = vector.broadcast %cst_99 : f32 to vector<128x1xf32>
    %229 = arith.divf %227, %228 : vector<128x1xf32>
    %230 = vector.broadcast %222 : vector<128x1xf32> to vector<128x32xf32>
    %231 = arith.subf %216, %230 : vector<128x32xf32>
    %cst_100 = arith.constant 9.99999974E-6 : f32
    %232 = vector.broadcast %cst_100 : f32 to vector<128x1xf32>
    %233 = arith.addf %229, %232 : vector<128x1xf32>
    %234 = math.rsqrt %233 : vector<128x1xf32>
    %235 = vector.broadcast %234 : vector<128x1xf32> to vector<128x32xf32>
    %236 = arith.mulf %231, %235 : vector<128x32xf32>
    %237 = vector.broadcast %217 : vector<1x32xf32> to vector<128x32xf32>
    %238 = arith.mulf %236, %237 : vector<128x32xf32>
    %239 = vector.broadcast %218 : vector<1x32xf32> to vector<128x32xf32>
    %240 = arith.addf %238, %239 : vector<128x32xf32>
    %241 = arith.addf %198, %240 : vector<128x32xf32>
    %c0_101 = arith.constant 0 : index
    %c0_102 = arith.constant 0 : index
    %242 = vector.load %arg16[%c0_101, %c0_102] : memref<128x32xf32, #tpu.memory_space<vmem>>, vector<128x32xf32>
    tpu.vector_store %arg16[%c0_101, %c0_102], %241 {strides = array<i32>} : memref<128x32xf32, #tpu.memory_space<vmem>>, vector<128x32xf32>,
    return
  }
  func.func @transform_0(%arg0: i32) -> (i32, i32) {
    %c0_i32 = arith.constant 0 : i32
    %c0_i32_0 = arith.constant 0 : i32
    %c0_i32_1 = arith.constant 0 : i32
    return %c0_i32, %c0_i32_0 : i32, i32
  }
  func.func @transform_1(%arg0: i32) -> (i32, i32, i32) {
    %c0_i32 = arith.constant 0 : i32
    %c0_i32_0 = arith.constant 0 : i32
    %c0_i32_1 = arith.constant 0 : i32
    %c0_i32_2 = arith.constant 0 : i32
    return %c0_i32, %c0_i32_0, %c0_i32_1 : i32, i32, i32
  }
  func.func @transform_2(%arg0: i32) -> (i32, i32, i32) {
    %c0_i32 = arith.constant 0 : i32
    %c0_i32_0 = arith.constant 0 : i32
    %c0_i32_1 = arith.constant 0 : i32
    %c0_i32_2 = arith.constant 0 : i32
    return %c0_i32, %c0_i32_0, %c0_i32_1 : i32, i32, i32
  }
  func.func @transform_3(%arg0: i32) -> (i32, i32) {
    %c0_i32 = arith.constant 0 : i32
    %c0_i32_0 = arith.constant 0 : i32
    %c0_i32_1 = arith.constant 0 : i32
    return %c0_i32, %c0_i32_0 : i32, i32
  }
  func.func @transform_4(%arg0: i32) -> (i32, i32) {
    %c0_i32 = arith.constant 0 : i32
    %c0_i32_0 = arith.constant 0 : i32
    %c0_i32_1 = arith.constant 0 : i32
    return %c0_i32, %c0_i32_0 : i32, i32
  }
  func.func @transform_5(%arg0: i32) -> (i32, i32) {
    %c0_i32 = arith.constant 0 : i32
    %c0_i32_0 = arith.constant 0 : i32
    %c0_i32_1 = arith.constant 0 : i32
    return %c0_i32, %c0_i32_0 : i32, i32
  }
  func.func @transform_6(%arg0: i32) -> (i32, i32) {
    %c0_i32 = arith.constant 0 : i32
    %c0_i32_0 = arith.constant 0 : i32
    %c0_i32_1 = arith.constant 0 : i32
    return %c0_i32, %c0_i32_0 : i32, i32
  }
  func.func @transform_7(%arg0: i32) -> (i32, i32) {
    %c0_i32 = arith.constant 0 : i32
    %c0_i32_0 = arith.constant 0 : i32
    %c0_i32_1 = arith.constant 0 : i32
    return %c0_i32, %c0_i32_0 : i32, i32
  }
  func.func @transform_8(%arg0: i32) -> (i32, i32) {
    %c0_i32 = arith.constant 0 : i32
    %c0_i32_0 = arith.constant 0 : i32
    %c0_i32_1 = arith.constant 0 : i32
    return %c0_i32, %c0_i32_0 : i32, i32
  }
  func.func @transform_9(%arg0: i32) -> (i32, i32) {
    %c0_i32 = arith.constant 0 : i32
    %c0_i32_0 = arith.constant 0 : i32
    %c0_i32_1 = arith.constant 0 : i32
    return %c0_i32, %c0_i32_0 : i32, i32
  }
  func.func @transform_10(%arg0: i32) -> (i32, i32) {
    %c0_i32 = arith.constant 0 : i32
    %c0_i32_0 = arith.constant 0 : i32
    %c0_i32_1 = arith.constant 0 : i32
    return %c0_i32, %c0_i32_0 : i32, i32
  }
  func.func @transform_11(%arg0: i32) -> (i32, i32) {
    %c0_i32 = arith.constant 0 : i32
    %c0_i32_0 = arith.constant 0 : i32
    %c0_i32_1 = arith.constant 0 : i32
    return %c0_i32, %c0_i32_0 : i32, i32
  }
  func.func @transform_12(%arg0: i32) -> (i32, i32) {
    %c0_i32 = arith.constant 0 : i32
    %c0_i32_0 = arith.constant 0 : i32
    %c0_i32_1 = arith.constant 0 : i32
    return %c0_i32, %c0_i32_0 : i32, i32
  }
  func.func @transform_13(%arg0: i32) -> (i32, i32) {
    %c0_i32 = arith.constant 0 : i32
    %c0_i32_0 = arith.constant 0 : i32
    %c0_i32_1 = arith.constant 0 : i32
    return %c0_i32, %c0_i32_0 : i32, i32
  }
  func.func @transform_14(%arg0: i32) -> (i32, i32) {
    %c0_i32 = arith.constant 0 : i32
    %c0_i32_0 = arith.constant 0 : i32
    %c0_i32_1 = arith.constant 0 : i32
    return %c0_i32, %c0_i32_0 : i32, i32
  }
  func.func @transform_15(%arg0: i32) -> (i32, i32) {
    %c0_i32 = arith.constant 0 : i32
    %c0_i32_0 = arith.constant 0 : i32
    %c0_i32_1 = arith.constant 0 : i32
    return %c0_i32, %c0_i32_0 : i32, i32
  }
}

</mosaic_0001>

<llo_original>
// kernel: sub.10
$region0: #{sub.10}
  %s0 = inlined_call_operand.vmem [shape: s32[2,4,4], index: 0, kind: input, shape index: {}]
  %s1 = inlined_call_operand.vmem [shape: s32[2,16], index: 1, kind: output, shape index: {}]
  $region1: #{sub.10} parent=0
    #allocation0 [shape = 'u8[4096]{0}', space=vmem, size = 0x1000, scoped, tag = 'scoped mem for output reshape']
    #allocation1 [shape = 'u8[8192]{0}', space=vmem, size = 0x2000, scoped, tag = 'scoped mem for input reshape']
    %s3 = sshllo.u32 0, 4
    %s4 = scalar_lea.vmem %s0, 4
    %v5 = vld [vmem:[%s4] sm:%s3]
    %s6 = scalar_lea.vmem [#allocation1], 8
    %7 = vst [vmem:[%s6] sm:%s3] %v5
    %v8 = vld [vmem:[%s0] sm:%s3]
    %9 = vst [vmem:[#allocation1] sm:%s3] %v8
    %s10 = smov 3
    %v11 = vld [vmem:[#allocation1] ss:$8 sm:%s10]
    %vm12 = vcmask 31744
    %13 = vst.msk [vmem:[#allocation0] sm:$0x3] %vm12, %v11
    %s14 = scalar_lea.vmem [#allocation1], 3
    %s15 = smov 3
    %v16 = vld [vmem:[%s14] ss:$8 sm:%s15]
    %17 = vrot.lane.b32.xlu0 %v16, 12
    %v18 = vpop.permute.xlu0 %17
    %vm19 = vcmask 130144
    %20 = vst.msk [vmem:[#allocation0] sm:$0x3] %vm19, %v18
    %s21 = scalar_lea.vmem [#allocation1], 2
    %s22 = smov 3
    %v23 = vld [vmem:[%s21] ss:$8 sm:%s22]
    %24 = vrot.lane.b32.xlu0 %v23, 8
    %v25 = vpop.permute.xlu0 %24
    %vm26 = vcmask 97344
    %27 = vst.msk [vmem:[#allocation0] sm:$0x3] %vm26, %v25
    %s28 = scalar_lea.vmem [#allocation1], 1
    %s29 = smov 3
    %v30 = vld [vmem:[%s28] ss:$8 sm:%s29]
    %31 = vrot.lane.b32.xlu0 %v30, 4
    %v32 = vpop.permute.xlu0 %31
    %vm33 = vcmask 64544
    %34 = vst.msk [vmem:[#allocation0] sm:$0x3] %vm33, %v32
    %s36 = sshllo.u32 0, 2
    %v38 = vld [vmem:[#allocation0] sm:%s36]
    %s39 = sshllo.u32 0, 2
    %40 = vst [vmem:[%s1] sm:%s39] %v38

// kernel: swin_block_forward.1
$region0: #{swin_block_forward.1}
  #allocation0 [shape = 'u32[]', space=smem, size = 0x4, offset = 0x4, fixed_abs, tag = 'smem constant byte address 0x4 - core index']
  #allocation1 [shape = 'u32[144,128]{1,0:T(1,128)}', space=vmem, size = 0x12000, scoped, tag = 'internal scratch']
  %s0 = inlined_call_operand.vmem [shape: f32[128,32], index: 0, kind: input, shape index: {}]
  %s1 = inlined_call_operand.vmem [shape: f32[4,128,128], index: 1, kind: input, shape index: {}]
  %s2 = inlined_call_operand.vmem [shape: f32[4,1,8], index: 2, kind: input, shape index: {}]
  %s3 = inlined_call_operand.vmem [shape: f32[32,96], index: 3, kind: input, shape index: {}]
  %s4 = inlined_call_operand.vmem [shape: f32[1,96], index: 4, kind: input, shape index: {}]
  %s5 = inlined_call_operand.vmem [shape: f32[32,32], index: 5, kind: input, shape index: {}]
  %s6 = inlined_call_operand.vmem [shape: f32[1,32], index: 6, kind: input, shape index: {}]
  %s7 = inlined_call_operand.vmem [shape: f32[1,32], index: 7, kind: input, shape index: {}]
  %s8 = inlined_call_operand.vmem [shape: f32[1,32], index: 8, kind: input, shape index: {}]
  %s9 = inlined_call_operand.vmem [shape: f32[1,32], index: 9, kind: input, shape index: {}]
  %s10 = inlined_call_operand.vmem [shape: f32[1,32], index: 10, kind: input, shape index: {}]
  %s11 = inlined_call_operand.vmem [shape: f32[32,128], index: 11, kind: input, shape index: {}]
  %s12 = inlined_call_operand.vmem [shape: f32[1,128], index: 12, kind: input, shape index: {}]
  %s13 = inlined_call_operand.vmem [shape: f32[128,32], index: 13, kind: input, shape index: {}]
  %s14 = inlined_call_operand.vmem [shape: f32[1,32], index: 14, kind: input, shape index: {}]
  %s15 = inlined_call_operand.vmem [shape: f32[128,32], index: 15, kind: output, shape index: {}]
  %s16 = sld [smem:[#allocation0]]
  $region70: #{swin_block_forward.1} parent=0
    _
  %s18 = ssub.s32 1, %s16
  %s19 = scalar_select 0, %s18, %s16
  // Predicated region
  $region2: #{swin_block_forward.1} parent=0 // pred_check
    _
  $region3: #{swin_block_forward.1} parent=0 // pred_check_branch
    %21 = sbr.rel (0) target = $region5
  $region4: #{swin_block_forward.1} parent=0 // pred_region
    _
  $region5: #{swin_block_forward.1} parent=0 // pred_fallthru
    _
  // Predicated region
  $region6: #{swin_block_forward.1} parent=0 // pred_check
    _
  $region7: #{swin_block_forward.1} parent=0 // pred_check_branch
    %23 = sbr.rel (0) target = $region9
  $region8: #{swin_block_forward.1} parent=0 // pred_region
    _
  $region9: #{swin_block_forward.1} parent=0 // pred_fallthru
    _
  // Predicated region
  $region10: #{swin_block_forward.1} parent=0 // pred_check
    _
  $region11: #{swin_block_forward.1} parent=0 // pred_check_branch
    %25 = sbr.rel (0) target = $region13
  $region12: #{swin_block_forward.1} parent=0 // pred_region
    _
  $region13: #{swin_block_forward.1} parent=0 // pred_fallthru
    _
  // Predicated region
  $region14: #{swin_block_forward.1} parent=0 // pred_check
    _
  $region15: #{swin_block_forward.1} parent=0 // pred_check_branch
    %27 = sbr.rel (0) target = $region17
  $region16: #{swin_block_forward.1} parent=0 // pred_region
    _
  $region17: #{swin_block_forward.1} parent=0 // pred_fallthru
    _
  // Predicated region
  $region18: #{swin_block_forward.1} parent=0 // pred_check
    _
  $region19: #{swin_block_forward.1} parent=0 // pred_check_branch
    %29 = sbr.rel (0) target = $region21
  $region20: #{swin_block_forward.1} parent=0 // pred_region
    _
  $region21: #{swin_block_forward.1} parent=0 // pred_fallthru
    _
  // Predicated region
  $region22: #{swin_block_forward.1} parent=0 // pred_check
    _
  $region23: #{swin_block_forward.1} parent=0 // pred_check_branch
    %31 = sbr.rel (0) target = $region25
  $region24: #{swin_block_forward.1} parent=0 // pred_region
    _
  $region25: #{swin_block_forward.1} parent=0 // pred_fallthru
    _
  // Predicated region
  $region26: #{swin_block_forward.1} parent=0 // pred_check
    _
  $region27: #{swin_block_forward.1} parent=0 // pred_check_branch
    %33 = sbr.rel (0) target = $region29
  $region28: #{swin_block_forward.1} parent=0 // pred_region
    _
  $region29: #{swin_block_forward.1} parent=0 // pred_fallthru
    _
  // Predicated region
  $region30: #{swin_block_forward.1} parent=0 // pred_check
    _
  $region31: #{swin_block_forward.1} parent=0 // pred_check_branch
    %35 = sbr.rel (0) target = $region33
  $region32: #{swin_block_forward.1} parent=0 // pred_region
    _
  $region33: #{swin_block_forward.1} parent=0 // pred_fallthru
    _
  // Predicated region
  $region34: #{swin_block_forward.1} parent=0 // pred_check
    _
  $region35: #{swin_block_forward.1} parent=0 // pred_check_branch
    %37 = sbr.rel (0) target = $region37
  $region36: #{swin_block_forward.1} parent=0 // pred_region
    _
  $region37: #{swin_block_forward.1} parent=0 // pred_fallthru
    _
  // Predicated region
  $region38: #{swin_block_forward.1} parent=0 // pred_check
    _
  $region39: #{swin_block_forward.1} parent=0 // pred_check_branch
    %39 = sbr.rel (0) target = $region41
  $region40: #{swin_block_forward.1} parent=0 // pred_region
    _
  $region41: #{swin_block_forward.1} parent=0 // pred_fallthru
    _
  // Predicated region
  $region42: #{swin_block_forward.1} parent=0 // pred_check
    _
  $region43: #{swin_block_forward.1} parent=0 // pred_check_branch
    %41 = sbr.rel (0) target = $region45
  $region44: #{swin_block_forward.1} parent=0 // pred_region
    _
  $region45: #{swin_block_forward.1} parent=0 // pred_fallthru
    _
  // Predicated region
  $region46: #{swin_block_forward.1} parent=0 // pred_check
    _
  $region47: #{swin_block_forward.1} parent=0 // pred_check_branch
    %43 = sbr.rel (0) target = $region49
  $region48: #{swin_block_forward.1} parent=0 // pred_region
    _
  $region49: #{swin_block_forward.1} parent=0 // pred_fallthru
    _
  // Predicated region
  $region50: #{swin_block_forward.1} parent=0 // pred_check
    _
  $region51: #{swin_block_forward.1} parent=0 // pred_check_branch
    %45 = sbr.rel (0) target = $region53
  $region52: #{swin_block_forward.1} parent=0 // pred_region
    _
  $region53: #{swin_block_forward.1} parent=0 // pred_fallthru
    _
  // Predicated region
  $region54: #{swin_block_forward.1} parent=0 // pred_check
    _
  $region55: #{swin_block_forward.1} parent=0 // pred_check_branch
    %47 = sbr.rel (0) target = $region57
  $region56: #{swin_block_forward.1} parent=0 // pred_region
    _
  $region57: #{swin_block_forward.1} parent=0 // pred_fallthru
    _
  // Predicated region
  $region58: #{swin_block_forward.1} parent=0 // pred_check
    _
  $region59: #{swin_block_forward.1} parent=0 // pred_check_branch
    %49 = sbr.rel (0) target = $region61
  $region60: #{swin_block_forward.1} parent=0 // pred_region
    _
  $region61: #{swin_block_forward.1} parent=0 // pred_fallthru
    _
  %v50 = vld [vmem:[%s0] sm:$0xff]
  %v51 = vld [vmem:[%s0 + $0x8] sm:$0xff]
  %v52 = vld [vmem:[%s0 + $0x10] sm:$0xff]
  %v53 = vld [vmem:[%s0 + $0x18] sm:$0xff]
  %v54 = vld [vmem:[%s0 + $0x20] sm:$0xff]
  %v55 = vld [vmem:[%s0 + $0x28] sm:$0xff]
  %v56 = vld [vmem:[%s0 + $0x30] sm:$0xff]
  %v57 = vld [vmem:[%s0 + $0x38] sm:$0xff]
  %v58 = vld [vmem:[%s0 + $0x40] sm:$0xff]
  %v59 = vld [vmem:[%s0 + $0x48] sm:$0xff]
  %v60 = vld [vmem:[%s0 + $0x50] sm:$0xff]
  %v61 = vld [vmem:[%s0 + $0x58] sm:$0xff]
  %v62 = vld [vmem:[%s0 + $0x60] sm:$0xff]
  %v63 = vld [vmem:[%s0 + $0x68] sm:$0xff]
  %v64 = vld [vmem:[%s0 + $0x70] sm:$0xff]
  %v65 = vld [vmem:[%s0 + $0x78] sm:$0xff]
  %v66 = vld [vmem:[%s3] sm:$0xff]
  %v67 = vld [vmem:[%s3 + $0x8] sm:$0xff]
  %v68 = vld [vmem:[%s3 + $0x10] sm:$0xff]
  %v69 = vld [vmem:[%s3 + $0x18] sm:$0xff]
  %v70 = vld [vmem:[%s4] sm:$0x1]
  %v72 = vlaneseq
  %v73 = vshrl.u32 %v72, 7
  %v74 = vsub.s32 0, %v73
  %v75 = vrot.slane %v70, %v74
  %vm77 = vcmask 261120
  %v79 = vsel %vm77, %v50, 0
  %v82 = vsel %vm77, %v51, 0
  %v85 = vsel %vm77, %v52, 0
  %v88 = vsel %vm77, %v53, 0
  %v91 = vsel %vm77, %v54, 0
  %v94 = vsel %vm77, %v55, 0
  %v97 = vsel %vm77, %v56, 0
  %v100 = vsel %vm77, %v57, 0
  %v103 = vsel %vm77, %v58, 0
  %v106 = vsel %vm77, %v59, 0
  %v109 = vsel %vm77, %v60, 0
  %v112 = vsel %vm77, %v61, 0
  %v115 = vsel %vm77, %v62, 0
  %v118 = vsel %vm77, %v63, 0
  %v121 = vsel %vm77, %v64, 0
  %v124 = vsel %vm77, %v65, 0
  %126 = vmatprep.subr.mxu0 0.0
  %127 = vmatpush1.msra.mxu0 %v66
  %128 = vmatprep.subr.mxu0 0.0
  %129 = vmatpush1.msra.mxu0 %v67
  %130 = vmatprep.subr.mxu0 0.0
  %131 = vmatpush1.msra.mxu0 %v68
  %132 = vmatprep.subr.mxu0 0.0
  %133 = vmatpush1.msra.mxu0 %v69
  %134 = vmatprep.subr.mxu0 0.0
  %135 = vmatpush1.msra.mxu0 0.0
  %136 = vmatprep.subr.mxu0 0.0
  %137 = vmatpush1.msra.mxu0 0.0
  %138 = vmatprep.subr.mxu0 0.0
  %139 = vmatpush1.msra.mxu0 0.0
  %140 = vmatprep.subr.mxu0 0.0
  %141 = vmatpush1.msra.mxu0 0.0
  %142 = vmatprep.subr.mxu0 0.0
  %143 = vmatpush1.msra.mxu0 0.0
  %144 = vmatprep.subr.mxu0 0.0
  %145 = vmatpush1.msra.mxu0 0.0
  %146 = vmatprep.subr.mxu0 0.0
  %147 = vmatpush1.msra.mxu0 0.0
  %148 = vmatprep.subr.mxu0 0.0
  %149 = vmatpush1.msra.mxu0 0.0
  %150 = vmatprep.subr.mxu0 0.0
  %151 = vmatpush1.msra.mxu0 0.0
  %152 = vmatprep.subr.mxu0 0.0
  %153 = vmatpush1.msra.mxu0 0.0
  %154 = vmatprep.subr.mxu0 0.0
  %155 = vmatpush1.msra.mxu0 0.0
  %156 = vmatprep.subr.mxu0 0.0
  %157 = vmatpush1.msra.mxu0 0.0
  %158 = vmatprep.subr.mxu0 0.0
  %159 = vmatpush1.msra.mxu0 0.0
  %160 = vmatprep.subr.mxu0 0.0
  %161 = vmatpush1.msra.mxu0 0.0
  %162 = vmatprep.subr.mxu0 0.0
  %163 = vmatpush1.msra.mxu0 0.0
  %164 = vmatprep.subr.mxu0 0.0
  %165 = vmatpush1.msra.mxu0 0.0
  %166 = vmatprep.subr.mxu0 0.0
  %167 = vmatpush1.msra.mxu0 0.0
  %168 = vmatprep.subr.mxu0 0.0
  %169 = vmatpush1.msra.mxu0 0.0
  %170 = vmatprep.subr.mxu0 0.0
  %171 = vmatpush1.msra.mxu0 0.0
  %172 = vmatprep.subr.mxu0 0.0
  %173 = vmatpush1.msra.mxu0 0.0
  %174 = vmatprep.subr.mxu0 0.0
  %175 = vmatpush1.msra.mxu0 0.0
  %176 = vmatprep.subr.mxu0 0.0
  %177 = vmatpush1.msra.mxu0 0.0
  %178 = vmatprep.subr.mxu0 0.0
  %179 = vmatpush1.msra.mxu0 0.0
  %180 = vmatprep.subr.mxu0 0.0
  %181 = vmatpush1.msra.mxu0 0.0
  %182 = vmatprep.subr.mxu0 0.0
  %183 = vmatpush1.msra.mxu0 0.0
  %184 = vmatprep.subr.mxu0 0.0
  %185 = vmatpush1.msra.mxu0 0.0
  %186 = vmatprep.subr.mxu0 0.0
  %187 = vmatpush1.msra.mxu0 0.0
  %188 = vmatprep.subr.mxu0 0.0
  %189 = vmatpush1.msra.mxu0 0.0
  %190 = vmatprep.mubr.f32.mxu0 0.0
  %191 = vmatmul.mubr.f32.gmra.mrb[0].mxu0 %v79
  %v192 = vpop.f32.mrb[0].mxu0
  %v193 = vadd.f32 %v75, %v192
  %v194 = vpop.f32.mrb[0].mxu0
  %195 = vmatprep.mubr.f32.mxu0 0.0
  %196 = vmatmul.mubr.f32.gmra.mrb[0].mxu0 %v82
  %v197 = vpop.f32.mrb[0].mxu0
  %v198 = vadd.f32 %v75, %v197
  %v199 = vpop.f32.mrb[0].mxu0
  %200 = vmatprep.mubr.f32.mxu0 0.0
  %201 = vmatmul.mubr.f32.gmra.mrb[0].mxu0 %v85
  %v202 = vpop.f32.mrb[0].mxu0
  %v203 = vadd.f32 %v75, %v202
  %v204 = vpop.f32.mrb[0].mxu0
  %205 = vmatprep.mubr.f32.mxu0 0.0
  %206 = vmatmul.mubr.f32.gmra.mrb[0].mxu0 %v88
  %v207 = vpop.f32.mrb[0].mxu0
  %v208 = vadd.f32 %v75, %v207
  %v209 = vpop.f32.mrb[0].mxu0
  %210 = vmatprep.mubr.f32.mxu0 0.0
  %211 = vmatmul.mubr.f32.gmra.mrb[0].mxu0 %v91
  %v212 = vpop.f32.mrb[0].mxu0
  %v213 = vadd.f32 %v75, %v212
  %v214 = vpop.f32.mrb[0].mxu0
  %215 = vmatprep.mubr.f32.mxu0 0.0
  %216 = vmatmul.mubr.f32.gmra.mrb[0].mxu0 %v94
  %v217 = vpop.f32.mrb[0].mxu0
  %v218 = vadd.f32 %v75, %v217
  %v219 = vpop.f32.mrb[0].mxu0
  %220 = vmatprep.mubr.f32.mxu0 0.0
  %221 = vmatmul.mubr.f32.gmra.mrb[0].mxu0 %v97
  %v222 = vpop.f32.mrb[0].mxu0
  %v223 = vadd.f32 %v75, %v222
  %v224 = vpop.f32.mrb[0].mxu0
  %225 = vmatprep.mubr.f32.mxu0 0.0
  %226 = vmatmul.mubr.f32.gmra.mrb[0].mxu0 %v100
  %v227 = vpop.f32.mrb[0].mxu0
  %v228 = vadd.f32 %v75, %v227
  %v229 = vpop.f32.mrb[0].mxu0
  %230 = vmatprep.mubr.f32.mxu0 0.0
  %231 = vmatmul.mubr.f32.gmra.mrb[0].mxu0 %v103
  %v232 = vpop.f32.mrb[0].mxu0
  %v233 = vadd.f32 %v75, %v232
  %v234 = vpop.f32.mrb[0].mxu0
  %235 = vmatprep.mubr.f32.mxu0 0.0
  %236 = vmatmul.mubr.f32.gmra.mrb[0].mxu0 %v106
  %v237 = vpop.f32.mrb[0].mxu0
  %v238 = vadd.f32 %v75, %v237
  %v239 = vpop.f32.mrb[0].mxu0
  %240 = vmatprep.mubr.f32.mxu0 0.0
  %241 = vmatmul.mubr.f32.gmra.mrb[0].mxu0 %v109
  %v242 = vpop.f32.mrb[0].mxu0
  %v243 = vadd.f32 %v75, %v242
  %v244 = vpop.f32.mrb[0].mxu0
  %245 = vmatprep.mubr.f32.mxu0 0.0
  %246 = vmatmul.mubr.f32.gmra.mrb[0].mxu0 %v112
  %v247 = vpop.f32.mrb[0].mxu0
  %v248 = vadd.f32 %v75, %v247
  %v249 = vpop.f32.mrb[0].mxu0
  %250 = vmatprep.mubr.f32.mxu0 0.0
  %251 = vmatmul.mubr.f32.gmra.mrb[0].mxu0 %v115
  %v252 = vpop.f32.mrb[0].mxu0
  %v253 = vadd.f32 %v75, %v252
  %v254 = vpop.f32.mrb[0].mxu0
  %255 = vmatprep.mubr.f32.mxu0 0.0
  %256 = vmatmul.mubr.f32.gmra.mrb[0].mxu0 %v118
  %v257 = vpop.f32.mrb[0].mxu0
  %v258 = vadd.f32 %v75, %v257
  %v259 = vpop.f32.mrb[0].mxu0
  %260 = vmatprep.mubr.f32.mxu0 0.0
  %261 = vmatmul.mubr.f32.gmra.mrb[0].mxu0 %v121
  %v262 = vpop.f32.mrb[0].mxu0
  %v263 = vadd.f32 %v75, %v262
  %v264 = vpop.f32.mrb[0].mxu0
  %265 = vmatprep.mubr.f32.mxu0 0.0
  %266 = vmatmul.mubr.f32.gmra.mrb[0].mxu0 %v124
  %v267 = vpop.f32.mrb[0].mxu0
  %v268 = vadd.f32 %v75, %v267
  %v269 = vpop.f32.mrb[0].mxu0
  %270 = vdwg.mxu0
  %v271 = vld [vmem:[%s2] sm:$0x1]
  %v272 = vmul.f32 %v193, %v193
  %v273 = vmul.f32 %v198, %v198
  %v274 = vmul.f32 %v203, %v203
  %v275 = vmul.f32 %v208, %v208
  %v276 = vmul.f32 %v213, %v213
  %v277 = vmul.f32 %v218, %v218
  %v278 = vmul.f32 %v223, %v223
  %v279 = vmul.f32 %v228, %v228
  %v280 = vmul.f32 %v233, %v233
  %v281 = vmul.f32 %v238, %v238
  %v282 = vmul.f32 %v243, %v243
  %v283 = vmul.f32 %v248, %v248
  %v284 = vmul.f32 %v253, %v253
  %v285 = vmul.f32 %v258, %v258
  %v286 = vmul.f32 %v263, %v263
  %v287 = vmul.f32 %v268, %v268
  %vm288 = vcmask 64512
  %v289 = vsel %vm288, %v272, 0.0
  %290 = vadd.xlane.f32.xlu0 %v289
  %v291 = vpop.xlane.xlu0 %290
  %v292 = vsel %vm288, %v273, 0.0
  %293 = vadd.xlane.f32.xlu0 %v292
  %v294 = vpop.xlane.xlu0 %293
  %v295 = vsel %vm288, %v274, 0.0
  %296 = vadd.xlane.f32.xlu0 %v295
  %v297 = vpop.xlane.xlu0 %296
  %v298 = vsel %vm288, %v275, 0.0
  %299 = vadd.xlane.f32.xlu0 %v298
  %v300 = vpop.xlane.xlu0 %299
  %v301 = vsel %vm288, %v276, 0.0
  %302 = vadd.xlane.f32.xlu0 %v301
  %v303 = vpop.xlane.xlu0 %302
  %v304 = vsel %vm288, %v277, 0.0
  %305 = vadd.xlane.f32.xlu0 %v304
  %v306 = vpop.xlane.xlu0 %305
  %v307 = vsel %vm288, %v278, 0.0
  %308 = vadd.xlane.f32.xlu0 %v307
  %v309 = vpop.xlane.xlu0 %308
  %v310 = vsel %vm288, %v279, 0.0
  %311 = vadd.xlane.f32.xlu0 %v310
  %v312 = vpop.xlane.xlu0 %311
  %v313 = vsel %vm288, %v280, 0.0
  %314 = vadd.xlane.f32.xlu0 %v313
  %v315 = vpop.xlane.xlu0 %314
  %v316 = vsel %vm288, %v281, 0.0
  %317 = vadd.xlane.f32.xlu0 %v316
  %v318 = vpop.xlane.xlu0 %317
  %v319 = vsel %vm288, %v282, 0.0
  %320 = vadd.xlane.f32.xlu0 %v319
  %v321 = vpop.xlane.xlu0 %320
  %v322 = vsel %vm288, %v283, 0.0
  %323 = vadd.xlane.f32.xlu0 %v322
  %v324 = vpop.xlane.xlu0 %323
  %v325 = vsel %vm288, %v284, 0.0
  %326 = vadd.xlane.f32.xlu0 %v325
  %v327 = vpop.xlane.xlu0 %326
  %v328 = vsel %vm288, %v285, 0.0
  %329 = vadd.xlane.f32.xlu0 %v328
  %v330 = vpop.xlane.xlu0 %329
  %v331 = vsel %vm288, %v286, 0.0
  %332 = vadd.xlane.f32.xlu0 %v331
  %v333 = vpop.xlane.xlu0 %332
  %v334 = vsel %vm288, %v287, 0.0
  %335 = vadd.xlane.f32.xlu0 %v334
  %v336 = vpop.xlane.xlu0 %335
  %v337 = vrsqrt.pop %v291
  %v338 = vmul.f32 %v291, %v337
  %vm339 = vcmp.eq.f32.partialorder %v291, inf
  %v340 = vsel %vm339, %v291, %v338
  %vm341 = vcmp.eq.f32.partialorder %v291, 0.0
  %v342 = vand.u32 %v291, 2147483648
  %v343 = vsel %vm341, %v342, %v340
  %v344 = vrsqrt.pop %v294
  %v345 = vmul.f32 %v294, %v344
  %vm346 = vcmp.eq.f32.partialorder %v294, inf
  %v347 = vsel %vm346, %v294, %v345
  %vm348 = vcmp.eq.f32.partialorder %v294, 0.0
  %v349 = vand.u32 %v294, 2147483648
  %v350 = vsel %vm348, %v349, %v347
  %v351 = vrsqrt.pop %v297
  %v352 = vmul.f32 %v297, %v351
  %vm353 = vcmp.eq.f32.partialorder %v297, inf
  %v354 = vsel %vm353, %v297, %v352
  %vm355 = vcmp.eq.f32.partialorder %v297, 0.0
  %v356 = vand.u32 %v297, 2147483648
  %v357 = vsel %vm355, %v356, %v354
  %v358 = vrsqrt.pop %v300
  %v359 = vmul.f32 %v300, %v358
  %vm360 = vcmp.eq.f32.partialorder %v300, inf
  %v361 = vsel %vm360, %v300, %v359
  %vm362 = vcmp.eq.f32.partialorder %v300, 0.0
  %v363 = vand.u32 %v300, 2147483648
  %v364 = vsel %vm362, %v363, %v361
  %v365 = vrsqrt.pop %v303
  %v366 = vmul.f32 %v303, %v365
  %vm367 = vcmp.eq.f32.partialorder %v303, inf
  %v368 = vsel %vm367, %v303, %v366
  %vm369 = vcmp.eq.f32.partialorder %v303, 0.0
  %v370 = vand.u32 %v303, 2147483648
  %v371 = vsel %vm369, %v370, %v368
  %v372 = vrsqrt.pop %v306
  %v373 = vmul.f32 %v306, %v372
  %vm374 = vcmp.eq.f32.partialorder %v306, inf
  %v375 = vsel %vm374, %v306, %v373
  %vm376 = vcmp.eq.f32.partialorder %v306, 0.0
  %v377 = vand.u32 %v306, 2147483648
  %v378 = vsel %vm376, %v377, %v375
  %v379 = vrsqrt.pop %v309
  %v380 = vmul.f32 %v309, %v379
  %vm381 = vcmp.eq.f32.partialorder %v309, inf
  %v382 = vsel %vm381, %v309, %v380
  %vm383 = vcmp.eq.f32.partialorder %v309, 0.0
  %v384 = vand.u32 %v309, 2147483648
  %v385 = vsel %vm383, %v384, %v382
  %v386 = vrsqrt.pop %v312
  %v387 = vmul.f32 %v312, %v386
  %vm388 = vcmp.eq.f32.partialorder %v312, inf
  %v389 = vsel %vm388, %v312, %v387
  %vm390 = vcmp.eq.f32.partialorder %v312, 0.0
  %v391 = vand.u32 %v312, 2147483648
  %v392 = vsel %vm390, %v391, %v389
  %v393 = vrsqrt.pop %v315
  %v394 = vmul.f32 %v315, %v393
  %vm395 = vcmp.eq.f32.partialorder %v315, inf
  %v396 = vsel %vm395, %v315, %v394
  %vm397 = vcmp.eq.f32.partialorder %v315, 0.0
  %v398 = vand.u32 %v315, 2147483648
  %v399 = vsel %vm397, %v398, %v396
  %v400 = vrsqrt.pop %v318
  %v401 = vmul.f32 %v318, %v400
  %vm402 = vcmp.eq.f32.partialorder %v318, inf
  %v403 = vsel %vm402, %v318, %v401
  %vm404 = vcmp.eq.f32.partialorder %v318, 0.0
  %v405 = vand.u32 %v318, 2147483648
  %v406 = vsel %vm404, %v405, %v403
  %v407 = vrsqrt.pop %v321
  %v408 = vmul.f32 %v321, %v407
  %vm409 = vcmp.eq.f32.partialorder %v321, inf
  %v410 = vsel %vm409, %v321, %v408
  %vm411 = vcmp.eq.f32.partialorder %v321, 0.0
  %v412 = vand.u32 %v321, 2147483648
  %v413 = vsel %vm411, %v412, %v410
  %v414 = vrsqrt.pop %v324
  %v415 = vmul.f32 %v324, %v414
  %vm416 = vcmp.eq.f32.partialorder %v324, inf
  %v417 = vsel %vm416, %v324, %v415
  %vm418 = vcmp.eq.f32.partialorder %v324, 0.0
  %v419 = vand.u32 %v324, 2147483648
  %v420 = vsel %vm418, %v419, %v417
  %v421 = vrsqrt.pop %v327
  %v422 = vmul.f32 %v327, %v421
  %vm423 = vcmp.eq.f32.partialorder %v327, inf
  %v424 = vsel %vm423, %v327, %v422
  %vm425 = vcmp.eq.f32.partialorder %v327, 0.0
  %v426 = vand.u32 %v327, 2147483648
  %v427 = vsel %vm425, %v426, %v424
  %v428 = vrsqrt.pop %v330
  %v429 = vmul.f32 %v330, %v428
  %vm430 = vcmp.eq.f32.partialorder %v330, inf
  %v431 = vsel %vm430, %v330, %v429
  %vm432 = vcmp.eq.f32.partialorder %v330, 0.0
  %v433 = vand.u32 %v330, 2147483648
  %v434 = vsel %vm432, %v433, %v431
  %v435 = vrsqrt.pop %v333
  %v436 = vmul.f32 %v333, %v435
  %vm437 = vcmp.eq.f32.partialorder %v333, inf
  %v438 = vsel %vm437, %v333, %v436
  %vm439 = vcmp.eq.f32.partialorder %v333, 0.0
  %v440 = vand.u32 %v333, 2147483648
  %v441 = vsel %vm439, %v440, %v438
  %v442 = vrsqrt.pop %v336
  %v443 = vmul.f32 %v336, %v442
  %vm444 = vcmp.eq.f32.partialorder %v336, inf
  %v445 = vsel %vm444, %v336, %v443
  %vm446 = vcmp.eq.f32.partialorder %v336, 0.0
  %v447 = vand.u32 %v336, 2147483648
  %v448 = vsel %vm446, %v447, %v445
  %v449 = vmax.f32 %v343, 1e-12
  %v450 = vmax.f32 %v350, 1e-12
  %v451 = vmax.f32 %v357, 1e-12
  %v452 = vmax.f32 %v364, 1e-12
  %v453 = vmax.f32 %v371, 1e-12
  %v454 = vmax.f32 %v378, 1e-12
  %v455 = vmax.f32 %v385, 1e-12
  %v456 = vmax.f32 %v392, 1e-12
  %v457 = vmax.f32 %v399, 1e-12
  %v458 = vmax.f32 %v406, 1e-12
  %v459 = vmax.f32 %v413, 1e-12
  %v460 = vmax.f32 %v420, 1e-12
  %v461 = vmax.f32 %v427, 1e-12
  %v462 = vmax.f32 %v434, 1e-12
  %v463 = vmax.f32 %v441, 1e-12
  %v464 = vmax.f32 %v448, 1e-12
  %v466 = vlaneseq
  %v467 = vshrl.u32 %v466, 7
  %v468 = vsub.s32 0, %v467
  %v469 = vrot.slane %v271, %v468
  %v471 = vrcp.pop %v449
  %v472 = vmul.f32 %v469, %v471
  %v473 = vrcp.pop %v450
  %v474 = vmul.f32 %v469, %v473
  %v475 = vrcp.pop %v451
  %v476 = vmul.f32 %v469, %v475
  %v477 = vrcp.pop %v452
  %v478 = vmul.f32 %v469, %v477
  %v479 = vrcp.pop %v453
  %v480 = vmul.f32 %v469, %v479
  %v481 = vrcp.pop %v454
  %v482 = vmul.f32 %v469, %v481
  %v483 = vrcp.pop %v455
  %v484 = vmul.f32 %v469, %v483
  %v485 = vrcp.pop %v456
  %v486 = vmul.f32 %v469, %v485
  %v487 = vrcp.pop %v457
  %v488 = vmul.f32 %v469, %v487
  %v489 = vrcp.pop %v458
  %v490 = vmul.f32 %v469, %v489
  %v491 = vrcp.pop %v459
  %v492 = vmul.f32 %v469, %v491
  %v493 = vrcp.pop %v460
  %v494 = vmul.f32 %v469, %v493
  %v495 = vrcp.pop %v461
  %v496 = vmul.f32 %v469, %v495
  %v497 = vrcp.pop %v462
  %v498 = vmul.f32 %v469, %v497
  %v499 = vrcp.pop %v463
  %v500 = vmul.f32 %v469, %v499
  %v501 = vrcp.pop %v464
  %v502 = vmul.f32 %v469, %v501
  %v503 = vmul.f32 %v193, %v472
  %v504 = vmul.f32 %v198, %v474
  %v505 = vmul.f32 %v203, %v476
  %v506 = vmul.f32 %v208, %v478
  %v507 = vmul.f32 %v213, %v480
  %v508 = vmul.f32 %v218, %v482
  %v509 = vmul.f32 %v223, %v484
  %v510 = vmul.f32 %v228, %v486
  %v511 = vmul.f32 %v233, %v488
  %v512 = vmul.f32 %v238, %v490
  %v513 = vmul.f32 %v243, %v492
  %v514 = vmul.f32 %v248, %v494
  %v515 = vmul.f32 %v253, %v496
  %v516 = vmul.f32 %v258, %v498
  %v517 = vmul.f32 %v263, %v500
  %v518 = vmul.f32 %v268, %v502
  %535 = vrot.lane.b32.xlu0 %v272, 96
  %v536 = vpop.permute.xlu0 %535
  %537 = vrot.lane.b32.xlu0 %v273, 96
  %v538 = vpop.permute.xlu0 %537
  %539 = vrot.lane.b32.xlu0 %v274, 96
  %v540 = vpop.permute.xlu0 %539
  %541 = vrot.lane.b32.xlu0 %v275, 96
  %v542 = vpop.permute.xlu0 %541
  %543 = vrot.lane.b32.xlu0 %v276, 96
  %v544 = vpop.permute.xlu0 %543
  %545 = vrot.lane.b32.xlu0 %v277, 96
  %v546 = vpop.permute.xlu0 %545
  %547 = vrot.lane.b32.xlu0 %v278, 96
  %v548 = vpop.permute.xlu0 %547
  %549 = vrot.lane.b32.xlu0 %v279, 96
  %v550 = vpop.permute.xlu0 %549
  %551 = vrot.lane.b32.xlu0 %v280, 96
  %v552 = vpop.permute.xlu0 %551
  %553 = vrot.lane.b32.xlu0 %v281, 96
  %v554 = vpop.permute.xlu0 %553
  %555 = vrot.lane.b32.xlu0 %v282, 96
  %v556 = vpop.permute.xlu0 %555
  %557 = vrot.lane.b32.xlu0 %v283, 96
  %v558 = vpop.permute.xlu0 %557
  %559 = vrot.lane.b32.xlu0 %v284, 96
  %v560 = vpop.permute.xlu0 %559
  %561 = vrot.lane.b32.xlu0 %v285, 96
  %v562 = vpop.permute.xlu0 %561
  %563 = vrot.lane.b32.xlu0 %v286, 96
  %v564 = vpop.permute.xlu0 %563
  %565 = vrot.lane.b32.xlu0 %v287, 96
  %v566 = vpop.permute.xlu0 %565
  %v583 = vsel %vm288, %v536, 0.0
  %584 = vadd.xlane.f32.xlu0 %v583
  %v585 = vpop.xlane.xlu0 %584
  %v586 = vsel %vm288, %v538, 0.0
  %587 = vadd.xlane.f32.xlu0 %v586
  %v588 = vpop.xlane.xlu0 %587
  %v589 = vsel %vm288, %v540, 0.0
  %590 = vadd.xlane.f32.xlu0 %v589
  %v591 = vpop.xlane.xlu0 %590
  %v592 = vsel %vm288, %v542, 0.0
  %593 = vadd.xlane.f32.xlu0 %v592
  %v594 = vpop.xlane.xlu0 %593
  %v595 = vsel %vm288, %v544, 0.0
  %596 = vadd.xlane.f32.xlu0 %v595
  %v597 = vpop.xlane.xlu0 %596
  %v598 = vsel %vm288, %v546, 0.0
  %599 = vadd.xlane.f32.xlu0 %v598
  %v600 = vpop.xlane.xlu0 %599
  %v601 = vsel %vm288, %v548, 0.0
  %602 = vadd.xlane.f32.xlu0 %v601
  %v603 = vpop.xlane.xlu0 %602
  %v604 = vsel %vm288, %v550, 0.0
  %605 = vadd.xlane.f32.xlu0 %v604
  %v606 = vpop.xlane.xlu0 %605
  %v607 = vsel %vm288, %v552, 0.0
  %608 = vadd.xlane.f32.xlu0 %v607
  %v609 = vpop.xlane.xlu0 %608
  %v610 = vsel %vm288, %v554, 0.0
  %611 = vadd.xlane.f32.xlu0 %v610
  %v612 = vpop.xlane.xlu0 %611
  %v613 = vsel %vm288, %v556, 0.0
  %614 = vadd.xlane.f32.xlu0 %v613
  %v615 = vpop.xlane.xlu0 %614
  %v616 = vsel %vm288, %v558, 0.0
  %617 = vadd.xlane.f32.xlu0 %v616
  %v618 = vpop.xlane.xlu0 %617
  %v619 = vsel %vm288, %v560, 0.0
  %620 = vadd.xlane.f32.xlu0 %v619
  %v621 = vpop.xlane.xlu0 %620
  %v622 = vsel %vm288, %v562, 0.0
  %623 = vadd.xlane.f32.xlu0 %v622
  %v624 = vpop.xlane.xlu0 %623
  %v625 = vsel %vm288, %v564, 0.0
  %626 = vadd.xlane.f32.xlu0 %v625
  %v627 = vpop.xlane.xlu0 %626
  %v628 = vsel %vm288, %v566, 0.0
  %629 = vadd.xlane.f32.xlu0 %v628
  %v630 = vpop.xlane.xlu0 %629
  %v631 = vrsqrt.pop %v585
  %v632 = vmul.f32 %v585, %v631
  %vm633 = vcmp.eq.f32.partialorder %v585, inf
  %v634 = vsel %vm633, %v585, %v632
  %vm635 = vcmp.eq.f32.partialorder %v585, 0.0
  %v636 = vand.u32 %v585, 2147483648
  %v637 = vsel %vm635, %v636, %v634
  %v638 = vrsqrt.pop %v588
  %v639 = vmul.f32 %v588, %v638
  %vm640 = vcmp.eq.f32.partialorder %v588, inf
  %v641 = vsel %vm640, %v588, %v639
  %vm642 = vcmp.eq.f32.partialorder %v588, 0.0
  %v643 = vand.u32 %v588, 2147483648
  %v644 = vsel %vm642, %v643, %v641
  %v645 = vrsqrt.pop %v591
  %v646 = vmul.f32 %v591, %v645
  %vm647 = vcmp.eq.f32.partialorder %v591, inf
  %v648 = vsel %vm647, %v591, %v646
  %vm649 = vcmp.eq.f32.partialorder %v591, 0.0
  %v650 = vand.u32 %v591, 2147483648
  %v651 = vsel %vm649, %v650, %v648
  %v652 = vrsqrt.pop %v594
  %v653 = vmul.f32 %v594, %v652
  %vm654 = vcmp.eq.f32.partialorder %v594, inf
  %v655 = vsel %vm654, %v594, %v653
  %vm656 = vcmp.eq.f32.partialorder %v594, 0.0
  %v657 = vand.u32 %v594, 2147483648
  %v658 = vsel %vm656, %v657, %v655
  %v659 = vrsqrt.pop %v597
  %v660 = vmul.f32 %v597, %v659
  %vm661 = vcmp.eq.f32.partialorder %v597, inf
  %v662 = vsel %vm661, %v597, %v660
  %vm663 = vcmp.eq.f32.partialorder %v597, 0.0
  %v664 = vand.u32 %v597, 2147483648
  %v665 = vsel %vm663, %v664, %v662
  %v666 = vrsqrt.pop %v600
  %v667 = vmul.f32 %v600, %v666
  %vm668 = vcmp.eq.f32.partialorder %v600, inf
  %v669 = vsel %vm668, %v600, %v667
  %vm670 = vcmp.eq.f32.partialorder %v600, 0.0
  %v671 = vand.u32 %v600, 2147483648
  %v672 = vsel %vm670, %v671, %v669
  %v673 = vrsqrt.pop %v603
  %v674 = vmul.f32 %v603, %v673
  %vm675 = vcmp.eq.f32.partialorder %v603, inf
  %v676 = vsel %vm675, %v603, %v674
  %vm677 = vcmp.eq.f32.partialorder %v603, 0.0
  %v678 = vand.u32 %v603, 2147483648
  %v679 = vsel %vm677, %v678, %v676
  %v680 = vrsqrt.pop %v606
  %v681 = vmul.f32 %v606, %v680
  %vm682 = vcmp.eq.f32.partialorder %v606, inf
  %v683 = vsel %vm682, %v606, %v681
  %vm684 = vcmp.eq.f32.partialorder %v606, 0.0
  %v685 = vand.u32 %v606, 2147483648
  %v686 = vsel %vm684, %v685, %v683
  %v687 = vrsqrt.pop %v609
  %v688 = vmul.f32 %v609, %v687
  %vm689 = vcmp.eq.f32.partialorder %v609, inf
  %v690 = vsel %vm689, %v609, %v688
  %vm691 = vcmp.eq.f32.partialorder %v609, 0.0
  %v692 = vand.u32 %v609, 2147483648
  %v693 = vsel %vm691, %v692, %v690
  %v694 = vrsqrt.pop %v612
  %v695 = vmul.f32 %v612, %v694
  %vm696 = vcmp.eq.f32.partialorder %v612, inf
  %v697 = vsel %vm696, %v612, %v695
  %vm698 = vcmp.eq.f32.partialorder %v612, 0.0
  %v699 = vand.u32 %v612, 2147483648
  %v700 = vsel %vm698, %v699, %v697
  %v701 = vrsqrt.pop %v615
  %v702 = vmul.f32 %v615, %v701
  %vm703 = vcmp.eq.f32.partialorder %v615, inf
  %v704 = vsel %vm703, %v615, %v702
  %vm705 = vcmp.eq.f32.partialorder %v615, 0.0
  %v706 = vand.u32 %v615, 2147483648
  %v707 = vsel %vm705, %v706, %v704
  %v708 = vrsqrt.pop %v618
  %v709 = vmul.f32 %v618, %v708
  %vm710 = vcmp.eq.f32.partialorder %v618, inf
  %v711 = vsel %vm710, %v618, %v709
  %vm712 = vcmp.eq.f32.partialorder %v618, 0.0
  %v713 = vand.u32 %v618, 2147483648
  %v714 = vsel %vm712, %v713, %v711
  %v715 = vrsqrt.pop %v621
  %v716 = vmul.f32 %v621, %v715
  %vm717 = vcmp.eq.f32.partialorder %v621, inf
  %v718 = vsel %vm717, %v621, %v716
  %vm719 = vcmp.eq.f32.partialorder %v621, 0.0
  %v720 = vand.u32 %v621, 2147483648
  %v721 = vsel %vm719, %v720, %v718
  %v722 = vrsqrt.pop %v624
  %v723 = vmul.f32 %v624, %v722
  %vm724 = vcmp.eq.f32.partialorder %v624, inf
  %v725 = vsel %vm724, %v624, %v723
  %vm726 = vcmp.eq.f32.partialorder %v624, 0.0
  %v727 = vand.u32 %v624, 2147483648
  %v728 = vsel %vm726, %v727, %v725
  %v729 = vrsqrt.pop %v627
  %v730 = vmul.f32 %v627, %v729
  %vm731 = vcmp.eq.f32.partialorder %v627, inf
  %v732 = vsel %vm731, %v627, %v730
  %vm733 = vcmp.eq.f32.partialorder %v627, 0.0
  %v734 = vand.u32 %v627, 2147483648
  %v735 = vsel %vm733, %v734, %v732
  %v736 = vrsqrt.pop %v630
  %v737 = vmul.f32 %v630, %v736
  %vm738 = vcmp.eq.f32.partialorder %v630, inf
  %v739 = vsel %vm738, %v630, %v737
  %vm740 = vcmp.eq.f32.partialorder %v630, 0.0
  %v741 = vand.u32 %v630, 2147483648
  %v742 = vsel %vm740, %v741, %v739
  %v743 = vmax.f32 %v637, 1e-12
  %v744 = vmax.f32 %v644, 1e-12
  %v745 = vmax.f32 %v651, 1e-12
  %v746 = vmax.f32 %v658, 1e-12
  %v747 = vmax.f32 %v665, 1e-12
  %v748 = vmax.f32 %v672, 1e-12
  %v749 = vmax.f32 %v679, 1e-12
  %v750 = vmax.f32 %v686, 1e-12
  %v751 = vmax.f32 %v693, 1e-12
  %v752 = vmax.f32 %v700, 1e-12
  %v753 = vmax.f32 %v707, 1e-12
  %v754 = vmax.f32 %v714, 1e-12
  %v755 = vmax.f32 %v721, 1e-12
  %v756 = vmax.f32 %v728, 1e-12
  %v757 = vmax.f32 %v735, 1e-12
  %v758 = vmax.f32 %v742, 1e-12
  %v759 = vrcp.pop %v743
  %v760 = vmul.f32 %v193, %v759
  %v761 = vrcp.pop %v744
  %v762 = vmul.f32 %v198, %v761
  %v763 = vrcp.pop %v745
  %v764 = vmul.f32 %v203, %v763
  %v765 = vrcp.pop %v746
  %v766 = vmul.f32 %v208, %v765
  %v767 = vrcp.pop %v747
  %v768 = vmul.f32 %v213, %v767
  %v769 = vrcp.pop %v748
  %v770 = vmul.f32 %v218, %v769
  %v771 = vrcp.pop %v749
  %v772 = vmul.f32 %v223, %v771
  %v773 = vrcp.pop %v750
  %v774 = vmul.f32 %v228, %v773
  %v775 = vrcp.pop %v751
  %v776 = vmul.f32 %v233, %v775
  %v777 = vrcp.pop %v752
  %v778 = vmul.f32 %v238, %v777
  %v779 = vrcp.pop %v753
  %v780 = vmul.f32 %v243, %v779
  %v781 = vrcp.pop %v754
  %v782 = vmul.f32 %v248, %v781
  %v783 = vrcp.pop %v755
  %v784 = vmul.f32 %v253, %v783
  %v785 = vrcp.pop %v756
  %v786 = vmul.f32 %v258, %v785
  %v787 = vrcp.pop %v757
  %v788 = vmul.f32 %v263, %v787
  %v789 = vrcp.pop %v758
  %v790 = vmul.f32 %v268, %v789
  %v791 = vld [vmem:[%s1] sm:$0xff]
  %v792 = vld [vmem:[%s1 + $0x8] sm:$0xff]
  %v793 = vld [vmem:[%s1 + $0x10] sm:$0xff]
  %v794 = vld [vmem:[%s1 + $0x18] sm:$0xff]
  %v795 = vld [vmem:[%s1 + $0x20] sm:$0xff]
  %v796 = vld [vmem:[%s1 + $0x28] sm:$0xff]
  %v797 = vld [vmem:[%s1 + $0x30] sm:$0xff]
  %v798 = vld [vmem:[%s1 + $0x38] sm:$0xff]
  %v799 = vld [vmem:[%s1 + $0x40] sm:$0xff]
  %v800 = vld [vmem:[%s1 + $0x48] sm:$0xff]
  %v801 = vld [vmem:[%s1 + $0x50] sm:$0xff]
  %v802 = vld [vmem:[%s1 + $0x58] sm:$0xff]
  %v803 = vld [vmem:[%s1 + $0x60] sm:$0xff]
  %v804 = vld [vmem:[%s1 + $0x68] sm:$0xff]
  %v805 = vld [vmem:[%s1 + $0x70] sm:$0xff]
  %v806 = vld [vmem:[%s1 + $0x78] sm:$0xff]
  %823 = vrot.lane.b32.xlu0 %v760, 96
  %v824 = vpop.permute.xlu0 %823
  %825 = vrot.lane.b32.xlu0 %v762, 96
  %v826 = vpop.permute.xlu0 %825
  %827 = vrot.lane.b32.xlu0 %v764, 96
  %v828 = vpop.permute.xlu0 %827
  %829 = vrot.lane.b32.xlu0 %v766, 96
  %v830 = vpop.permute.xlu0 %829
  %831 = vrot.lane.b32.xlu0 %v768, 96
  %v832 = vpop.permute.xlu0 %831
  %833 = vrot.lane.b32.xlu0 %v770, 96
  %v834 = vpop.permute.xlu0 %833
  %835 = vrot.lane.b32.xlu0 %v772, 96
  %v836 = vpop.permute.xlu0 %835
  %837 = vrot.lane.b32.xlu0 %v774, 96
  %v838 = vpop.permute.xlu0 %837
  %839 = vrot.lane.b32.xlu0 %v776, 96
  %v840 = vpop.permute.xlu0 %839
  %841 = vrot.lane.b32.xlu0 %v778, 96
  %v842 = vpop.permute.xlu0 %841
  %843 = vrot.lane.b32.xlu0 %v780, 96
  %v844 = vpop.permute.xlu0 %843
  %845 = vrot.lane.b32.xlu0 %v782, 96
  %v846 = vpop.permute.xlu0 %845
  %847 = vrot.lane.b32.xlu0 %v784, 96
  %v848 = vpop.permute.xlu0 %847
  %849 = vrot.lane.b32.xlu0 %v786, 96
  %v850 = vpop.permute.xlu0 %849
  %851 = vrot.lane.b32.xlu0 %v788, 96
  %v852 = vpop.permute.xlu0 %851
  %853 = vrot.lane.b32.xlu0 %v790, 96
  %v854 = vpop.permute.xlu0 %853
  %v856 = vsel %vm288, %v503, 0
  %v859 = vsel %vm288, %v504, 0
  %v862 = vsel %vm288, %v505, 0
  %v865 = vsel %vm288, %v506, 0
  %v868 = vsel %vm288, %v507, 0
  %v871 = vsel %vm288, %v508, 0
  %v874 = vsel %vm288, %v509, 0
  %v877 = vsel %vm288, %v510, 0
  %v880 = vsel %vm288, %v511, 0
  %v883 = vsel %vm288, %v512, 0
  %v886 = vsel %vm288, %v513, 0
  %v889 = vsel %vm288, %v514, 0
  %v892 = vsel %vm288, %v515, 0
  %v895 = vsel %vm288, %v516, 0
  %v898 = vsel %vm288, %v517, 0
  %v901 = vsel %vm288, %v518, 0
  %v903 = vsel %vm288, %v824, 0
  %v905 = vsel %vm288, %v826, 0
  %v907 = vsel %vm288, %v828, 0
  %v909 = vsel %vm288, %v830, 0
  %v911 = vsel %vm288, %v832, 0
  %v913 = vsel %vm288, %v834, 0
  %v915 = vsel %vm288, %v836, 0
  %v917 = vsel %vm288, %v838, 0
  %v919 = vsel %vm288, %v840, 0
  %v921 = vsel %vm288, %v842, 0
  %v923 = vsel %vm288, %v844, 0
  %v925 = vsel %vm288, %v846, 0
  %v927 = vsel %vm288, %v848, 0
  %v929 = vsel %vm288, %v850, 0
  %v931 = vsel %vm288, %v852, 0
  %v933 = vsel %vm288, %v854, 0
  %935 = vmatprep.subr.mxu0 0.0
  %936 = vmatpush1.xpose.msra.mxu0 %v903
  %937 = vmatprep.subr.mxu0 0.0
  %938 = vmatpush1.xpose.msra.mxu0 %v905
  %939 = vmatprep.subr.mxu0 0.0
  %940 = vmatpush1.xpose.msra.mxu0 %v907
  %941 = vmatprep.subr.mxu0 0.0
  %942 = vmatpush1.xpose.msra.mxu0 %v909
  %943 = vmatprep.subr.mxu0 0.0
  %944 = vmatpush1.xpose.msra.mxu0 %v911
  %945 = vmatprep.subr.mxu0 0.0
  %946 = vmatpush1.xpose.msra.mxu0 %v913
  %947 = vmatprep.subr.mxu0 0.0
  %948 = vmatpush1.xpose.msra.mxu0 %v915
  %949 = vmatprep.subr.mxu0 0.0
  %950 = vmatpush1.xpose.msra.mxu0 %v917
  %951 = vmatprep.subr.mxu0 0.0
  %952 = vmatpush1.xpose.msra.mxu0 %v919
  %953 = vmatprep.subr.mxu0 0.0
  %954 = vmatpush1.xpose.msra.mxu0 %v921
  %955 = vmatprep.subr.mxu0 0.0
  %956 = vmatpush1.xpose.msra.mxu0 %v923
  %957 = vmatprep.subr.mxu0 0.0
  %958 = vmatpush1.xpose.msra.mxu0 %v925
  %959 = vmatprep.subr.mxu0 0.0
  %960 = vmatpush1.xpose.msra.mxu0 %v927
  %961 = vmatprep.subr.mxu0 0.0
  %962 = vmatpush1.xpose.msra.mxu0 %v929
  %963 = vmatprep.subr.mxu0 0.0
  %964 = vmatpush1.xpose.msra.mxu0 %v931
  %965 = vmatprep.subr.mxu0 0.0
  %966 = vmatpush1.xpose.msra.mxu0 %v933
  %967 = vmatprep.subr.mxu0 0.0
  %968 = vmatpush1.xpose.msra.mxu0 0.0
  %969 = vmatprep.subr.mxu0 0.0
  %970 = vmatpush1.xpose.msra.mxu0 0.0
  %971 = vmatprep.subr.mxu0 0.0
  %972 = vmatpush1.xpose.msra.mxu0 0.0
  %973 = vmatprep.subr.mxu0 0.0
  %974 = vmatpush1.xpose.msra.mxu0 0.0
  %975 = vmatprep.subr.mxu0 0.0
  %976 = vmatpush1.xpose.msra.mxu0 0.0
  %977 = vmatprep.subr.mxu0 0.0
  %978 = vmatpush1.xpose.msra.mxu0 0.0
  %979 = vmatprep.subr.mxu0 0.0
  %980 = vmatpush1.xpose.msra.mxu0 0.0
  %981 = vmatprep.subr.mxu0 0.0
  %982 = vmatpush1.xpose.msra.mxu0 0.0
  %983 = vmatprep.subr.mxu0 0.0
  %984 = vmatpush1.xpose.msra.mxu0 0.0
  %985 = vmatprep.subr.mxu0 0.0
  %986 = vmatpush1.xpose.msra.mxu0 0.0
  %987 = vmatprep.subr.mxu0 0.0
  %988 = vmatpush1.xpose.msra.mxu0 0.0
  %989 = vmatprep.subr.mxu0 0.0
  %990 = vmatpush1.xpose.msra.mxu0 0.0
  %991 = vmatprep.subr.mxu0 0.0
  %992 = vmatpush1.xpose.msra.mxu0 0.0
  %993 = vmatprep.subr.mxu0 0.0
  %994 = vmatpush1.xpose.msra.mxu0 0.0
  %995 = vmatprep.subr.mxu0 0.0
  %996 = vmatpush1.xpose.msra.mxu0 0.0
  %997 = vmatprep.subr.mxu0 0.0
  %998 = vmatpush1.xpose.msra.mxu0 0.0
  %999 = vmatprep.mubr.f32.mxu0 0.0
  %1000 = vmatmul.mubr.f32.gmra.mrb[0].mxu0 %v856
  %v1001 = vpop.f32.mrb[0].mxu0
  %v1002 = vadd.f32 %v791, %v1001
  %v1003 = vpop.f32.mrb[0].mxu0
  %1004 = vmatprep.mubr.f32.mxu0 0.0
  %1005 = vmatmul.mubr.f32.gmra.mrb[0].mxu0 %v859
  %v1006 = vpop.f32.mrb[0].mxu0
  %v1007 = vadd.f32 %v792, %v1006
  %v1008 = vpop.f32.mrb[0].mxu0
  %1009 = vmatprep.mubr.f32.mxu0 0.0
  %1010 = vmatmul.mubr.f32.gmra.mrb[0].mxu0 %v862
  %v1011 = vpop.f32.mrb[0].mxu0
  %v1012 = vadd.f32 %v793, %v1011
  %v1013 = vpop.f32.mrb[0].mxu0
  %1014 = vmatprep.mubr.f32.mxu0 0.0
  %1015 = vmatmul.mubr.f32.gmra.mrb[0].mxu0 %v865
  %v1016 = vpop.f32.mrb[0].mxu0
  %v1017 = vadd.f32 %v794, %v1016
  %v1018 = vpop.f32.mrb[0].mxu0
  %1019 = vmatprep.mubr.f32.mxu0 0.0
  %1020 = vmatmul.mubr.f32.gmra.mrb[0].mxu0 %v868
  %v1021 = vpop.f32.mrb[0].mxu0
  %v1022 = vadd.f32 %v795, %v1021
  %v1023 = vpop.f32.mrb[0].mxu0
  %1024 = vmatprep.mubr.f32.mxu0 0.0
  %1025 = vmatmul.mubr.f32.gmra.mrb[0].mxu0 %v871
  %v1026 = vpop.f32.mrb[0].mxu0
  %v1027 = vadd.f32 %v796, %v1026
  %v1028 = vpop.f32.mrb[0].mxu0
  %1029 = vmatprep.mubr.f32.mxu0 0.0
  %1030 = vmatmul.mubr.f32.gmra.mrb[0].mxu0 %v874
  %v1031 = vpop.f32.mrb[0].mxu0
  %v1032 = vadd.f32 %v797, %v1031
  %v1033 = vpop.f32.mrb[0].mxu0
  %1034 = vmatprep.mubr.f32.mxu0 0.0
  %1035 = vmatmul.mubr.f32.gmra.mrb[0].mxu0 %v877
  %v1036 = vpop.f32.mrb[0].mxu0
  %v1037 = vadd.f32 %v798, %v1036
  %v1038 = vpop.f32.mrb[0].mxu0
  %1039 = vmatprep.mubr.f32.mxu0 0.0
  %1040 = vmatmul.mubr.f32.gmra.mrb[0].mxu0 %v880
  %v1041 = vpop.f32.mrb[0].mxu0
  %v1042 = vadd.f32 %v799, %v1041
  %v1043 = vpop.f32.mrb[0].mxu0
  %1044 = vmatprep.mubr.f32.mxu0 0.0
  %1045 = vmatmul.mubr.f32.gmra.mrb[0].mxu0 %v883
  %v1046 = vpop.f32.mrb[0].mxu0
  %v1047 = vadd.f32 %v800, %v1046
  %v1048 = vpop.f32.mrb[0].mxu0
  %1049 = vmatprep.mubr.f32.mxu0 0.0
  %1050 = vmatmul.mubr.f32.gmra.mrb[0].mxu0 %v886
  %v1051 = vpop.f32.mrb[0].mxu0
  %v1052 = vadd.f32 %v801, %v1051
  %v1053 = vpop.f32.mrb[0].mxu0
  %1054 = vmatprep.mubr.f32.mxu0 0.0
  %1055 = vmatmul.mubr.f32.gmra.mrb[0].mxu0 %v889
  %v1056 = vpop.f32.mrb[0].mxu0
  %v1057 = vadd.f32 %v802, %v1056
  %v1058 = vpop.f32.mrb[0].mxu0
  %1059 = vmatprep.mubr.f32.mxu0 0.0
  %1060 = vmatmul.mubr.f32.gmra.mrb[0].mxu0 %v892
  %v1061 = vpop.f32.mrb[0].mxu0
  %v1062 = vadd.f32 %v803, %v1061
  %v1063 = vpop.f32.mrb[0].mxu0
  %1064 = vmatprep.mubr.f32.mxu0 0.0
  %1065 = vmatmul.mubr.f32.gmra.mrb[0].mxu0 %v895
  %v1066 = vpop.f32.mrb[0].mxu0
  %v1067 = vadd.f32 %v804, %v1066
  %v1068 = vpop.f32.mrb[0].mxu0
  %1069 = vmatprep.mubr.f32.mxu0 0.0
  %1070 = vmatmul.mubr.f32.gmra.mrb[0].mxu0 %v898
  %v1071 = vpop.f32.mrb[0].mxu0
  %v1072 = vadd.f32 %v805, %v1071
  %v1073 = vpop.f32.mrb[0].mxu0
  %1074 = vmatprep.mubr.f32.mxu0 0.0
  %1075 = vmatmul.mubr.f32.gmra.mrb[0].mxu0 %v901
  %v1076 = vpop.f32.mrb[0].mxu0
  %v1077 = vadd.f32 %v806, %v1076
  %v1078 = vpop.f32.mrb[0].mxu0
  %1079 = vdwg.mxu0
  %1080 = vmax.xlane.f32.xlu0 %v1002
  %v1081 = vpop.xlane.xlu0 %1080
  %1082 = vmax.xlane.f32.xlu0 %v1007
  %v1083 = vpop.xlane.xlu0 %1082
  %1084 = vmax.xlane.f32.xlu0 %v1012
  %v1085 = vpop.xlane.xlu0 %1084
  %1086 = vmax.xlane.f32.xlu0 %v1017
  %v1087 = vpop.xlane.xlu0 %1086
  %1088 = vmax.xlane.f32.xlu0 %v1022
  %v1089 = vpop.xlane.xlu0 %1088
  %1090 = vmax.xlane.f32.xlu0 %v1027
  %v1091 = vpop.xlane.xlu0 %1090
  %1092 = vmax.xlane.f32.xlu0 %v1032
  %v1093 = vpop.xlane.xlu0 %1092
  %1094 = vmax.xlane.f32.xlu0 %v1037
  %v1095 = vpop.xlane.xlu0 %1094
  %1096 = vmax.xlane.f32.xlu0 %v1042
  %v1097 = vpop.xlane.xlu0 %1096
  %1098 = vmax.xlane.f32.xlu0 %v1047
  %v1099 = vpop.xlane.xlu0 %1098
  %1100 = vmax.xlane.f32.xlu0 %v1052
  %v1101 = vpop.xlane.xlu0 %1100
  %1102 = vmax.xlane.f32.xlu0 %v1057
  %v1103 = vpop.xlane.xlu0 %1102
  %1104 = vmax.xlane.f32.xlu0 %v1062
  %v1105 = vpop.xlane.xlu0 %1104
  %1106 = vmax.xlane.f32.xlu0 %v1067
  %v1107 = vpop.xlane.xlu0 %1106
  %1108 = vmax.xlane.f32.xlu0 %v1072
  %v1109 = vpop.xlane.xlu0 %1108
  %1110 = vmax.xlane.f32.xlu0 %v1077
  %v1111 = vpop.xlane.xlu0 %1110
  %v1112 = vsub.f32 %v1002, %v1081
  %v1113 = vsub.f32 %v1007, %v1083
  %v1114 = vsub.f32 %v1012, %v1085
  %v1115 = vsub.f32 %v1017, %v1087
  %v1116 = vsub.f32 %v1022, %v1089
  %v1117 = vsub.f32 %v1027, %v1091
  %v1118 = vsub.f32 %v1032, %v1093
  %v1119 = vsub.f32 %v1037, %v1095
  %v1120 = vsub.f32 %v1042, %v1097
  %v1121 = vsub.f32 %v1047, %v1099
  %v1122 = vsub.f32 %v1052, %v1101
  %v1123 = vsub.f32 %v1057, %v1103
  %v1124 = vsub.f32 %v1062, %v1105
  %v1125 = vsub.f32 %v1067, %v1107
  %v1126 = vsub.f32 %v1072, %v1109
  %v1127 = vsub.f32 %v1077, %v1111
  %v1128 = vmul.f32 %v1112, 1.442695
  %v1129 = vpow.pop %v1128
  %v1130 = vmul.f32 %v1113, 1.442695
  %v1131 = vpow.pop %v1130
  %v1132 = vmul.f32 %v1114, 1.442695
  %v1133 = vpow.pop %v1132
  %v1134 = vmul.f32 %v1115, 1.442695
  %v1135 = vpow.pop %v1134
  %v1136 = vmul.f32 %v1116, 1.442695
  %v1137 = vpow.pop %v1136
  %v1138 = vmul.f32 %v1117, 1.442695
  %v1139 = vpow.pop %v1138
  %v1140 = vmul.f32 %v1118, 1.442695
  %v1141 = vpow.pop %v1140
  %v1142 = vmul.f32 %v1119, 1.442695
  %v1143 = vpow.pop %v1142
  %v1144 = vmul.f32 %v1120, 1.442695
  %v1145 = vpow.pop %v1144
  %v1146 = vmul.f32 %v1121, 1.442695
  %v1147 = vpow.pop %v1146
  %v1148 = vmul.f32 %v1122, 1.442695
  %v1149 = vpow.pop %v1148
  %v1150 = vmul.f32 %v1123, 1.442695
  %v1151 = vpow.pop %v1150
  %v1152 = vmul.f32 %v1124, 1.442695
  %v1153 = vpow.pop %v1152
  %v1154 = vmul.f32 %v1125, 1.442695
  %v1155 = vpow.pop %v1154
  %v1156 = vmul.f32 %v1126, 1.442695
  %v1157 = vpow.pop %v1156
  %v1158 = vmul.f32 %v1127, 1.442695
  %v1159 = vpow.pop %v1158
  %1160 = vadd.xlane.f32.xlu0 %v1129
  %v1161 = vpop.xlane.xlu0 %1160
  %1162 = vadd.xlane.f32.xlu0 %v1131
  %v1163 = vpop.xlane.xlu0 %1162
  %1164 = vadd.xlane.f32.xlu0 %v1133
  %v1165 = vpop.xlane.xlu0 %1164
  %1166 = vadd.xlane.f32.xlu0 %v1135
  %v1167 = vpop.xlane.xlu0 %1166
  %1168 = vadd.xlane.f32.xlu0 %v1137
  %v1169 = vpop.xlane.xlu0 %1168
  %1170 = vadd.xlane.f32.xlu0 %v1139
  %v1171 = vpop.xlane.xlu0 %1170
  %1172 = vadd.xlane.f32.xlu0 %v1141
  %v1173 = vpop.xlane.xlu0 %1172
  %1174 = vadd.xlane.f32.xlu0 %v1143
  %v1175 = vpop.xlane.xlu0 %1174
  %1176 = vadd.xlane.f32.xlu0 %v1145
  %v1177 = vpop.xlane.xlu0 %1176
  %1178 = vadd.xlane.f32.xlu0 %v1147
  %v1179 = vpop.xlane.xlu0 %1178
  %1180 = vadd.xlane.f32.xlu0 %v1149
  %v1181 = vpop.xlane.xlu0 %1180
  %1182 = vadd.xlane.f32.xlu0 %v1151
  %v1183 = vpop.xlane.xlu0 %1182
  %1184 = vadd.xlane.f32.xlu0 %v1153
  %v1185 = vpop.xlane.xlu0 %1184
  %1186 = vadd.xlane.f32.xlu0 %v1155
  %v1187 = vpop.xlane.xlu0 %1186
  %1188 = vadd.xlane.f32.xlu0 %v1157
  %v1189 = vpop.xlane.xlu0 %1188
  %1190 = vadd.xlane.f32.xlu0 %v1159
  %v1191 = vpop.xlane.xlu0 %1190
  %v1192 = vrcp.pop %v1161
  %v1193 = vrcp.pop %v1163
  %v1194 = vrcp.pop %v1165
  %v1195 = vrcp.pop %v1167
  %v1196 = vrcp.pop %v1169
  %v1197 = vrcp.pop %v1171
  %v1198 = vrcp.pop %v1173
  %v1199 = vrcp.pop %v1175
  %v1200 = vrcp.pop %v1177
  %v1201 = vrcp.pop %v1179
  %v1202 = vrcp.pop %v1181
  %v1203 = vrcp.pop %v1183
  %v1204 = vrcp.pop %v1185
  %v1205 = vrcp.pop %v1187
  %v1206 = vrcp.pop %v1189
  %v1207 = vrcp.pop %v1191
  %v1208 = vmul.f32 %v1129, %v1192
  %v1209 = vmul.f32 %v1131, %v1193
  %v1210 = vmul.f32 %v1133, %v1194
  %v1211 = vmul.f32 %v1135, %v1195
  %v1212 = vmul.f32 %v1137, %v1196
  %v1213 = vmul.f32 %v1139, %v1197
  %v1214 = vmul.f32 %v1141, %v1198
  %v1215 = vmul.f32 %v1143, %v1199
  %v1216 = vmul.f32 %v1145, %v1200
  %v1217 = vmul.f32 %v1147, %v1201
  %v1218 = vmul.f32 %v1149, %v1202
  %v1219 = vmul.f32 %v1151, %v1203
  %v1220 = vmul.f32 %v1153, %v1204
  %v1221 = vmul.f32 %v1155, %v1205
  %v1222 = vmul.f32 %v1157, %v1206
  %v1223 = vmul.f32 %v1159, %v1207
  %1240 = vrot.lane.b32.xlu0 %v193, 64
  %v1241 = vpop.permute.xlu0 %1240
  %1242 = vrot.lane.b32.xlu0 %v198, 64
  %v1243 = vpop.permute.xlu0 %1242
  %1244 = vrot.lane.b32.xlu0 %v203, 64
  %v1245 = vpop.permute.xlu0 %1244
  %1246 = vrot.lane.b32.xlu0 %v208, 64
  %v1247 = vpop.permute.xlu0 %1246
  %1248 = vrot.lane.b32.xlu0 %v213, 64
  %v1249 = vpop.permute.xlu0 %1248
  %1250 = vrot.lane.b32.xlu0 %v218, 64
  %v1251 = vpop.permute.xlu0 %1250
  %1252 = vrot.lane.b32.xlu0 %v223, 64
  %v1253 = vpop.permute.xlu0 %1252
  %1254 = vrot.lane.b32.xlu0 %v228, 64
  %v1255 = vpop.permute.xlu0 %1254
  %1256 = vrot.lane.b32.xlu0 %v233, 64
  %v1257 = vpop.permute.xlu0 %1256
  %1258 = vrot.lane.b32.xlu0 %v238, 64
  %v1259 = vpop.permute.xlu0 %1258
  %1260 = vrot.lane.b32.xlu0 %v243, 64
  %v1261 = vpop.permute.xlu0 %1260
  %1262 = vrot.lane.b32.xlu0 %v248, 64
  %v1263 = vpop.permute.xlu0 %1262
  %1264 = vrot.lane.b32.xlu0 %v253, 64
  %v1265 = vpop.permute.xlu0 %1264
  %1266 = vrot.lane.b32.xlu0 %v258, 64
  %v1267 = vpop.permute.xlu0 %1266
  %1268 = vrot.lane.b32.xlu0 %v263, 64
  %v1269 = vpop.permute.xlu0 %1268
  %1270 = vrot.lane.b32.xlu0 %v268, 64
  %v1271 = vpop.permute.xlu0 %1270
  %1288 = vmatprep.subr.mxu0 0.0
  %1289 = vmatpush1.msra.mxu0 %v1241
  %1290 = vmatprep.subr.mxu0 0.0
  %1291 = vmatpush1.msra.mxu0 %v1243
  %1292 = vmatprep.subr.mxu0 0.0
  %1293 = vmatpush1.msra.mxu0 %v1245
  %1294 = vmatprep.subr.mxu0 0.0
  %1295 = vmatpush1.msra.mxu0 %v1247
  %1296 = vmatprep.subr.mxu0 0.0
  %1297 = vmatpush1.msra.mxu0 %v1249
  %1298 = vmatprep.subr.mxu0 0.0
  %1299 = vmatpush1.msra.mxu0 %v1251
  %1300 = vmatprep.subr.mxu0 0.0
  %1301 = vmatpush1.msra.mxu0 %v1253
  %1302 = vmatprep.subr.mxu0 0.0
  %1303 = vmatpush1.msra.mxu0 %v1255
  %1304 = vmatprep.subr.mxu0 0.0
  %1305 = vmatpush1.msra.mxu0 %v1257
  %1306 = vmatprep.subr.mxu0 0.0
  %1307 = vmatpush1.msra.mxu0 %v1259
  %1308 = vmatprep.subr.mxu0 0.0
  %1309 = vmatpush1.msra.mxu0 %v1261
  %1310 = vmatprep.subr.mxu0 0.0
  %1311 = vmatpush1.msra.mxu0 %v1263
  %1312 = vmatprep.subr.mxu0 0.0
  %1313 = vmatpush1.msra.mxu0 %v1265
  %1314 = vmatprep.subr.mxu0 0.0
  %1315 = vmatpush1.msra.mxu0 %v1267
  %1316 = vmatprep.subr.mxu0 0.0
  %1317 = vmatpush1.msra.mxu0 %v1269
  %1318 = vmatprep.subr.mxu0 0.0
  %1319 = vmatpush1.msra.mxu0 %v1271
  %1320 = vmatprep.subr.mxu0 0.0
  %1321 = vmatpush1.msra.mxu0 0.0
  %1322 = vmatprep.subr.mxu0 0.0
  %1323 = vmatpush1.msra.mxu0 0.0
  %1324 = vmatprep.subr.mxu0 0.0
  %1325 = vmatpush1.msra.mxu0 0.0
  %1326 = vmatprep.subr.mxu0 0.0
  %1327 = vmatpush1.msra.mxu0 0.0
  %1328 = vmatprep.subr.mxu0 0.0
  %1329 = vmatpush1.msra.mxu0 0.0
  %1330 = vmatprep.subr.mxu0 0.0
  %1331 = vmatpush1.msra.mxu0 0.0
  %1332 = vmatprep.subr.mxu0 0.0
  %1333 = vmatpush1.msra.mxu0 0.0
  %1334 = vmatprep.subr.mxu0 0.0
  %1335 = vmatpush1.msra.mxu0 0.0
  %1336 = vmatprep.subr.mxu0 0.0
  %1337 = vmatpush1.msra.mxu0 0.0
  %1338 = vmatprep.subr.mxu0 0.0
  %1339 = vmatpush1.msra.mxu0 0.0
  %1340 = vmatprep.subr.mxu0 0.0
  %1341 = vmatpush1.msra.mxu0 0.0
  %1342 = vmatprep.subr.mxu0 0.0
  %1343 = vmatpush1.msra.mxu0 0.0
  %1344 = vmatprep.subr.mxu0 0.0
  %1345 = vmatpush1.msra.mxu0 0.0
  %1346 = vmatprep.subr.mxu0 0.0
  %1347 = vmatpush1.msra.mxu0 0.0
  %1348 = vmatprep.subr.mxu0 0.0
  %1349 = vmatpush1.msra.mxu0 0.0
  %1350 = vmatprep.subr.mxu0 0.0
  %1351 = vmatpush1.msra.mxu0 0.0
  %1352 = vmatprep.mubr.f32.mxu0 0.0
  %1353 = vmatmul.mubr.f32.gmra.mrb[0].mxu0 %v1208
  %v1354 = vpop.f32.mrb[0].mxu0
  %v1355 = vadd.f32 0.0, %v1354
  %v1356 = vpop.f32.mrb[0].mxu0
  %1357 = vmatprep.mubr.f32.mxu0 0.0
  %1358 = vmatmul.mubr.f32.gmra.mrb[0].mxu0 %v1209
  %v1359 = vpop.f32.mrb[0].mxu0
  %v1360 = vadd.f32 0.0, %v1359
  %v1361 = vpop.f32.mrb[0].mxu0
  %1362 = vmatprep.mubr.f32.mxu0 0.0
  %1363 = vmatmul.mubr.f32.gmra.mrb[0].mxu0 %v1210
  %v1364 = vpop.f32.mrb[0].mxu0
  %v1365 = vadd.f32 0.0, %v1364
  %v1366 = vpop.f32.mrb[0].mxu0
  %1367 = vmatprep.mubr.f32.mxu0 0.0
  %1368 = vmatmul.mubr.f32.gmra.mrb[0].mxu0 %v1211
  %v1369 = vpop.f32.mrb[0].mxu0
  %v1370 = vadd.f32 0.0, %v1369
  %v1371 = vpop.f32.mrb[0].mxu0
  %1372 = vmatprep.mubr.f32.mxu0 0.0
  %1373 = vmatmul.mubr.f32.gmra.mrb[0].mxu0 %v1212
  %v1374 = vpop.f32.mrb[0].mxu0
  %v1375 = vadd.f32 0.0, %v1374
  %v1376 = vpop.f32.mrb[0].mxu0
  %1377 = vmatprep.mubr.f32.mxu0 0.0
  %1378 = vmatmul.mubr.f32.gmra.mrb[0].mxu0 %v1213
  %v1379 = vpop.f32.mrb[0].mxu0
  %v1380 = vadd.f32 0.0, %v1379
  %v1381 = vpop.f32.mrb[0].mxu0
  %1382 = vmatprep.mubr.f32.mxu0 0.0
  %1383 = vmatmul.mubr.f32.gmra.mrb[0].mxu0 %v1214
  %v1384 = vpop.f32.mrb[0].mxu0
  %v1385 = vadd.f32 0.0, %v1384
  %v1386 = vpop.f32.mrb[0].mxu0
  %1387 = vmatprep.mubr.f32.mxu0 0.0
  %1388 = vmatmul.mubr.f32.gmra.mrb[0].mxu0 %v1215
  %v1389 = vpop.f32.mrb[0].mxu0
  %v1390 = vadd.f32 0.0, %v1389
  %v1391 = vpop.f32.mrb[0].mxu0
  %1392 = vmatprep.mubr.f32.mxu0 0.0
  %1393 = vmatmul.mubr.f32.gmra.mrb[0].mxu0 %v1216
  %v1394 = vpop.f32.mrb[0].mxu0
  %v1395 = vadd.f32 0.0, %v1394
  %v1396 = vpop.f32.mrb[0].mxu0
  %1397 = vmatprep.mubr.f32.mxu0 0.0
  %1398 = vmatmul.mubr.f32.gmra.mrb[0].mxu0 %v1217
  %v1399 = vpop.f32.mrb[0].mxu0
  %v1400 = vadd.f32 0.0, %v1399
  %v1401 = vpop.f32.mrb[0].mxu0
  %1402 = vmatprep.mubr.f32.mxu0 0.0
  %1403 = vmatmul.mubr.f32.gmra.mrb[0].mxu0 %v1218
  %v1404 = vpop.f32.mrb[0].mxu0
  %v1405 = vadd.f32 0.0, %v1404
  %v1406 = vpop.f32.mrb[0].mxu0
  %1407 = vmatprep.mubr.f32.mxu0 0.0
  %1408 = vmatmul.mubr.f32.gmra.mrb[0].mxu0 %v1219
  %v1409 = vpop.f32.mrb[0].mxu0
  %v1410 = vadd.f32 0.0, %v1409
  %v1411 = vpop.f32.mrb[0].mxu0
  %1412 = vmatprep.mubr.f32.mxu0 0.0
  %1413 = vmatmul.mubr.f32.gmra.mrb[0].mxu0 %v1220
  %v1414 = vpop.f32.mrb[0].mxu0
  %v1415 = vadd.f32 0.0, %v1414
  %v1416 = vpop.f32.mrb[0].mxu0
  %1417 = vmatprep.mubr.f32.mxu0 0.0
  %1418 = vmatmul.mubr.f32.gmra.mrb[0].mxu0 %v1221
  %v1419 = vpop.f32.mrb[0].mxu0
  %v1420 = vadd.f32 0.0, %v1419
  %v1421 = vpop.f32.mrb[0].mxu0
  %1422 = vmatprep.mubr.f32.mxu0 0.0
  %1423 = vmatmul.mubr.f32.gmra.mrb[0].mxu0 %v1222
  %v1424 = vpop.f32.mrb[0].mxu0
  %v1425 = vadd.f32 0.0, %v1424
  %v1426 = vpop.f32.mrb[0].mxu0
  %1427 = vmatprep.mubr.f32.mxu0 0.0
  %1428 = vmatmul.mubr.f32.gmra.mrb[0].mxu0 %v1223
  %v1429 = vpop.f32.mrb[0].mxu0
  %v1430 = vadd.f32 0.0, %v1429
  %v1431 = vpop.f32.mrb[0].mxu0
  %1432 = vdwg.mxu0
  %v1433 = vld [vmem:[%s5] sm:$0xff]
  %s1434 = scalar_lea.vmem %s2, 1
  %v1435 = vld [vmem:[%s1434] sm:$0x1]
  %1436 = vrot.lane.b32.xlu0 %v272, 120
  %v1437 = vpop.permute.xlu0 %1436
  %1438 = vrot.lane.b32.xlu0 %v273, 120
  %v1439 = vpop.permute.xlu0 %1438
  %1440 = vrot.lane.b32.xlu0 %v274, 120
  %v1441 = vpop.permute.xlu0 %1440
  %1442 = vrot.lane.b32.xlu0 %v275, 120
  %v1443 = vpop.permute.xlu0 %1442
  %1444 = vrot.lane.b32.xlu0 %v276, 120
  %v1445 = vpop.permute.xlu0 %1444
  %1446 = vrot.lane.b32.xlu0 %v277, 120
  %v1447 = vpop.permute.xlu0 %1446
  %1448 = vrot.lane.b32.xlu0 %v278, 120
  %v1449 = vpop.permute.xlu0 %1448
  %1450 = vrot.lane.b32.xlu0 %v279, 120
  %v1451 = vpop.permute.xlu0 %1450
  %1452 = vrot.lane.b32.xlu0 %v280, 120
  %v1453 = vpop.permute.xlu0 %1452
  %1454 = vrot.lane.b32.xlu0 %v281, 120
  %v1455 = vpop.permute.xlu0 %1454
  %1456 = vrot.lane.b32.xlu0 %v282, 120
  %v1457 = vpop.permute.xlu0 %1456
  %1458 = vrot.lane.b32.xlu0 %v283, 120
  %v1459 = vpop.permute.xlu0 %1458
  %1460 = vrot.lane.b32.xlu0 %v284, 120
  %v1461 = vpop.permute.xlu0 %1460
  %1462 = vrot.lane.b32.xlu0 %v285, 120
  %v1463 = vpop.permute.xlu0 %1462
  %1464 = vrot.lane.b32.xlu0 %v286, 120
  %v1465 = vpop.permute.xlu0 %1464
  %1466 = vrot.lane.b32.xlu0 %v287, 120
  %v1467 = vpop.permute.xlu0 %1466
  %v1484 = vsel %vm288, %v1437, 0.0
  %1485 = vadd.xlane.f32.xlu0 %v1484
  %v1486 = vpop.xlane.xlu0 %1485
  %v1487 = vsel %vm288, %v1439, 0.0
  %1488 = vadd.xlane.f32.xlu0 %v1487
  %v1489 = vpop.xlane.xlu0 %1488
  %v1490 = vsel %vm288, %v1441, 0.0
  %1491 = vadd.xlane.f32.xlu0 %v1490
  %v1492 = vpop.xlane.xlu0 %1491
  %v1493 = vsel %vm288, %v1443, 0.0
  %1494 = vadd.xlane.f32.xlu0 %v1493
  %v1495 = vpop.xlane.xlu0 %1494
  %v1496 = vsel %vm288, %v1445, 0.0
  %1497 = vadd.xlane.f32.xlu0 %v1496
  %v1498 = vpop.xlane.xlu0 %1497
  %v1499 = vsel %vm288, %v1447, 0.0
  %1500 = vadd.xlane.f32.xlu0 %v1499
  %v1501 = vpop.xlane.xlu0 %1500
  %v1502 = vsel %vm288, %v1449, 0.0
  %1503 = vadd.xlane.f32.xlu0 %v1502
  %v1504 = vpop.xlane.xlu0 %1503
  %v1505 = vsel %vm288, %v1451, 0.0
  %1506 = vadd.xlane.f32.xlu0 %v1505
  %v1507 = vpop.xlane.xlu0 %1506
  %v1508 = vsel %vm288, %v1453, 0.0
  %1509 = vadd.xlane.f32.xlu0 %v1508
  %v1510 = vpop.xlane.xlu0 %1509
  %v1511 = vsel %vm288, %v1455, 0.0
  %1512 = vadd.xlane.f32.xlu0 %v1511
  %v1513 = vpop.xlane.xlu0 %1512
  %v1514 = vsel %vm288, %v1457, 0.0
  %1515 = vadd.xlane.f32.xlu0 %v1514
  %v1516 = vpop.xlane.xlu0 %1515
  %v1517 = vsel %vm288, %v1459, 0.0
  %1518 = vadd.xlane.f32.xlu0 %v1517
  %v1519 = vpop.xlane.xlu0 %1518
  %v1520 = vsel %vm288, %v1461, 0.0
  %1521 = vadd.xlane.f32.xlu0 %v1520
  %v1522 = vpop.xlane.xlu0 %1521
  %v1523 = vsel %vm288, %v1463, 0.0
  %1524 = vadd.xlane.f32.xlu0 %v1523
  %v1525 = vpop.xlane.xlu0 %1524
  %v1526 = vsel %vm288, %v1465, 0.0
  %1527 = vadd.xlane.f32.xlu0 %v1526
  %v1528 = vpop.xlane.xlu0 %1527
  %v1529 = vsel %vm288, %v1467, 0.0
  %1530 = vadd.xlane.f32.xlu0 %v1529
  %v1531 = vpop.xlane.xlu0 %1530
  %v1532 = vrsqrt.pop %v1486
  %v1533 = vmul.f32 %v1486, %v1532
  %vm1534 = vcmp.eq.f32.partialorder %v1486, inf
  %v1535 = vsel %vm1534, %v1486, %v1533
  %vm1536 = vcmp.eq.f32.partialorder %v1486, 0.0
  %v1537 = vand.u32 %v1486, 2147483648
  %v1538 = vsel %vm1536, %v1537, %v1535
  %v1539 = vrsqrt.pop %v1489
  %v1540 = vmul.f32 %v1489, %v1539
  %vm1541 = vcmp.eq.f32.partialorder %v1489, inf
  %v1542 = vsel %vm1541, %v1489, %v1540
  %vm1543 = vcmp.eq.f32.partialorder %v1489, 0.0
  %v1544 = vand.u32 %v1489, 2147483648
  %v1545 = vsel %vm1543, %v1544, %v1542
  %v1546 = vrsqrt.pop %v1492
  %v1547 = vmul.f32 %v1492, %v1546
  %vm1548 = vcmp.eq.f32.partialorder %v1492, inf
  %v1549 = vsel %vm1548, %v1492, %v1547
  %vm1550 = vcmp.eq.f32.partialorder %v1492, 0.0
  %v1551 = vand.u32 %v1492, 2147483648
  %v1552 = vsel %vm1550, %v1551, %v1549
  %v1553 = vrsqrt.pop %v1495
  %v1554 = vmul.f32 %v1495, %v1553
  %vm1555 = vcmp.eq.f32.partialorder %v1495, inf
  %v1556 = vsel %vm1555, %v1495, %v1554
  %vm1557 = vcmp.eq.f32.partialorder %v1495, 0.0
  %v1558 = vand.u32 %v1495, 2147483648
  %v1559 = vsel %vm1557, %v1558, %v1556
  %v1560 = vrsqrt.pop %v1498
  %v1561 = vmul.f32 %v1498, %v1560
  %vm1562 = vcmp.eq.f32.partialorder %v1498, inf
  %v1563 = vsel %vm1562, %v1498, %v1561
  %vm1564 = vcmp.eq.f32.partialorder %v1498, 0.0
  %v1565 = vand.u32 %v1498, 2147483648
  %v1566 = vsel %vm1564, %v1565, %v1563
  %v1567 = vrsqrt.pop %v1501
  %v1568 = vmul.f32 %v1501, %v1567
  %vm1569 = vcmp.eq.f32.partialorder %v1501, inf
  %v1570 = vsel %vm1569, %v1501, %v1568
  %vm1571 = vcmp.eq.f32.partialorder %v1501, 0.0
  %v1572 = vand.u32 %v1501, 2147483648
  %v1573 = vsel %vm1571, %v1572, %v1570
  %v1574 = vrsqrt.pop %v1504
  %v1575 = vmul.f32 %v1504, %v1574
  %vm1576 = vcmp.eq.f32.partialorder %v1504, inf
  %v1577 = vsel %vm1576, %v1504, %v1575
  %vm1578 = vcmp.eq.f32.partialorder %v1504, 0.0
  %v1579 = vand.u32 %v1504, 2147483648
  %v1580 = vsel %vm1578, %v1579, %v1577
  %v1581 = vrsqrt.pop %v1507
  %v1582 = vmul.f32 %v1507, %v1581
  %vm1583 = vcmp.eq.f32.partialorder %v1507, inf
  %v1584 = vsel %vm1583, %v1507, %v1582
  %vm1585 = vcmp.eq.f32.partialorder %v1507, 0.0
  %v1586 = vand.u32 %v1507, 2147483648
  %v1587 = vsel %vm1585, %v1586, %v1584
  %v1588 = vrsqrt.pop %v1510
  %v1589 = vmul.f32 %v1510, %v1588
  %vm1590 = vcmp.eq.f32.partialorder %v1510, inf
  %v1591 = vsel %vm1590, %v1510, %v1589
  %vm1592 = vcmp.eq.f32.partialorder %v1510, 0.0
  %v1593 = vand.u32 %v1510, 2147483648
  %v1594 = vsel %vm1592, %v1593, %v1591
  %v1595 = vrsqrt.pop %v1513
  %v1596 = vmul.f32 %v1513, %v1595
  %vm1597 = vcmp.eq.f32.partialorder %v1513, inf
  %v1598 = vsel %vm1597, %v1513, %v1596
  %vm1599 = vcmp.eq.f32.partialorder %v1513, 0.0
  %v1600 = vand.u32 %v1513, 2147483648
  %v1601 = vsel %vm1599, %v1600, %v1598
  %v1602 = vrsqrt.pop %v1516
  %v1603 = vmul.f32 %v1516, %v1602
  %vm1604 = vcmp.eq.f32.partialorder %v1516, inf
  %v1605 = vsel %vm1604, %v1516, %v1603
  %vm1606 = vcmp.eq.f32.partialorder %v1516, 0.0
  %v1607 = vand.u32 %v1516, 2147483648
  %v1608 = vsel %vm1606, %v1607, %v1605
  %v1609 = vrsqrt.pop %v1519
  %v1610 = vmul.f32 %v1519, %v1609
  %vm1611 = vcmp.eq.f32.partialorder %v1519, inf
  %v1612 = vsel %vm1611, %v1519, %v1610
  %vm1613 = vcmp.eq.f32.partialorder %v1519, 0.0
  %v1614 = vand.u32 %v1519, 2147483648
  %v1615 = vsel %vm1613, %v1614, %v1612
  %v1616 = vrsqrt.pop %v1522
  %v1617 = vmul.f32 %v1522, %v1616
  %vm1618 = vcmp.eq.f32.partialorder %v1522, inf
  %v1619 = vsel %vm1618, %v1522, %v1617
  %vm1620 = vcmp.eq.f32.partialorder %v1522, 0.0
  %v1621 = vand.u32 %v1522, 2147483648
  %v1622 = vsel %vm1620, %v1621, %v1619
  %v1623 = vrsqrt.pop %v1525
  %v1624 = vmul.f32 %v1525, %v1623
  %vm1625 = vcmp.eq.f32.partialorder %v1525, inf
  %v1626 = vsel %vm1625, %v1525, %v1624
  %vm1627 = vcmp.eq.f32.partialorder %v1525, 0.0
  %v1628 = vand.u32 %v1525, 2147483648
  %v1629 = vsel %vm1627, %v1628, %v1626
  %v1630 = vrsqrt.pop %v1528
  %v1631 = vmul.f32 %v1528, %v1630
  %vm1632 = vcmp.eq.f32.partialorder %v1528, inf
  %v1633 = vsel %vm1632, %v1528, %v1631
  %vm1634 = vcmp.eq.f32.partialorder %v1528, 0.0
  %v1635 = vand.u32 %v1528, 2147483648
  %v1636 = vsel %vm1634, %v1635, %v1633
  %v1637 = vrsqrt.pop %v1531
  %v1638 = vmul.f32 %v1531, %v1637
  %vm1639 = vcmp.eq.f32.partialorder %v1531, inf
  %v1640 = vsel %vm1639, %v1531, %v1638
  %vm1641 = vcmp.eq.f32.partialorder %v1531, 0.0
  %v1642 = vand.u32 %v1531, 2147483648
  %v1643 = vsel %vm1641, %v1642, %v1640
  %v1644 = vmax.f32 %v1538, 1e-12
  %v1645 = vmax.f32 %v1545, 1e-12
  %v1646 = vmax.f32 %v1552, 1e-12
  %v1647 = vmax.f32 %v1559, 1e-12
  %v1648 = vmax.f32 %v1566, 1e-12
  %v1649 = vmax.f32 %v1573, 1e-12
  %v1650 = vmax.f32 %v1580, 1e-12
  %v1651 = vmax.f32 %v1587, 1e-12
  %v1652 = vmax.f32 %v1594, 1e-12
  %v1653 = vmax.f32 %v1601, 1e-12
  %v1654 = vmax.f32 %v1608, 1e-12
  %v1655 = vmax.f32 %v1615, 1e-12
  %v1656 = vmax.f32 %v1622, 1e-12
  %v1657 = vmax.f32 %v1629, 1e-12
  %v1658 = vmax.f32 %v1636, 1e-12
  %v1659 = vmax.f32 %v1643, 1e-12
  %v1661 = vlaneseq
  %v1662 = vshrl.u32 %v1661, 7
  %v1663 = vsub.s32 0, %v1662
  %v1664 = vrot.slane %v1435, %v1663
  %v1666 = vrcp.pop %v1644
  %v1667 = vmul.f32 %v1664, %v1666
  %v1668 = vrcp.pop %v1645
  %v1669 = vmul.f32 %v1664, %v1668
  %v1670 = vrcp.pop %v1646
  %v1671 = vmul.f32 %v1664, %v1670
  %v1672 = vrcp.pop %v1647
  %v1673 = vmul.f32 %v1664, %v1672
  %v1674 = vrcp.pop %v1648
  %v1675 = vmul.f32 %v1664, %v1674
  %v1676 = vrcp.pop %v1649
  %v1677 = vmul.f32 %v1664, %v1676
  %v1678 = vrcp.pop %v1650
  %v1679 = vmul.f32 %v1664, %v1678
  %v1680 = vrcp.pop %v1651
  %v1681 = vmul.f32 %v1664, %v1680
  %v1682 = vrcp.pop %v1652
  %v1683 = vmul.f32 %v1664, %v1682
  %v1684 = vrcp.pop %v1653
  %v1685 = vmul.f32 %v1664, %v1684
  %v1686 = vrcp.pop %v1654
  %v1687 = vmul.f32 %v1664, %v1686
  %v1688 = vrcp.pop %v1655
  %v1689 = vmul.f32 %v1664, %v1688
  %v1690 = vrcp.pop %v1656
  %v1691 = vmul.f32 %v1664, %v1690
  %v1692 = vrcp.pop %v1657
  %v1693 = vmul.f32 %v1664, %v1692
  %v1694 = vrcp.pop %v1658
  %v1695 = vmul.f32 %v1664, %v1694
  %v1696 = vrcp.pop %v1659
  %v1697 = vmul.f32 %v1664, %v1696
  %1714 = vrot.lane.b32.xlu0 %v1667, 8
  %v1715 = vpop.permute.xlu0 %1714
  %1716 = vrot.lane.b32.xlu0 %v1669, 8
  %v1717 = vpop.permute.xlu0 %1716
  %1718 = vrot.lane.b32.xlu0 %v1671, 8
  %v1719 = vpop.permute.xlu0 %1718
  %1720 = vrot.lane.b32.xlu0 %v1673, 8
  %v1721 = vpop.permute.xlu0 %1720
  %1722 = vrot.lane.b32.xlu0 %v1675, 8
  %v1723 = vpop.permute.xlu0 %1722
  %1724 = vrot.lane.b32.xlu0 %v1677, 8
  %v1725 = vpop.permute.xlu0 %1724
  %1726 = vrot.lane.b32.xlu0 %v1679, 8
  %v1727 = vpop.permute.xlu0 %1726
  %1728 = vrot.lane.b32.xlu0 %v1681, 8
  %v1729 = vpop.permute.xlu0 %1728
  %1730 = vrot.lane.b32.xlu0 %v1683, 8
  %v1731 = vpop.permute.xlu0 %1730
  %1732 = vrot.lane.b32.xlu0 %v1685, 8
  %v1733 = vpop.permute.xlu0 %1732
  %1734 = vrot.lane.b32.xlu0 %v1687, 8
  %v1735 = vpop.permute.xlu0 %1734
  %1736 = vrot.lane.b32.xlu0 %v1689, 8
  %v1737 = vpop.permute.xlu0 %1736
  %1738 = vrot.lane.b32.xlu0 %v1691, 8
  %v1739 = vpop.permute.xlu0 %1738
  %1740 = vrot.lane.b32.xlu0 %v1693, 8
  %v1741 = vpop.permute.xlu0 %1740
  %1742 = vrot.lane.b32.xlu0 %v1695, 8
  %v1743 = vpop.permute.xlu0 %1742
  %1744 = vrot.lane.b32.xlu0 %v1697, 8
  %v1745 = vpop.permute.xlu0 %1744
  %v1762 = vmul.f32 %v193, %v1715
  %v1763 = vmul.f32 %v198, %v1717
  %v1764 = vmul.f32 %v203, %v1719
  %v1765 = vmul.f32 %v208, %v1721
  %v1766 = vmul.f32 %v213, %v1723
  %v1767 = vmul.f32 %v218, %v1725
  %v1768 = vmul.f32 %v223, %v1727
  %v1769 = vmul.f32 %v228, %v1729
  %v1770 = vmul.f32 %v233, %v1731
  %v1771 = vmul.f32 %v238, %v1733
  %v1772 = vmul.f32 %v243, %v1735
  %v1773 = vmul.f32 %v248, %v1737
  %v1774 = vmul.f32 %v253, %v1739
  %v1775 = vmul.f32 %v258, %v1741
  %v1776 = vmul.f32 %v263, %v1743
  %v1777 = vmul.f32 %v268, %v1745
  %1778 = vrot.lane.b32.xlu0 %v272, 88
  %v1779 = vpop.permute.xlu0 %1778
  %1780 = vrot.lane.b32.xlu0 %v273, 88
  %v1781 = vpop.permute.xlu0 %1780
  %1782 = vrot.lane.b32.xlu0 %v274, 88
  %v1783 = vpop.permute.xlu0 %1782
  %1784 = vrot.lane.b32.xlu0 %v275, 88
  %v1785 = vpop.permute.xlu0 %1784
  %1786 = vrot.lane.b32.xlu0 %v276, 88
  %v1787 = vpop.permute.xlu0 %1786
  %1788 = vrot.lane.b32.xlu0 %v277, 88
  %v1789 = vpop.permute.xlu0 %1788
  %1790 = vrot.lane.b32.xlu0 %v278, 88
  %v1791 = vpop.permute.xlu0 %1790
  %1792 = vrot.lane.b32.xlu0 %v279, 88
  %v1793 = vpop.permute.xlu0 %1792
  %1794 = vrot.lane.b32.xlu0 %v280, 88
  %v1795 = vpop.permute.xlu0 %1794
  %1796 = vrot.lane.b32.xlu0 %v281, 88
  %v1797 = vpop.permute.xlu0 %1796
  %1798 = vrot.lane.b32.xlu0 %v282, 88
  %v1799 = vpop.permute.xlu0 %1798
  %1800 = vrot.lane.b32.xlu0 %v283, 88
  %v1801 = vpop.permute.xlu0 %1800
  %1802 = vrot.lane.b32.xlu0 %v284, 88
  %v1803 = vpop.permute.xlu0 %1802
  %1804 = vrot.lane.b32.xlu0 %v285, 88
  %v1805 = vpop.permute.xlu0 %1804
  %1806 = vrot.lane.b32.xlu0 %v286, 88
  %v1807 = vpop.permute.xlu0 %1806
  %1808 = vrot.lane.b32.xlu0 %v287, 88
  %v1809 = vpop.permute.xlu0 %1808
  %v1826 = vsel %vm288, %v1779, 0.0
  %1827 = vadd.xlane.f32.xlu0 %v1826
  %v1828 = vpop.xlane.xlu0 %1827
  %v1829 = vsel %vm288, %v1781, 0.0
  %1830 = vadd.xlane.f32.xlu0 %v1829
  %v1831 = vpop.xlane.xlu0 %1830
  %v1832 = vsel %vm288, %v1783, 0.0
  %1833 = vadd.xlane.f32.xlu0 %v1832
  %v1834 = vpop.xlane.xlu0 %1833
  %v1835 = vsel %vm288, %v1785, 0.0
  %1836 = vadd.xlane.f32.xlu0 %v1835
  %v1837 = vpop.xlane.xlu0 %1836
  %v1838 = vsel %vm288, %v1787, 0.0
  %1839 = vadd.xlane.f32.xlu0 %v1838
  %v1840 = vpop.xlane.xlu0 %1839
  %v1841 = vsel %vm288, %v1789, 0.0
  %1842 = vadd.xlane.f32.xlu0 %v1841
  %v1843 = vpop.xlane.xlu0 %1842
  %v1844 = vsel %vm288, %v1791, 0.0
  %1845 = vadd.xlane.f32.xlu0 %v1844
  %v1846 = vpop.xlane.xlu0 %1845
  %v1847 = vsel %vm288, %v1793, 0.0
  %1848 = vadd.xlane.f32.xlu0 %v1847
  %v1849 = vpop.xlane.xlu0 %1848
  %v1850 = vsel %vm288, %v1795, 0.0
  %1851 = vadd.xlane.f32.xlu0 %v1850
  %v1852 = vpop.xlane.xlu0 %1851
  %v1853 = vsel %vm288, %v1797, 0.0
  %1854 = vadd.xlane.f32.xlu0 %v1853
  %v1855 = vpop.xlane.xlu0 %1854
  %v1856 = vsel %vm288, %v1799, 0.0
  %1857 = vadd.xlane.f32.xlu0 %v1856
  %v1858 = vpop.xlane.xlu0 %1857
  %v1859 = vsel %vm288, %v1801, 0.0
  %1860 = vadd.xlane.f32.xlu0 %v1859
  %v1861 = vpop.xlane.xlu0 %1860
  %v1862 = vsel %vm288, %v1803, 0.0
  %1863 = vadd.xlane.f32.xlu0 %v1862
  %v1864 = vpop.xlane.xlu0 %1863
  %v1865 = vsel %vm288, %v1805, 0.0
  %1866 = vadd.xlane.f32.xlu0 %v1865
  %v1867 = vpop.xlane.xlu0 %1866
  %v1868 = vsel %vm288, %v1807, 0.0
  %1869 = vadd.xlane.f32.xlu0 %v1868
  %v1870 = vpop.xlane.xlu0 %1869
  %v1871 = vsel %vm288, %v1809, 0.0
  %1872 = vadd.xlane.f32.xlu0 %v1871
  %v1873 = vpop.xlane.xlu0 %1872
  %v1874 = vrsqrt.pop %v1828
  %v1875 = vmul.f32 %v1828, %v1874
  %vm1876 = vcmp.eq.f32.partialorder %v1828, inf
  %v1877 = vsel %vm1876, %v1828, %v1875
  %vm1878 = vcmp.eq.f32.partialorder %v1828, 0.0
  %v1879 = vand.u32 %v1828, 2147483648
  %v1880 = vsel %vm1878, %v1879, %v1877
  %v1881 = vrsqrt.pop %v1831
  %v1882 = vmul.f32 %v1831, %v1881
  %vm1883 = vcmp.eq.f32.partialorder %v1831, inf
  %v1884 = vsel %vm1883, %v1831, %v1882
  %vm1885 = vcmp.eq.f32.partialorder %v1831, 0.0
  %v1886 = vand.u32 %v1831, 2147483648
  %v1887 = vsel %vm1885, %v1886, %v1884
  %v1888 = vrsqrt.pop %v1834
  %v1889 = vmul.f32 %v1834, %v1888
  %vm1890 = vcmp.eq.f32.partialorder %v1834, inf
  %v1891 = vsel %vm1890, %v1834, %v1889
  %vm1892 = vcmp.eq.f32.partialorder %v1834, 0.0
  %v1893 = vand.u32 %v1834, 2147483648
  %v1894 = vsel %vm1892, %v1893, %v1891
  %v1895 = vrsqrt.pop %v1837
  %v1896 = vmul.f32 %v1837, %v1895
  %vm1897 = vcmp.eq.f32.partialorder %v1837, inf
  %v1898 = vsel %vm1897, %v1837, %v1896
  %vm1899 = vcmp.eq.f32.partialorder %v1837, 0.0
  %v1900 = vand.u32 %v1837, 2147483648
  %v1901 = vsel %vm1899, %v1900, %v1898
  %v1902 = vrsqrt.pop %v1840
  %v1903 = vmul.f32 %v1840, %v1902
  %vm1904 = vcmp.eq.f32.partialorder %v1840, inf
  %v1905 = vsel %vm1904, %v1840, %v1903
  %vm1906 = vcmp.eq.f32.partialorder %v1840, 0.0
  %v1907 = vand.u32 %v1840, 2147483648
  %v1908 = vsel %vm1906, %v1907, %v1905
  %v1909 = vrsqrt.pop %v1843
  %v1910 = vmul.f32 %v1843, %v1909
  %vm1911 = vcmp.eq.f32.partialorder %v1843, inf
  %v1912 = vsel %vm1911, %v1843, %v1910
  %vm1913 = vcmp.eq.f32.partialorder %v1843, 0.0
  %v1914 = vand.u32 %v1843, 2147483648
  %v1915 = vsel %vm1913, %v1914, %v1912
  %v1916 = vrsqrt.pop %v1846
  %v1917 = vmul.f32 %v1846, %v1916
  %vm1918 = vcmp.eq.f32.partialorder %v1846, inf
  %v1919 = vsel %vm1918, %v1846, %v1917
  %vm1920 = vcmp.eq.f32.partialorder %v1846, 0.0
  %v1921 = vand.u32 %v1846, 2147483648
  %v1922 = vsel %vm1920, %v1921, %v1919
  %v1923 = vrsqrt.pop %v1849
  %v1924 = vmul.f32 %v1849, %v1923
  %vm1925 = vcmp.eq.f32.partialorder %v1849, inf
  %v1926 = vsel %vm1925, %v1849, %v1924
  %vm1927 = vcmp.eq.f32.partialorder %v1849, 0.0
  %v1928 = vand.u32 %v1849, 2147483648
  %v1929 = vsel %vm1927, %v1928, %v1926
  %v1930 = vrsqrt.pop %v1852
  %v1931 = vmul.f32 %v1852, %v1930
  %vm1932 = vcmp.eq.f32.partialorder %v1852, inf
  %v1933 = vsel %vm1932, %v1852, %v1931
  %vm1934 = vcmp.eq.f32.partialorder %v1852, 0.0
  %v1935 = vand.u32 %v1852, 2147483648
  %v1936 = vsel %vm1934, %v1935, %v1933
  %v1937 = vrsqrt.pop %v1855
  %v1938 = vmul.f32 %v1855, %v1937
  %vm1939 = vcmp.eq.f32.partialorder %v1855, inf
  %v1940 = vsel %vm1939, %v1855, %v1938
  %vm1941 = vcmp.eq.f32.partialorder %v1855, 0.0
  %v1942 = vand.u32 %v1855, 2147483648
  %v1943 = vsel %vm1941, %v1942, %v1940
  %v1944 = vrsqrt.pop %v1858
  %v1945 = vmul.f32 %v1858, %v1944
  %vm1946 = vcmp.eq.f32.partialorder %v1858, inf
  %v1947 = vsel %vm1946, %v1858, %v1945
  %vm1948 = vcmp.eq.f32.partialorder %v1858, 0.0
  %v1949 = vand.u32 %v1858, 2147483648
  %v1950 = vsel %vm1948, %v1949, %v1947
  %v1951 = vrsqrt.pop %v1861
  %v1952 = vmul.f32 %v1861, %v1951
  %vm1953 = vcmp.eq.f32.partialorder %v1861, inf
  %v1954 = vsel %vm1953, %v1861, %v1952
  %vm1955 = vcmp.eq.f32.partialorder %v1861, 0.0
  %v1956 = vand.u32 %v1861, 2147483648
  %v1957 = vsel %vm1955, %v1956, %v1954
  %v1958 = vrsqrt.pop %v1864
  %v1959 = vmul.f32 %v1864, %v1958
  %vm1960 = vcmp.eq.f32.partialorder %v1864, inf
  %v1961 = vsel %vm1960, %v1864, %v1959
  %vm1962 = vcmp.eq.f32.partialorder %v1864, 0.0
  %v1963 = vand.u32 %v1864, 2147483648
  %v1964 = vsel %vm1962, %v1963, %v1961
  %v1965 = vrsqrt.pop %v1867
  %v1966 = vmul.f32 %v1867, %v1965
  %vm1967 = vcmp.eq.f32.partialorder %v1867, inf
  %v1968 = vsel %vm1967, %v1867, %v1966
  %vm1969 = vcmp.eq.f32.partialorder %v1867, 0.0
  %v1970 = vand.u32 %v1867, 2147483648
  %v1971 = vsel %vm1969, %v1970, %v1968
  %v1972 = vrsqrt.pop %v1870
  %v1973 = vmul.f32 %v1870, %v1972
  %vm1974 = vcmp.eq.f32.partialorder %v1870, inf
  %v1975 = vsel %vm1974, %v1870, %v1973
  %vm1976 = vcmp.eq.f32.partialorder %v1870, 0.0
  %v1977 = vand.u32 %v1870, 2147483648
  %v1978 = vsel %vm1976, %v1977, %v1975
  %v1979 = vrsqrt.pop %v1873
  %v1980 = vmul.f32 %v1873, %v1979
  %vm1981 = vcmp.eq.f32.partialorder %v1873, inf
  %v1982 = vsel %vm1981, %v1873, %v1980
  %vm1983 = vcmp.eq.f32.partialorder %v1873, 0.0
  %v1984 = vand.u32 %v1873, 2147483648
  %v1985 = vsel %vm1983, %v1984, %v1982
  %v1986 = vmax.f32 %v1880, 1e-12
  %v1987 = vmax.f32 %v1887, 1e-12
  %v1988 = vmax.f32 %v1894, 1e-12
  %v1989 = vmax.f32 %v1901, 1e-12
  %v1990 = vmax.f32 %v1908, 1e-12
  %v1991 = vmax.f32 %v1915, 1e-12
  %v1992 = vmax.f32 %v1922, 1e-12
  %v1993 = vmax.f32 %v1929, 1e-12
  %v1994 = vmax.f32 %v1936, 1e-12
  %v1995 = vmax.f32 %v1943, 1e-12
  %v1996 = vmax.f32 %v1950, 1e-12
  %v1997 = vmax.f32 %v1957, 1e-12
  %v1998 = vmax.f32 %v1964, 1e-12
  %v1999 = vmax.f32 %v1971, 1e-12
  %v2000 = vmax.f32 %v1978, 1e-12
  %v2001 = vmax.f32 %v1985, 1e-12
  %v2002 = vrcp.pop %v1986
  %v2003 = vmul.f32 %v193, %v2002
  %v2004 = vrcp.pop %v1987
  %v2005 = vmul.f32 %v198, %v2004
  %v2006 = vrcp.pop %v1988
  %v2007 = vmul.f32 %v203, %v2006
  %v2008 = vrcp.pop %v1989
  %v2009 = vmul.f32 %v208, %v2008
  %v2010 = vrcp.pop %v1990
  %v2011 = vmul.f32 %v213, %v2010
  %v2012 = vrcp.pop %v1991
  %v2013 = vmul.f32 %v218, %v2012
  %v2014 = vrcp.pop %v1992
  %v2015 = vmul.f32 %v223, %v2014
  %v2016 = vrcp.pop %v1993
  %v2017 = vmul.f32 %v228, %v2016
  %v2018 = vrcp.pop %v1994
  %v2019 = vmul.f32 %v233, %v2018
  %v2020 = vrcp.pop %v1995
  %v2021 = vmul.f32 %v238, %v2020
  %v2022 = vrcp.pop %v1996
  %v2023 = vmul.f32 %v243, %v2022
  %v2024 = vrcp.pop %v1997
  %v2025 = vmul.f32 %v248, %v2024
  %v2026 = vrcp.pop %v1998
  %v2027 = vmul.f32 %v253, %v2026
  %v2028 = vrcp.pop %v1999
  %v2029 = vmul.f32 %v258, %v2028
  %v2030 = vrcp.pop %v2000
  %v2031 = vmul.f32 %v263, %v2030
  %v2032 = vrcp.pop %v2001
  %v2033 = vmul.f32 %v268, %v2032
  %s2034 = scalar_lea.vmem %s1, 128
  %v2035 = vld [vmem:[%s2034] sm:$0xff]
  %v2036 = vld [vmem:[%s2034 + $0x8] sm:$0xff]
  %v2037 = vld [vmem:[%s2034 + $0x10] sm:$0xff]
  %v2038 = vld [vmem:[%s2034 + $0x18] sm:$0xff]
  %v2039 = vld [vmem:[%s2034 + $0x20] sm:$0xff]
  %v2040 = vld [vmem:[%s2034 + $0x28] sm:$0xff]
  %v2041 = vld [vmem:[%s2034 + $0x30] sm:$0xff]
  %v2042 = vld [vmem:[%s2034 + $0x38] sm:$0xff]
  %v2043 = vld [vmem:[%s2034 + $0x40] sm:$0xff]
  %v2044 = vld [vmem:[%s2034 + $0x48] sm:$0xff]
  %v2045 = vld [vmem:[%s2034 + $0x50] sm:$0xff]
  %v2046 = vld [vmem:[%s2034 + $0x58] sm:$0xff]
  %v2047 = vld [vmem:[%s2034 + $0x60] sm:$0xff]
  %v2048 = vld [vmem:[%s2034 + $0x68] sm:$0xff]
  %v2049 = vld [vmem:[%s2034 + $0x70] sm:$0xff]
  %v2050 = vld [vmem:[%s2034 + $0x78] sm:$0xff]
  %2067 = vrot.lane.b32.xlu0 %v1762, 120
  %v2068 = vpop.permute.xlu0 %2067
  %2069 = vrot.lane.b32.xlu0 %v1763, 120
  %v2070 = vpop.permute.xlu0 %2069
  %2071 = vrot.lane.b32.xlu0 %v1764, 120
  %v2072 = vpop.permute.xlu0 %2071
  %2073 = vrot.lane.b32.xlu0 %v1765, 120
  %v2074 = vpop.permute.xlu0 %2073
  %2075 = vrot.lane.b32.xlu0 %v1766, 120
  %v2076 = vpop.permute.xlu0 %2075
  %2077 = vrot.lane.b32.xlu0 %v1767, 120
  %v2078 = vpop.permute.xlu0 %2077
  %2079 = vrot.lane.b32.xlu0 %v1768, 120
  %v2080 = vpop.permute.xlu0 %2079
  %2081 = vrot.lane.b32.xlu0 %v1769, 120
  %v2082 = vpop.permute.xlu0 %2081
  %2083 = vrot.lane.b32.xlu0 %v1770, 120
  %v2084 = vpop.permute.xlu0 %2083
  %2085 = vrot.lane.b32.xlu0 %v1771, 120
  %v2086 = vpop.permute.xlu0 %2085
  %2087 = vrot.lane.b32.xlu0 %v1772, 120
  %v2088 = vpop.permute.xlu0 %2087
  %2089 = vrot.lane.b32.xlu0 %v1773, 120
  %v2090 = vpop.permute.xlu0 %2089
  %2091 = vrot.lane.b32.xlu0 %v1774, 120
  %v2092 = vpop.permute.xlu0 %2091
  %2093 = vrot.lane.b32.xlu0 %v1775, 120
  %v2094 = vpop.permute.xlu0 %2093
  %2095 = vrot.lane.b32.xlu0 %v1776, 120
  %v2096 = vpop.permute.xlu0 %2095
  %2097 = vrot.lane.b32.xlu0 %v1777, 120
  %v2098 = vpop.permute.xlu0 %2097
  %2115 = vrot.lane.b32.xlu0 %v2003, 88
  %v2116 = vpop.permute.xlu0 %2115
  %2117 = vrot.lane.b32.xlu0 %v2005, 88
  %v2118 = vpop.permute.xlu0 %2117
  %2119 = vrot.lane.b32.xlu0 %v2007, 88
  %v2120 = vpop.permute.xlu0 %2119
  %2121 = vrot.lane.b32.xlu0 %v2009, 88
  %v2122 = vpop.permute.xlu0 %2121
  %2123 = vrot.lane.b32.xlu0 %v2011, 88
  %v2124 = vpop.permute.xlu0 %2123
  %2125 = vrot.lane.b32.xlu0 %v2013, 88
  %v2126 = vpop.permute.xlu0 %2125
  %2127 = vrot.lane.b32.xlu0 %v2015, 88
  %v2128 = vpop.permute.xlu0 %2127
  %2129 = vrot.lane.b32.xlu0 %v2017, 88
  %v2130 = vpop.permute.xlu0 %2129
  %2131 = vrot.lane.b32.xlu0 %v2019, 88
  %v2132 = vpop.permute.xlu0 %2131
  %2133 = vrot.lane.b32.xlu0 %v2021, 88
  %v2134 = vpop.permute.xlu0 %2133
  %2135 = vrot.lane.b32.xlu0 %v2023, 88
  %v2136 = vpop.permute.xlu0 %2135
  %2137 = vrot.lane.b32.xlu0 %v2025, 88
  %v2138 = vpop.permute.xlu0 %2137
  %2139 = vrot.lane.b32.xlu0 %v2027, 88
  %v2140 = vpop.permute.xlu0 %2139
  %2141 = vrot.lane.b32.xlu0 %v2029, 88
  %v2142 = vpop.permute.xlu0 %2141
  %2143 = vrot.lane.b32.xlu0 %v2031, 88
  %v2144 = vpop.permute.xlu0 %2143
  %2145 = vrot.lane.b32.xlu0 %v2033, 88
  %v2146 = vpop.permute.xlu0 %2145
  %v2147 = vsel %vm288, %v2068, 0
  %v2149 = vsel %vm288, %v2070, 0
  %v2151 = vsel %vm288, %v2072, 0
  %v2153 = vsel %vm288, %v2074, 0
  %v2155 = vsel %vm288, %v2076, 0
  %v2157 = vsel %vm288, %v2078, 0
  %v2159 = vsel %vm288, %v2080, 0
  %v2161 = vsel %vm288, %v2082, 0
  %v2163 = vsel %vm288, %v2084, 0
  %v2165 = vsel %vm288, %v2086, 0
  %v2167 = vsel %vm288, %v2088, 0
  %v2169 = vsel %vm288, %v2090, 0
  %v2171 = vsel %vm288, %v2092, 0
  %v2173 = vsel %vm288, %v2094, 0
  %v2175 = vsel %vm288, %v2096, 0
  %v2177 = vsel %vm288, %v2098, 0
  %v2179 = vsel %vm288, %v2116, 0
  %v2181 = vsel %vm288, %v2118, 0
  %v2183 = vsel %vm288, %v2120, 0
  %v2185 = vsel %vm288, %v2122, 0
  %v2187 = vsel %vm288, %v2124, 0
  %v2189 = vsel %vm288, %v2126, 0
  %v2191 = vsel %vm288, %v2128, 0
  %v2193 = vsel %vm288, %v2130, 0
  %v2195 = vsel %vm288, %v2132, 0
  %v2197 = vsel %vm288, %v2134, 0
  %v2199 = vsel %vm288, %v2136, 0
  %v2201 = vsel %vm288, %v2138, 0
  %v2203 = vsel %vm288, %v2140, 0
  %v2205 = vsel %vm288, %v2142, 0
  %v2207 = vsel %vm288, %v2144, 0
  %v2209 = vsel %vm288, %v2146, 0
  %2211 = vmatprep.subr.mxu0 0.0
  %2212 = vmatpush1.xpose.msra.mxu0 %v2179
  %2213 = vmatprep.subr.mxu0 0.0
  %2214 = vmatpush1.xpose.msra.mxu0 %v2181
  %2215 = vmatprep.subr.mxu0 0.0
  %2216 = vmatpush1.xpose.msra.mxu0 %v2183
  %2217 = vmatprep.subr.mxu0 0.0
  %2218 = vmatpush1.xpose.msra.mxu0 %v2185
  %2219 = vmatprep.subr.mxu0 0.0
  %2220 = vmatpush1.xpose.msra.mxu0 %v2187
  %2221 = vmatprep.subr.mxu0 0.0
  %2222 = vmatpush1.xpose.msra.mxu0 %v2189
  %2223 = vmatprep.subr.mxu0 0.0
  %2224 = vmatpush1.xpose.msra.mxu0 %v2191
  %2225 = vmatprep.subr.mxu0 0.0
  %2226 = vmatpush1.xpose.msra.mxu0 %v2193
  %2227 = vmatprep.subr.mxu0 0.0
  %2228 = vmatpush1.xpose.msra.mxu0 %v2195
  %2229 = vmatprep.subr.mxu0 0.0
  %2230 = vmatpush1.xpose.msra.mxu0 %v2197
  %2231 = vmatprep.subr.mxu0 0.0
  %2232 = vmatpush1.xpose.msra.mxu0 %v2199
  %2233 = vmatprep.subr.mxu0 0.0
  %2234 = vmatpush1.xpose.msra.mxu0 %v2201
  %2235 = vmatprep.subr.mxu0 0.0
  %2236 = vmatpush1.xpose.msra.mxu0 %v2203
  %2237 = vmatprep.subr.mxu0 0.0
  %2238 = vmatpush1.xpose.msra.mxu0 %v2205
  %2239 = vmatprep.subr.mxu0 0.0
  %2240 = vmatpush1.xpose.msra.mxu0 %v2207
  %2241 = vmatprep.subr.mxu0 0.0
  %2242 = vmatpush1.xpose.msra.mxu0 %v2209
  %2243 = vmatprep.subr.mxu0 0.0
  %2244 = vmatpush1.xpose.msra.mxu0 0.0
  %2245 = vmatprep.subr.mxu0 0.0
  %2246 = vmatpush1.xpose.msra.mxu0 0.0
  %2247 = vmatprep.subr.mxu0 0.0
  %2248 = vmatpush1.xpose.msra.mxu0 0.0
  %2249 = vmatprep.subr.mxu0 0.0
  %2250 = vmatpush1.xpose.msra.mxu0 0.0
  %2251 = vmatprep.subr.mxu0 0.0
  %2252 = vmatpush1.xpose.msra.mxu0 0.0
  %2253 = vmatprep.subr.mxu0 0.0
  %2254 = vmatpush1.xpose.msra.mxu0 0.0
  %2255 = vmatprep.subr.mxu0 0.0
  %2256 = vmatpush1.xpose.msra.mxu0 0.0
  %2257 = vmatprep.subr.mxu0 0.0
  %2258 = vmatpush1.xpose.msra.mxu0 0.0
  %2259 = vmatprep.subr.mxu0 0.0
  %2260 = vmatpush1.xpose.msra.mxu0 0.0
  %2261 = vmatprep.subr.mxu0 0.0
  %2262 = vmatpush1.xpose.msra.mxu0 0.0
  %2263 = vmatprep.subr.mxu0 0.0
  %2264 = vmatpush1.xpose.msra.mxu0 0.0
  %2265 = vmatprep.subr.mxu0 0.0
  %2266 = vmatpush1.xpose.msra.mxu0 0.0
  %2267 = vmatprep.subr.mxu0 0.0
  %2268 = vmatpush1.xpose.msra.mxu0 0.0
  %2269 = vmatprep.subr.mxu0 0.0
  %2270 = vmatpush1.xpose.msra.mxu0 0.0
  %2271 = vmatprep.subr.mxu0 0.0
  %2272 = vmatpush1.xpose.msra.mxu0 0.0
  %2273 = vmatprep.subr.mxu0 0.0
  %2274 = vmatpush1.xpose.msra.mxu0 0.0
  %2275 = vmatprep.mubr.f32.mxu0 0.0
  %2276 = vmatmul.mubr.f32.gmra.mrb[0].mxu0 %v2147
  %v2277 = vpop.f32.mrb[0].mxu0
  %v2278 = vadd.f32 %v2035, %v2277
  %v2279 = vpop.f32.mrb[0].mxu0
  %2280 = vmatprep.mubr.f32.mxu0 0.0
  %2281 = vmatmul.mubr.f32.gmra.mrb[0].mxu0 %v2149
  %v2282 = vpop.f32.mrb[0].mxu0
  %v2283 = vadd.f32 %v2036, %v2282
  %v2284 = vpop.f32.mrb[0].mxu0
  %2285 = vmatprep.mubr.f32.mxu0 0.0
  %2286 = vmatmul.mubr.f32.gmra.mrb[0].mxu0 %v2151
  %v2287 = vpop.f32.mrb[0].mxu0
  %v2288 = vadd.f32 %v2037, %v2287
  %v2289 = vpop.f32.mrb[0].mxu0
  %2290 = vmatprep.mubr.f32.mxu0 0.0
  %2291 = vmatmul.mubr.f32.gmra.mrb[0].mxu0 %v2153
  %v2292 = vpop.f32.mrb[0].mxu0
  %v2293 = vadd.f32 %v2038, %v2292
  %v2294 = vpop.f32.mrb[0].mxu0
  %2295 = vmatprep.mubr.f32.mxu0 0.0
  %2296 = vmatmul.mubr.f32.gmra.mrb[0].mxu0 %v2155
  %v2297 = vpop.f32.mrb[0].mxu0
  %v2298 = vadd.f32 %v2039, %v2297
  %v2299 = vpop.f32.mrb[0].mxu0
  %2300 = vmatprep.mubr.f32.mxu0 0.0
  %2301 = vmatmul.mubr.f32.gmra.mrb[0].mxu0 %v2157
  %v2302 = vpop.f32.mrb[0].mxu0
  %v2303 = vadd.f32 %v2040, %v2302
  %v2304 = vpop.f32.mrb[0].mxu0
  %2305 = vmatprep.mubr.f32.mxu0 0.0
  %2306 = vmatmul.mubr.f32.gmra.mrb[0].mxu0 %v2159
  %v2307 = vpop.f32.mrb[0].mxu0
  %v2308 = vadd.f32 %v2041, %v2307
  %v2309 = vpop.f32.mrb[0].mxu0
  %2310 = vmatprep.mubr.f32.mxu0 0.0
  %2311 = vmatmul.mubr.f32.gmra.mrb[0].mxu0 %v2161
  %v2312 = vpop.f32.mrb[0].mxu0
  %v2313 = vadd.f32 %v2042, %v2312
  %v2314 = vpop.f32.mrb[0].mxu0
  %2315 = vmatprep.mubr.f32.mxu0 0.0
  %2316 = vmatmul.mubr.f32.gmra.mrb[0].mxu0 %v2163
  %v2317 = vpop.f32.mrb[0].mxu0
  %v2318 = vadd.f32 %v2043, %v2317
  %v2319 = vpop.f32.mrb[0].mxu0
  %2320 = vmatprep.mubr.f32.mxu0 0.0
  %2321 = vmatmul.mubr.f32.gmra.mrb[0].mxu0 %v2165
  %v2322 = vpop.f32.mrb[0].mxu0
  %v2323 = vadd.f32 %v2044, %v2322
  %v2324 = vpop.f32.mrb[0].mxu0
  %2325 = vmatprep.mubr.f32.mxu0 0.0
  %2326 = vmatmul.mubr.f32.gmra.mrb[0].mxu0 %v2167
  %v2327 = vpop.f32.mrb[0].mxu0
  %v2328 = vadd.f32 %v2045, %v2327
  %v2329 = vpop.f32.mrb[0].mxu0
  %2330 = vmatprep.mubr.f32.mxu0 0.0
  %2331 = vmatmul.mubr.f32.gmra.mrb[0].mxu0 %v2169
  %v2332 = vpop.f32.mrb[0].mxu0
  %v2333 = vadd.f32 %v2046, %v2332
  %v2334 = vpop.f32.mrb[0].mxu0
  %2335 = vmatprep.mubr.f32.mxu0 0.0
  %2336 = vmatmul.mubr.f32.gmra.mrb[0].mxu0 %v2171
  %v2337 = vpop.f32.mrb[0].mxu0
  %v2338 = vadd.f32 %v2047, %v2337
  %v2339 = vpop.f32.mrb[0].mxu0
  %2340 = vmatprep.mubr.f32.mxu0 0.0
  %2341 = vmatmul.mubr.f32.gmra.mrb[0].mxu0 %v2173
  %v2342 = vpop.f32.mrb[0].mxu0
  %v2343 = vadd.f32 %v2048, %v2342
  %v2344 = vpop.f32.mrb[0].mxu0
  %2345 = vmatprep.mubr.f32.mxu0 0.0
  %2346 = vmatmul.mubr.f32.gmra.mrb[0].mxu0 %v2175
  %v2347 = vpop.f32.mrb[0].mxu0
  %v2348 = vadd.f32 %v2049, %v2347
  %v2349 = vpop.f32.mrb[0].mxu0
  %2350 = vmatprep.mubr.f32.mxu0 0.0
  %2351 = vmatmul.mubr.f32.gmra.mrb[0].mxu0 %v2177
  %v2352 = vpop.f32.mrb[0].mxu0
  %v2353 = vadd.f32 %v2050, %v2352
  %v2354 = vpop.f32.mrb[0].mxu0
  %2355 = vdwg.mxu0
  %2356 = vmax.xlane.f32.xlu0 %v2278
  %v2357 = vpop.xlane.xlu0 %2356
  %2358 = vmax.xlane.f32.xlu0 %v2283
  %v2359 = vpop.xlane.xlu0 %2358
  %2360 = vmax.xlane.f32.xlu0 %v2288
  %v2361 = vpop.xlane.xlu0 %2360
  %2362 = vmax.xlane.f32.xlu0 %v2293
  %v2363 = vpop.xlane.xlu0 %2362
  %2364 = vmax.xlane.f32.xlu0 %v2298
  %v2365 = vpop.xlane.xlu0 %2364
  %2366 = vmax.xlane.f32.xlu0 %v2303
  %v2367 = vpop.xlane.xlu0 %2366
  %2368 = vmax.xlane.f32.xlu0 %v2308
  %v2369 = vpop.xlane.xlu0 %2368
  %2370 = vmax.xlane.f32.xlu0 %v2313
  %v2371 = vpop.xlane.xlu0 %2370
  %2372 = vmax.xlane.f32.xlu0 %v2318
  %v2373 = vpop.xlane.xlu0 %2372
  %2374 = vmax.xlane.f32.xlu0 %v2323
  %v2375 = vpop.xlane.xlu0 %2374
  %2376 = vmax.xlane.f32.xlu0 %v2328
  %v2377 = vpop.xlane.xlu0 %2376
  %2378 = vmax.xlane.f32.xlu0 %v2333
  %v2379 = vpop.xlane.xlu0 %2378
  %2380 = vmax.xlane.f32.xlu0 %v2338
  %v2381 = vpop.xlane.xlu0 %2380
  %2382 = vmax.xlane.f32.xlu0 %v2343
  %v2383 = vpop.xlane.xlu0 %2382
  %2384 = vmax.xlane.f32.xlu0 %v2348
  %v2385 = vpop.xlane.xlu0 %2384
  %2386 = vmax.xlane.f32.xlu0 %v2353
  %v2387 = vpop.xlane.xlu0 %2386
  %v2388 = vsub.f32 %v2278, %v2357
  %v2389 = vsub.f32 %v2283, %v2359
  %v2390 = vsub.f32 %v2288, %v2361
  %v2391 = vsub.f32 %v2293, %v2363
  %v2392 = vsub.f32 %v2298, %v2365
  %v2393 = vsub.f32 %v2303, %v2367
  %v2394 = vsub.f32 %v2308, %v2369
  %v2395 = vsub.f32 %v2313, %v2371
  %v2396 = vsub.f32 %v2318, %v2373
  %v2397 = vsub.f32 %v2323, %v2375
  %v2398 = vsub.f32 %v2328, %v2377
  %v2399 = vsub.f32 %v2333, %v2379
  %v2400 = vsub.f32 %v2338, %v2381
  %v2401 = vsub.f32 %v2343, %v2383
  %v2402 = vsub.f32 %v2348, %v2385
  %v2403 = vsub.f32 %v2353, %v2387
  %v2404 = vmul.f32 %v2388, 1.442695
  %v2405 = vpow.pop %v2404
  %v2406 = vmul.f32 %v2389, 1.442695
  %v2407 = vpow.pop %v2406
  %v2408 = vmul.f32 %v2390, 1.442695
  %v2409 = vpow.pop %v2408
  %v2410 = vmul.f32 %v2391, 1.442695
  %v2411 = vpow.pop %v2410
  %v2412 = vmul.f32 %v2392, 1.442695
  %v2413 = vpow.pop %v2412
  %v2414 = vmul.f32 %v2393, 1.442695
  %v2415 = vpow.pop %v2414
  %v2416 = vmul.f32 %v2394, 1.442695
  %v2417 = vpow.pop %v2416
  %v2418 = vmul.f32 %v2395, 1.442695
  %v2419 = vpow.pop %v2418
  %v2420 = vmul.f32 %v2396, 1.442695
  %v2421 = vpow.pop %v2420
  %v2422 = vmul.f32 %v2397, 1.442695
  %v2423 = vpow.pop %v2422
  %v2424 = vmul.f32 %v2398, 1.442695
  %v2425 = vpow.pop %v2424
  %v2426 = vmul.f32 %v2399, 1.442695
  %v2427 = vpow.pop %v2426
  %v2428 = vmul.f32 %v2400, 1.442695
  %v2429 = vpow.pop %v2428
  %v2430 = vmul.f32 %v2401, 1.442695
  %v2431 = vpow.pop %v2430
  %v2432 = vmul.f32 %v2402, 1.442695
  %v2433 = vpow.pop %v2432
  %v2434 = vmul.f32 %v2403, 1.442695
  %v2435 = vpow.pop %v2434
  %2436 = vadd.xlane.f32.xlu0 %v2405
  %v2437 = vpop.xlane.xlu0 %2436
  %2438 = vadd.xlane.f32.xlu0 %v2407
  %v2439 = vpop.xlane.xlu0 %2438
  %2440 = vadd.xlane.f32.xlu0 %v2409
  %v2441 = vpop.xlane.xlu0 %2440
  %2442 = vadd.xlane.f32.xlu0 %v2411
  %v2443 = vpop.xlane.xlu0 %2442
  %2444 = vadd.xlane.f32.xlu0 %v2413
  %v2445 = vpop.xlane.xlu0 %2444
  %2446 = vadd.xlane.f32.xlu0 %v2415
  %v2447 = vpop.xlane.xlu0 %2446
  %2448 = vadd.xlane.f32.xlu0 %v2417
  %v2449 = vpop.xlane.xlu0 %2448
  %2450 = vadd.xlane.f32.xlu0 %v2419
  %v2451 = vpop.xlane.xlu0 %2450
  %2452 = vadd.xlane.f32.xlu0 %v2421
  %v2453 = vpop.xlane.xlu0 %2452
  %2454 = vadd.xlane.f32.xlu0 %v2423
  %v2455 = vpop.xlane.xlu0 %2454
  %2456 = vadd.xlane.f32.xlu0 %v2425
  %v2457 = vpop.xlane.xlu0 %2456
  %2458 = vadd.xlane.f32.xlu0 %v2427
  %v2459 = vpop.xlane.xlu0 %2458
  %2460 = vadd.xlane.f32.xlu0 %v2429
  %v2461 = vpop.xlane.xlu0 %2460
  %2462 = vadd.xlane.f32.xlu0 %v2431
  %v2463 = vpop.xlane.xlu0 %2462
  %2464 = vadd.xlane.f32.xlu0 %v2433
  %v2465 = vpop.xlane.xlu0 %2464
  %2466 = vadd.xlane.f32.xlu0 %v2435
  %v2467 = vpop.xlane.xlu0 %2466
  %v2468 = vrcp.pop %v2437
  %v2469 = vrcp.pop %v2439
  %v2470 = vrcp.pop %v2441
  %v2471 = vrcp.pop %v2443
  %v2472 = vrcp.pop %v2445
  %v2473 = vrcp.pop %v2447
  %v2474 = vrcp.pop %v2449
  %v2475 = vrcp.pop %v2451
  %v2476 = vrcp.pop %v2453
  %v2477 = vrcp.pop %v2455
  %v2478 = vrcp.pop %v2457
  %v2479 = vrcp.pop %v2459
  %v2480 = vrcp.pop %v2461
  %v2481 = vrcp.pop %v2463
  %v2482 = vrcp.pop %v2465
  %v2483 = vrcp.pop %v2467
  %v2484 = vmul.f32 %v2405, %v2468
  %v2485 = vmul.f32 %v2407, %v2469
  %v2486 = vmul.f32 %v2409, %v2470
  %v2487 = vmul.f32 %v2411, %v2471
  %v2488 = vmul.f32 %v2413, %v2472
  %v2489 = vmul.f32 %v2415, %v2473
  %v2490 = vmul.f32 %v2417, %v2474
  %v2491 = vmul.f32 %v2419, %v2475
  %v2492 = vmul.f32 %v2421, %v2476
  %v2493 = vmul.f32 %v2423, %v2477
  %v2494 = vmul.f32 %v2425, %v2478
  %v2495 = vmul.f32 %v2427, %v2479
  %v2496 = vmul.f32 %v2429, %v2480
  %v2497 = vmul.f32 %v2431, %v2481
  %v2498 = vmul.f32 %v2433, %v2482
  %v2499 = vmul.f32 %v2435, %v2483
  %2500 = vrot.lane.b32.xlu0 %v193, 56
  %v2501 = vpop.permute.xlu0 %2500
  %2502 = vrot.lane.b32.xlu0 %v198, 56
  %v2503 = vpop.permute.xlu0 %2502
  %2504 = vrot.lane.b32.xlu0 %v203, 56
  %v2505 = vpop.permute.xlu0 %2504
  %2506 = vrot.lane.b32.xlu0 %v208, 56
  %v2507 = vpop.permute.xlu0 %2506
  %2508 = vrot.lane.b32.xlu0 %v213, 56
  %v2509 = vpop.permute.xlu0 %2508
  %2510 = vrot.lane.b32.xlu0 %v218, 56
  %v2511 = vpop.permute.xlu0 %2510
  %2512 = vrot.lane.b32.xlu0 %v223, 56
  %v2513 = vpop.permute.xlu0 %2512
  %2514 = vrot.lane.b32.xlu0 %v228, 56
  %v2515 = vpop.permute.xlu0 %2514
  %2516 = vrot.lane.b32.xlu0 %v233, 56
  %v2517 = vpop.permute.xlu0 %2516
  %2518 = vrot.lane.b32.xlu0 %v238, 56
  %v2519 = vpop.permute.xlu0 %2518
  %2520 = vrot.lane.b32.xlu0 %v243, 56
  %v2521 = vpop.permute.xlu0 %2520
  %2522 = vrot.lane.b32.xlu0 %v248, 56
  %v2523 = vpop.permute.xlu0 %2522
  %2524 = vrot.lane.b32.xlu0 %v253, 56
  %v2525 = vpop.permute.xlu0 %2524
  %2526 = vrot.lane.b32.xlu0 %v258, 56
  %v2527 = vpop.permute.xlu0 %2526
  %2528 = vrot.lane.b32.xlu0 %v263, 56
  %v2529 = vpop.permute.xlu0 %2528
  %2530 = vrot.lane.b32.xlu0 %v268, 56
  %v2531 = vpop.permute.xlu0 %2530
  %2548 = vmatprep.subr.mxu0 0.0
  %2549 = vmatpush1.msra.mxu0 %v2501
  %2550 = vmatprep.subr.mxu0 0.0
  %2551 = vmatpush1.msra.mxu0 %v2503
  %2552 = vmatprep.subr.mxu0 0.0
  %2553 = vmatpush1.msra.mxu0 %v2505
  %2554 = vmatprep.subr.mxu0 0.0
  %2555 = vmatpush1.msra.mxu0 %v2507
  %2556 = vmatprep.subr.mxu0 0.0
  %2557 = vmatpush1.msra.mxu0 %v2509
  %2558 = vmatprep.subr.mxu0 0.0
  %2559 = vmatpush1.msra.mxu0 %v2511
  %2560 = vmatprep.subr.mxu0 0.0
  %2561 = vmatpush1.msra.mxu0 %v2513
  %2562 = vmatprep.subr.mxu0 0.0
  %2563 = vmatpush1.msra.mxu0 %v2515
  %2564 = vmatprep.subr.mxu0 0.0
  %2565 = vmatpush1.msra.mxu0 %v2517
  %2566 = vmatprep.subr.mxu0 0.0
  %2567 = vmatpush1.msra.mxu0 %v2519
  %2568 = vmatprep.subr.mxu0 0.0
  %2569 = vmatpush1.msra.mxu0 %v2521
  %2570 = vmatprep.subr.mxu0 0.0
  %2571 = vmatpush1.msra.mxu0 %v2523
  %2572 = vmatprep.subr.mxu0 0.0
  %2573 = vmatpush1.msra.mxu0 %v2525
  %2574 = vmatprep.subr.mxu0 0.0
  %2575 = vmatpush1.msra.mxu0 %v2527
  %2576 = vmatprep.subr.mxu0 0.0
  %2577 = vmatpush1.msra.mxu0 %v2529
  %2578 = vmatprep.subr.mxu0 0.0
  %2579 = vmatpush1.msra.mxu0 %v2531
  %2580 = vmatprep.subr.mxu0 0.0
  %2581 = vmatpush1.msra.mxu0 0.0
  %2582 = vmatprep.subr.mxu0 0.0
  %2583 = vmatpush1.msra.mxu0 0.0
  %2584 = vmatprep.subr.mxu0 0.0
  %2585 = vmatpush1.msra.mxu0 0.0
  %2586 = vmatprep.subr.mxu0 0.0
  %2587 = vmatpush1.msra.mxu0 0.0
  %2588 = vmatprep.subr.mxu0 0.0
  %2589 = vmatpush1.msra.mxu0 0.0
  %2590 = vmatprep.subr.mxu0 0.0
  %2591 = vmatpush1.msra.mxu0 0.0
  %2592 = vmatprep.subr.mxu0 0.0
  %2593 = vmatpush1.msra.mxu0 0.0
  %2594 = vmatprep.subr.mxu0 0.0
  %2595 = vmatpush1.msra.mxu0 0.0
  %2596 = vmatprep.subr.mxu0 0.0
  %2597 = vmatpush1.msra.mxu0 0.0
  %2598 = vmatprep.subr.mxu0 0.0
  %2599 = vmatpush1.msra.mxu0 0.0
  %2600 = vmatprep.subr.mxu0 0.0
  %2601 = vmatpush1.msra.mxu0 0.0
  %2602 = vmatprep.subr.mxu0 0.0
  %2603 = vmatpush1.msra.mxu0 0.0
  %2604 = vmatprep.subr.mxu0 0.0
  %2605 = vmatpush1.msra.mxu0 0.0
  %2606 = vmatprep.subr.mxu0 0.0
  %2607 = vmatpush1.msra.mxu0 0.0
  %2608 = vmatprep.subr.mxu0 0.0
  %2609 = vmatpush1.msra.mxu0 0.0
  %2610 = vmatprep.subr.mxu0 0.0
  %2611 = vmatpush1.msra.mxu0 0.0
  %2612 = vmatprep.mubr.f32.mxu0 0.0
  %2613 = vmatmul.mubr.f32.gmra.mrb[0].mxu0 %v2484
  %v2614 = vpop.f32.mrb[0].mxu0
  %v2615 = vadd.f32 0.0, %v2614
  %v2616 = vpop.f32.mrb[0].mxu0
  %2617 = vmatprep.mubr.f32.mxu0 0.0
  %2618 = vmatmul.mubr.f32.gmra.mrb[0].mxu0 %v2485
  %v2619 = vpop.f32.mrb[0].mxu0
  %v2620 = vadd.f32 0.0, %v2619
  %v2621 = vpop.f32.mrb[0].mxu0
  %2622 = vmatprep.mubr.f32.mxu0 0.0
  %2623 = vmatmul.mubr.f32.gmra.mrb[0].mxu0 %v2486
  %v2624 = vpop.f32.mrb[0].mxu0
  %v2625 = vadd.f32 0.0, %v2624
  %v2626 = vpop.f32.mrb[0].mxu0
  %2627 = vmatprep.mubr.f32.mxu0 0.0
  %2628 = vmatmul.mubr.f32.gmra.mrb[0].mxu0 %v2487
  %v2629 = vpop.f32.mrb[0].mxu0
  %v2630 = vadd.f32 0.0, %v2629
  %v2631 = vpop.f32.mrb[0].mxu0
  %2632 = vmatprep.mubr.f32.mxu0 0.0
  %2633 = vmatmul.mubr.f32.gmra.mrb[0].mxu0 %v2488
  %v2634 = vpop.f32.mrb[0].mxu0
  %v2635 = vadd.f32 0.0, %v2634
  %v2636 = vpop.f32.mrb[0].mxu0
  %2637 = vmatprep.mubr.f32.mxu0 0.0
  %2638 = vmatmul.mubr.f32.gmra.mrb[0].mxu0 %v2489
  %v2639 = vpop.f32.mrb[0].mxu0
  %v2640 = vadd.f32 0.0, %v2639
  %v2641 = vpop.f32.mrb[0].mxu0
  %2642 = vmatprep.mubr.f32.mxu0 0.0
  %2643 = vmatmul.mubr.f32.gmra.mrb[0].mxu0 %v2490
  %v2644 = vpop.f32.mrb[0].mxu0
  %v2645 = vadd.f32 0.0, %v2644
  %v2646 = vpop.f32.mrb[0].mxu0
  %2647 = vmatprep.mubr.f32.mxu0 0.0
  %2648 = vmatmul.mubr.f32.gmra.mrb[0].mxu0 %v2491
  %v2649 = vpop.f32.mrb[0].mxu0
  %v2650 = vadd.f32 0.0, %v2649
  %v2651 = vpop.f32.mrb[0].mxu0
  %2652 = vmatprep.mubr.f32.mxu0 0.0
  %2653 = vmatmul.mubr.f32.gmra.mrb[0].mxu0 %v2492
  %v2654 = vpop.f32.mrb[0].mxu0
  %v2655 = vadd.f32 0.0, %v2654
  %v2656 = vpop.f32.mrb[0].mxu0
  %2657 = vmatprep.mubr.f32.mxu0 0.0
  %2658 = vmatmul.mubr.f32.gmra.mrb[0].mxu0 %v2493
  %v2659 = vpop.f32.mrb[0].mxu0
  %v2660 = vadd.f32 0.0, %v2659
  %v2661 = vpop.f32.mrb[0].mxu0
  %2662 = vmatprep.mubr.f32.mxu0 0.0
  %2663 = vmatmul.mubr.f32.gmra.mrb[0].mxu0 %v2494
  %v2664 = vpop.f32.mrb[0].mxu0
  %v2665 = vadd.f32 0.0, %v2664
  %v2666 = vpop.f32.mrb[0].mxu0
  %2667 = vmatprep.mubr.f32.mxu0 0.0
  %2668 = vmatmul.mubr.f32.gmra.mrb[0].mxu0 %v2495
  %v2669 = vpop.f32.mrb[0].mxu0
  %v2670 = vadd.f32 0.0, %v2669
  %v2671 = vpop.f32.mrb[0].mxu0
  %2672 = vmatprep.mubr.f32.mxu0 0.0
  %2673 = vmatmul.mubr.f32.gmra.mrb[0].mxu0 %v2496
  %v2674 = vpop.f32.mrb[0].mxu0
  %v2675 = vadd.f32 0.0, %v2674
  %v2676 = vpop.f32.mrb[0].mxu0
  %2677 = vmatprep.mubr.f32.mxu0 0.0
  %2678 = vmatmul.mubr.f32.gmra.mrb[0].mxu0 %v2497
  %v2679 = vpop.f32.mrb[0].mxu0
  %v2680 = vadd.f32 0.0, %v2679
  %v2681 = vpop.f32.mrb[0].mxu0
  %2682 = vmatprep.mubr.f32.mxu0 0.0
  %2683 = vmatmul.mubr.f32.gmra.mrb[0].mxu0 %v2498
  %v2684 = vpop.f32.mrb[0].mxu0
  %v2685 = vadd.f32 0.0, %v2684
  %v2686 = vpop.f32.mrb[0].mxu0
  %2687 = vmatprep.mubr.f32.mxu0 0.0
  %2688 = vmatmul.mubr.f32.gmra.mrb[0].mxu0 %v2499
  %v2689 = vpop.f32.mrb[0].mxu0
  %v2690 = vadd.f32 0.0, %v2689
  %v2691 = vpop.f32.mrb[0].mxu0
  %2692 = vdwg.mxu0
  %v2693 = vld [vmem:[%s5 + $0x8] sm:$0xff]
  %v2695 = vsel %vm288, %v2615, 0
  %v2698 = vsel %vm288, %v2620, 0
  %v2701 = vsel %vm288, %v2625, 0
  %v2704 = vsel %vm288, %v2630, 0
  %v2707 = vsel %vm288, %v2635, 0
  %v2710 = vsel %vm288, %v2640, 0
  %v2713 = vsel %vm288, %v2645, 0
  %v2716 = vsel %vm288, %v2650, 0
  %v2719 = vsel %vm288, %v2655, 0
  %v2722 = vsel %vm288, %v2660, 0
  %v2725 = vsel %vm288, %v2665, 0
  %v2728 = vsel %vm288, %v2670, 0
  %v2731 = vsel %vm288, %v2675, 0
  %v2734 = vsel %vm288, %v2680, 0
  %v2737 = vsel %vm288, %v2685, 0
  %v2740 = vsel %vm288, %v2690, 0
  %2742 = vmatprep.subr.mxu0 0.0
  %2743 = vmatpush1.msra.mxu0 %v2693
  %2744 = vmatprep.subr.mxu0 0.0
  %2745 = vmatpush1.msra.mxu0 0.0
  %2746 = vmatprep.subr.mxu0 0.0
  %2747 = vmatpush1.msra.mxu0 0.0
  %2748 = vmatprep.subr.mxu0 0.0
  %2749 = vmatpush1.msra.mxu0 0.0
  %2750 = vmatprep.subr.mxu0 0.0
  %2751 = vmatpush1.msra.mxu0 0.0
  %2752 = vmatprep.subr.mxu0 0.0
  %2753 = vmatpush1.msra.mxu0 0.0
  %2754 = vmatprep.subr.mxu0 0.0
  %2755 = vmatpush1.msra.mxu0 0.0
  %2756 = vmatprep.subr.mxu0 0.0
  %2757 = vmatpush1.msra.mxu0 0.0
  %2758 = vmatprep.subr.mxu0 0.0
  %2759 = vmatpush1.msra.mxu0 0.0
  %2760 = vmatprep.subr.mxu0 0.0
  %2761 = vmatpush1.msra.mxu0 0.0
  %2762 = vmatprep.subr.mxu0 0.0
  %2763 = vmatpush1.msra.mxu0 0.0
  %2764 = vmatprep.subr.mxu0 0.0
  %2765 = vmatpush1.msra.mxu0 0.0
  %2766 = vmatprep.subr.mxu0 0.0
  %2767 = vmatpush1.msra.mxu0 0.0
  %2768 = vmatprep.subr.mxu0 0.0
  %2769 = vmatpush1.msra.mxu0 0.0
  %2770 = vmatprep.subr.mxu0 0.0
  %2771 = vmatpush1.msra.mxu0 0.0
  %2772 = vmatprep.subr.mxu0 0.0
  %2773 = vmatpush1.msra.mxu0 0.0
  %2774 = vmatprep.subr.mxu0 0.0
  %2775 = vmatpush1.msra.mxu0 0.0
  %2776 = vmatprep.subr.mxu0 0.0
  %2777 = vmatpush1.msra.mxu0 0.0
  %2778 = vmatprep.subr.mxu0 0.0
  %2779 = vmatpush1.msra.mxu0 0.0
  %2780 = vmatprep.subr.mxu0 0.0
  %2781 = vmatpush1.msra.mxu0 0.0
  %2782 = vmatprep.subr.mxu0 0.0
  %2783 = vmatpush1.msra.mxu0 0.0
  %2784 = vmatprep.subr.mxu0 0.0
  %2785 = vmatpush1.msra.mxu0 0.0
  %2786 = vmatprep.subr.mxu0 0.0
  %2787 = vmatpush1.msra.mxu0 0.0
  %2788 = vmatprep.subr.mxu0 0.0
  %2789 = vmatpush1.msra.mxu0 0.0
  %2790 = vmatprep.subr.mxu0 0.0
  %2791 = vmatpush1.msra.mxu0 0.0
  %2792 = vmatprep.subr.mxu0 0.0
  %2793 = vmatpush1.msra.mxu0 0.0
  %2794 = vmatprep.subr.mxu0 0.0
  %2795 = vmatpush1.msra.mxu0 0.0
  %2796 = vmatprep.subr.mxu0 0.0
  %2797 = vmatpush1.msra.mxu0 0.0
  %2798 = vmatprep.subr.mxu0 0.0
  %2799 = vmatpush1.msra.mxu0 0.0
  %2800 = vmatprep.subr.mxu0 0.0
  %2801 = vmatpush1.msra.mxu0 0.0
  %2802 = vmatprep.subr.mxu0 0.0
  %2803 = vmatpush1.msra.mxu0 0.0
  %2804 = vmatprep.subr.mxu0 0.0
  %2805 = vmatpush1.msra.mxu0 0.0
  %2806 = vmatprep.mubr.f32.mxu0 0.0
  %2807 = vmatmul.mubr.f32.gmra.mrb[0].mxu0 %v2695
  %v2808 = vpop.f32.mrb[0].mxu0
  %v2809 = vadd.f32 0.0, %v2808
  %v2810 = vpop.f32.mrb[0].mxu0
  %2811 = vmatprep.mubr.f32.mxu0 0.0
  %2812 = vmatmul.mubr.f32.gmra.mrb[0].mxu0 %v2698
  %v2813 = vpop.f32.mrb[0].mxu0
  %v2814 = vadd.f32 0.0, %v2813
  %v2815 = vpop.f32.mrb[0].mxu0
  %2816 = vmatprep.mubr.f32.mxu0 0.0
  %2817 = vmatmul.mubr.f32.gmra.mrb[0].mxu0 %v2701
  %v2818 = vpop.f32.mrb[0].mxu0
  %v2819 = vadd.f32 0.0, %v2818
  %v2820 = vpop.f32.mrb[0].mxu0
  %2821 = vmatprep.mubr.f32.mxu0 0.0
  %2822 = vmatmul.mubr.f32.gmra.mrb[0].mxu0 %v2704
  %v2823 = vpop.f32.mrb[0].mxu0
  %v2824 = vadd.f32 0.0, %v2823
  %v2825 = vpop.f32.mrb[0].mxu0
  %2826 = vmatprep.mubr.f32.mxu0 0.0
  %2827 = vmatmul.mubr.f32.gmra.mrb[0].mxu0 %v2707
  %v2828 = vpop.f32.mrb[0].mxu0
  %v2829 = vadd.f32 0.0, %v2828
  %v2830 = vpop.f32.mrb[0].mxu0
  %2831 = vmatprep.mubr.f32.mxu0 0.0
  %2832 = vmatmul.mubr.f32.gmra.mrb[0].mxu0 %v2710
  %v2833 = vpop.f32.mrb[0].mxu0
  %v2834 = vadd.f32 0.0, %v2833
  %v2835 = vpop.f32.mrb[0].mxu0
  %2836 = vmatprep.mubr.f32.mxu0 0.0
  %2837 = vmatmul.mubr.f32.gmra.mrb[0].mxu0 %v2713
  %v2838 = vpop.f32.mrb[0].mxu0
  %v2839 = vadd.f32 0.0, %v2838
  %v2840 = vpop.f32.mrb[0].mxu0
  %2841 = vmatprep.mubr.f32.mxu0 0.0
  %2842 = vmatmul.mubr.f32.gmra.mrb[0].mxu0 %v2716
  %v2843 = vpop.f32.mrb[0].mxu0
  %v2844 = vadd.f32 0.0, %v2843
  %v2845 = vpop.f32.mrb[0].mxu0
  %2846 = vmatprep.mubr.f32.mxu0 0.0
  %2847 = vmatmul.mubr.f32.gmra.mrb[0].mxu0 %v2719
  %v2848 = vpop.f32.mrb[0].mxu0
  %v2849 = vadd.f32 0.0, %v2848
  %v2850 = vpop.f32.mrb[0].mxu0
  %2851 = vmatprep.mubr.f32.mxu0 0.0
  %2852 = vmatmul.mubr.f32.gmra.mrb[0].mxu0 %v2722
  %v2853 = vpop.f32.mrb[0].mxu0
  %v2854 = vadd.f32 0.0, %v2853
  %v2855 = vpop.f32.mrb[0].mxu0
  %2856 = vmatprep.mubr.f32.mxu0 0.0
  %2857 = vmatmul.mubr.f32.gmra.mrb[0].mxu0 %v2725
  %v2858 = vpop.f32.mrb[0].mxu0
  %v2859 = vadd.f32 0.0, %v2858
  %v2860 = vpop.f32.mrb[0].mxu0
  %2861 = vmatprep.mubr.f32.mxu0 0.0
  %2862 = vmatmul.mubr.f32.gmra.mrb[0].mxu0 %v2728
  %v2863 = vpop.f32.mrb[0].mxu0
  %v2864 = vadd.f32 0.0, %v2863
  %v2865 = vpop.f32.mrb[0].mxu0
  %2866 = vmatprep.mubr.f32.mxu0 0.0
  %2867 = vmatmul.mubr.f32.gmra.mrb[0].mxu0 %v2731
  %v2868 = vpop.f32.mrb[0].mxu0
  %v2869 = vadd.f32 0.0, %v2868
  %v2870 = vpop.f32.mrb[0].mxu0
  %2871 = vmatprep.mubr.f32.mxu0 0.0
  %2872 = vmatmul.mubr.f32.gmra.mrb[0].mxu0 %v2734
  %v2873 = vpop.f32.mrb[0].mxu0
  %v2874 = vadd.f32 0.0, %v2873
  %v2875 = vpop.f32.mrb[0].mxu0
  %2876 = vmatprep.mubr.f32.mxu0 0.0
  %2877 = vmatmul.mubr.f32.gmra.mrb[0].mxu0 %v2737
  %v2878 = vpop.f32.mrb[0].mxu0
  %v2879 = vadd.f32 0.0, %v2878
  %v2880 = vpop.f32.mrb[0].mxu0
  %2881 = vmatprep.mubr.f32.mxu0 0.0
  %2882 = vmatmul.mubr.f32.gmra.mrb[0].mxu0 %v2740
  %v2883 = vpop.f32.mrb[0].mxu0
  %v2884 = vadd.f32 0.0, %v2883
  %v2885 = vpop.f32.mrb[0].mxu0
  %2886 = vdwg.mxu0
  %v2888 = vsel %vm288, %v1355, 0
  %v2891 = vsel %vm288, %v1360, 0
  %v2894 = vsel %vm288, %v1365, 0
  %v2897 = vsel %vm288, %v1370, 0
  %v2900 = vsel %vm288, %v1375, 0
  %v2903 = vsel %vm288, %v1380, 0
  %v2906 = vsel %vm288, %v1385, 0
  %v2909 = vsel %vm288, %v1390, 0
  %v2912 = vsel %vm288, %v1395, 0
  %v2915 = vsel %vm288, %v1400, 0
  %v2918 = vsel %vm288, %v1405, 0
  %v2921 = vsel %vm288, %v1410, 0
  %v2924 = vsel %vm288, %v1415, 0
  %v2927 = vsel %vm288, %v1420, 0
  %v2930 = vsel %vm288, %v1425, 0
  %v2933 = vsel %vm288, %v1430, 0
  %2935 = vmatprep.subr.mxu0 0.0
  %2936 = vmatpush1.msra.mxu0 %v1433
  %2937 = vmatprep.subr.mxu0 0.0
  %2938 = vmatpush1.msra.mxu0 0.0
  %2939 = vmatprep.subr.mxu0 0.0
  %2940 = vmatpush1.msra.mxu0 0.0
  %2941 = vmatprep.subr.mxu0 0.0
  %2942 = vmatpush1.msra.mxu0 0.0
  %2943 = vmatprep.subr.mxu0 0.0
  %2944 = vmatpush1.msra.mxu0 0.0
  %2945 = vmatprep.subr.mxu0 0.0
  %2946 = vmatpush1.msra.mxu0 0.0
  %2947 = vmatprep.subr.mxu0 0.0
  %2948 = vmatpush1.msra.mxu0 0.0
  %2949 = vmatprep.subr.mxu0 0.0
  %2950 = vmatpush1.msra.mxu0 0.0
  %2951 = vmatprep.subr.mxu0 0.0
  %2952 = vmatpush1.msra.mxu0 0.0
  %2953 = vmatprep.subr.mxu0 0.0
  %2954 = vmatpush1.msra.mxu0 0.0
  %2955 = vmatprep.subr.mxu0 0.0
  %2956 = vmatpush1.msra.mxu0 0.0
  %2957 = vmatprep.subr.mxu0 0.0
  %2958 = vmatpush1.msra.mxu0 0.0
  %2959 = vmatprep.subr.mxu0 0.0
  %2960 = vmatpush1.msra.mxu0 0.0
  %2961 = vmatprep.subr.mxu0 0.0
  %2962 = vmatpush1.msra.mxu0 0.0
  %2963 = vmatprep.subr.mxu0 0.0
  %2964 = vmatpush1.msra.mxu0 0.0
  %2965 = vmatprep.subr.mxu0 0.0
  %2966 = vmatpush1.msra.mxu0 0.0
  %2967 = vmatprep.subr.mxu0 0.0
  %2968 = vmatpush1.msra.mxu0 0.0
  %2969 = vmatprep.subr.mxu0 0.0
  %2970 = vmatpush1.msra.mxu0 0.0
  %2971 = vmatprep.subr.mxu0 0.0
  %2972 = vmatpush1.msra.mxu0 0.0
  %2973 = vmatprep.subr.mxu0 0.0
  %2974 = vmatpush1.msra.mxu0 0.0
  %2975 = vmatprep.subr.mxu0 0.0
  %2976 = vmatpush1.msra.mxu0 0.0
  %2977 = vmatprep.subr.mxu0 0.0
  %2978 = vmatpush1.msra.mxu0 0.0
  %2979 = vmatprep.subr.mxu0 0.0
  %2980 = vmatpush1.msra.mxu0 0.0
  %2981 = vmatprep.subr.mxu0 0.0
  %2982 = vmatpush1.msra.mxu0 0.0
  %2983 = vmatprep.subr.mxu0 0.0
  %2984 = vmatpush1.msra.mxu0 0.0
  %2985 = vmatprep.subr.mxu0 0.0
  %2986 = vmatpush1.msra.mxu0 0.0
  %2987 = vmatprep.subr.mxu0 0.0
  %2988 = vmatpush1.msra.mxu0 0.0
  %2989 = vmatprep.subr.mxu0 0.0
  %2990 = vmatpush1.msra.mxu0 0.0
  %2991 = vmatprep.subr.mxu0 0.0
  %2992 = vmatpush1.msra.mxu0 0.0
  %2993 = vmatprep.subr.mxu0 0.0
  %2994 = vmatpush1.msra.mxu0 0.0
  %2995 = vmatprep.subr.mxu0 0.0
  %2996 = vmatpush1.msra.mxu0 0.0
  %2997 = vmatprep.subr.mxu0 0.0
  %2998 = vmatpush1.msra.mxu0 0.0
  %2999 = vmatprep.mubr.f32.mxu0 0.0
  %3000 = vmatmul.mubr.f32.gmra.mrb[0].mxu0 %v2888
  %v3001 = vpop.f32.mrb[0].mxu0
  %v3002 = vadd.f32 %v2809, %v3001
  %v3003 = vpop.f32.mrb[0].mxu0
  %3004 = vmatprep.mubr.f32.mxu0 0.0
  %3005 = vmatmul.mubr.f32.gmra.mrb[0].mxu0 %v2891
  %v3006 = vpop.f32.mrb[0].mxu0
  %v3007 = vadd.f32 %v2814, %v3006
  %v3008 = vpop.f32.mrb[0].mxu0
  %3009 = vmatprep.mubr.f32.mxu0 0.0
  %3010 = vmatmul.mubr.f32.gmra.mrb[0].mxu0 %v2894
  %v3011 = vpop.f32.mrb[0].mxu0
  %v3012 = vadd.f32 %v2819, %v3011
  %v3013 = vpop.f32.mrb[0].mxu0
  %3014 = vmatprep.mubr.f32.mxu0 0.0
  %3015 = vmatmul.mubr.f32.gmra.mrb[0].mxu0 %v2897
  %v3016 = vpop.f32.mrb[0].mxu0
  %v3017 = vadd.f32 %v2824, %v3016
  %v3018 = vpop.f32.mrb[0].mxu0
  %3019 = vmatprep.mubr.f32.mxu0 0.0
  %3020 = vmatmul.mubr.f32.gmra.mrb[0].mxu0 %v2900
  %v3021 = vpop.f32.mrb[0].mxu0
  %v3022 = vadd.f32 %v2829, %v3021
  %v3023 = vpop.f32.mrb[0].mxu0
  %3024 = vmatprep.mubr.f32.mxu0 0.0
  %3025 = vmatmul.mubr.f32.gmra.mrb[0].mxu0 %v2903
  %v3026 = vpop.f32.mrb[0].mxu0
  %v3027 = vadd.f32 %v2834, %v3026
  %v3028 = vpop.f32.mrb[0].mxu0
  %3029 = vmatprep.mubr.f32.mxu0 0.0
  %3030 = vmatmul.mubr.f32.gmra.mrb[0].mxu0 %v2906
  %v3031 = vpop.f32.mrb[0].mxu0
  %v3032 = vadd.f32 %v2839, %v3031
  %v3033 = vpop.f32.mrb[0].mxu0
  %3034 = vmatprep.mubr.f32.mxu0 0.0
  %3035 = vmatmul.mubr.f32.gmra.mrb[0].mxu0 %v2909
  %v3036 = vpop.f32.mrb[0].mxu0
  %v3037 = vadd.f32 %v2844, %v3036
  %v3038 = vpop.f32.mrb[0].mxu0
  %3039 = vmatprep.mubr.f32.mxu0 0.0
  %3040 = vmatmul.mubr.f32.gmra.mrb[0].mxu0 %v2912
  %v3041 = vpop.f32.mrb[0].mxu0
  %v3042 = vadd.f32 %v2849, %v3041
  %v3043 = vpop.f32.mrb[0].mxu0
  %3044 = vmatprep.mubr.f32.mxu0 0.0
  %3045 = vmatmul.mubr.f32.gmra.mrb[0].mxu0 %v2915
  %v3046 = vpop.f32.mrb[0].mxu0
  %v3047 = vadd.f32 %v2854, %v3046
  %v3048 = vpop.f32.mrb[0].mxu0
  %3049 = vmatprep.mubr.f32.mxu0 0.0
  %3050 = vmatmul.mubr.f32.gmra.mrb[0].mxu0 %v2918
  %v3051 = vpop.f32.mrb[0].mxu0
  %v3052 = vadd.f32 %v2859, %v3051
  %v3053 = vpop.f32.mrb[0].mxu0
  %3054 = vmatprep.mubr.f32.mxu0 0.0
  %3055 = vmatmul.mubr.f32.gmra.mrb[0].mxu0 %v2921
  %v3056 = vpop.f32.mrb[0].mxu0
  %v3057 = vadd.f32 %v2864, %v3056
  %v3058 = vpop.f32.mrb[0].mxu0
  %3059 = vmatprep.mubr.f32.mxu0 0.0
  %3060 = vmatmul.mubr.f32.gmra.mrb[0].mxu0 %v2924
  %v3061 = vpop.f32.mrb[0].mxu0
  %v3062 = vadd.f32 %v2869, %v3061
  %v3063 = vpop.f32.mrb[0].mxu0
  %3064 = vmatprep.mubr.f32.mxu0 0.0
  %3065 = vmatmul.mubr.f32.gmra.mrb[0].mxu0 %v2927
  %v3066 = vpop.f32.mrb[0].mxu0
  %v3067 = vadd.f32 %v2874, %v3066
  %v3068 = vpop.f32.mrb[0].mxu0
  %3069 = vmatprep.mubr.f32.mxu0 0.0
  %3070 = vmatmul.mubr.f32.gmra.mrb[0].mxu0 %v2930
  %v3071 = vpop.f32.mrb[0].mxu0
  %v3072 = vadd.f32 %v2879, %v3071
  %v3073 = vpop.f32.mrb[0].mxu0
  %3074 = vmatprep.mubr.f32.mxu0 0.0
  %3075 = vmatmul.mubr.f32.gmra.mrb[0].mxu0 %v2933
  %v3076 = vpop.f32.mrb[0].mxu0
  %v3077 = vadd.f32 %v2884, %v3076
  %v3078 = vpop.f32.mrb[0].mxu0
  %3079 = vdwg.mxu0
  %s3080 = scalar_lea.vmem %s2, 2
  %v3081 = vld [vmem:[%s3080] sm:$0x1]
  %3082 = vrot.lane.b32.xlu0 %v272, 112
  %v3083 = vpop.permute.xlu0 %3082
  %3084 = vrot.lane.b32.xlu0 %v273, 112
  %v3085 = vpop.permute.xlu0 %3084
  %3086 = vrot.lane.b32.xlu0 %v274, 112
  %v3087 = vpop.permute.xlu0 %3086
  %3088 = vrot.lane.b32.xlu0 %v275, 112
  %v3089 = vpop.permute.xlu0 %3088
  %3090 = vrot.lane.b32.xlu0 %v276, 112
  %v3091 = vpop.permute.xlu0 %3090
  %3092 = vrot.lane.b32.xlu0 %v277, 112
  %v3093 = vpop.permute.xlu0 %3092
  %3094 = vrot.lane.b32.xlu0 %v278, 112
  %v3095 = vpop.permute.xlu0 %3094
  %3096 = vrot.lane.b32.xlu0 %v279, 112
  %v3097 = vpop.permute.xlu0 %3096
  %3098 = vrot.lane.b32.xlu0 %v280, 112
  %v3099 = vpop.permute.xlu0 %3098
  %3100 = vrot.lane.b32.xlu0 %v281, 112
  %v3101 = vpop.permute.xlu0 %3100
  %3102 = vrot.lane.b32.xlu0 %v282, 112
  %v3103 = vpop.permute.xlu0 %3102
  %3104 = vrot.lane.b32.xlu0 %v283, 112
  %v3105 = vpop.permute.xlu0 %3104
  %3106 = vrot.lane.b32.xlu0 %v284, 112
  %v3107 = vpop.permute.xlu0 %3106
  %3108 = vrot.lane.b32.xlu0 %v285, 112
  %v3109 = vpop.permute.xlu0 %3108
  %3110 = vrot.lane.b32.xlu0 %v286, 112
  %v3111 = vpop.permute.xlu0 %3110
  %3112 = vrot.lane.b32.xlu0 %v287, 112
  %v3113 = vpop.permute.xlu0 %3112
  %v3130 = vsel %vm288, %v3083, 0.0
  %3131 = vadd.xlane.f32.xlu0 %v3130
  %v3132 = vpop.xlane.xlu0 %3131
  %v3133 = vsel %vm288, %v3085, 0.0
  %3134 = vadd.xlane.f32.xlu0 %v3133
  %v3135 = vpop.xlane.xlu0 %3134
  %v3136 = vsel %vm288, %v3087, 0.0
  %3137 = vadd.xlane.f32.xlu0 %v3136
  %v3138 = vpop.xlane.xlu0 %3137
  %v3139 = vsel %vm288, %v3089, 0.0
  %3140 = vadd.xlane.f32.xlu0 %v3139
  %v3141 = vpop.xlane.xlu0 %3140
  %v3142 = vsel %vm288, %v3091, 0.0
  %3143 = vadd.xlane.f32.xlu0 %v3142
  %v3144 = vpop.xlane.xlu0 %3143
  %v3145 = vsel %vm288, %v3093, 0.0
  %3146 = vadd.xlane.f32.xlu0 %v3145
  %v3147 = vpop.xlane.xlu0 %3146
  %v3148 = vsel %vm288, %v3095, 0.0
  %3149 = vadd.xlane.f32.xlu0 %v3148
  %v3150 = vpop.xlane.xlu0 %3149
  %v3151 = vsel %vm288, %v3097, 0.0
  %3152 = vadd.xlane.f32.xlu0 %v3151
  %v3153 = vpop.xlane.xlu0 %3152
  %v3154 = vsel %vm288, %v3099, 0.0
  %3155 = vadd.xlane.f32.xlu0 %v3154
  %v3156 = vpop.xlane.xlu0 %3155
  %v3157 = vsel %vm288, %v3101, 0.0
  %3158 = vadd.xlane.f32.xlu0 %v3157
  %v3159 = vpop.xlane.xlu0 %3158
  %v3160 = vsel %vm288, %v3103, 0.0
  %3161 = vadd.xlane.f32.xlu0 %v3160
  %v3162 = vpop.xlane.xlu0 %3161
  %v3163 = vsel %vm288, %v3105, 0.0
  %3164 = vadd.xlane.f32.xlu0 %v3163
  %v3165 = vpop.xlane.xlu0 %3164
  %v3166 = vsel %vm288, %v3107, 0.0
  %3167 = vadd.xlane.f32.xlu0 %v3166
  %v3168 = vpop.xlane.xlu0 %3167
  %v3169 = vsel %vm288, %v3109, 0.0
  %3170 = vadd.xlane.f32.xlu0 %v3169
  %v3171 = vpop.xlane.xlu0 %3170
  %v3172 = vsel %vm288, %v3111, 0.0
  %3173 = vadd.xlane.f32.xlu0 %v3172
  %v3174 = vpop.xlane.xlu0 %3173
  %v3175 = vsel %vm288, %v3113, 0.0
  %3176 = vadd.xlane.f32.xlu0 %v3175
  %v3177 = vpop.xlane.xlu0 %3176
  %v3178 = vrsqrt.pop %v3132
  %v3179 = vmul.f32 %v3132, %v3178
  %vm3180 = vcmp.eq.f32.partialorder %v3132, inf
  %v3181 = vsel %vm3180, %v3132, %v3179
  %vm3182 = vcmp.eq.f32.partialorder %v3132, 0.0
  %v3183 = vand.u32 %v3132, 2147483648
  %v3184 = vsel %vm3182, %v3183, %v3181
  %v3185 = vrsqrt.pop %v3135
  %v3186 = vmul.f32 %v3135, %v3185
  %vm3187 = vcmp.eq.f32.partialorder %v3135, inf
  %v3188 = vsel %vm3187, %v3135, %v3186
  %vm3189 = vcmp.eq.f32.partialorder %v3135, 0.0
  %v3190 = vand.u32 %v3135, 2147483648
  %v3191 = vsel %vm3189, %v3190, %v3188
  %v3192 = vrsqrt.pop %v3138
  %v3193 = vmul.f32 %v3138, %v3192
  %vm3194 = vcmp.eq.f32.partialorder %v3138, inf
  %v3195 = vsel %vm3194, %v3138, %v3193
  %vm3196 = vcmp.eq.f32.partialorder %v3138, 0.0
  %v3197 = vand.u32 %v3138, 2147483648
  %v3198 = vsel %vm3196, %v3197, %v3195
  %v3199 = vrsqrt.pop %v3141
  %v3200 = vmul.f32 %v3141, %v3199
  %vm3201 = vcmp.eq.f32.partialorder %v3141, inf
  %v3202 = vsel %vm3201, %v3141, %v3200
  %vm3203 = vcmp.eq.f32.partialorder %v3141, 0.0
  %v3204 = vand.u32 %v3141, 2147483648
  %v3205 = vsel %vm3203, %v3204, %v3202
  %v3206 = vrsqrt.pop %v3144
  %v3207 = vmul.f32 %v3144, %v3206
  %vm3208 = vcmp.eq.f32.partialorder %v3144, inf
  %v3209 = vsel %vm3208, %v3144, %v3207
  %vm3210 = vcmp.eq.f32.partialorder %v3144, 0.0
  %v3211 = vand.u32 %v3144, 2147483648
  %v3212 = vsel %vm3210, %v3211, %v3209
  %v3213 = vrsqrt.pop %v3147
  %v3214 = vmul.f32 %v3147, %v3213
  %vm3215 = vcmp.eq.f32.partialorder %v3147, inf
  %v3216 = vsel %vm3215, %v3147, %v3214
  %vm3217 = vcmp.eq.f32.partialorder %v3147, 0.0
  %v3218 = vand.u32 %v3147, 2147483648
  %v3219 = vsel %vm3217, %v3218, %v3216
  %v3220 = vrsqrt.pop %v3150
  %v3221 = vmul.f32 %v3150, %v3220
  %vm3222 = vcmp.eq.f32.partialorder %v3150, inf
  %v3223 = vsel %vm3222, %v3150, %v3221
  %vm3224 = vcmp.eq.f32.partialorder %v3150, 0.0
  %v3225 = vand.u32 %v3150, 2147483648
  %v3226 = vsel %vm3224, %v3225, %v3223
  %v3227 = vrsqrt.pop %v3153
  %v3228 = vmul.f32 %v3153, %v3227
  %vm3229 = vcmp.eq.f32.partialorder %v3153, inf
  %v3230 = vsel %vm3229, %v3153, %v3228
  %vm3231 = vcmp.eq.f32.partialorder %v3153, 0.0
  %v3232 = vand.u32 %v3153, 2147483648
  %v3233 = vsel %vm3231, %v3232, %v3230
  %v3234 = vrsqrt.pop %v3156
  %v3235 = vmul.f32 %v3156, %v3234
  %vm3236 = vcmp.eq.f32.partialorder %v3156, inf
  %v3237 = vsel %vm3236, %v3156, %v3235
  %vm3238 = vcmp.eq.f32.partialorder %v3156, 0.0
  %v3239 = vand.u32 %v3156, 2147483648
  %v3240 = vsel %vm3238, %v3239, %v3237
  %v3241 = vrsqrt.pop %v3159
  %v3242 = vmul.f32 %v3159, %v3241
  %vm3243 = vcmp.eq.f32.partialorder %v3159, inf
  %v3244 = vsel %vm3243, %v3159, %v3242
  %vm3245 = vcmp.eq.f32.partialorder %v3159, 0.0
  %v3246 = vand.u32 %v3159, 2147483648
  %v3247 = vsel %vm3245, %v3246, %v3244
  %v3248 = vrsqrt.pop %v3162
  %v3249 = vmul.f32 %v3162, %v3248
  %vm3250 = vcmp.eq.f32.partialorder %v3162, inf
  %v3251 = vsel %vm3250, %v3162, %v3249
  %vm3252 = vcmp.eq.f32.partialorder %v3162, 0.0
  %v3253 = vand.u32 %v3162, 2147483648
  %v3254 = vsel %vm3252, %v3253, %v3251
  %v3255 = vrsqrt.pop %v3165
  %v3256 = vmul.f32 %v3165, %v3255
  %vm3257 = vcmp.eq.f32.partialorder %v3165, inf
  %v3258 = vsel %vm3257, %v3165, %v3256
  %vm3259 = vcmp.eq.f32.partialorder %v3165, 0.0
  %v3260 = vand.u32 %v3165, 2147483648
  %v3261 = vsel %vm3259, %v3260, %v3258
  %v3262 = vrsqrt.pop %v3168
  %v3263 = vmul.f32 %v3168, %v3262
  %vm3264 = vcmp.eq.f32.partialorder %v3168, inf
  %v3265 = vsel %vm3264, %v3168, %v3263
  %vm3266 = vcmp.eq.f32.partialorder %v3168, 0.0
  %v3267 = vand.u32 %v3168, 2147483648
  %v3268 = vsel %vm3266, %v3267, %v3265
  %v3269 = vrsqrt.pop %v3171
  %v3270 = vmul.f32 %v3171, %v3269
  %vm3271 = vcmp.eq.f32.partialorder %v3171, inf
  %v3272 = vsel %vm3271, %v3171, %v3270
  %vm3273 = vcmp.eq.f32.partialorder %v3171, 0.0
  %v3274 = vand.u32 %v3171, 2147483648
  %v3275 = vsel %vm3273, %v3274, %v3272
  %v3276 = vrsqrt.pop %v3174
  %v3277 = vmul.f32 %v3174, %v3276
  %vm3278 = vcmp.eq.f32.partialorder %v3174, inf
  %v3279 = vsel %vm3278, %v3174, %v3277
  %vm3280 = vcmp.eq.f32.partialorder %v3174, 0.0
  %v3281 = vand.u32 %v3174, 2147483648
  %v3282 = vsel %vm3280, %v3281, %v3279
  %v3283 = vrsqrt.pop %v3177
  %v3284 = vmul.f32 %v3177, %v3283
  %vm3285 = vcmp.eq.f32.partialorder %v3177, inf
  %v3286 = vsel %vm3285, %v3177, %v3284
  %vm3287 = vcmp.eq.f32.partialorder %v3177, 0.0
  %v3288 = vand.u32 %v3177, 2147483648
  %v3289 = vsel %vm3287, %v3288, %v3286
  %v3290 = vmax.f32 %v3184, 1e-12
  %v3291 = vmax.f32 %v3191, 1e-12
  %v3292 = vmax.f32 %v3198, 1e-12
  %v3293 = vmax.f32 %v3205, 1e-12
  %v3294 = vmax.f32 %v3212, 1e-12
  %v3295 = vmax.f32 %v3219, 1e-12
  %v3296 = vmax.f32 %v3226, 1e-12
  %v3297 = vmax.f32 %v3233, 1e-12
  %v3298 = vmax.f32 %v3240, 1e-12
  %v3299 = vmax.f32 %v3247, 1e-12
  %v3300 = vmax.f32 %v3254, 1e-12
  %v3301 = vmax.f32 %v3261, 1e-12
  %v3302 = vmax.f32 %v3268, 1e-12
  %v3303 = vmax.f32 %v3275, 1e-12
  %v3304 = vmax.f32 %v3282, 1e-12
  %v3305 = vmax.f32 %v3289, 1e-12
  %v3307 = vlaneseq
  %v3308 = vshrl.u32 %v3307, 7
  %v3309 = vsub.s32 0, %v3308
  %v3310 = vrot.slane %v3081, %v3309
  %v3312 = vrcp.pop %v3290
  %v3313 = vmul.f32 %v3310, %v3312
  %v3314 = vrcp.pop %v3291
  %v3315 = vmul.f32 %v3310, %v3314
  %v3316 = vrcp.pop %v3292
  %v3317 = vmul.f32 %v3310, %v3316
  %v3318 = vrcp.pop %v3293
  %v3319 = vmul.f32 %v3310, %v3318
  %v3320 = vrcp.pop %v3294
  %v3321 = vmul.f32 %v3310, %v3320
  %v3322 = vrcp.pop %v3295
  %v3323 = vmul.f32 %v3310, %v3322
  %v3324 = vrcp.pop %v3296
  %v3325 = vmul.f32 %v3310, %v3324
  %v3326 = vrcp.pop %v3297
  %v3327 = vmul.f32 %v3310, %v3326
  %v3328 = vrcp.pop %v3298
  %v3329 = vmul.f32 %v3310, %v3328
  %v3330 = vrcp.pop %v3299
  %v3331 = vmul.f32 %v3310, %v3330
  %v3332 = vrcp.pop %v3300
  %v3333 = vmul.f32 %v3310, %v3332
  %v3334 = vrcp.pop %v3301
  %v3335 = vmul.f32 %v3310, %v3334
  %v3336 = vrcp.pop %v3302
  %v3337 = vmul.f32 %v3310, %v3336
  %v3338 = vrcp.pop %v3303
  %v3339 = vmul.f32 %v3310, %v3338
  %v3340 = vrcp.pop %v3304
  %v3341 = vmul.f32 %v3310, %v3340
  %v3342 = vrcp.pop %v3305
  %v3343 = vmul.f32 %v3310, %v3342
  %3360 = vrot.lane.b32.xlu0 %v3313, 16
  %v3361 = vpop.permute.xlu0 %3360
  %3362 = vrot.lane.b32.xlu0 %v3315, 16
  %v3363 = vpop.permute.xlu0 %3362
  %3364 = vrot.lane.b32.xlu0 %v3317, 16
  %v3365 = vpop.permute.xlu0 %3364
  %3366 = vrot.lane.b32.xlu0 %v3319, 16
  %v3367 = vpop.permute.xlu0 %3366
  %3368 = vrot.lane.b32.xlu0 %v3321, 16
  %v3369 = vpop.permute.xlu0 %3368
  %3370 = vrot.lane.b32.xlu0 %v3323, 16
  %v3371 = vpop.permute.xlu0 %3370
  %3372 = vrot.lane.b32.xlu0 %v3325, 16
  %v3373 = vpop.permute.xlu0 %3372
  %3374 = vrot.lane.b32.xlu0 %v3327, 16
  %v3375 = vpop.permute.xlu0 %3374
  %3376 = vrot.lane.b32.xlu0 %v3329, 16
  %v3377 = vpop.permute.xlu0 %3376
  %3378 = vrot.lane.b32.xlu0 %v3331, 16
  %v3379 = vpop.permute.xlu0 %3378
  %3380 = vrot.lane.b32.xlu0 %v3333, 16
  %v3381 = vpop.permute.xlu0 %3380
  %3382 = vrot.lane.b32.xlu0 %v3335, 16
  %v3383 = vpop.permute.xlu0 %3382
  %3384 = vrot.lane.b32.xlu0 %v3337, 16
  %v3385 = vpop.permute.xlu0 %3384
  %3386 = vrot.lane.b32.xlu0 %v3339, 16
  %v3387 = vpop.permute.xlu0 %3386
  %3388 = vrot.lane.b32.xlu0 %v3341, 16
  %v3389 = vpop.permute.xlu0 %3388
  %3390 = vrot.lane.b32.xlu0 %v3343, 16
  %v3391 = vpop.permute.xlu0 %3390
  %v3408 = vmul.f32 %v193, %v3361
  %v3409 = vmul.f32 %v198, %v3363
  %v3410 = vmul.f32 %v203, %v3365
  %v3411 = vmul.f32 %v208, %v3367
  %v3412 = vmul.f32 %v213, %v3369
  %v3413 = vmul.f32 %v218, %v3371
  %v3414 = vmul.f32 %v223, %v3373
  %v3415 = vmul.f32 %v228, %v3375
  %v3416 = vmul.f32 %v233, %v3377
  %v3417 = vmul.f32 %v238, %v3379
  %v3418 = vmul.f32 %v243, %v3381
  %v3419 = vmul.f32 %v248, %v3383
  %v3420 = vmul.f32 %v253, %v3385
  %v3421 = vmul.f32 %v258, %v3387
  %v3422 = vmul.f32 %v263, %v3389
  %v3423 = vmul.f32 %v268, %v3391
  %3424 = vrot.lane.b32.xlu0 %v272, 80
  %v3425 = vpop.permute.xlu0 %3424
  %3426 = vrot.lane.b32.xlu0 %v273, 80
  %v3427 = vpop.permute.xlu0 %3426
  %3428 = vrot.lane.b32.xlu0 %v274, 80
  %v3429 = vpop.permute.xlu0 %3428
  %3430 = vrot.lane.b32.xlu0 %v275, 80
  %v3431 = vpop.permute.xlu0 %3430
  %3432 = vrot.lane.b32.xlu0 %v276, 80
  %v3433 = vpop.permute.xlu0 %3432
  %3434 = vrot.lane.b32.xlu0 %v277, 80
  %v3435 = vpop.permute.xlu0 %3434
  %3436 = vrot.lane.b32.xlu0 %v278, 80
  %v3437 = vpop.permute.xlu0 %3436
  %3438 = vrot.lane.b32.xlu0 %v279, 80
  %v3439 = vpop.permute.xlu0 %3438
  %3440 = vrot.lane.b32.xlu0 %v280, 80
  %v3441 = vpop.permute.xlu0 %3440
  %3442 = vrot.lane.b32.xlu0 %v281, 80
  %v3443 = vpop.permute.xlu0 %3442
  %3444 = vrot.lane.b32.xlu0 %v282, 80
  %v3445 = vpop.permute.xlu0 %3444
  %3446 = vrot.lane.b32.xlu0 %v283, 80
  %v3447 = vpop.permute.xlu0 %3446
  %3448 = vrot.lane.b32.xlu0 %v284, 80
  %v3449 = vpop.permute.xlu0 %3448
  %3450 = vrot.lane.b32.xlu0 %v285, 80
  %v3451 = vpop.permute.xlu0 %3450
  %3452 = vrot.lane.b32.xlu0 %v286, 80
  %v3453 = vpop.permute.xlu0 %3452
  %3454 = vrot.lane.b32.xlu0 %v287, 80
  %v3455 = vpop.permute.xlu0 %3454
  %v3472 = vsel %vm288, %v3425, 0.0
  %3473 = vadd.xlane.f32.xlu0 %v3472
  %v3474 = vpop.xlane.xlu0 %3473
  %v3475 = vsel %vm288, %v3427, 0.0
  %3476 = vadd.xlane.f32.xlu0 %v3475
  %v3477 = vpop.xlane.xlu0 %3476
  %v3478 = vsel %vm288, %v3429, 0.0
  %3479 = vadd.xlane.f32.xlu0 %v3478
  %v3480 = vpop.xlane.xlu0 %3479
  %v3481 = vsel %vm288, %v3431, 0.0
  %3482 = vadd.xlane.f32.xlu0 %v3481
  %v3483 = vpop.xlane.xlu0 %3482
  %v3484 = vsel %vm288, %v3433, 0.0
  %3485 = vadd.xlane.f32.xlu0 %v3484
  %v3486 = vpop.xlane.xlu0 %3485
  %v3487 = vsel %vm288, %v3435, 0.0
  %3488 = vadd.xlane.f32.xlu0 %v3487
  %v3489 = vpop.xlane.xlu0 %3488
  %v3490 = vsel %vm288, %v3437, 0.0
  %3491 = vadd.xlane.f32.xlu0 %v3490
  %v3492 = vpop.xlane.xlu0 %3491
  %v3493 = vsel %vm288, %v3439, 0.0
  %3494 = vadd.xlane.f32.xlu0 %v3493
  %v3495 = vpop.xlane.xlu0 %3494
  %v3496 = vsel %vm288, %v3441, 0.0
  %3497 = vadd.xlane.f32.xlu0 %v3496
  %v3498 = vpop.xlane.xlu0 %3497
  %v3499 = vsel %vm288, %v3443, 0.0
  %3500 = vadd.xlane.f32.xlu0 %v3499
  %v3501 = vpop.xlane.xlu0 %3500
  %v3502 = vsel %vm288, %v3445, 0.0
  %3503 = vadd.xlane.f32.xlu0 %v3502
  %v3504 = vpop.xlane.xlu0 %3503
  %v3505 = vsel %vm288, %v3447, 0.0
  %3506 = vadd.xlane.f32.xlu0 %v3505
  %v3507 = vpop.xlane.xlu0 %3506
  %v3508 = vsel %vm288, %v3449, 0.0
  %3509 = vadd.xlane.f32.xlu0 %v3508
  %v3510 = vpop.xlane.xlu0 %3509
  %v3511 = vsel %vm288, %v3451, 0.0
  %3512 = vadd.xlane.f32.xlu0 %v3511
  %v3513 = vpop.xlane.xlu0 %3512
  %v3514 = vsel %vm288, %v3453, 0.0
  %3515 = vadd.xlane.f32.xlu0 %v3514
  %v3516 = vpop.xlane.xlu0 %3515
  %v3517 = vsel %vm288, %v3455, 0.0
  %3518 = vadd.xlane.f32.xlu0 %v3517
  %v3519 = vpop.xlane.xlu0 %3518
  %v3520 = vrsqrt.pop %v3474
  %v3521 = vmul.f32 %v3474, %v3520
  %vm3522 = vcmp.eq.f32.partialorder %v3474, inf
  %v3523 = vsel %vm3522, %v3474, %v3521
  %vm3524 = vcmp.eq.f32.partialorder %v3474, 0.0
  %v3525 = vand.u32 %v3474, 2147483648
  %v3526 = vsel %vm3524, %v3525, %v3523
  %v3527 = vrsqrt.pop %v3477
  %v3528 = vmul.f32 %v3477, %v3527
  %vm3529 = vcmp.eq.f32.partialorder %v3477, inf
  %v3530 = vsel %vm3529, %v3477, %v3528
  %vm3531 = vcmp.eq.f32.partialorder %v3477, 0.0
  %v3532 = vand.u32 %v3477, 2147483648
  %v3533 = vsel %vm3531, %v3532, %v3530
  %v3534 = vrsqrt.pop %v3480
  %v3535 = vmul.f32 %v3480, %v3534
  %vm3536 = vcmp.eq.f32.partialorder %v3480, inf
  %v3537 = vsel %vm3536, %v3480, %v3535
  %vm3538 = vcmp.eq.f32.partialorder %v3480, 0.0
  %v3539 = vand.u32 %v3480, 2147483648
  %v3540 = vsel %vm3538, %v3539, %v3537
  %v3541 = vrsqrt.pop %v3483
  %v3542 = vmul.f32 %v3483, %v3541
  %vm3543 = vcmp.eq.f32.partialorder %v3483, inf
  %v3544 = vsel %vm3543, %v3483, %v3542
  %vm3545 = vcmp.eq.f32.partialorder %v3483, 0.0
  %v3546 = vand.u32 %v3483, 2147483648
  %v3547 = vsel %vm3545, %v3546, %v3544
  %v3548 = vrsqrt.pop %v3486
  %v3549 = vmul.f32 %v3486, %v3548
  %vm3550 = vcmp.eq.f32.partialorder %v3486, inf
  %v3551 = vsel %vm3550, %v3486, %v3549
  %vm3552 = vcmp.eq.f32.partialorder %v3486, 0.0
  %v3553 = vand.u32 %v3486, 2147483648
  %v3554 = vsel %vm3552, %v3553, %v3551
  %v3555 = vrsqrt.pop %v3489
  %v3556 = vmul.f32 %v3489, %v3555
  %vm3557 = vcmp.eq.f32.partialorder %v3489, inf
  %v3558 = vsel %vm3557, %v3489, %v3556
  %vm3559 = vcmp.eq.f32.partialorder %v3489, 0.0
  %v3560 = vand.u32 %v3489, 2147483648
  %v3561 = vsel %vm3559, %v3560, %v3558
  %v3562 = vrsqrt.pop %v3492
  %v3563 = vmul.f32 %v3492, %v3562
  %vm3564 = vcmp.eq.f32.partialorder %v3492, inf
  %v3565 = vsel %vm3564, %v3492, %v3563
  %vm3566 = vcmp.eq.f32.partialorder %v3492, 0.0
  %v3567 = vand.u32 %v3492, 2147483648
  %v3568 = vsel %vm3566, %v3567, %v3565
  %v3569 = vrsqrt.pop %v3495
  %v3570 = vmul.f32 %v3495, %v3569
  %vm3571 = vcmp.eq.f32.partialorder %v3495, inf
  %v3572 = vsel %vm3571, %v3495, %v3570
  %vm3573 = vcmp.eq.f32.partialorder %v3495, 0.0
  %v3574 = vand.u32 %v3495, 2147483648
  %v3575 = vsel %vm3573, %v3574, %v3572
  %v3576 = vrsqrt.pop %v3498
  %v3577 = vmul.f32 %v3498, %v3576
  %vm3578 = vcmp.eq.f32.partialorder %v3498, inf
  %v3579 = vsel %vm3578, %v3498, %v3577
  %vm3580 = vcmp.eq.f32.partialorder %v3498, 0.0
  %v3581 = vand.u32 %v3498, 2147483648
  %v3582 = vsel %vm3580, %v3581, %v3579
  %v3583 = vrsqrt.pop %v3501
  %v3584 = vmul.f32 %v3501, %v3583
  %vm3585 = vcmp.eq.f32.partialorder %v3501, inf
  %v3586 = vsel %vm3585, %v3501, %v3584
  %vm3587 = vcmp.eq.f32.partialorder %v3501, 0.0
  %v3588 = vand.u32 %v3501, 2147483648
  %v3589 = vsel %vm3587, %v3588, %v3586
  %v3590 = vrsqrt.pop %v3504
  %v3591 = vmul.f32 %v3504, %v3590
  %vm3592 = vcmp.eq.f32.partialorder %v3504, inf
  %v3593 = vsel %vm3592, %v3504, %v3591
  %vm3594 = vcmp.eq.f32.partialorder %v3504, 0.0
  %v3595 = vand.u32 %v3504, 2147483648
  %v3596 = vsel %vm3594, %v3595, %v3593
  %v3597 = vrsqrt.pop %v3507
  %v3598 = vmul.f32 %v3507, %v3597
  %vm3599 = vcmp.eq.f32.partialorder %v3507, inf
  %v3600 = vsel %vm3599, %v3507, %v3598
  %vm3601 = vcmp.eq.f32.partialorder %v3507, 0.0
  %v3602 = vand.u32 %v3507, 2147483648
  %v3603 = vsel %vm3601, %v3602, %v3600
  %v3604 = vrsqrt.pop %v3510
  %v3605 = vmul.f32 %v3510, %v3604
  %vm3606 = vcmp.eq.f32.partialorder %v3510, inf
  %v3607 = vsel %vm3606, %v3510, %v3605
  %vm3608 = vcmp.eq.f32.partialorder %v3510, 0.0
  %v3609 = vand.u32 %v3510, 2147483648
  %v3610 = vsel %vm3608, %v3609, %v3607
  %v3611 = vrsqrt.pop %v3513
  %v3612 = vmul.f32 %v3513, %v3611
  %vm3613 = vcmp.eq.f32.partialorder %v3513, inf
  %v3614 = vsel %vm3613, %v3513, %v3612
  %vm3615 = vcmp.eq.f32.partialorder %v3513, 0.0
  %v3616 = vand.u32 %v3513, 2147483648
  %v3617 = vsel %vm3615, %v3616, %v3614
  %v3618 = vrsqrt.pop %v3516
  %v3619 = vmul.f32 %v3516, %v3618
  %vm3620 = vcmp.eq.f32.partialorder %v3516, inf
  %v3621 = vsel %vm3620, %v3516, %v3619
  %vm3622 = vcmp.eq.f32.partialorder %v3516, 0.0
  %v3623 = vand.u32 %v3516, 2147483648
  %v3624 = vsel %vm3622, %v3623, %v3621
  %v3625 = vrsqrt.pop %v3519
  %v3626 = vmul.f32 %v3519, %v3625
  %vm3627 = vcmp.eq.f32.partialorder %v3519, inf
  %v3628 = vsel %vm3627, %v3519, %v3626
  %vm3629 = vcmp.eq.f32.partialorder %v3519, 0.0
  %v3630 = vand.u32 %v3519, 2147483648
  %v3631 = vsel %vm3629, %v3630, %v3628
  %v3632 = vmax.f32 %v3526, 1e-12
  %v3633 = vmax.f32 %v3533, 1e-12
  %v3634 = vmax.f32 %v3540, 1e-12
  %v3635 = vmax.f32 %v3547, 1e-12
  %v3636 = vmax.f32 %v3554, 1e-12
  %v3637 = vmax.f32 %v3561, 1e-12
  %v3638 = vmax.f32 %v3568, 1e-12
  %v3639 = vmax.f32 %v3575, 1e-12
  %v3640 = vmax.f32 %v3582, 1e-12
  %v3641 = vmax.f32 %v3589, 1e-12
  %v3642 = vmax.f32 %v3596, 1e-12
  %v3643 = vmax.f32 %v3603, 1e-12
  %v3644 = vmax.f32 %v3610, 1e-12
  %v3645 = vmax.f32 %v3617, 1e-12
  %v3646 = vmax.f32 %v3624, 1e-12
  %v3647 = vmax.f32 %v3631, 1e-12
  %v3648 = vrcp.pop %v3632
  %v3649 = vmul.f32 %v193, %v3648
  %v3650 = vrcp.pop %v3633
  %v3651 = vmul.f32 %v198, %v3650
  %v3652 = vrcp.pop %v3634
  %v3653 = vmul.f32 %v203, %v3652
  %v3654 = vrcp.pop %v3635
  %v3655 = vmul.f32 %v208, %v3654
  %v3656 = vrcp.pop %v3636
  %v3657 = vmul.f32 %v213, %v3656
  %v3658 = vrcp.pop %v3637
  %v3659 = vmul.f32 %v218, %v3658
  %v3660 = vrcp.pop %v3638
  %v3661 = vmul.f32 %v223, %v3660
  %v3662 = vrcp.pop %v3639
  %v3663 = vmul.f32 %v228, %v3662
  %v3664 = vrcp.pop %v3640
  %v3665 = vmul.f32 %v233, %v3664
  %v3666 = vrcp.pop %v3641
  %v3667 = vmul.f32 %v238, %v3666
  %v3668 = vrcp.pop %v3642
  %v3669 = vmul.f32 %v243, %v3668
  %v3670 = vrcp.pop %v3643
  %v3671 = vmul.f32 %v248, %v3670
  %v3672 = vrcp.pop %v3644
  %v3673 = vmul.f32 %v253, %v3672
  %v3674 = vrcp.pop %v3645
  %v3675 = vmul.f32 %v258, %v3674
  %v3676 = vrcp.pop %v3646
  %v3677 = vmul.f32 %v263, %v3676
  %v3678 = vrcp.pop %v3647
  %v3679 = vmul.f32 %v268, %v3678
  %s3680 = scalar_lea.vmem %s1, 256
  %v3681 = vld [vmem:[%s3680] sm:$0xff]
  %v3682 = vld [vmem:[%s3680 + $0x8] sm:$0xff]
  %v3683 = vld [vmem:[%s3680 + $0x10] sm:$0xff]
  %v3684 = vld [vmem:[%s3680 + $0x18] sm:$0xff]
  %v3685 = vld [vmem:[%s3680 + $0x20] sm:$0xff]
  %v3686 = vld [vmem:[%s3680 + $0x28] sm:$0xff]
  %v3687 = vld [vmem:[%s3680 + $0x30] sm:$0xff]
  %v3688 = vld [vmem:[%s3680 + $0x38] sm:$0xff]
  %v3689 = vld [vmem:[%s3680 + $0x40] sm:$0xff]
  %v3690 = vld [vmem:[%s3680 + $0x48] sm:$0xff]
  %v3691 = vld [vmem:[%s3680 + $0x50] sm:$0xff]
  %v3692 = vld [vmem:[%s3680 + $0x58] sm:$0xff]
  %v3693 = vld [vmem:[%s3680 + $0x60] sm:$0xff]
  %v3694 = vld [vmem:[%s3680 + $0x68] sm:$0xff]
  %v3695 = vld [vmem:[%s3680 + $0x70] sm:$0xff]
  %v3696 = vld [vmem:[%s3680 + $0x78] sm:$0xff]
  %3713 = vrot.lane.b32.xlu0 %v3408, 112
  %v3714 = vpop.permute.xlu0 %3713
  %3715 = vrot.lane.b32.xlu0 %v3409, 112
  %v3716 = vpop.permute.xlu0 %3715
  %3717 = vrot.lane.b32.xlu0 %v3410, 112
  %v3718 = vpop.permute.xlu0 %3717
  %3719 = vrot.lane.b32.xlu0 %v3411, 112
  %v3720 = vpop.permute.xlu0 %3719
  %3721 = vrot.lane.b32.xlu0 %v3412, 112
  %v3722 = vpop.permute.xlu0 %3721
  %3723 = vrot.lane.b32.xlu0 %v3413, 112
  %v3724 = vpop.permute.xlu0 %3723
  %3725 = vrot.lane.b32.xlu0 %v3414, 112
  %v3726 = vpop.permute.xlu0 %3725
  %3727 = vrot.lane.b32.xlu0 %v3415, 112
  %v3728 = vpop.permute.xlu0 %3727
  %3729 = vrot.lane.b32.xlu0 %v3416, 112
  %v3730 = vpop.permute.xlu0 %3729
  %3731 = vrot.lane.b32.xlu0 %v3417, 112
  %v3732 = vpop.permute.xlu0 %3731
  %3733 = vrot.lane.b32.xlu0 %v3418, 112
  %v3734 = vpop.permute.xlu0 %3733
  %3735 = vrot.lane.b32.xlu0 %v3419, 112
  %v3736 = vpop.permute.xlu0 %3735
  %3737 = vrot.lane.b32.xlu0 %v3420, 112
  %v3738 = vpop.permute.xlu0 %3737
  %3739 = vrot.lane.b32.xlu0 %v3421, 112
  %v3740 = vpop.permute.xlu0 %3739
  %3741 = vrot.lane.b32.xlu0 %v3422, 112
  %v3742 = vpop.permute.xlu0 %3741
  %3743 = vrot.lane.b32.xlu0 %v3423, 112
  %v3744 = vpop.permute.xlu0 %3743
  %3761 = vrot.lane.b32.xlu0 %v3649, 80
  %v3762 = vpop.permute.xlu0 %3761
  %3763 = vrot.lane.b32.xlu0 %v3651, 80
  %v3764 = vpop.permute.xlu0 %3763
  %3765 = vrot.lane.b32.xlu0 %v3653, 80
  %v3766 = vpop.permute.xlu0 %3765
  %3767 = vrot.lane.b32.xlu0 %v3655, 80
  %v3768 = vpop.permute.xlu0 %3767
  %3769 = vrot.lane.b32.xlu0 %v3657, 80
  %v3770 = vpop.permute.xlu0 %3769
  %3771 = vrot.lane.b32.xlu0 %v3659, 80
  %v3772 = vpop.permute.xlu0 %3771
  %3773 = vrot.lane.b32.xlu0 %v3661, 80
  %v3774 = vpop.permute.xlu0 %3773
  %3775 = vrot.lane.b32.xlu0 %v3663, 80
  %v3776 = vpop.permute.xlu0 %3775
  %3777 = vrot.lane.b32.xlu0 %v3665, 80
  %v3778 = vpop.permute.xlu0 %3777
  %3779 = vrot.lane.b32.xlu0 %v3667, 80
  %v3780 = vpop.permute.xlu0 %3779
  %3781 = vrot.lane.b32.xlu0 %v3669, 80
  %v3782 = vpop.permute.xlu0 %3781
  %3783 = vrot.lane.b32.xlu0 %v3671, 80
  %v3784 = vpop.permute.xlu0 %3783
  %3785 = vrot.lane.b32.xlu0 %v3673, 80
  %v3786 = vpop.permute.xlu0 %3785
  %3787 = vrot.lane.b32.xlu0 %v3675, 80
  %v3788 = vpop.permute.xlu0 %3787
  %3789 = vrot.lane.b32.xlu0 %v3677, 80
  %v3790 = vpop.permute.xlu0 %3789
  %3791 = vrot.lane.b32.xlu0 %v3679, 80
  %v3792 = vpop.permute.xlu0 %3791
  %v3793 = vsel %vm288, %v3714, 0
  %v3795 = vsel %vm288, %v3716, 0
  %v3797 = vsel %vm288, %v3718, 0
  %v3799 = vsel %vm288, %v3720, 0
  %v3801 = vsel %vm288, %v3722, 0
  %v3803 = vsel %vm288, %v3724, 0
  %v3805 = vsel %vm288, %v3726, 0
  %v3807 = vsel %vm288, %v3728, 0
  %v3809 = vsel %vm288, %v3730, 0
  %v3811 = vsel %vm288, %v3732, 0
  %v3813 = vsel %vm288, %v3734, 0
  %v3815 = vsel %vm288, %v3736, 0
  %v3817 = vsel %vm288, %v3738, 0
  %v3819 = vsel %vm288, %v3740, 0
  %v3821 = vsel %vm288, %v3742, 0
  %v3823 = vsel %vm288, %v3744, 0
  %v3825 = vsel %vm288, %v3762, 0
  %v3827 = vsel %vm288, %v3764, 0
  %v3829 = vsel %vm288, %v3766, 0
  %v3831 = vsel %vm288, %v3768, 0
  %v3833 = vsel %vm288, %v3770, 0
  %v3835 = vsel %vm288, %v3772, 0
  %v3837 = vsel %vm288, %v3774, 0
  %v3839 = vsel %vm288, %v3776, 0
  %v3841 = vsel %vm288, %v3778, 0
  %v3843 = vsel %vm288, %v3780, 0
  %v3845 = vsel %vm288, %v3782, 0
  %v3847 = vsel %vm288, %v3784, 0
  %v3849 = vsel %vm288, %v3786, 0
  %v3851 = vsel %vm288, %v3788, 0
  %v3853 = vsel %vm288, %v3790, 0
  %v3855 = vsel %vm288, %v3792, 0
  %3857 = vmatprep.subr.mxu0 0.0
  %3858 = vmatpush1.xpose.msra.mxu0 %v3825
  %3859 = vmatprep.subr.mxu0 0.0
  %3860 = vmatpush1.xpose.msra.mxu0 %v3827
  %3861 = vmatprep.subr.mxu0 0.0
  %3862 = vmatpush1.xpose.msra.mxu0 %v3829
  %3863 = vmatprep.subr.mxu0 0.0
  %3864 = vmatpush1.xpose.msra.mxu0 %v3831
  %3865 = vmatprep.subr.mxu0 0.0
  %3866 = vmatpush1.xpose.msra.mxu0 %v3833
  %3867 = vmatprep.subr.mxu0 0.0
  %3868 = vmatpush1.xpose.msra.mxu0 %v3835
  %3869 = vmatprep.subr.mxu0 0.0
  %3870 = vmatpush1.xpose.msra.mxu0 %v3837
  %3871 = vmatprep.subr.mxu0 0.0
  %3872 = vmatpush1.xpose.msra.mxu0 %v3839
  %3873 = vmatprep.subr.mxu0 0.0
  %3874 = vmatpush1.xpose.msra.mxu0 %v3841
  %3875 = vmatprep.subr.mxu0 0.0
  %3876 = vmatpush1.xpose.msra.mxu0 %v3843
  %3877 = vmatprep.subr.mxu0 0.0
  %3878 = vmatpush1.xpose.msra.mxu0 %v3845
  %3879 = vmatprep.subr.mxu0 0.0
  %3880 = vmatpush1.xpose.msra.mxu0 %v3847
  %3881 = vmatprep.subr.mxu0 0.0
  %3882 = vmatpush1.xpose.msra.mxu0 %v3849
  %3883 = vmatprep.subr.mxu0 0.0
  %3884 = vmatpush1.xpose.msra.mxu0 %v3851
  %3885 = vmatprep.subr.mxu0 0.0
  %3886 = vmatpush1.xpose.msra.mxu0 %v3853
  %3887 = vmatprep.subr.mxu0 0.0
  %3888 = vmatpush1.xpose.msra.mxu0 %v3855
  %3889 = vmatprep.subr.mxu0 0.0
  %3890 = vmatpush1.xpose.msra.mxu0 0.0
  %3891 = vmatprep.subr.mxu0 0.0
  %3892 = vmatpush1.xpose.msra.mxu0 0.0
  %3893 = vmatprep.subr.mxu0 0.0
  %3894 = vmatpush1.xpose.msra.mxu0 0.0
  %3895 = vmatprep.subr.mxu0 0.0
  %3896 = vmatpush1.xpose.msra.mxu0 0.0
  %3897 = vmatprep.subr.mxu0 0.0
  %3898 = vmatpush1.xpose.msra.mxu0 0.0
  %3899 = vmatprep.subr.mxu0 0.0
  %3900 = vmatpush1.xpose.msra.mxu0 0.0
  %3901 = vmatprep.subr.mxu0 0.0
  %3902 = vmatpush1.xpose.msra.mxu0 0.0
  %3903 = vmatprep.subr.mxu0 0.0
  %3904 = vmatpush1.xpose.msra.mxu0 0.0
  %3905 = vmatprep.subr.mxu0 0.0
  %3906 = vmatpush1.xpose.msra.mxu0 0.0
  %3907 = vmatprep.subr.mxu0 0.0
  %3908 = vmatpush1.xpose.msra.mxu0 0.0
  %3909 = vmatprep.subr.mxu0 0.0
  %3910 = vmatpush1.xpose.msra.mxu0 0.0
  %3911 = vmatprep.subr.mxu0 0.0
  %3912 = vmatpush1.xpose.msra.mxu0 0.0
  %3913 = vmatprep.subr.mxu0 0.0
  %3914 = vmatpush1.xpose.msra.mxu0 0.0
  %3915 = vmatprep.subr.mxu0 0.0
  %3916 = vmatpush1.xpose.msra.mxu0 0.0
  %3917 = vmatprep.subr.mxu0 0.0
  %3918 = vmatpush1.xpose.msra.mxu0 0.0
  %3919 = vmatprep.subr.mxu0 0.0
  %3920 = vmatpush1.xpose.msra.mxu0 0.0
  %3921 = vmatprep.mubr.f32.mxu0 0.0
  %3922 = vmatmul.mubr.f32.gmra.mrb[0].mxu0 %v3793
  %v3923 = vpop.f32.mrb[0].mxu0
  %v3924 = vadd.f32 %v3681, %v3923
  %v3925 = vpop.f32.mrb[0].mxu0
  %3926 = vmatprep.mubr.f32.mxu0 0.0
  %3927 = vmatmul.mubr.f32.gmra.mrb[0].mxu0 %v3795
  %v3928 = vpop.f32.mrb[0].mxu0
  %v3929 = vadd.f32 %v3682, %v3928
  %v3930 = vpop.f32.mrb[0].mxu0
  %3931 = vmatprep.mubr.f32.mxu0 0.0
  %3932 = vmatmul.mubr.f32.gmra.mrb[0].mxu0 %v3797
  %v3933 = vpop.f32.mrb[0].mxu0
  %v3934 = vadd.f32 %v3683, %v3933
  %v3935 = vpop.f32.mrb[0].mxu0
  %3936 = vmatprep.mubr.f32.mxu0 0.0
  %3937 = vmatmul.mubr.f32.gmra.mrb[0].mxu0 %v3799
  %v3938 = vpop.f32.mrb[0].mxu0
  %v3939 = vadd.f32 %v3684, %v3938
  %v3940 = vpop.f32.mrb[0].mxu0
  %3941 = vmatprep.mubr.f32.mxu0 0.0
  %3942 = vmatmul.mubr.f32.gmra.mrb[0].mxu0 %v3801
  %v3943 = vpop.f32.mrb[0].mxu0
  %v3944 = vadd.f32 %v3685, %v3943
  %v3945 = vpop.f32.mrb[0].mxu0
  %3946 = vmatprep.mubr.f32.mxu0 0.0
  %3947 = vmatmul.mubr.f32.gmra.mrb[0].mxu0 %v3803
  %v3948 = vpop.f32.mrb[0].mxu0
  %v3949 = vadd.f32 %v3686, %v3948
  %v3950 = vpop.f32.mrb[0].mxu0
  %3951 = vmatprep.mubr.f32.mxu0 0.0
  %3952 = vmatmul.mubr.f32.gmra.mrb[0].mxu0 %v3805
  %v3953 = vpop.f32.mrb[0].mxu0
  %v3954 = vadd.f32 %v3687, %v3953
  %v3955 = vpop.f32.mrb[0].mxu0
  %3956 = vmatprep.mubr.f32.mxu0 0.0
  %3957 = vmatmul.mubr.f32.gmra.mrb[0].mxu0 %v3807
  %v3958 = vpop.f32.mrb[0].mxu0
  %v3959 = vadd.f32 %v3688, %v3958
  %v3960 = vpop.f32.mrb[0].mxu0
  %3961 = vmatprep.mubr.f32.mxu0 0.0
  %3962 = vmatmul.mubr.f32.gmra.mrb[0].mxu0 %v3809
  %v3963 = vpop.f32.mrb[0].mxu0
  %v3964 = vadd.f32 %v3689, %v3963
  %v3965 = vpop.f32.mrb[0].mxu0
  %3966 = vmatprep.mubr.f32.mxu0 0.0
  %3967 = vmatmul.mubr.f32.gmra.mrb[0].mxu0 %v3811
  %v3968 = vpop.f32.mrb[0].mxu0
  %v3969 = vadd.f32 %v3690, %v3968
  %v3970 = vpop.f32.mrb[0].mxu0
  %3971 = vmatprep.mubr.f32.mxu0 0.0
  %3972 = vmatmul.mubr.f32.gmra.mrb[0].mxu0 %v3813
  %v3973 = vpop.f32.mrb[0].mxu0
  %v3974 = vadd.f32 %v3691, %v3973
  %v3975 = vpop.f32.mrb[0].mxu0
  %3976 = vmatprep.mubr.f32.mxu0 0.0
  %3977 = vmatmul.mubr.f32.gmra.mrb[0].mxu0 %v3815
  %v3978 = vpop.f32.mrb[0].mxu0
  %v3979 = vadd.f32 %v3692, %v3978
  %v3980 = vpop.f32.mrb[0].mxu0
  %3981 = vmatprep.mubr.f32.mxu0 0.0
  %3982 = vmatmul.mubr.f32.gmra.mrb[0].mxu0 %v3817
  %v3983 = vpop.f32.mrb[0].mxu0
  %v3984 = vadd.f32 %v3693, %v3983
  %v3985 = vpop.f32.mrb[0].mxu0
  %3986 = vmatprep.mubr.f32.mxu0 0.0
  %3987 = vmatmul.mubr.f32.gmra.mrb[0].mxu0 %v3819
  %v3988 = vpop.f32.mrb[0].mxu0
  %v3989 = vadd.f32 %v3694, %v3988
  %v3990 = vpop.f32.mrb[0].mxu0
  %3991 = vmatprep.mubr.f32.mxu0 0.0
  %3992 = vmatmul.mubr.f32.gmra.mrb[0].mxu0 %v3821
  %v3993 = vpop.f32.mrb[0].mxu0
  %v3994 = vadd.f32 %v3695, %v3993
  %v3995 = vpop.f32.mrb[0].mxu0
  %3996 = vmatprep.mubr.f32.mxu0 0.0
  %3997 = vmatmul.mubr.f32.gmra.mrb[0].mxu0 %v3823
  %v3998 = vpop.f32.mrb[0].mxu0
  %v3999 = vadd.f32 %v3696, %v3998
  %v4000 = vpop.f32.mrb[0].mxu0
  %4001 = vdwg.mxu0
  %4002 = vmax.xlane.f32.xlu0 %v3924
  %v4003 = vpop.xlane.xlu0 %4002
  %4004 = vmax.xlane.f32.xlu0 %v3929
  %v4005 = vpop.xlane.xlu0 %4004
  %4006 = vmax.xlane.f32.xlu0 %v3934
  %v4007 = vpop.xlane.xlu0 %4006
  %4008 = vmax.xlane.f32.xlu0 %v3939
  %v4009 = vpop.xlane.xlu0 %4008
  %4010 = vmax.xlane.f32.xlu0 %v3944
  %v4011 = vpop.xlane.xlu0 %4010
  %4012 = vmax.xlane.f32.xlu0 %v3949
  %v4013 = vpop.xlane.xlu0 %4012
  %4014 = vmax.xlane.f32.xlu0 %v3954
  %v4015 = vpop.xlane.xlu0 %4014
  %4016 = vmax.xlane.f32.xlu0 %v3959
  %v4017 = vpop.xlane.xlu0 %4016
  %4018 = vmax.xlane.f32.xlu0 %v3964
  %v4019 = vpop.xlane.xlu0 %4018
  %4020 = vmax.xlane.f32.xlu0 %v3969
  %v4021 = vpop.xlane.xlu0 %4020
  %4022 = vmax.xlane.f32.xlu0 %v3974
  %v4023 = vpop.xlane.xlu0 %4022
  %4024 = vmax.xlane.f32.xlu0 %v3979
  %v4025 = vpop.xlane.xlu0 %4024
  %4026 = vmax.xlane.f32.xlu0 %v3984
  %v4027 = vpop.xlane.xlu0 %4026
  %4028 = vmax.xlane.f32.xlu0 %v3989
  %v4029 = vpop.xlane.xlu0 %4028
  %4030 = vmax.xlane.f32.xlu0 %v3994
  %v4031 = vpop.xlane.xlu0 %4030
  %4032 = vmax.xlane.f32.xlu0 %v3999
  %v4033 = vpop.xlane.xlu0 %4032
  %v4034 = vsub.f32 %v3924, %v4003
  %v4035 = vsub.f32 %v3929, %v4005
  %v4036 = vsub.f32 %v3934, %v4007
  %v4037 = vsub.f32 %v3939, %v4009
  %v4038 = vsub.f32 %v3944, %v4011
  %v4039 = vsub.f32 %v3949, %v4013
  %v4040 = vsub.f32 %v3954, %v4015
  %v4041 = vsub.f32 %v3959, %v4017
  %v4042 = vsub.f32 %v3964, %v4019
  %v4043 = vsub.f32 %v3969, %v4021
  %v4044 = vsub.f32 %v3974, %v4023
  %v4045 = vsub.f32 %v3979, %v4025
  %v4046 = vsub.f32 %v3984, %v4027
  %v4047 = vsub.f32 %v3989, %v4029
  %v4048 = vsub.f32 %v3994, %v4031
  %v4049 = vsub.f32 %v3999, %v4033
  %v4050 = vmul.f32 %v4034, 1.442695
  %v4051 = vpow.pop %v4050
  %v4052 = vmul.f32 %v4035, 1.442695
  %v4053 = vpow.pop %v4052
  %v4054 = vmul.f32 %v4036, 1.442695
  %v4055 = vpow.pop %v4054
  %v4056 = vmul.f32 %v4037, 1.442695
  %v4057 = vpow.pop %v4056
  %v4058 = vmul.f32 %v4038, 1.442695
  %v4059 = vpow.pop %v4058
  %v4060 = vmul.f32 %v4039, 1.442695
  %v4061 = vpow.pop %v4060
  %v4062 = vmul.f32 %v4040, 1.442695
  %v4063 = vpow.pop %v4062
  %v4064 = vmul.f32 %v4041, 1.442695
  %v4065 = vpow.pop %v4064
  %v4066 = vmul.f32 %v4042, 1.442695
  %v4067 = vpow.pop %v4066
  %v4068 = vmul.f32 %v4043, 1.442695
  %v4069 = vpow.pop %v4068
  %v4070 = vmul.f32 %v4044, 1.442695
  %v4071 = vpow.pop %v4070
  %v4072 = vmul.f32 %v4045, 1.442695
  %v4073 = vpow.pop %v4072
  %v4074 = vmul.f32 %v4046, 1.442695
  %v4075 = vpow.pop %v4074
  %v4076 = vmul.f32 %v4047, 1.442695
  %v4077 = vpow.pop %v4076
  %v4078 = vmul.f32 %v4048, 1.442695
  %v4079 = vpow.pop %v4078
  %v4080 = vmul.f32 %v4049, 1.442695
  %v4081 = vpow.pop %v4080
  %4082 = vadd.xlane.f32.xlu0 %v4051
  %v4083 = vpop.xlane.xlu0 %4082
  %4084 = vadd.xlane.f32.xlu0 %v4053
  %v4085 = vpop.xlane.xlu0 %4084
  %4086 = vadd.xlane.f32.xlu0 %v4055
  %v4087 = vpop.xlane.xlu0 %4086
  %4088 = vadd.xlane.f32.xlu0 %v4057
  %v4089 = vpop.xlane.xlu0 %4088
  %4090 = vadd.xlane.f32.xlu0 %v4059
  %v4091 = vpop.xlane.xlu0 %4090
  %4092 = vadd.xlane.f32.xlu0 %v4061
  %v4093 = vpop.xlane.xlu0 %4092
  %4094 = vadd.xlane.f32.xlu0 %v4063
  %v4095 = vpop.xlane.xlu0 %4094
  %4096 = vadd.xlane.f32.xlu0 %v4065
  %v4097 = vpop.xlane.xlu0 %4096
  %4098 = vadd.xlane.f32.xlu0 %v4067
  %v4099 = vpop.xlane.xlu0 %4098
  %4100 = vadd.xlane.f32.xlu0 %v4069
  %v4101 = vpop.xlane.xlu0 %4100
  %4102 = vadd.xlane.f32.xlu0 %v4071
  %v4103 = vpop.xlane.xlu0 %4102
  %4104 = vadd.xlane.f32.xlu0 %v4073
  %v4105 = vpop.xlane.xlu0 %4104
  %4106 = vadd.xlane.f32.xlu0 %v4075
  %v4107 = vpop.xlane.xlu0 %4106
  %4108 = vadd.xlane.f32.xlu0 %v4077
  %v4109 = vpop.xlane.xlu0 %4108
  %4110 = vadd.xlane.f32.xlu0 %v4079
  %v4111 = vpop.xlane.xlu0 %4110
  %4112 = vadd.xlane.f32.xlu0 %v4081
  %v4113 = vpop.xlane.xlu0 %4112
  %v4114 = vrcp.pop %v4083
  %v4115 = vrcp.pop %v4085
  %v4116 = vrcp.pop %v4087
  %v4117 = vrcp.pop %v4089
  %v4118 = vrcp.pop %v4091
  %v4119 = vrcp.pop %v4093
  %v4120 = vrcp.pop %v4095
  %v4121 = vrcp.pop %v4097
  %v4122 = vrcp.pop %v4099
  %v4123 = vrcp.pop %v4101
  %v4124 = vrcp.pop %v4103
  %v4125 = vrcp.pop %v4105
  %v4126 = vrcp.pop %v4107
  %v4127 = vrcp.pop %v4109
  %v4128 = vrcp.pop %v4111
  %v4129 = vrcp.pop %v4113
  %v4130 = vmul.f32 %v4051, %v4114
  %v4131 = vmul.f32 %v4053, %v4115
  %v4132 = vmul.f32 %v4055, %v4116
  %v4133 = vmul.f32 %v4057, %v4117
  %v4134 = vmul.f32 %v4059, %v4118
  %v4135 = vmul.f32 %v4061, %v4119
  %v4136 = vmul.f32 %v4063, %v4120
  %v4137 = vmul.f32 %v4065, %v4121
  %v4138 = vmul.f32 %v4067, %v4122
  %v4139 = vmul.f32 %v4069, %v4123
  %v4140 = vmul.f32 %v4071, %v4124
  %v4141 = vmul.f32 %v4073, %v4125
  %v4142 = vmul.f32 %v4075, %v4126
  %v4143 = vmul.f32 %v4077, %v4127
  %v4144 = vmul.f32 %v4079, %v4128
  %v4145 = vmul.f32 %v4081, %v4129
  %4146 = vrot.lane.b32.xlu0 %v193, 48
  %v4147 = vpop.permute.xlu0 %4146
  %4148 = vrot.lane.b32.xlu0 %v198, 48
  %v4149 = vpop.permute.xlu0 %4148
  %4150 = vrot.lane.b32.xlu0 %v203, 48
  %v4151 = vpop.permute.xlu0 %4150
  %4152 = vrot.lane.b32.xlu0 %v208, 48
  %v4153 = vpop.permute.xlu0 %4152
  %4154 = vrot.lane.b32.xlu0 %v213, 48
  %v4155 = vpop.permute.xlu0 %4154
  %4156 = vrot.lane.b32.xlu0 %v218, 48
  %v4157 = vpop.permute.xlu0 %4156
  %4158 = vrot.lane.b32.xlu0 %v223, 48
  %v4159 = vpop.permute.xlu0 %4158
  %4160 = vrot.lane.b32.xlu0 %v228, 48
  %v4161 = vpop.permute.xlu0 %4160
  %4162 = vrot.lane.b32.xlu0 %v233, 48
  %v4163 = vpop.permute.xlu0 %4162
  %4164 = vrot.lane.b32.xlu0 %v238, 48
  %v4165 = vpop.permute.xlu0 %4164
  %4166 = vrot.lane.b32.xlu0 %v243, 48
  %v4167 = vpop.permute.xlu0 %4166
  %4168 = vrot.lane.b32.xlu0 %v248, 48
  %v4169 = vpop.permute.xlu0 %4168
  %4170 = vrot.lane.b32.xlu0 %v253, 48
  %v4171 = vpop.permute.xlu0 %4170
  %4172 = vrot.lane.b32.xlu0 %v258, 48
  %v4173 = vpop.permute.xlu0 %4172
  %4174 = vrot.lane.b32.xlu0 %v263, 48
  %v4175 = vpop.permute.xlu0 %4174
  %4176 = vrot.lane.b32.xlu0 %v268, 48
  %v4177 = vpop.permute.xlu0 %4176
  %4194 = vmatprep.subr.mxu0 0.0
  %4195 = vmatpush1.msra.mxu0 %v4147
  %4196 = vmatprep.subr.mxu0 0.0
  %4197 = vmatpush1.msra.mxu0 %v4149
  %4198 = vmatprep.subr.mxu0 0.0
  %4199 = vmatpush1.msra.mxu0 %v4151
  %4200 = vmatprep.subr.mxu0 0.0
  %4201 = vmatpush1.msra.mxu0 %v4153
  %4202 = vmatprep.subr.mxu0 0.0
  %4203 = vmatpush1.msra.mxu0 %v4155
  %4204 = vmatprep.subr.mxu0 0.0
  %4205 = vmatpush1.msra.mxu0 %v4157
  %4206 = vmatprep.subr.mxu0 0.0
  %4207 = vmatpush1.msra.mxu0 %v4159
  %4208 = vmatprep.subr.mxu0 0.0
  %4209 = vmatpush1.msra.mxu0 %v4161
  %4210 = vmatprep.subr.mxu0 0.0
  %4211 = vmatpush1.msra.mxu0 %v4163
  %4212 = vmatprep.subr.mxu0 0.0
  %4213 = vmatpush1.msra.mxu0 %v4165
  %4214 = vmatprep.subr.mxu0 0.0
  %4215 = vmatpush1.msra.mxu0 %v4167
  %4216 = vmatprep.subr.mxu0 0.0
  %4217 = vmatpush1.msra.mxu0 %v4169
  %4218 = vmatprep.subr.mxu0 0.0
  %4219 = vmatpush1.msra.mxu0 %v4171
  %4220 = vmatprep.subr.mxu0 0.0
  %4221 = vmatpush1.msra.mxu0 %v4173
  %4222 = vmatprep.subr.mxu0 0.0
  %4223 = vmatpush1.msra.mxu0 %v4175
  %4224 = vmatprep.subr.mxu0 0.0
  %4225 = vmatpush1.msra.mxu0 %v4177
  %4226 = vmatprep.subr.mxu0 0.0
  %4227 = vmatpush1.msra.mxu0 0.0
  %4228 = vmatprep.subr.mxu0 0.0
  %4229 = vmatpush1.msra.mxu0 0.0
  %4230 = vmatprep.subr.mxu0 0.0
  %4231 = vmatpush1.msra.mxu0 0.0
  %4232 = vmatprep.subr.mxu0 0.0
  %4233 = vmatpush1.msra.mxu0 0.0
  %4234 = vmatprep.subr.mxu0 0.0
  %4235 = vmatpush1.msra.mxu0 0.0
  %4236 = vmatprep.subr.mxu0 0.0
  %4237 = vmatpush1.msra.mxu0 0.0
  %4238 = vmatprep.subr.mxu0 0.0
  %4239 = vmatpush1.msra.mxu0 0.0
  %4240 = vmatprep.subr.mxu0 0.0
  %4241 = vmatpush1.msra.mxu0 0.0
  %4242 = vmatprep.subr.mxu0 0.0
  %4243 = vmatpush1.msra.mxu0 0.0
  %4244 = vmatprep.subr.mxu0 0.0
  %4245 = vmatpush1.msra.mxu0 0.0
  %4246 = vmatprep.subr.mxu0 0.0
  %4247 = vmatpush1.msra.mxu0 0.0
  %4248 = vmatprep.subr.mxu0 0.0
  %4249 = vmatpush1.msra.mxu0 0.0
  %4250 = vmatprep.subr.mxu0 0.0
  %4251 = vmatpush1.msra.mxu0 0.0
  %4252 = vmatprep.subr.mxu0 0.0
  %4253 = vmatpush1.msra.mxu0 0.0
  %4254 = vmatprep.subr.mxu0 0.0
  %4255 = vmatpush1.msra.mxu0 0.0
  %4256 = vmatprep.subr.mxu0 0.0
  %4257 = vmatpush1.msra.mxu0 0.0
  %4258 = vmatprep.mubr.f32.mxu0 0.0
  %4259 = vmatmul.mubr.f32.gmra.mrb[0].mxu0 %v4130
  %v4260 = vpop.f32.mrb[0].mxu0
  %v4261 = vadd.f32 0.0, %v4260
  %v4262 = vpop.f32.mrb[0].mxu0
  %4263 = vmatprep.mubr.f32.mxu0 0.0
  %4264 = vmatmul.mubr.f32.gmra.mrb[0].mxu0 %v4131
  %v4265 = vpop.f32.mrb[0].mxu0
  %v4266 = vadd.f32 0.0, %v4265
  %v4267 = vpop.f32.mrb[0].mxu0
  %4268 = vmatprep.mubr.f32.mxu0 0.0
  %4269 = vmatmul.mubr.f32.gmra.mrb[0].mxu0 %v4132
  %v4270 = vpop.f32.mrb[0].mxu0
  %v4271 = vadd.f32 0.0, %v4270
  %v4272 = vpop.f32.mrb[0].mxu0
  %4273 = vmatprep.mubr.f32.mxu0 0.0
  %4274 = vmatmul.mubr.f32.gmra.mrb[0].mxu0 %v4133
  %v4275 = vpop.f32.mrb[0].mxu0
  %v4276 = vadd.f32 0.0, %v4275
  %v4277 = vpop.f32.mrb[0].mxu0
  %4278 = vmatprep.mubr.f32.mxu0 0.0
  %4279 = vmatmul.mubr.f32.gmra.mrb[0].mxu0 %v4134
  %v4280 = vpop.f32.mrb[0].mxu0
  %v4281 = vadd.f32 0.0, %v4280
  %v4282 = vpop.f32.mrb[0].mxu0
  %4283 = vmatprep.mubr.f32.mxu0 0.0
  %4284 = vmatmul.mubr.f32.gmra.mrb[0].mxu0 %v4135
  %v4285 = vpop.f32.mrb[0].mxu0
  %v4286 = vadd.f32 0.0, %v4285
  %v4287 = vpop.f32.mrb[0].mxu0
  %4288 = vmatprep.mubr.f32.mxu0 0.0
  %4289 = vmatmul.mubr.f32.gmra.mrb[0].mxu0 %v4136
  %v4290 = vpop.f32.mrb[0].mxu0
  %v4291 = vadd.f32 0.0, %v4290
  %v4292 = vpop.f32.mrb[0].mxu0
  %4293 = vmatprep.mubr.f32.mxu0 0.0
  %4294 = vmatmul.mubr.f32.gmra.mrb[0].mxu0 %v4137
  %v4295 = vpop.f32.mrb[0].mxu0
  %v4296 = vadd.f32 0.0, %v4295
  %v4297 = vpop.f32.mrb[0].mxu0
  %4298 = vmatprep.mubr.f32.mxu0 0.0
  %4299 = vmatmul.mubr.f32.gmra.mrb[0].mxu0 %v4138
  %v4300 = vpop.f32.mrb[0].mxu0
  %v4301 = vadd.f32 0.0, %v4300
  %v4302 = vpop.f32.mrb[0].mxu0
  %4303 = vmatprep.mubr.f32.mxu0 0.0
  %4304 = vmatmul.mubr.f32.gmra.mrb[0].mxu0 %v4139
  %v4305 = vpop.f32.mrb[0].mxu0
  %v4306 = vadd.f32 0.0, %v4305
  %v4307 = vpop.f32.mrb[0].mxu0
  %4308 = vmatprep.mubr.f32.mxu0 0.0
  %4309 = vmatmul.mubr.f32.gmra.mrb[0].mxu0 %v4140
  %v4310 = vpop.f32.mrb[0].mxu0
  %v4311 = vadd.f32 0.0, %v4310
  %v4312 = vpop.f32.mrb[0].mxu0
  %4313 = vmatprep.mubr.f32.mxu0 0.0
  %4314 = vmatmul.mubr.f32.gmra.mrb[0].mxu0 %v4141
  %v4315 = vpop.f32.mrb[0].mxu0
  %v4316 = vadd.f32 0.0, %v4315
  %v4317 = vpop.f32.mrb[0].mxu0
  %4318 = vmatprep.mubr.f32.mxu0 0.0
  %4319 = vmatmul.mubr.f32.gmra.mrb[0].mxu0 %v4142
  %v4320 = vpop.f32.mrb[0].mxu0
  %v4321 = vadd.f32 0.0, %v4320
  %v4322 = vpop.f32.mrb[0].mxu0
  %4323 = vmatprep.mubr.f32.mxu0 0.0
  %4324 = vmatmul.mubr.f32.gmra.mrb[0].mxu0 %v4143
  %v4325 = vpop.f32.mrb[0].mxu0
  %v4326 = vadd.f32 0.0, %v4325
  %v4327 = vpop.f32.mrb[0].mxu0
  %4328 = vmatprep.mubr.f32.mxu0 0.0
  %4329 = vmatmul.mubr.f32.gmra.mrb[0].mxu0 %v4144
  %v4330 = vpop.f32.mrb[0].mxu0
  %v4331 = vadd.f32 0.0, %v4330
  %v4332 = vpop.f32.mrb[0].mxu0
  %4333 = vmatprep.mubr.f32.mxu0 0.0
  %4334 = vmatmul.mubr.f32.gmra.mrb[0].mxu0 %v4145
  %v4335 = vpop.f32.mrb[0].mxu0
  %v4336 = vadd.f32 0.0, %v4335
  %v4337 = vpop.f32.mrb[0].mxu0
  %4338 = vdwg.mxu0
  %v4339 = vld [vmem:[%s5 + $0x10] sm:$0xff]
  %v4341 = vsel %vm288, %v4261, 0
  %v4344 = vsel %vm288, %v4266, 0
  %v4347 = vsel %vm288, %v4271, 0
  %v4350 = vsel %vm288, %v4276, 0
  %v4353 = vsel %vm288, %v4281, 0
  %v4356 = vsel %vm288, %v4286, 0
  %v4359 = vsel %vm288, %v4291, 0
  %v4362 = vsel %vm288, %v4296, 0
  %v4365 = vsel %vm288, %v4301, 0
  %v4368 = vsel %vm288, %v4306, 0
  %v4371 = vsel %vm288, %v4311, 0
  %v4374 = vsel %vm288, %v4316, 0
  %v4377 = vsel %vm288, %v4321, 0
  %v4380 = vsel %vm288, %v4326, 0
  %v4383 = vsel %vm288, %v4331, 0
  %v4386 = vsel %vm288, %v4336, 0
  %4388 = vmatprep.subr.mxu0 0.0
  %4389 = vmatpush1.msra.mxu0 %v4339
  %4390 = vmatprep.subr.mxu0 0.0
  %4391 = vmatpush1.msra.mxu0 0.0
  %4392 = vmatprep.subr.mxu0 0.0
  %4393 = vmatpush1.msra.mxu0 0.0
  %4394 = vmatprep.subr.mxu0 0.0
  %4395 = vmatpush1.msra.mxu0 0.0
  %4396 = vmatprep.subr.mxu0 0.0
  %4397 = vmatpush1.msra.mxu0 0.0
  %4398 = vmatprep.subr.mxu0 0.0
  %4399 = vmatpush1.msra.mxu0 0.0
  %4400 = vmatprep.subr.mxu0 0.0
  %4401 = vmatpush1.msra.mxu0 0.0
  %4402 = vmatprep.subr.mxu0 0.0
  %4403 = vmatpush1.msra.mxu0 0.0
  %4404 = vmatprep.subr.mxu0 0.0
  %4405 = vmatpush1.msra.mxu0 0.0
  %4406 = vmatprep.subr.mxu0 0.0
  %4407 = vmatpush1.msra.mxu0 0.0
  %4408 = vmatprep.subr.mxu0 0.0
  %4409 = vmatpush1.msra.mxu0 0.0
  %4410 = vmatprep.subr.mxu0 0.0
  %4411 = vmatpush1.msra.mxu0 0.0
  %4412 = vmatprep.subr.mxu0 0.0
  %4413 = vmatpush1.msra.mxu0 0.0
  %4414 = vmatprep.subr.mxu0 0.0
  %4415 = vmatpush1.msra.mxu0 0.0
  %4416 = vmatprep.subr.mxu0 0.0
  %4417 = vmatpush1.msra.mxu0 0.0
  %4418 = vmatprep.subr.mxu0 0.0
  %4419 = vmatpush1.msra.mxu0 0.0
  %4420 = vmatprep.subr.mxu0 0.0
  %4421 = vmatpush1.msra.mxu0 0.0
  %4422 = vmatprep.subr.mxu0 0.0
  %4423 = vmatpush1.msra.mxu0 0.0
  %4424 = vmatprep.subr.mxu0 0.0
  %4425 = vmatpush1.msra.mxu0 0.0
  %4426 = vmatprep.subr.mxu0 0.0
  %4427 = vmatpush1.msra.mxu0 0.0
  %4428 = vmatprep.subr.mxu0 0.0
  %4429 = vmatpush1.msra.mxu0 0.0
  %4430 = vmatprep.subr.mxu0 0.0
  %4431 = vmatpush1.msra.mxu0 0.0
  %4432 = vmatprep.subr.mxu0 0.0
  %4433 = vmatpush1.msra.mxu0 0.0
  %4434 = vmatprep.subr.mxu0 0.0
  %4435 = vmatpush1.msra.mxu0 0.0
  %4436 = vmatprep.subr.mxu0 0.0
  %4437 = vmatpush1.msra.mxu0 0.0
  %4438 = vmatprep.subr.mxu0 0.0
  %4439 = vmatpush1.msra.mxu0 0.0
  %4440 = vmatprep.subr.mxu0 0.0
  %4441 = vmatpush1.msra.mxu0 0.0
  %4442 = vmatprep.subr.mxu0 0.0
  %4443 = vmatpush1.msra.mxu0 0.0
  %4444 = vmatprep.subr.mxu0 0.0
  %4445 = vmatpush1.msra.mxu0 0.0
  %4446 = vmatprep.subr.mxu0 0.0
  %4447 = vmatpush1.msra.mxu0 0.0
  %4448 = vmatprep.subr.mxu0 0.0
  %4449 = vmatpush1.msra.mxu0 0.0
  %4450 = vmatprep.subr.mxu0 0.0
  %4451 = vmatpush1.msra.mxu0 0.0
  %4452 = vmatprep.mubr.f32.mxu0 0.0
  %4453 = vmatmul.mubr.f32.gmra.mrb[0].mxu0 %v4341
  %v4454 = vpop.f32.mrb[0].mxu0
  %v4455 = vadd.f32 0.0, %v4454
  %v4456 = vpop.f32.mrb[0].mxu0
  %4457 = vmatprep.mubr.f32.mxu0 0.0
  %4458 = vmatmul.mubr.f32.gmra.mrb[0].mxu0 %v4344
  %v4459 = vpop.f32.mrb[0].mxu0
  %v4460 = vadd.f32 0.0, %v4459
  %v4461 = vpop.f32.mrb[0].mxu0
  %4462 = vmatprep.mubr.f32.mxu0 0.0
  %4463 = vmatmul.mubr.f32.gmra.mrb[0].mxu0 %v4347
  %v4464 = vpop.f32.mrb[0].mxu0
  %v4465 = vadd.f32 0.0, %v4464
  %v4466 = vpop.f32.mrb[0].mxu0
  %4467 = vmatprep.mubr.f32.mxu0 0.0
  %4468 = vmatmul.mubr.f32.gmra.mrb[0].mxu0 %v4350
  %v4469 = vpop.f32.mrb[0].mxu0
  %v4470 = vadd.f32 0.0, %v4469
  %v4471 = vpop.f32.mrb[0].mxu0
  %4472 = vmatprep.mubr.f32.mxu0 0.0
  %4473 = vmatmul.mubr.f32.gmra.mrb[0].mxu0 %v4353
  %v4474 = vpop.f32.mrb[0].mxu0
  %v4475 = vadd.f32 0.0, %v4474
  %v4476 = vpop.f32.mrb[0].mxu0
  %4477 = vmatprep.mubr.f32.mxu0 0.0
  %4478 = vmatmul.mubr.f32.gmra.mrb[0].mxu0 %v4356
  %v4479 = vpop.f32.mrb[0].mxu0
  %v4480 = vadd.f32 0.0, %v4479
  %v4481 = vpop.f32.mrb[0].mxu0
  %4482 = vmatprep.mubr.f32.mxu0 0.0
  %4483 = vmatmul.mubr.f32.gmra.mrb[0].mxu0 %v4359
  %v4484 = vpop.f32.mrb[0].mxu0
  %v4485 = vadd.f32 0.0, %v4484
  %v4486 = vpop.f32.mrb[0].mxu0
  %4487 = vmatprep.mubr.f32.mxu0 0.0
  %4488 = vmatmul.mubr.f32.gmra.mrb[0].mxu0 %v4362
  %v4489 = vpop.f32.mrb[0].mxu0
  %v4490 = vadd.f32 0.0, %v4489
  %v4491 = vpop.f32.mrb[0].mxu0
  %4492 = vmatprep.mubr.f32.mxu0 0.0
  %4493 = vmatmul.mubr.f32.gmra.mrb[0].mxu0 %v4365
  %v4494 = vpop.f32.mrb[0].mxu0
  %v4495 = vadd.f32 0.0, %v4494
  %v4496 = vpop.f32.mrb[0].mxu0
  %4497 = vmatprep.mubr.f32.mxu0 0.0
  %4498 = vmatmul.mubr.f32.gmra.mrb[0].mxu0 %v4368
  %v4499 = vpop.f32.mrb[0].mxu0
  %v4500 = vadd.f32 0.0, %v4499
  %v4501 = vpop.f32.mrb[0].mxu0
  %4502 = vmatprep.mubr.f32.mxu0 0.0
  %4503 = vmatmul.mubr.f32.gmra.mrb[0].mxu0 %v4371
  %v4504 = vpop.f32.mrb[0].mxu0
  %v4505 = vadd.f32 0.0, %v4504
  %v4506 = vpop.f32.mrb[0].mxu0
  %4507 = vmatprep.mubr.f32.mxu0 0.0
  %4508 = vmatmul.mubr.f32.gmra.mrb[0].mxu0 %v4374
  %v4509 = vpop.f32.mrb[0].mxu0
  %v4510 = vadd.f32 0.0, %v4509
  %v4511 = vpop.f32.mrb[0].mxu0
  %4512 = vmatprep.mubr.f32.mxu0 0.0
  %4513 = vmatmul.mubr.f32.gmra.mrb[0].mxu0 %v4377
  %v4514 = vpop.f32.mrb[0].mxu0
  %v4515 = vadd.f32 0.0, %v4514
  %v4516 = vpop.f32.mrb[0].mxu0
  %4517 = vmatprep.mubr.f32.mxu0 0.0
  %4518 = vmatmul.mubr.f32.gmra.mrb[0].mxu0 %v4380
  %v4519 = vpop.f32.mrb[0].mxu0
  %v4520 = vadd.f32 0.0, %v4519
  %v4521 = vpop.f32.mrb[0].mxu0
  %4522 = vmatprep.mubr.f32.mxu0 0.0
  %4523 = vmatmul.mubr.f32.gmra.mrb[0].mxu0 %v4383
  %v4524 = vpop.f32.mrb[0].mxu0
  %v4525 = vadd.f32 0.0, %v4524
  %v4526 = vpop.f32.mrb[0].mxu0
  %4527 = vmatprep.mubr.f32.mxu0 0.0
  %4528 = vmatmul.mubr.f32.gmra.mrb[0].mxu0 %v4386
  %v4529 = vpop.f32.mrb[0].mxu0
  %v4530 = vadd.f32 0.0, %v4529
  %v4531 = vpop.f32.mrb[0].mxu0
  %4532 = vdwg.mxu0
  %v4533 = vadd.f32 %v3002, %v4455
  %v4534 = vadd.f32 %v3007, %v4460
  %v4535 = vadd.f32 %v3012, %v4465
  %v4536 = vadd.f32 %v3017, %v4470
  %v4537 = vadd.f32 %v3022, %v4475
  %v4538 = vadd.f32 %v3027, %v4480
  %v4539 = vadd.f32 %v3032, %v4485
  %v4540 = vadd.f32 %v3037, %v4490
  %v4541 = vadd.f32 %v3042, %v4495
  %v4542 = vadd.f32 %v3047, %v4500
  %v4543 = vadd.f32 %v3052, %v4505
  %v4544 = vadd.f32 %v3057, %v4510
  %v4545 = vadd.f32 %v3062, %v4515
  %v4546 = vadd.f32 %v3067, %v4520
  %v4547 = vadd.f32 %v3072, %v4525
  %v4548 = vadd.f32 %v3077, %v4530
  %s4549 = scalar_lea.vmem %s2, 3
  %v4550 = vld [vmem:[%s4549] sm:$0x1]
  %4551 = vrot.lane.b32.xlu0 %v272, 104
  %v4552 = vpop.permute.xlu0 %4551
  %4553 = vrot.lane.b32.xlu0 %v273, 104
  %v4554 = vpop.permute.xlu0 %4553
  %4555 = vrot.lane.b32.xlu0 %v274, 104
  %v4556 = vpop.permute.xlu0 %4555
  %4557 = vrot.lane.b32.xlu0 %v275, 104
  %v4558 = vpop.permute.xlu0 %4557
  %4559 = vrot.lane.b32.xlu0 %v276, 104
  %v4560 = vpop.permute.xlu0 %4559
  %4561 = vrot.lane.b32.xlu0 %v277, 104
  %v4562 = vpop.permute.xlu0 %4561
  %4563 = vrot.lane.b32.xlu0 %v278, 104
  %v4564 = vpop.permute.xlu0 %4563
  %4565 = vrot.lane.b32.xlu0 %v279, 104
  %v4566 = vpop.permute.xlu0 %4565
  %4567 = vrot.lane.b32.xlu0 %v280, 104
  %v4568 = vpop.permute.xlu0 %4567
  %4569 = vrot.lane.b32.xlu0 %v281, 104
  %v4570 = vpop.permute.xlu0 %4569
  %4571 = vrot.lane.b32.xlu0 %v282, 104
  %v4572 = vpop.permute.xlu0 %4571
  %4573 = vrot.lane.b32.xlu0 %v283, 104
  %v4574 = vpop.permute.xlu0 %4573
  %4575 = vrot.lane.b32.xlu0 %v284, 104
  %v4576 = vpop.permute.xlu0 %4575
  %4577 = vrot.lane.b32.xlu0 %v285, 104
  %v4578 = vpop.permute.xlu0 %4577
  %4579 = vrot.lane.b32.xlu0 %v286, 104
  %v4580 = vpop.permute.xlu0 %4579
  %4581 = vrot.lane.b32.xlu0 %v287, 104
  %v4582 = vpop.permute.xlu0 %4581
  %v4599 = vsel %vm288, %v4552, 0.0
  %4600 = vadd.xlane.f32.xlu0 %v4599
  %v4601 = vpop.xlane.xlu0 %4600
  %v4602 = vsel %vm288, %v4554, 0.0
  %4603 = vadd.xlane.f32.xlu0 %v4602
  %v4604 = vpop.xlane.xlu0 %4603
  %v4605 = vsel %vm288, %v4556, 0.0
  %4606 = vadd.xlane.f32.xlu0 %v4605
  %v4607 = vpop.xlane.xlu0 %4606
  %v4608 = vsel %vm288, %v4558, 0.0
  %4609 = vadd.xlane.f32.xlu0 %v4608
  %v4610 = vpop.xlane.xlu0 %4609
  %v4611 = vsel %vm288, %v4560, 0.0
  %4612 = vadd.xlane.f32.xlu0 %v4611
  %v4613 = vpop.xlane.xlu0 %4612
  %v4614 = vsel %vm288, %v4562, 0.0
  %4615 = vadd.xlane.f32.xlu0 %v4614
  %v4616 = vpop.xlane.xlu0 %4615
  %v4617 = vsel %vm288, %v4564, 0.0
  %4618 = vadd.xlane.f32.xlu0 %v4617
  %v4619 = vpop.xlane.xlu0 %4618
  %v4620 = vsel %vm288, %v4566, 0.0
  %4621 = vadd.xlane.f32.xlu0 %v4620
  %v4622 = vpop.xlane.xlu0 %4621
  %v4623 = vsel %vm288, %v4568, 0.0
  %4624 = vadd.xlane.f32.xlu0 %v4623
  %v4625 = vpop.xlane.xlu0 %4624
  %v4626 = vsel %vm288, %v4570, 0.0
  %4627 = vadd.xlane.f32.xlu0 %v4626
  %v4628 = vpop.xlane.xlu0 %4627
  %v4629 = vsel %vm288, %v4572, 0.0
  %4630 = vadd.xlane.f32.xlu0 %v4629
  %v4631 = vpop.xlane.xlu0 %4630
  %v4632 = vsel %vm288, %v4574, 0.0
  %4633 = vadd.xlane.f32.xlu0 %v4632
  %v4634 = vpop.xlane.xlu0 %4633
  %v4635 = vsel %vm288, %v4576, 0.0
  %4636 = vadd.xlane.f32.xlu0 %v4635
  %v4637 = vpop.xlane.xlu0 %4636
  %v4638 = vsel %vm288, %v4578, 0.0
  %4639 = vadd.xlane.f32.xlu0 %v4638
  %v4640 = vpop.xlane.xlu0 %4639
  %v4641 = vsel %vm288, %v4580, 0.0
  %4642 = vadd.xlane.f32.xlu0 %v4641
  %v4643 = vpop.xlane.xlu0 %4642
  %v4644 = vsel %vm288, %v4582, 0.0
  %4645 = vadd.xlane.f32.xlu0 %v4644
  %v4646 = vpop.xlane.xlu0 %4645
  %v4647 = vrsqrt.pop %v4601
  %v4648 = vmul.f32 %v4601, %v4647
  %vm4649 = vcmp.eq.f32.partialorder %v4601, inf
  %v4650 = vsel %vm4649, %v4601, %v4648
  %vm4651 = vcmp.eq.f32.partialorder %v4601, 0.0
  %v4652 = vand.u32 %v4601, 2147483648
  %v4653 = vsel %vm4651, %v4652, %v4650
  %v4654 = vrsqrt.pop %v4604
  %v4655 = vmul.f32 %v4604, %v4654
  %vm4656 = vcmp.eq.f32.partialorder %v4604, inf
  %v4657 = vsel %vm4656, %v4604, %v4655
  %vm4658 = vcmp.eq.f32.partialorder %v4604, 0.0
  %v4659 = vand.u32 %v4604, 2147483648
  %v4660 = vsel %vm4658, %v4659, %v4657
  %v4661 = vrsqrt.pop %v4607
  %v4662 = vmul.f32 %v4607, %v4661
  %vm4663 = vcmp.eq.f32.partialorder %v4607, inf
  %v4664 = vsel %vm4663, %v4607, %v4662
  %vm4665 = vcmp.eq.f32.partialorder %v4607, 0.0
  %v4666 = vand.u32 %v4607, 2147483648
  %v4667 = vsel %vm4665, %v4666, %v4664
  %v4668 = vrsqrt.pop %v4610
  %v4669 = vmul.f32 %v4610, %v4668
  %vm4670 = vcmp.eq.f32.partialorder %v4610, inf
  %v4671 = vsel %vm4670, %v4610, %v4669
  %vm4672 = vcmp.eq.f32.partialorder %v4610, 0.0
  %v4673 = vand.u32 %v4610, 2147483648
  %v4674 = vsel %vm4672, %v4673, %v4671
  %v4675 = vrsqrt.pop %v4613
  %v4676 = vmul.f32 %v4613, %v4675
  %vm4677 = vcmp.eq.f32.partialorder %v4613, inf
  %v4678 = vsel %vm4677, %v4613, %v4676
  %vm4679 = vcmp.eq.f32.partialorder %v4613, 0.0
  %v4680 = vand.u32 %v4613, 2147483648
  %v4681 = vsel %vm4679, %v4680, %v4678
  %v4682 = vrsqrt.pop %v4616
  %v4683 = vmul.f32 %v4616, %v4682
  %vm4684 = vcmp.eq.f32.partialorder %v4616, inf
  %v4685 = vsel %vm4684, %v4616, %v4683
  %vm4686 = vcmp.eq.f32.partialorder %v4616, 0.0
  %v4687 = vand.u32 %v4616, 2147483648
  %v4688 = vsel %vm4686, %v4687, %v4685
  %v4689 = vrsqrt.pop %v4619
  %v4690 = vmul.f32 %v4619, %v4689
  %vm4691 = vcmp.eq.f32.partialorder %v4619, inf
  %v4692 = vsel %vm4691, %v4619, %v4690
  %vm4693 = vcmp.eq.f32.partialorder %v4619, 0.0
  %v4694 = vand.u32 %v4619, 2147483648
  %v4695 = vsel %vm4693, %v4694, %v4692
  %v4696 = vrsqrt.pop %v4622
  %v4697 = vmul.f32 %v4622, %v4696
  %vm4698 = vcmp.eq.f32.partialorder %v4622, inf
  %v4699 = vsel %vm4698, %v4622, %v4697
  %vm4700 = vcmp.eq.f32.partialorder %v4622, 0.0
  %v4701 = vand.u32 %v4622, 2147483648
  %v4702 = vsel %vm4700, %v4701, %v4699
  %v4703 = vrsqrt.pop %v4625
  %v4704 = vmul.f32 %v4625, %v4703
  %vm4705 = vcmp.eq.f32.partialorder %v4625, inf
  %v4706 = vsel %vm4705, %v4625, %v4704
  %vm4707 = vcmp.eq.f32.partialorder %v4625, 0.0
  %v4708 = vand.u32 %v4625, 2147483648
  %v4709 = vsel %vm4707, %v4708, %v4706
  %v4710 = vrsqrt.pop %v4628
  %v4711 = vmul.f32 %v4628, %v4710
  %vm4712 = vcmp.eq.f32.partialorder %v4628, inf
  %v4713 = vsel %vm4712, %v4628, %v4711
  %vm4714 = vcmp.eq.f32.partialorder %v4628, 0.0
  %v4715 = vand.u32 %v4628, 2147483648
  %v4716 = vsel %vm4714, %v4715, %v4713
  %v4717 = vrsqrt.pop %v4631
  %v4718 = vmul.f32 %v4631, %v4717
  %vm4719 = vcmp.eq.f32.partialorder %v4631, inf
  %v4720 = vsel %vm4719, %v4631, %v4718
  %vm4721 = vcmp.eq.f32.partialorder %v4631, 0.0
  %v4722 = vand.u32 %v4631, 2147483648
  %v4723 = vsel %vm4721, %v4722, %v4720
  %v4724 = vrsqrt.pop %v4634
  %v4725 = vmul.f32 %v4634, %v4724
  %vm4726 = vcmp.eq.f32.partialorder %v4634, inf
  %v4727 = vsel %vm4726, %v4634, %v4725
  %vm4728 = vcmp.eq.f32.partialorder %v4634, 0.0
  %v4729 = vand.u32 %v4634, 2147483648
  %v4730 = vsel %vm4728, %v4729, %v4727
  %v4731 = vrsqrt.pop %v4637
  %v4732 = vmul.f32 %v4637, %v4731
  %vm4733 = vcmp.eq.f32.partialorder %v4637, inf
  %v4734 = vsel %vm4733, %v4637, %v4732
  %vm4735 = vcmp.eq.f32.partialorder %v4637, 0.0
  %v4736 = vand.u32 %v4637, 2147483648
  %v4737 = vsel %vm4735, %v4736, %v4734
  %v4738 = vrsqrt.pop %v4640
  %v4739 = vmul.f32 %v4640, %v4738
  %vm4740 = vcmp.eq.f32.partialorder %v4640, inf
  %v4741 = vsel %vm4740, %v4640, %v4739
  %vm4742 = vcmp.eq.f32.partialorder %v4640, 0.0
  %v4743 = vand.u32 %v4640, 2147483648
  %v4744 = vsel %vm4742, %v4743, %v4741
  %v4745 = vrsqrt.pop %v4643
  %v4746 = vmul.f32 %v4643, %v4745
  %vm4747 = vcmp.eq.f32.partialorder %v4643, inf
  %v4748 = vsel %vm4747, %v4643, %v4746
  %vm4749 = vcmp.eq.f32.partialorder %v4643, 0.0
  %v4750 = vand.u32 %v4643, 2147483648
  %v4751 = vsel %vm4749, %v4750, %v4748
  %v4752 = vrsqrt.pop %v4646
  %v4753 = vmul.f32 %v4646, %v4752
  %vm4754 = vcmp.eq.f32.partialorder %v4646, inf
  %v4755 = vsel %vm4754, %v4646, %v4753
  %vm4756 = vcmp.eq.f32.partialorder %v4646, 0.0
  %v4757 = vand.u32 %v4646, 2147483648
  %v4758 = vsel %vm4756, %v4757, %v4755
  %v4759 = vmax.f32 %v4653, 1e-12
  %v4760 = vmax.f32 %v4660, 1e-12
  %v4761 = vmax.f32 %v4667, 1e-12
  %v4762 = vmax.f32 %v4674, 1e-12
  %v4763 = vmax.f32 %v4681, 1e-12
  %v4764 = vmax.f32 %v4688, 1e-12
  %v4765 = vmax.f32 %v4695, 1e-12
  %v4766 = vmax.f32 %v4702, 1e-12
  %v4767 = vmax.f32 %v4709, 1e-12
  %v4768 = vmax.f32 %v4716, 1e-12
  %v4769 = vmax.f32 %v4723, 1e-12
  %v4770 = vmax.f32 %v4730, 1e-12
  %v4771 = vmax.f32 %v4737, 1e-12
  %v4772 = vmax.f32 %v4744, 1e-12
  %v4773 = vmax.f32 %v4751, 1e-12
  %v4774 = vmax.f32 %v4758, 1e-12
  %v4776 = vlaneseq
  %v4777 = vshrl.u32 %v4776, 7
  %v4778 = vsub.s32 0, %v4777
  %v4779 = vrot.slane %v4550, %v4778
  %v4781 = vrcp.pop %v4759
  %v4782 = vmul.f32 %v4779, %v4781
  %v4783 = vrcp.pop %v4760
  %v4784 = vmul.f32 %v4779, %v4783
  %v4785 = vrcp.pop %v4761
  %v4786 = vmul.f32 %v4779, %v4785
  %v4787 = vrcp.pop %v4762
  %v4788 = vmul.f32 %v4779, %v4787
  %v4789 = vrcp.pop %v4763
  %v4790 = vmul.f32 %v4779, %v4789
  %v4791 = vrcp.pop %v4764
  %v4792 = vmul.f32 %v4779, %v4791
  %v4793 = vrcp.pop %v4765
  %v4794 = vmul.f32 %v4779, %v4793
  %v4795 = vrcp.pop %v4766
  %v4796 = vmul.f32 %v4779, %v4795
  %v4797 = vrcp.pop %v4767
  %v4798 = vmul.f32 %v4779, %v4797
  %v4799 = vrcp.pop %v4768
  %v4800 = vmul.f32 %v4779, %v4799
  %v4801 = vrcp.pop %v4769
  %v4802 = vmul.f32 %v4779, %v4801
  %v4803 = vrcp.pop %v4770
  %v4804 = vmul.f32 %v4779, %v4803
  %v4805 = vrcp.pop %v4771
  %v4806 = vmul.f32 %v4779, %v4805
  %v4807 = vrcp.pop %v4772
  %v4808 = vmul.f32 %v4779, %v4807
  %v4809 = vrcp.pop %v4773
  %v4810 = vmul.f32 %v4779, %v4809
  %v4811 = vrcp.pop %v4774
  %v4812 = vmul.f32 %v4779, %v4811
  %4829 = vrot.lane.b32.xlu0 %v4782, 24
  %v4830 = vpop.permute.xlu0 %4829
  %4831 = vrot.lane.b32.xlu0 %v4784, 24
  %v4832 = vpop.permute.xlu0 %4831
  %4833 = vrot.lane.b32.xlu0 %v4786, 24
  %v4834 = vpop.permute.xlu0 %4833
  %4835 = vrot.lane.b32.xlu0 %v4788, 24
  %v4836 = vpop.permute.xlu0 %4835
  %4837 = vrot.lane.b32.xlu0 %v4790, 24
  %v4838 = vpop.permute.xlu0 %4837
  %4839 = vrot.lane.b32.xlu0 %v4792, 24
  %v4840 = vpop.permute.xlu0 %4839
  %4841 = vrot.lane.b32.xlu0 %v4794, 24
  %v4842 = vpop.permute.xlu0 %4841
  %4843 = vrot.lane.b32.xlu0 %v4796, 24
  %v4844 = vpop.permute.xlu0 %4843
  %4845 = vrot.lane.b32.xlu0 %v4798, 24
  %v4846 = vpop.permute.xlu0 %4845
  %4847 = vrot.lane.b32.xlu0 %v4800, 24
  %v4848 = vpop.permute.xlu0 %4847
  %4849 = vrot.lane.b32.xlu0 %v4802, 24
  %v4850 = vpop.permute.xlu0 %4849
  %4851 = vrot.lane.b32.xlu0 %v4804, 24
  %v4852 = vpop.permute.xlu0 %4851
  %4853 = vrot.lane.b32.xlu0 %v4806, 24
  %v4854 = vpop.permute.xlu0 %4853
  %4855 = vrot.lane.b32.xlu0 %v4808, 24
  %v4856 = vpop.permute.xlu0 %4855
  %4857 = vrot.lane.b32.xlu0 %v4810, 24
  %v4858 = vpop.permute.xlu0 %4857
  %4859 = vrot.lane.b32.xlu0 %v4812, 24
  %v4860 = vpop.permute.xlu0 %4859
  %v4877 = vmul.f32 %v193, %v4830
  %v4878 = vmul.f32 %v198, %v4832
  %v4879 = vmul.f32 %v203, %v4834
  %v4880 = vmul.f32 %v208, %v4836
  %v4881 = vmul.f32 %v213, %v4838
  %v4882 = vmul.f32 %v218, %v4840
  %v4883 = vmul.f32 %v223, %v4842
  %v4884 = vmul.f32 %v228, %v4844
  %v4885 = vmul.f32 %v233, %v4846
  %v4886 = vmul.f32 %v238, %v4848
  %v4887 = vmul.f32 %v243, %v4850
  %v4888 = vmul.f32 %v248, %v4852
  %v4889 = vmul.f32 %v253, %v4854
  %v4890 = vmul.f32 %v258, %v4856
  %v4891 = vmul.f32 %v263, %v4858
  %v4892 = vmul.f32 %v268, %v4860
  %4893 = vrot.lane.b32.xlu0 %v272, 72
  %v4894 = vpop.permute.xlu0 %4893
  %4895 = vrot.lane.b32.xlu0 %v273, 72
  %v4896 = vpop.permute.xlu0 %4895
  %4897 = vrot.lane.b32.xlu0 %v274, 72
  %v4898 = vpop.permute.xlu0 %4897
  %4899 = vrot.lane.b32.xlu0 %v275, 72
  %v4900 = vpop.permute.xlu0 %4899
  %4901 = vrot.lane.b32.xlu0 %v276, 72
  %v4902 = vpop.permute.xlu0 %4901
  %4903 = vrot.lane.b32.xlu0 %v277, 72
  %v4904 = vpop.permute.xlu0 %4903
  %4905 = vrot.lane.b32.xlu0 %v278, 72
  %v4906 = vpop.permute.xlu0 %4905
  %4907 = vrot.lane.b32.xlu0 %v279, 72
  %v4908 = vpop.permute.xlu0 %4907
  %4909 = vrot.lane.b32.xlu0 %v280, 72
  %v4910 = vpop.permute.xlu0 %4909
  %4911 = vrot.lane.b32.xlu0 %v281, 72
  %v4912 = vpop.permute.xlu0 %4911
  %4913 = vrot.lane.b32.xlu0 %v282, 72
  %v4914 = vpop.permute.xlu0 %4913
  %4915 = vrot.lane.b32.xlu0 %v283, 72
  %v4916 = vpop.permute.xlu0 %4915
  %4917 = vrot.lane.b32.xlu0 %v284, 72
  %v4918 = vpop.permute.xlu0 %4917
  %4919 = vrot.lane.b32.xlu0 %v285, 72
  %v4920 = vpop.permute.xlu0 %4919
  %4921 = vrot.lane.b32.xlu0 %v286, 72
  %v4922 = vpop.permute.xlu0 %4921
  %4923 = vrot.lane.b32.xlu0 %v287, 72
  %v4924 = vpop.permute.xlu0 %4923
  %v4941 = vsel %vm288, %v4894, 0.0
  %4942 = vadd.xlane.f32.xlu0 %v4941
  %v4943 = vpop.xlane.xlu0 %4942
  %v4944 = vsel %vm288, %v4896, 0.0
  %4945 = vadd.xlane.f32.xlu0 %v4944
  %v4946 = vpop.xlane.xlu0 %4945
  %v4947 = vsel %vm288, %v4898, 0.0
  %4948 = vadd.xlane.f32.xlu0 %v4947
  %v4949 = vpop.xlane.xlu0 %4948
  %v4950 = vsel %vm288, %v4900, 0.0
  %4951 = vadd.xlane.f32.xlu0 %v4950
  %v4952 = vpop.xlane.xlu0 %4951
  %v4953 = vsel %vm288, %v4902, 0.0
  %4954 = vadd.xlane.f32.xlu0 %v4953
  %v4955 = vpop.xlane.xlu0 %4954
  %v4956 = vsel %vm288, %v4904, 0.0
  %4957 = vadd.xlane.f32.xlu0 %v4956
  %v4958 = vpop.xlane.xlu0 %4957
  %v4959 = vsel %vm288, %v4906, 0.0
  %4960 = vadd.xlane.f32.xlu0 %v4959
  %v4961 = vpop.xlane.xlu0 %4960
  %v4962 = vsel %vm288, %v4908, 0.0
  %4963 = vadd.xlane.f32.xlu0 %v4962
  %v4964 = vpop.xlane.xlu0 %4963
  %v4965 = vsel %vm288, %v4910, 0.0
  %4966 = vadd.xlane.f32.xlu0 %v4965
  %v4967 = vpop.xlane.xlu0 %4966
  %v4968 = vsel %vm288, %v4912, 0.0
  %4969 = vadd.xlane.f32.xlu0 %v4968
  %v4970 = vpop.xlane.xlu0 %4969
  %v4971 = vsel %vm288, %v4914, 0.0
  %4972 = vadd.xlane.f32.xlu0 %v4971
  %v4973 = vpop.xlane.xlu0 %4972
  %v4974 = vsel %vm288, %v4916, 0.0
  %4975 = vadd.xlane.f32.xlu0 %v4974
  %v4976 = vpop.xlane.xlu0 %4975
  %v4977 = vsel %vm288, %v4918, 0.0
  %4978 = vadd.xlane.f32.xlu0 %v4977
  %v4979 = vpop.xlane.xlu0 %4978
  %v4980 = vsel %vm288, %v4920, 0.0
  %4981 = vadd.xlane.f32.xlu0 %v4980
  %v4982 = vpop.xlane.xlu0 %4981
  %v4983 = vsel %vm288, %v4922, 0.0
  %4984 = vadd.xlane.f32.xlu0 %v4983
  %v4985 = vpop.xlane.xlu0 %4984
  %v4986 = vsel %vm288, %v4924, 0.0
  %4987 = vadd.xlane.f32.xlu0 %v4986
  %v4988 = vpop.xlane.xlu0 %4987
  %v4989 = vrsqrt.pop %v4943
  %v4990 = vmul.f32 %v4943, %v4989
  %vm4991 = vcmp.eq.f32.partialorder %v4943, inf
  %v4992 = vsel %vm4991, %v4943, %v4990
  %vm4993 = vcmp.eq.f32.partialorder %v4943, 0.0
  %v4994 = vand.u32 %v4943, 2147483648
  %v4995 = vsel %vm4993, %v4994, %v4992
  %v4996 = vrsqrt.pop %v4946
  %v4997 = vmul.f32 %v4946, %v4996
  %vm4998 = vcmp.eq.f32.partialorder %v4946, inf
  %v4999 = vsel %vm4998, %v4946, %v4997
  %vm5000 = vcmp.eq.f32.partialorder %v4946, 0.0
  %v5001 = vand.u32 %v4946, 2147483648
  %v5002 = vsel %vm5000, %v5001, %v4999
  %v5003 = vrsqrt.pop %v4949
  %v5004 = vmul.f32 %v4949, %v5003
  %vm5005 = vcmp.eq.f32.partialorder %v4949, inf
  %v5006 = vsel %vm5005, %v4949, %v5004
  %vm5007 = vcmp.eq.f32.partialorder %v4949, 0.0
  %v5008 = vand.u32 %v4949, 2147483648
  %v5009 = vsel %vm5007, %v5008, %v5006
  %v5010 = vrsqrt.pop %v4952
  %v5011 = vmul.f32 %v4952, %v5010
  %vm5012 = vcmp.eq.f32.partialorder %v4952, inf
  %v5013 = vsel %vm5012, %v4952, %v5011
  %vm5014 = vcmp.eq.f32.partialorder %v4952, 0.0
  %v5015 = vand.u32 %v4952, 2147483648
  %v5016 = vsel %vm5014, %v5015, %v5013
  %v5017 = vrsqrt.pop %v4955
  %v5018 = vmul.f32 %v4955, %v5017
  %vm5019 = vcmp.eq.f32.partialorder %v4955, inf
  %v5020 = vsel %vm5019, %v4955, %v5018
  %vm5021 = vcmp.eq.f32.partialorder %v4955, 0.0
  %v5022 = vand.u32 %v4955, 2147483648
  %v5023 = vsel %vm5021, %v5022, %v5020
  %v5024 = vrsqrt.pop %v4958
  %v5025 = vmul.f32 %v4958, %v5024
  %vm5026 = vcmp.eq.f32.partialorder %v4958, inf
  %v5027 = vsel %vm5026, %v4958, %v5025
  %vm5028 = vcmp.eq.f32.partialorder %v4958, 0.0
  %v5029 = vand.u32 %v4958, 2147483648
  %v5030 = vsel %vm5028, %v5029, %v5027
  %v5031 = vrsqrt.pop %v4961
  %v5032 = vmul.f32 %v4961, %v5031
  %vm5033 = vcmp.eq.f32.partialorder %v4961, inf
  %v5034 = vsel %vm5033, %v4961, %v5032
  %vm5035 = vcmp.eq.f32.partialorder %v4961, 0.0
  %v5036 = vand.u32 %v4961, 2147483648
  %v5037 = vsel %vm5035, %v5036, %v5034
  %v5038 = vrsqrt.pop %v4964
  %v5039 = vmul.f32 %v4964, %v5038
  %vm5040 = vcmp.eq.f32.partialorder %v4964, inf
  %v5041 = vsel %vm5040, %v4964, %v5039
  %vm5042 = vcmp.eq.f32.partialorder %v4964, 0.0
  %v5043 = vand.u32 %v4964, 2147483648
  %v5044 = vsel %vm5042, %v5043, %v5041
  %v5045 = vrsqrt.pop %v4967
  %v5046 = vmul.f32 %v4967, %v5045
  %vm5047 = vcmp.eq.f32.partialorder %v4967, inf
  %v5048 = vsel %vm5047, %v4967, %v5046
  %vm5049 = vcmp.eq.f32.partialorder %v4967, 0.0
  %v5050 = vand.u32 %v4967, 2147483648
  %v5051 = vsel %vm5049, %v5050, %v5048
  %v5052 = vrsqrt.pop %v4970
  %v5053 = vmul.f32 %v4970, %v5052
  %vm5054 = vcmp.eq.f32.partialorder %v4970, inf
  %v5055 = vsel %vm5054, %v4970, %v5053
  %vm5056 = vcmp.eq.f32.partialorder %v4970, 0.0
  %v5057 = vand.u32 %v4970, 2147483648
  %v5058 = vsel %vm5056, %v5057, %v5055
  %v5059 = vrsqrt.pop %v4973
  %v5060 = vmul.f32 %v4973, %v5059
  %vm5061 = vcmp.eq.f32.partialorder %v4973, inf
  %v5062 = vsel %vm5061, %v4973, %v5060
  %vm5063 = vcmp.eq.f32.partialorder %v4973, 0.0
  %v5064 = vand.u32 %v4973, 2147483648
  %v5065 = vsel %vm5063, %v5064, %v5062
  %v5066 = vrsqrt.pop %v4976
  %v5067 = vmul.f32 %v4976, %v5066
  %vm5068 = vcmp.eq.f32.partialorder %v4976, inf
  %v5069 = vsel %vm5068, %v4976, %v5067
  %vm5070 = vcmp.eq.f32.partialorder %v4976, 0.0
  %v5071 = vand.u32 %v4976, 2147483648
  %v5072 = vsel %vm5070, %v5071, %v5069
  %v5073 = vrsqrt.pop %v4979
  %v5074 = vmul.f32 %v4979, %v5073
  %vm5075 = vcmp.eq.f32.partialorder %v4979, inf
  %v5076 = vsel %vm5075, %v4979, %v5074
  %vm5077 = vcmp.eq.f32.partialorder %v4979, 0.0
  %v5078 = vand.u32 %v4979, 2147483648
  %v5079 = vsel %vm5077, %v5078, %v5076
  %v5080 = vrsqrt.pop %v4982
  %v5081 = vmul.f32 %v4982, %v5080
  %vm5082 = vcmp.eq.f32.partialorder %v4982, inf
  %v5083 = vsel %vm5082, %v4982, %v5081
  %vm5084 = vcmp.eq.f32.partialorder %v4982, 0.0
  %v5085 = vand.u32 %v4982, 2147483648
  %v5086 = vsel %vm5084, %v5085, %v5083
  %v5087 = vrsqrt.pop %v4985
  %v5088 = vmul.f32 %v4985, %v5087
  %vm5089 = vcmp.eq.f32.partialorder %v4985, inf
  %v5090 = vsel %vm5089, %v4985, %v5088
  %vm5091 = vcmp.eq.f32.partialorder %v4985, 0.0
  %v5092 = vand.u32 %v4985, 2147483648
  %v5093 = vsel %vm5091, %v5092, %v5090
  %v5094 = vrsqrt.pop %v4988
  %v5095 = vmul.f32 %v4988, %v5094
  %vm5096 = vcmp.eq.f32.partialorder %v4988, inf
  %v5097 = vsel %vm5096, %v4988, %v5095
  %vm5098 = vcmp.eq.f32.partialorder %v4988, 0.0
  %v5099 = vand.u32 %v4988, 2147483648
  %v5100 = vsel %vm5098, %v5099, %v5097
  %v5101 = vmax.f32 %v4995, 1e-12
  %v5102 = vmax.f32 %v5002, 1e-12
  %v5103 = vmax.f32 %v5009, 1e-12
  %v5104 = vmax.f32 %v5016, 1e-12
  %v5105 = vmax.f32 %v5023, 1e-12
  %v5106 = vmax.f32 %v5030, 1e-12
  %v5107 = vmax.f32 %v5037, 1e-12
  %v5108 = vmax.f32 %v5044, 1e-12
  %v5109 = vmax.f32 %v5051, 1e-12
  %v5110 = vmax.f32 %v5058, 1e-12
  %v5111 = vmax.f32 %v5065, 1e-12
  %v5112 = vmax.f32 %v5072, 1e-12
  %v5113 = vmax.f32 %v5079, 1e-12
  %v5114 = vmax.f32 %v5086, 1e-12
  %v5115 = vmax.f32 %v5093, 1e-12
  %v5116 = vmax.f32 %v5100, 1e-12
  %v5117 = vrcp.pop %v5101
  %v5118 = vmul.f32 %v193, %v5117
  %v5119 = vrcp.pop %v5102
  %v5120 = vmul.f32 %v198, %v5119
  %v5121 = vrcp.pop %v5103
  %v5122 = vmul.f32 %v203, %v5121
  %v5123 = vrcp.pop %v5104
  %v5124 = vmul.f32 %v208, %v5123
  %v5125 = vrcp.pop %v5105
  %v5126 = vmul.f32 %v213, %v5125
  %v5127 = vrcp.pop %v5106
  %v5128 = vmul.f32 %v218, %v5127
  %v5129 = vrcp.pop %v5107
  %v5130 = vmul.f32 %v223, %v5129
  %v5131 = vrcp.pop %v5108
  %v5132 = vmul.f32 %v228, %v5131
  %v5133 = vrcp.pop %v5109
  %v5134 = vmul.f32 %v233, %v5133
  %v5135 = vrcp.pop %v5110
  %v5136 = vmul.f32 %v238, %v5135
  %v5137 = vrcp.pop %v5111
  %v5138 = vmul.f32 %v243, %v5137
  %v5139 = vrcp.pop %v5112
  %v5140 = vmul.f32 %v248, %v5139
  %v5141 = vrcp.pop %v5113
  %v5142 = vmul.f32 %v253, %v5141
  %v5143 = vrcp.pop %v5114
  %v5144 = vmul.f32 %v258, %v5143
  %v5145 = vrcp.pop %v5115
  %v5146 = vmul.f32 %v263, %v5145
  %v5147 = vrcp.pop %v5116
  %v5148 = vmul.f32 %v268, %v5147
  %s5149 = scalar_lea.vmem %s1, 384
  %v5150 = vld [vmem:[%s5149] sm:$0xff]
  %v5151 = vld [vmem:[%s5149 + $0x8] sm:$0xff]
  %v5152 = vld [vmem:[%s5149 + $0x10] sm:$0xff]
  %v5153 = vld [vmem:[%s5149 + $0x18] sm:$0xff]
  %v5154 = vld [vmem:[%s5149 + $0x20] sm:$0xff]
  %v5155 = vld [vmem:[%s5149 + $0x28] sm:$0xff]
  %v5156 = vld [vmem:[%s5149 + $0x30] sm:$0xff]
  %v5157 = vld [vmem:[%s5149 + $0x38] sm:$0xff]
  %v5158 = vld [vmem:[%s5149 + $0x40] sm:$0xff]
  %v5159 = vld [vmem:[%s5149 + $0x48] sm:$0xff]
  %v5160 = vld [vmem:[%s5149 + $0x50] sm:$0xff]
  %v5161 = vld [vmem:[%s5149 + $0x58] sm:$0xff]
  %v5162 = vld [vmem:[%s5149 + $0x60] sm:$0xff]
  %v5163 = vld [vmem:[%s5149 + $0x68] sm:$0xff]
  %v5164 = vld [vmem:[%s5149 + $0x70] sm:$0xff]
  %v5165 = vld [vmem:[%s5149 + $0x78] sm:$0xff]
  %5182 = vrot.lane.b32.xlu0 %v4877, 104
  %v5183 = vpop.permute.xlu0 %5182
  %5184 = vrot.lane.b32.xlu0 %v4878, 104
  %v5185 = vpop.permute.xlu0 %5184
  %5186 = vrot.lane.b32.xlu0 %v4879, 104
  %v5187 = vpop.permute.xlu0 %5186
  %5188 = vrot.lane.b32.xlu0 %v4880, 104
  %v5189 = vpop.permute.xlu0 %5188
  %5190 = vrot.lane.b32.xlu0 %v4881, 104
  %v5191 = vpop.permute.xlu0 %5190
  %5192 = vrot.lane.b32.xlu0 %v4882, 104
  %v5193 = vpop.permute.xlu0 %5192
  %5194 = vrot.lane.b32.xlu0 %v4883, 104
  %v5195 = vpop.permute.xlu0 %5194
  %5196 = vrot.lane.b32.xlu0 %v4884, 104
  %v5197 = vpop.permute.xlu0 %5196
  %5198 = vrot.lane.b32.xlu0 %v4885, 104
  %v5199 = vpop.permute.xlu0 %5198
  %5200 = vrot.lane.b32.xlu0 %v4886, 104
  %v5201 = vpop.permute.xlu0 %5200
  %5202 = vrot.lane.b32.xlu0 %v4887, 104
  %v5203 = vpop.permute.xlu0 %5202
  %5204 = vrot.lane.b32.xlu0 %v4888, 104
  %v5205 = vpop.permute.xlu0 %5204
  %5206 = vrot.lane.b32.xlu0 %v4889, 104
  %v5207 = vpop.permute.xlu0 %5206
  %5208 = vrot.lane.b32.xlu0 %v4890, 104
  %v5209 = vpop.permute.xlu0 %5208
  %5210 = vrot.lane.b32.xlu0 %v4891, 104
  %v5211 = vpop.permute.xlu0 %5210
  %5212 = vrot.lane.b32.xlu0 %v4892, 104
  %v5213 = vpop.permute.xlu0 %5212
  %5230 = vrot.lane.b32.xlu0 %v5118, 72
  %v5231 = vpop.permute.xlu0 %5230
  %5232 = vrot.lane.b32.xlu0 %v5120, 72
  %v5233 = vpop.permute.xlu0 %5232
  %5234 = vrot.lane.b32.xlu0 %v5122, 72
  %v5235 = vpop.permute.xlu0 %5234
  %5236 = vrot.lane.b32.xlu0 %v5124, 72
  %v5237 = vpop.permute.xlu0 %5236
  %5238 = vrot.lane.b32.xlu0 %v5126, 72
  %v5239 = vpop.permute.xlu0 %5238
  %5240 = vrot.lane.b32.xlu0 %v5128, 72
  %v5241 = vpop.permute.xlu0 %5240
  %5242 = vrot.lane.b32.xlu0 %v5130, 72
  %v5243 = vpop.permute.xlu0 %5242
  %5244 = vrot.lane.b32.xlu0 %v5132, 72
  %v5245 = vpop.permute.xlu0 %5244
  %5246 = vrot.lane.b32.xlu0 %v5134, 72
  %v5247 = vpop.permute.xlu0 %5246
  %5248 = vrot.lane.b32.xlu0 %v5136, 72
  %v5249 = vpop.permute.xlu0 %5248
  %5250 = vrot.lane.b32.xlu0 %v5138, 72
  %v5251 = vpop.permute.xlu0 %5250
  %5252 = vrot.lane.b32.xlu0 %v5140, 72
  %v5253 = vpop.permute.xlu0 %5252
  %5254 = vrot.lane.b32.xlu0 %v5142, 72
  %v5255 = vpop.permute.xlu0 %5254
  %5256 = vrot.lane.b32.xlu0 %v5144, 72
  %v5257 = vpop.permute.xlu0 %5256
  %5258 = vrot.lane.b32.xlu0 %v5146, 72
  %v5259 = vpop.permute.xlu0 %5258
  %5260 = vrot.lane.b32.xlu0 %v5148, 72
  %v5261 = vpop.permute.xlu0 %5260
  %v5262 = vsel %vm288, %v5183, 0
  %v5264 = vsel %vm288, %v5185, 0
  %v5266 = vsel %vm288, %v5187, 0
  %v5268 = vsel %vm288, %v5189, 0
  %v5270 = vsel %vm288, %v5191, 0
  %v5272 = vsel %vm288, %v5193, 0
  %v5274 = vsel %vm288, %v5195, 0
  %v5276 = vsel %vm288, %v5197, 0
  %v5278 = vsel %vm288, %v5199, 0
  %v5280 = vsel %vm288, %v5201, 0
  %v5282 = vsel %vm288, %v5203, 0
  %v5284 = vsel %vm288, %v5205, 0
  %v5286 = vsel %vm288, %v5207, 0
  %v5288 = vsel %vm288, %v5209, 0
  %v5290 = vsel %vm288, %v5211, 0
  %v5292 = vsel %vm288, %v5213, 0
  %v5294 = vsel %vm288, %v5231, 0
  %v5296 = vsel %vm288, %v5233, 0
  %v5298 = vsel %vm288, %v5235, 0
  %v5300 = vsel %vm288, %v5237, 0
  %v5302 = vsel %vm288, %v5239, 0
  %v5304 = vsel %vm288, %v5241, 0
  %v5306 = vsel %vm288, %v5243, 0
  %v5308 = vsel %vm288, %v5245, 0
  %v5310 = vsel %vm288, %v5247, 0
  %v5312 = vsel %vm288, %v5249, 0
  %v5314 = vsel %vm288, %v5251, 0
  %v5316 = vsel %vm288, %v5253, 0
  %v5318 = vsel %vm288, %v5255, 0
  %v5320 = vsel %vm288, %v5257, 0
  %v5322 = vsel %vm288, %v5259, 0
  %v5324 = vsel %vm288, %v5261, 0
  %5326 = vmatprep.subr.mxu0 0.0
  %5327 = vmatpush1.xpose.msra.mxu0 %v5294
  %5328 = vmatprep.subr.mxu0 0.0
  %5329 = vmatpush1.xpose.msra.mxu0 %v5296
  %5330 = vmatprep.subr.mxu0 0.0
  %5331 = vmatpush1.xpose.msra.mxu0 %v5298
  %5332 = vmatprep.subr.mxu0 0.0
  %5333 = vmatpush1.xpose.msra.mxu0 %v5300
  %5334 = vmatprep.subr.mxu0 0.0
  %5335 = vmatpush1.xpose.msra.mxu0 %v5302
  %5336 = vmatprep.subr.mxu0 0.0
  %5337 = vmatpush1.xpose.msra.mxu0 %v5304
  %5338 = vmatprep.subr.mxu0 0.0
  %5339 = vmatpush1.xpose.msra.mxu0 %v5306
  %5340 = vmatprep.subr.mxu0 0.0
  %5341 = vmatpush1.xpose.msra.mxu0 %v5308
  %5342 = vmatprep.subr.mxu0 0.0
  %5343 = vmatpush1.xpose.msra.mxu0 %v5310
  %5344 = vmatprep.subr.mxu0 0.0
  %5345 = vmatpush1.xpose.msra.mxu0 %v5312
  %5346 = vmatprep.subr.mxu0 0.0
  %5347 = vmatpush1.xpose.msra.mxu0 %v5314
  %5348 = vmatprep.subr.mxu0 0.0
  %5349 = vmatpush1.xpose.msra.mxu0 %v5316
  %5350 = vmatprep.subr.mxu0 0.0
  %5351 = vmatpush1.xpose.msra.mxu0 %v5318
  %5352 = vmatprep.subr.mxu0 0.0
  %5353 = vmatpush1.xpose.msra.mxu0 %v5320
  %5354 = vmatprep.subr.mxu0 0.0
  %5355 = vmatpush1.xpose.msra.mxu0 %v5322
  %5356 = vmatprep.subr.mxu0 0.0
  %5357 = vmatpush1.xpose.msra.mxu0 %v5324
  %5358 = vmatprep.subr.mxu0 0.0
  %5359 = vmatpush1.xpose.msra.mxu0 0.0
  %5360 = vmatprep.subr.mxu0 0.0
  %5361 = vmatpush1.xpose.msra.mxu0 0.0
  %5362 = vmatprep.subr.mxu0 0.0
  %5363 = vmatpush1.xpose.msra.mxu0 0.0
  %5364 = vmatprep.subr.mxu0 0.0
  %5365 = vmatpush1.xpose.msra.mxu0 0.0
  %5366 = vmatprep.subr.mxu0 0.0
  %5367 = vmatpush1.xpose.msra.mxu0 0.0
  %5368 = vmatprep.subr.mxu0 0.0
  %5369 = vmatpush1.xpose.msra.mxu0 0.0
  %5370 = vmatprep.subr.mxu0 0.0
  %5371 = vmatpush1.xpose.msra.mxu0 0.0
  %5372 = vmatprep.subr.mxu0 0.0
  %5373 = vmatpush1.xpose.msra.mxu0 0.0
  %5374 = vmatprep.subr.mxu0 0.0
  %5375 = vmatpush1.xpose.msra.mxu0 0.0
  %5376 = vmatprep.subr.mxu0 0.0
  %5377 = vmatpush1.xpose.msra.mxu0 0.0
  %5378 = vmatprep.subr.mxu0 0.0
  %5379 = vmatpush1.xpose.msra.mxu0 0.0
  %5380 = vmatprep.subr.mxu0 0.0
  %5381 = vmatpush1.xpose.msra.mxu0 0.0
  %5382 = vmatprep.subr.mxu0 0.0
  %5383 = vmatpush1.xpose.msra.mxu0 0.0
  %5384 = vmatprep.subr.mxu0 0.0
  %5385 = vmatpush1.xpose.msra.mxu0 0.0
  %5386 = vmatprep.subr.mxu0 0.0
  %5387 = vmatpush1.xpose.msra.mxu0 0.0
  %5388 = vmatprep.subr.mxu0 0.0
  %5389 = vmatpush1.xpose.msra.mxu0 0.0
  %5390 = vmatprep.mubr.f32.mxu0 0.0
  %5391 = vmatmul.mubr.f32.gmra.mrb[0].mxu0 %v5262
  %v5392 = vpop.f32.mrb[0].mxu0
  %v5393 = vadd.f32 %v5150, %v5392
  %v5394 = vpop.f32.mrb[0].mxu0
  %5395 = vmatprep.mubr.f32.mxu0 0.0
  %5396 = vmatmul.mubr.f32.gmra.mrb[0].mxu0 %v5264
  %v5397 = vpop.f32.mrb[0].mxu0
  %v5398 = vadd.f32 %v5151, %v5397
  %v5399 = vpop.f32.mrb[0].mxu0
  %5400 = vmatprep.mubr.f32.mxu0 0.0
  %5401 = vmatmul.mubr.f32.gmra.mrb[0].mxu0 %v5266
  %v5402 = vpop.f32.mrb[0].mxu0
  %v5403 = vadd.f32 %v5152, %v5402
  %v5404 = vpop.f32.mrb[0].mxu0
  %5405 = vmatprep.mubr.f32.mxu0 0.0
  %5406 = vmatmul.mubr.f32.gmra.mrb[0].mxu0 %v5268
  %v5407 = vpop.f32.mrb[0].mxu0
  %v5408 = vadd.f32 %v5153, %v5407
  %v5409 = vpop.f32.mrb[0].mxu0
  %5410 = vmatprep.mubr.f32.mxu0 0.0
  %5411 = vmatmul.mubr.f32.gmra.mrb[0].mxu0 %v5270
  %v5412 = vpop.f32.mrb[0].mxu0
  %v5413 = vadd.f32 %v5154, %v5412
  %v5414 = vpop.f32.mrb[0].mxu0
  %5415 = vmatprep.mubr.f32.mxu0 0.0
  %5416 = vmatmul.mubr.f32.gmra.mrb[0].mxu0 %v5272
  %v5417 = vpop.f32.mrb[0].mxu0
  %v5418 = vadd.f32 %v5155, %v5417
  %v5419 = vpop.f32.mrb[0].mxu0
  %5420 = vmatprep.mubr.f32.mxu0 0.0
  %5421 = vmatmul.mubr.f32.gmra.mrb[0].mxu0 %v5274
  %v5422 = vpop.f32.mrb[0].mxu0
  %v5423 = vadd.f32 %v5156, %v5422
  %v5424 = vpop.f32.mrb[0].mxu0
  %5425 = vmatprep.mubr.f32.mxu0 0.0
  %5426 = vmatmul.mubr.f32.gmra.mrb[0].mxu0 %v5276
  %v5427 = vpop.f32.mrb[0].mxu0
  %v5428 = vadd.f32 %v5157, %v5427
  %v5429 = vpop.f32.mrb[0].mxu0
  %5430 = vmatprep.mubr.f32.mxu0 0.0
  %5431 = vmatmul.mubr.f32.gmra.mrb[0].mxu0 %v5278
  %v5432 = vpop.f32.mrb[0].mxu0
  %v5433 = vadd.f32 %v5158, %v5432
  %v5434 = vpop.f32.mrb[0].mxu0
  %5435 = vmatprep.mubr.f32.mxu0 0.0
  %5436 = vmatmul.mubr.f32.gmra.mrb[0].mxu0 %v5280
  %v5437 = vpop.f32.mrb[0].mxu0
  %v5438 = vadd.f32 %v5159, %v5437
  %v5439 = vpop.f32.mrb[0].mxu0
  %5440 = vmatprep.mubr.f32.mxu0 0.0
  %5441 = vmatmul.mubr.f32.gmra.mrb[0].mxu0 %v5282
  %v5442 = vpop.f32.mrb[0].mxu0
  %v5443 = vadd.f32 %v5160, %v5442
  %v5444 = vpop.f32.mrb[0].mxu0
  %5445 = vmatprep.mubr.f32.mxu0 0.0
  %5446 = vmatmul.mubr.f32.gmra.mrb[0].mxu0 %v5284
  %v5447 = vpop.f32.mrb[0].mxu0
  %v5448 = vadd.f32 %v5161, %v5447
  %v5449 = vpop.f32.mrb[0].mxu0
  %5450 = vmatprep.mubr.f32.mxu0 0.0
  %5451 = vmatmul.mubr.f32.gmra.mrb[0].mxu0 %v5286
  %v5452 = vpop.f32.mrb[0].mxu0
  %v5453 = vadd.f32 %v5162, %v5452
  %v5454 = vpop.f32.mrb[0].mxu0
  %5455 = vmatprep.mubr.f32.mxu0 0.0
  %5456 = vmatmul.mubr.f32.gmra.mrb[0].mxu0 %v5288
  %v5457 = vpop.f32.mrb[0].mxu0
  %v5458 = vadd.f32 %v5163, %v5457
  %v5459 = vpop.f32.mrb[0].mxu0
  %5460 = vmatprep.mubr.f32.mxu0 0.0
  %5461 = vmatmul.mubr.f32.gmra.mrb[0].mxu0 %v5290
  %v5462 = vpop.f32.mrb[0].mxu0
  %v5463 = vadd.f32 %v5164, %v5462
  %v5464 = vpop.f32.mrb[0].mxu0
  %5465 = vmatprep.mubr.f32.mxu0 0.0
  %5466 = vmatmul.mubr.f32.gmra.mrb[0].mxu0 %v5292
  %v5467 = vpop.f32.mrb[0].mxu0
  %v5468 = vadd.f32 %v5165, %v5467
  %v5469 = vpop.f32.mrb[0].mxu0
  %5470 = vdwg.mxu0
  %5471 = vmax.xlane.f32.xlu0 %v5393
  %v5472 = vpop.xlane.xlu0 %5471
  %5473 = vmax.xlane.f32.xlu0 %v5398
  %v5474 = vpop.xlane.xlu0 %5473
  %5475 = vmax.xlane.f32.xlu0 %v5403
  %v5476 = vpop.xlane.xlu0 %5475
  %5477 = vmax.xlane.f32.xlu0 %v5408
  %v5478 = vpop.xlane.xlu0 %5477
  %5479 = vmax.xlane.f32.xlu0 %v5413
  %v5480 = vpop.xlane.xlu0 %5479
  %5481 = vmax.xlane.f32.xlu0 %v5418
  %v5482 = vpop.xlane.xlu0 %5481
  %5483 = vmax.xlane.f32.xlu0 %v5423
  %v5484 = vpop.xlane.xlu0 %5483
  %5485 = vmax.xlane.f32.xlu0 %v5428
  %v5486 = vpop.xlane.xlu0 %5485
  %5487 = vmax.xlane.f32.xlu0 %v5433
  %v5488 = vpop.xlane.xlu0 %5487
  %5489 = vmax.xlane.f32.xlu0 %v5438
  %v5490 = vpop.xlane.xlu0 %5489
  %5491 = vmax.xlane.f32.xlu0 %v5443
  %v5492 = vpop.xlane.xlu0 %5491
  %5493 = vmax.xlane.f32.xlu0 %v5448
  %v5494 = vpop.xlane.xlu0 %5493
  %5495 = vmax.xlane.f32.xlu0 %v5453
  %v5496 = vpop.xlane.xlu0 %5495
  %5497 = vmax.xlane.f32.xlu0 %v5458
  %v5498 = vpop.xlane.xlu0 %5497
  %5499 = vmax.xlane.f32.xlu0 %v5463
  %v5500 = vpop.xlane.xlu0 %5499
  %5501 = vmax.xlane.f32.xlu0 %v5468
  %v5502 = vpop.xlane.xlu0 %5501
  %v5503 = vsub.f32 %v5393, %v5472
  %v5504 = vsub.f32 %v5398, %v5474
  %v5505 = vsub.f32 %v5403, %v5476
  %v5506 = vsub.f32 %v5408, %v5478
  %v5507 = vsub.f32 %v5413, %v5480
  %v5508 = vsub.f32 %v5418, %v5482
  %v5509 = vsub.f32 %v5423, %v5484
  %v5510 = vsub.f32 %v5428, %v5486
  %v5511 = vsub.f32 %v5433, %v5488
  %v5512 = vsub.f32 %v5438, %v5490
  %v5513 = vsub.f32 %v5443, %v5492
  %v5514 = vsub.f32 %v5448, %v5494
  %v5515 = vsub.f32 %v5453, %v5496
  %v5516 = vsub.f32 %v5458, %v5498
  %v5517 = vsub.f32 %v5463, %v5500
  %v5518 = vsub.f32 %v5468, %v5502
  %v5519 = vmul.f32 %v5503, 1.442695
  %v5520 = vpow.pop %v5519
  %v5521 = vmul.f32 %v5504, 1.442695
  %v5522 = vpow.pop %v5521
  %v5523 = vmul.f32 %v5505, 1.442695
  %v5524 = vpow.pop %v5523
  %v5525 = vmul.f32 %v5506, 1.442695
  %v5526 = vpow.pop %v5525
  %v5527 = vmul.f32 %v5507, 1.442695
  %v5528 = vpow.pop %v5527
  %v5529 = vmul.f32 %v5508, 1.442695
  %v5530 = vpow.pop %v5529
  %v5531 = vmul.f32 %v5509, 1.442695
  %v5532 = vpow.pop %v5531
  %v5533 = vmul.f32 %v5510, 1.442695
  %v5534 = vpow.pop %v5533
  %v5535 = vmul.f32 %v5511, 1.442695
  %v5536 = vpow.pop %v5535
  %v5537 = vmul.f32 %v5512, 1.442695
  %v5538 = vpow.pop %v5537
  %v5539 = vmul.f32 %v5513, 1.442695
  %v5540 = vpow.pop %v5539
  %v5541 = vmul.f32 %v5514, 1.442695
  %v5542 = vpow.pop %v5541
  %v5543 = vmul.f32 %v5515, 1.442695
  %v5544 = vpow.pop %v5543
  %v5545 = vmul.f32 %v5516, 1.442695
  %v5546 = vpow.pop %v5545
  %v5547 = vmul.f32 %v5517, 1.442695
  %v5548 = vpow.pop %v5547
  %v5549 = vmul.f32 %v5518, 1.442695
  %v5550 = vpow.pop %v5549
  %5551 = vadd.xlane.f32.xlu0 %v5520
  %v5552 = vpop.xlane.xlu0 %5551
  %5553 = vadd.xlane.f32.xlu0 %v5522
  %v5554 = vpop.xlane.xlu0 %5553
  %5555 = vadd.xlane.f32.xlu0 %v5524
  %v5556 = vpop.xlane.xlu0 %5555
  %5557 = vadd.xlane.f32.xlu0 %v5526
  %v5558 = vpop.xlane.xlu0 %5557
  %5559 = vadd.xlane.f32.xlu0 %v5528
  %v5560 = vpop.xlane.xlu0 %5559
  %5561 = vadd.xlane.f32.xlu0 %v5530
  %v5562 = vpop.xlane.xlu0 %5561
  %5563 = vadd.xlane.f32.xlu0 %v5532
  %v5564 = vpop.xlane.xlu0 %5563
  %5565 = vadd.xlane.f32.xlu0 %v5534
  %v5566 = vpop.xlane.xlu0 %5565
  %5567 = vadd.xlane.f32.xlu0 %v5536
  %v5568 = vpop.xlane.xlu0 %5567
  %5569 = vadd.xlane.f32.xlu0 %v5538
  %v5570 = vpop.xlane.xlu0 %5569
  %5571 = vadd.xlane.f32.xlu0 %v5540
  %v5572 = vpop.xlane.xlu0 %5571
  %5573 = vadd.xlane.f32.xlu0 %v5542
  %v5574 = vpop.xlane.xlu0 %5573
  %5575 = vadd.xlane.f32.xlu0 %v5544
  %v5576 = vpop.xlane.xlu0 %5575
  %5577 = vadd.xlane.f32.xlu0 %v5546
  %v5578 = vpop.xlane.xlu0 %5577
  %5579 = vadd.xlane.f32.xlu0 %v5548
  %v5580 = vpop.xlane.xlu0 %5579
  %5581 = vadd.xlane.f32.xlu0 %v5550
  %v5582 = vpop.xlane.xlu0 %5581
  %v5583 = vrcp.pop %v5552
  %v5584 = vrcp.pop %v5554
  %v5585 = vrcp.pop %v5556
  %v5586 = vrcp.pop %v5558
  %v5587 = vrcp.pop %v5560
  %v5588 = vrcp.pop %v5562
  %v5589 = vrcp.pop %v5564
  %v5590 = vrcp.pop %v5566
  %v5591 = vrcp.pop %v5568
  %v5592 = vrcp.pop %v5570
  %v5593 = vrcp.pop %v5572
  %v5594 = vrcp.pop %v5574
  %v5595 = vrcp.pop %v5576
  %v5596 = vrcp.pop %v5578
  %v5597 = vrcp.pop %v5580
  %v5598 = vrcp.pop %v5582
  %v5599 = vmul.f32 %v5520, %v5583
  %v5600 = vmul.f32 %v5522, %v5584
  %v5601 = vmul.f32 %v5524, %v5585
  %v5602 = vmul.f32 %v5526, %v5586
  %v5603 = vmul.f32 %v5528, %v5587
  %v5604 = vmul.f32 %v5530, %v5588
  %v5605 = vmul.f32 %v5532, %v5589
  %v5606 = vmul.f32 %v5534, %v5590
  %v5607 = vmul.f32 %v5536, %v5591
  %v5608 = vmul.f32 %v5538, %v5592
  %v5609 = vmul.f32 %v5540, %v5593
  %v5610 = vmul.f32 %v5542, %v5594
  %v5611 = vmul.f32 %v5544, %v5595
  %v5612 = vmul.f32 %v5546, %v5596
  %v5613 = vmul.f32 %v5548, %v5597
  %v5614 = vmul.f32 %v5550, %v5598
  %5615 = vrot.lane.b32.xlu0 %v193, 40
  %v5616 = vpop.permute.xlu0 %5615
  %5617 = vrot.lane.b32.xlu0 %v198, 40
  %v5618 = vpop.permute.xlu0 %5617
  %5619 = vrot.lane.b32.xlu0 %v203, 40
  %v5620 = vpop.permute.xlu0 %5619
  %5621 = vrot.lane.b32.xlu0 %v208, 40
  %v5622 = vpop.permute.xlu0 %5621
  %5623 = vrot.lane.b32.xlu0 %v213, 40
  %v5624 = vpop.permute.xlu0 %5623
  %5625 = vrot.lane.b32.xlu0 %v218, 40
  %v5626 = vpop.permute.xlu0 %5625
  %5627 = vrot.lane.b32.xlu0 %v223, 40
  %v5628 = vpop.permute.xlu0 %5627
  %5629 = vrot.lane.b32.xlu0 %v228, 40
  %v5630 = vpop.permute.xlu0 %5629
  %5631 = vrot.lane.b32.xlu0 %v233, 40
  %v5632 = vpop.permute.xlu0 %5631
  %5633 = vrot.lane.b32.xlu0 %v238, 40
  %v5634 = vpop.permute.xlu0 %5633
  %5635 = vrot.lane.b32.xlu0 %v243, 40
  %v5636 = vpop.permute.xlu0 %5635
  %5637 = vrot.lane.b32.xlu0 %v248, 40
  %v5638 = vpop.permute.xlu0 %5637
  %5639 = vrot.lane.b32.xlu0 %v253, 40
  %v5640 = vpop.permute.xlu0 %5639
  %5641 = vrot.lane.b32.xlu0 %v258, 40
  %v5642 = vpop.permute.xlu0 %5641
  %5643 = vrot.lane.b32.xlu0 %v263, 40
  %v5644 = vpop.permute.xlu0 %5643
  %5645 = vrot.lane.b32.xlu0 %v268, 40
  %v5646 = vpop.permute.xlu0 %5645
  %5663 = vmatprep.subr.mxu0 0.0
  %5664 = vmatpush1.msra.mxu0 %v5616
  %5665 = vmatprep.subr.mxu0 0.0
  %5666 = vmatpush1.msra.mxu0 %v5618
  %5667 = vmatprep.subr.mxu0 0.0
  %5668 = vmatpush1.msra.mxu0 %v5620
  %5669 = vmatprep.subr.mxu0 0.0
  %5670 = vmatpush1.msra.mxu0 %v5622
  %5671 = vmatprep.subr.mxu0 0.0
  %5672 = vmatpush1.msra.mxu0 %v5624
  %5673 = vmatprep.subr.mxu0 0.0
  %5674 = vmatpush1.msra.mxu0 %v5626
  %5675 = vmatprep.subr.mxu0 0.0
  %5676 = vmatpush1.msra.mxu0 %v5628
  %5677 = vmatprep.subr.mxu0 0.0
  %5678 = vmatpush1.msra.mxu0 %v5630
  %5679 = vmatprep.subr.mxu0 0.0
  %5680 = vmatpush1.msra.mxu0 %v5632
  %5681 = vmatprep.subr.mxu0 0.0
  %5682 = vmatpush1.msra.mxu0 %v5634
  %5683 = vmatprep.subr.mxu0 0.0
  %5684 = vmatpush1.msra.mxu0 %v5636
  %5685 = vmatprep.subr.mxu0 0.0
  %5686 = vmatpush1.msra.mxu0 %v5638
  %5687 = vmatprep.subr.mxu0 0.0
  %5688 = vmatpush1.msra.mxu0 %v5640
  %5689 = vmatprep.subr.mxu0 0.0
  %5690 = vmatpush1.msra.mxu0 %v5642
  %5691 = vmatprep.subr.mxu0 0.0
  %5692 = vmatpush1.msra.mxu0 %v5644
  %5693 = vmatprep.subr.mxu0 0.0
  %5694 = vmatpush1.msra.mxu0 %v5646
  %5695 = vmatprep.subr.mxu0 0.0
  %5696 = vmatpush1.msra.mxu0 0.0
  %5697 = vmatprep.subr.mxu0 0.0
  %5698 = vmatpush1.msra.mxu0 0.0
  %5699 = vmatprep.subr.mxu0 0.0
  %5700 = vmatpush1.msra.mxu0 0.0
  %5701 = vmatprep.subr.mxu0 0.0
  %5702 = vmatpush1.msra.mxu0 0.0
  %5703 = vmatprep.subr.mxu0 0.0
  %5704 = vmatpush1.msra.mxu0 0.0
  %5705 = vmatprep.subr.mxu0 0.0
  %5706 = vmatpush1.msra.mxu0 0.0
  %5707 = vmatprep.subr.mxu0 0.0
  %5708 = vmatpush1.msra.mxu0 0.0
  %5709 = vmatprep.subr.mxu0 0.0
  %5710 = vmatpush1.msra.mxu0 0.0
  %5711 = vmatprep.subr.mxu0 0.0
  %5712 = vmatpush1.msra.mxu0 0.0
  %5713 = vmatprep.subr.mxu0 0.0
  %5714 = vmatpush1.msra.mxu0 0.0
  %5715 = vmatprep.subr.mxu0 0.0
  %5716 = vmatpush1.msra.mxu0 0.0
  %5717 = vmatprep.subr.mxu0 0.0
  %5718 = vmatpush1.msra.mxu0 0.0
  %5719 = vmatprep.subr.mxu0 0.0
  %5720 = vmatpush1.msra.mxu0 0.0
  %5721 = vmatprep.subr.mxu0 0.0
  %5722 = vmatpush1.msra.mxu0 0.0
  %5723 = vmatprep.subr.mxu0 0.0
  %5724 = vmatpush1.msra.mxu0 0.0
  %5725 = vmatprep.subr.mxu0 0.0
  %5726 = vmatpush1.msra.mxu0 0.0
  %5727 = vmatprep.mubr.f32.mxu0 0.0
  %5728 = vmatmul.mubr.f32.gmra.mrb[0].mxu0 %v5599
  %v5729 = vpop.f32.mrb[0].mxu0
  %v5730 = vadd.f32 0.0, %v5729
  %v5731 = vpop.f32.mrb[0].mxu0
  %5732 = vmatprep.mubr.f32.mxu0 0.0
  %5733 = vmatmul.mubr.f32.gmra.mrb[0].mxu0 %v5600
  %v5734 = vpop.f32.mrb[0].mxu0
  %v5735 = vadd.f32 0.0, %v5734
  %v5736 = vpop.f32.mrb[0].mxu0
  %5737 = vmatprep.mubr.f32.mxu0 0.0
  %5738 = vmatmul.mubr.f32.gmra.mrb[0].mxu0 %v5601
  %v5739 = vpop.f32.mrb[0].mxu0
  %v5740 = vadd.f32 0.0, %v5739
  %v5741 = vpop.f32.mrb[0].mxu0
  %5742 = vmatprep.mubr.f32.mxu0 0.0
  %5743 = vmatmul.mubr.f32.gmra.mrb[0].mxu0 %v5602
  %v5744 = vpop.f32.mrb[0].mxu0
  %v5745 = vadd.f32 0.0, %v5744
  %v5746 = vpop.f32.mrb[0].mxu0
  %5747 = vmatprep.mubr.f32.mxu0 0.0
  %5748 = vmatmul.mubr.f32.gmra.mrb[0].mxu0 %v5603
  %v5749 = vpop.f32.mrb[0].mxu0
  %v5750 = vadd.f32 0.0, %v5749
  %v5751 = vpop.f32.mrb[0].mxu0
  %5752 = vmatprep.mubr.f32.mxu0 0.0
  %5753 = vmatmul.mubr.f32.gmra.mrb[0].mxu0 %v5604
  %v5754 = vpop.f32.mrb[0].mxu0
  %v5755 = vadd.f32 0.0, %v5754
  %v5756 = vpop.f32.mrb[0].mxu0
  %5757 = vmatprep.mubr.f32.mxu0 0.0
  %5758 = vmatmul.mubr.f32.gmra.mrb[0].mxu0 %v5605
  %v5759 = vpop.f32.mrb[0].mxu0
  %v5760 = vadd.f32 0.0, %v5759
  %v5761 = vpop.f32.mrb[0].mxu0
  %5762 = vmatprep.mubr.f32.mxu0 0.0
  %5763 = vmatmul.mubr.f32.gmra.mrb[0].mxu0 %v5606
  %v5764 = vpop.f32.mrb[0].mxu0
  %v5765 = vadd.f32 0.0, %v5764
  %v5766 = vpop.f32.mrb[0].mxu0
  %5767 = vmatprep.mubr.f32.mxu0 0.0
  %5768 = vmatmul.mubr.f32.gmra.mrb[0].mxu0 %v5607
  %v5769 = vpop.f32.mrb[0].mxu0
  %v5770 = vadd.f32 0.0, %v5769
  %v5771 = vpop.f32.mrb[0].mxu0
  %5772 = vmatprep.mubr.f32.mxu0 0.0
  %5773 = vmatmul.mubr.f32.gmra.mrb[0].mxu0 %v5608
  %v5774 = vpop.f32.mrb[0].mxu0
  %v5775 = vadd.f32 0.0, %v5774
  %v5776 = vpop.f32.mrb[0].mxu0
  %5777 = vmatprep.mubr.f32.mxu0 0.0
  %5778 = vmatmul.mubr.f32.gmra.mrb[0].mxu0 %v5609
  %v5779 = vpop.f32.mrb[0].mxu0
  %v5780 = vadd.f32 0.0, %v5779
  %v5781 = vpop.f32.mrb[0].mxu0
  %5782 = vmatprep.mubr.f32.mxu0 0.0
  %5783 = vmatmul.mubr.f32.gmra.mrb[0].mxu0 %v5610
  %v5784 = vpop.f32.mrb[0].mxu0
  %v5785 = vadd.f32 0.0, %v5784
  %v5786 = vpop.f32.mrb[0].mxu0
  %5787 = vmatprep.mubr.f32.mxu0 0.0
  %5788 = vmatmul.mubr.f32.gmra.mrb[0].mxu0 %v5611
  %v5789 = vpop.f32.mrb[0].mxu0
  %v5790 = vadd.f32 0.0, %v5789
  %v5791 = vpop.f32.mrb[0].mxu0
  %5792 = vmatprep.mubr.f32.mxu0 0.0
  %5793 = vmatmul.mubr.f32.gmra.mrb[0].mxu0 %v5612
  %v5794 = vpop.f32.mrb[0].mxu0
  %v5795 = vadd.f32 0.0, %v5794
  %v5796 = vpop.f32.mrb[0].mxu0
  %5797 = vmatprep.mubr.f32.mxu0 0.0
  %5798 = vmatmul.mubr.f32.gmra.mrb[0].mxu0 %v5613
  %v5799 = vpop.f32.mrb[0].mxu0
  %v5800 = vadd.f32 0.0, %v5799
  %v5801 = vpop.f32.mrb[0].mxu0
  %5802 = vmatprep.mubr.f32.mxu0 0.0
  %5803 = vmatmul.mubr.f32.gmra.mrb[0].mxu0 %v5614
  %v5804 = vpop.f32.mrb[0].mxu0
  %v5805 = vadd.f32 0.0, %v5804
  %v5806 = vpop.f32.mrb[0].mxu0
  %5807 = vdwg.mxu0
  %v5808 = vld [vmem:[%s5 + $0x18] sm:$0xff]
  %v5810 = vsel %vm288, %v5730, 0
  %v5813 = vsel %vm288, %v5735, 0
  %v5816 = vsel %vm288, %v5740, 0
  %v5819 = vsel %vm288, %v5745, 0
  %v5822 = vsel %vm288, %v5750, 0
  %v5825 = vsel %vm288, %v5755, 0
  %v5828 = vsel %vm288, %v5760, 0
  %v5831 = vsel %vm288, %v5765, 0
  %v5834 = vsel %vm288, %v5770, 0
  %v5837 = vsel %vm288, %v5775, 0
  %v5840 = vsel %vm288, %v5780, 0
  %v5843 = vsel %vm288, %v5785, 0
  %v5846 = vsel %vm288, %v5790, 0
  %v5849 = vsel %vm288, %v5795, 0
  %v5852 = vsel %vm288, %v5800, 0
  %v5855 = vsel %vm288, %v5805, 0
  %5857 = vmatprep.subr.mxu0 0.0
  %5858 = vmatpush1.msra.mxu0 %v5808
  %5859 = vmatprep.subr.mxu0 0.0
  %5860 = vmatpush1.msra.mxu0 0.0
  %5861 = vmatprep.subr.mxu0 0.0
  %5862 = vmatpush1.msra.mxu0 0.0
  %5863 = vmatprep.subr.mxu0 0.0
  %5864 = vmatpush1.msra.mxu0 0.0
  %5865 = vmatprep.subr.mxu0 0.0
  %5866 = vmatpush1.msra.mxu0 0.0
  %5867 = vmatprep.subr.mxu0 0.0
  %5868 = vmatpush1.msra.mxu0 0.0
  %5869 = vmatprep.subr.mxu0 0.0
  %5870 = vmatpush1.msra.mxu0 0.0
  %5871 = vmatprep.subr.mxu0 0.0
  %5872 = vmatpush1.msra.mxu0 0.0
  %5873 = vmatprep.subr.mxu0 0.0
  %5874 = vmatpush1.msra.mxu0 0.0
  %5875 = vmatprep.subr.mxu0 0.0
  %5876 = vmatpush1.msra.mxu0 0.0
  %5877 = vmatprep.subr.mxu0 0.0
  %5878 = vmatpush1.msra.mxu0 0.0
  %5879 = vmatprep.subr.mxu0 0.0
  %5880 = vmatpush1.msra.mxu0 0.0
  %5881 = vmatprep.subr.mxu0 0.0
  %5882 = vmatpush1.msra.mxu0 0.0
  %5883 = vmatprep.subr.mxu0 0.0
  %5884 = vmatpush1.msra.mxu0 0.0
  %5885 = vmatprep.subr.mxu0 0.0
  %5886 = vmatpush1.msra.mxu0 0.0
  %5887 = vmatprep.subr.mxu0 0.0
  %5888 = vmatpush1.msra.mxu0 0.0
  %5889 = vmatprep.subr.mxu0 0.0
  %5890 = vmatpush1.msra.mxu0 0.0
  %5891 = vmatprep.subr.mxu0 0.0
  %5892 = vmatpush1.msra.mxu0 0.0
  %5893 = vmatprep.subr.mxu0 0.0
  %5894 = vmatpush1.msra.mxu0 0.0
  %5895 = vmatprep.subr.mxu0 0.0
  %5896 = vmatpush1.msra.mxu0 0.0
  %5897 = vmatprep.subr.mxu0 0.0
  %5898 = vmatpush1.msra.mxu0 0.0
  %5899 = vmatprep.subr.mxu0 0.0
  %5900 = vmatpush1.msra.mxu0 0.0
  %5901 = vmatprep.subr.mxu0 0.0
  %5902 = vmatpush1.msra.mxu0 0.0
  %5903 = vmatprep.subr.mxu0 0.0
  %5904 = vmatpush1.msra.mxu0 0.0
  %5905 = vmatprep.subr.mxu0 0.0
  %5906 = vmatpush1.msra.mxu0 0.0
  %5907 = vmatprep.subr.mxu0 0.0
  %5908 = vmatpush1.msra.mxu0 0.0
  %5909 = vmatprep.subr.mxu0 0.0
  %5910 = vmatpush1.msra.mxu0 0.0
  %5911 = vmatprep.subr.mxu0 0.0
  %5912 = vmatpush1.msra.mxu0 0.0
  %5913 = vmatprep.subr.mxu0 0.0
  %5914 = vmatpush1.msra.mxu0 0.0
  %5915 = vmatprep.subr.mxu0 0.0
  %5916 = vmatpush1.msra.mxu0 0.0
  %5917 = vmatprep.subr.mxu0 0.0
  %5918 = vmatpush1.msra.mxu0 0.0
  %5919 = vmatprep.subr.mxu0 0.0
  %5920 = vmatpush1.msra.mxu0 0.0
  %5921 = vmatprep.mubr.f32.mxu0 0.0
  %5922 = vmatmul.mubr.f32.gmra.mrb[0].mxu0 %v5810
  %v5923 = vpop.f32.mrb[0].mxu0
  %v5924 = vadd.f32 0.0, %v5923
  %v5925 = vpop.f32.mrb[0].mxu0
  %5926 = vmatprep.mubr.f32.mxu0 0.0
  %5927 = vmatmul.mubr.f32.gmra.mrb[0].mxu0 %v5813
  %v5928 = vpop.f32.mrb[0].mxu0
  %v5929 = vadd.f32 0.0, %v5928
  %v5930 = vpop.f32.mrb[0].mxu0
  %5931 = vmatprep.mubr.f32.mxu0 0.0
  %5932 = vmatmul.mubr.f32.gmra.mrb[0].mxu0 %v5816
  %v5933 = vpop.f32.mrb[0].mxu0
  %v5934 = vadd.f32 0.0, %v5933
  %v5935 = vpop.f32.mrb[0].mxu0
  %5936 = vmatprep.mubr.f32.mxu0 0.0
  %5937 = vmatmul.mubr.f32.gmra.mrb[0].mxu0 %v5819
  %v5938 = vpop.f32.mrb[0].mxu0
  %v5939 = vadd.f32 0.0, %v5938
  %v5940 = vpop.f32.mrb[0].mxu0
  %5941 = vmatprep.mubr.f32.mxu0 0.0
  %5942 = vmatmul.mubr.f32.gmra.mrb[0].mxu0 %v5822
  %v5943 = vpop.f32.mrb[0].mxu0
  %v5944 = vadd.f32 0.0, %v5943
  %v5945 = vpop.f32.mrb[0].mxu0
  %5946 = vmatprep.mubr.f32.mxu0 0.0
  %5947 = vmatmul.mubr.f32.gmra.mrb[0].mxu0 %v5825
  %v5948 = vpop.f32.mrb[0].mxu0
  %v5949 = vadd.f32 0.0, %v5948
  %v5950 = vpop.f32.mrb[0].mxu0
  %5951 = vmatprep.mubr.f32.mxu0 0.0
  %5952 = vmatmul.mubr.f32.gmra.mrb[0].mxu0 %v5828
  %v5953 = vpop.f32.mrb[0].mxu0
  %v5954 = vadd.f32 0.0, %v5953
  %v5955 = vpop.f32.mrb[0].mxu0
  %5956 = vmatprep.mubr.f32.mxu0 0.0
  %5957 = vmatmul.mubr.f32.gmra.mrb[0].mxu0 %v5831
  %v5958 = vpop.f32.mrb[0].mxu0
  %v5959 = vadd.f32 0.0, %v5958
  %v5960 = vpop.f32.mrb[0].mxu0
  %5961 = vmatprep.mubr.f32.mxu0 0.0
  %5962 = vmatmul.mubr.f32.gmra.mrb[0].mxu0 %v5834
  %v5963 = vpop.f32.mrb[0].mxu0
  %v5964 = vadd.f32 0.0, %v5963
  %v5965 = vpop.f32.mrb[0].mxu0
  %5966 = vmatprep.mubr.f32.mxu0 0.0
  %5967 = vmatmul.mubr.f32.gmra.mrb[0].mxu0 %v5837
  %v5968 = vpop.f32.mrb[0].mxu0
  %v5969 = vadd.f32 0.0, %v5968
  %v5970 = vpop.f32.mrb[0].mxu0
  %5971 = vmatprep.mubr.f32.mxu0 0.0
  %5972 = vmatmul.mubr.f32.gmra.mrb[0].mxu0 %v5840
  %v5973 = vpop.f32.mrb[0].mxu0
  %v5974 = vadd.f32 0.0, %v5973
  %v5975 = vpop.f32.mrb[0].mxu0
  %5976 = vmatprep.mubr.f32.mxu0 0.0
  %5977 = vmatmul.mubr.f32.gmra.mrb[0].mxu0 %v5843
  %v5978 = vpop.f32.mrb[0].mxu0
  %v5979 = vadd.f32 0.0, %v5978
  %v5980 = vpop.f32.mrb[0].mxu0
  %5981 = vmatprep.mubr.f32.mxu0 0.0
  %5982 = vmatmul.mubr.f32.gmra.mrb[0].mxu0 %v5846
  %v5983 = vpop.f32.mrb[0].mxu0
  %v5984 = vadd.f32 0.0, %v5983
  %v5985 = vpop.f32.mrb[0].mxu0
  %5986 = vmatprep.mubr.f32.mxu0 0.0
  %5987 = vmatmul.mubr.f32.gmra.mrb[0].mxu0 %v5849
  %v5988 = vpop.f32.mrb[0].mxu0
  %v5989 = vadd.f32 0.0, %v5988
  %v5990 = vpop.f32.mrb[0].mxu0
  %5991 = vmatprep.mubr.f32.mxu0 0.0
  %5992 = vmatmul.mubr.f32.gmra.mrb[0].mxu0 %v5852
  %v5993 = vpop.f32.mrb[0].mxu0
  %v5994 = vadd.f32 0.0, %v5993
  %v5995 = vpop.f32.mrb[0].mxu0
  %5996 = vmatprep.mubr.f32.mxu0 0.0
  %5997 = vmatmul.mubr.f32.gmra.mrb[0].mxu0 %v5855
  %v5998 = vpop.f32.mrb[0].mxu0
  %v5999 = vadd.f32 0.0, %v5998
  %v6000 = vpop.f32.mrb[0].mxu0
  %6001 = vdwg.mxu0
  %v6002 = vadd.f32 %v4533, %v5924
  %v6003 = vadd.f32 %v4534, %v5929
  %v6004 = vadd.f32 %v4535, %v5934
  %v6005 = vadd.f32 %v4536, %v5939
  %v6006 = vadd.f32 %v4537, %v5944
  %v6007 = vadd.f32 %v4538, %v5949
  %v6008 = vadd.f32 %v4539, %v5954
  %v6009 = vadd.f32 %v4540, %v5959
  %v6010 = vadd.f32 %v4541, %v5964
  %v6011 = vadd.f32 %v4542, %v5969
  %v6012 = vadd.f32 %v4543, %v5974
  %v6013 = vadd.f32 %v4544, %v5979
  %v6014 = vadd.f32 %v4545, %v5984
  %v6015 = vadd.f32 %v4546, %v5989
  %v6016 = vadd.f32 %v4547, %v5994
  %v6017 = vadd.f32 %v4548, %v5999
  %v6018 = vld [vmem:[%s6] sm:$0x1]
  %v6020 = vlaneseq
  %v6021 = vshrl.u32 %v6020, 7
  %v6022 = vsub.s32 0, %v6021
  %v6023 = vrot.slane %v6018, %v6022
  %v6025 = vadd.f32 %v6002, %v6023
  %v6026 = vadd.f32 %v6003, %v6023
  %v6027 = vadd.f32 %v6004, %v6023
  %v6028 = vadd.f32 %v6005, %v6023
  %v6029 = vadd.f32 %v6006, %v6023
  %v6030 = vadd.f32 %v6007, %v6023
  %v6031 = vadd.f32 %v6008, %v6023
  %v6032 = vadd.f32 %v6009, %v6023
  %v6033 = vadd.f32 %v6010, %v6023
  %v6034 = vadd.f32 %v6011, %v6023
  %v6035 = vadd.f32 %v6012, %v6023
  %v6036 = vadd.f32 %v6013, %v6023
  %v6037 = vadd.f32 %v6014, %v6023
  %v6038 = vadd.f32 %v6015, %v6023
  %v6039 = vadd.f32 %v6016, %v6023
  %v6040 = vadd.f32 %v6017, %v6023
  %v6041 = vld [vmem:[%s7] sm:$0x1]
  %v6042 = vld [vmem:[%s8] sm:$0x1]
  %v6043 = vsel %vm77, %v6025, 0.0
  %6044 = vadd.xlane.f32.xlu0 %v6043
  %v6045 = vpop.xlane.xlu0 %6044
  %v6046 = vsel %vm77, %v6026, 0.0
  %6047 = vadd.xlane.f32.xlu0 %v6046
  %v6048 = vpop.xlane.xlu0 %6047
  %v6049 = vsel %vm77, %v6027, 0.0
  %6050 = vadd.xlane.f32.xlu0 %v6049
  %v6051 = vpop.xlane.xlu0 %6050
  %v6052 = vsel %vm77, %v6028, 0.0
  %6053 = vadd.xlane.f32.xlu0 %v6052
  %v6054 = vpop.xlane.xlu0 %6053
  %v6055 = vsel %vm77, %v6029, 0.0
  %6056 = vadd.xlane.f32.xlu0 %v6055
  %v6057 = vpop.xlane.xlu0 %6056
  %v6058 = vsel %vm77, %v6030, 0.0
  %6059 = vadd.xlane.f32.xlu0 %v6058
  %v6060 = vpop.xlane.xlu0 %6059
  %v6061 = vsel %vm77, %v6031, 0.0
  %6062 = vadd.xlane.f32.xlu0 %v6061
  %v6063 = vpop.xlane.xlu0 %6062
  %v6064 = vsel %vm77, %v6032, 0.0
  %6065 = vadd.xlane.f32.xlu0 %v6064
  %v6066 = vpop.xlane.xlu0 %6065
  %v6067 = vsel %vm77, %v6033, 0.0
  %6068 = vadd.xlane.f32.xlu0 %v6067
  %v6069 = vpop.xlane.xlu0 %6068
  %v6070 = vsel %vm77, %v6034, 0.0
  %6071 = vadd.xlane.f32.xlu0 %v6070
  %v6072 = vpop.xlane.xlu0 %6071
  %v6073 = vsel %vm77, %v6035, 0.0
  %6074 = vadd.xlane.f32.xlu0 %v6073
  %v6075 = vpop.xlane.xlu0 %6074
  %v6076 = vsel %vm77, %v6036, 0.0
  %6077 = vadd.xlane.f32.xlu0 %v6076
  %v6078 = vpop.xlane.xlu0 %6077
  %v6079 = vsel %vm77, %v6037, 0.0
  %6080 = vadd.xlane.f32.xlu0 %v6079
  %v6081 = vpop.xlane.xlu0 %6080
  %v6082 = vsel %vm77, %v6038, 0.0
  %6083 = vadd.xlane.f32.xlu0 %v6082
  %v6084 = vpop.xlane.xlu0 %6083
  %v6085 = vsel %vm77, %v6039, 0.0
  %6086 = vadd.xlane.f32.xlu0 %v6085
  %v6087 = vpop.xlane.xlu0 %6086
  %v6088 = vsel %vm77, %v6040, 0.0
  %6089 = vadd.xlane.f32.xlu0 %v6088
  %v6090 = vpop.xlane.xlu0 %6089
  %v6091 = vrcp.pop 32.0
  %v6092 = vmul.f32 %v6045, %v6091
  %v6093 = vmul.f32 %v6048, %v6091
  %v6094 = vmul.f32 %v6051, %v6091
  %v6095 = vmul.f32 %v6054, %v6091
  %v6096 = vmul.f32 %v6057, %v6091
  %v6097 = vmul.f32 %v6060, %v6091
  %v6098 = vmul.f32 %v6063, %v6091
  %v6099 = vmul.f32 %v6066, %v6091
  %v6100 = vmul.f32 %v6069, %v6091
  %v6101 = vmul.f32 %v6072, %v6091
  %v6102 = vmul.f32 %v6075, %v6091
  %v6103 = vmul.f32 %v6078, %v6091
  %v6104 = vmul.f32 %v6081, %v6091
  %v6105 = vmul.f32 %v6084, %v6091
  %v6106 = vmul.f32 %v6087, %v6091
  %v6107 = vmul.f32 %v6090, %v6091
  %v6108 = vsub.f32 %v6025, %v6092
  %v6109 = vsub.f32 %v6026, %v6093
  %v6110 = vsub.f32 %v6027, %v6094
  %v6111 = vsub.f32 %v6028, %v6095
  %v6112 = vsub.f32 %v6029, %v6096
  %v6113 = vsub.f32 %v6030, %v6097
  %v6114 = vsub.f32 %v6031, %v6098
  %v6115 = vsub.f32 %v6032, %v6099
  %v6116 = vsub.f32 %v6033, %v6100
  %v6117 = vsub.f32 %v6034, %v6101
  %v6118 = vsub.f32 %v6035, %v6102
  %v6119 = vsub.f32 %v6036, %v6103
  %v6120 = vsub.f32 %v6037, %v6104
  %v6121 = vsub.f32 %v6038, %v6105
  %v6122 = vsub.f32 %v6039, %v6106
  %v6123 = vsub.f32 %v6040, %v6107
  %v6124 = vmul.f32 %v6108, %v6108
  %v6125 = vmul.f32 %v6109, %v6109
  %v6126 = vmul.f32 %v6110, %v6110
  %v6127 = vmul.f32 %v6111, %v6111
  %v6128 = vmul.f32 %v6112, %v6112
  %v6129 = vmul.f32 %v6113, %v6113
  %v6130 = vmul.f32 %v6114, %v6114
  %v6131 = vmul.f32 %v6115, %v6115
  %v6132 = vmul.f32 %v6116, %v6116
  %v6133 = vmul.f32 %v6117, %v6117
  %v6134 = vmul.f32 %v6118, %v6118
  %v6135 = vmul.f32 %v6119, %v6119
  %v6136 = vmul.f32 %v6120, %v6120
  %v6137 = vmul.f32 %v6121, %v6121
  %v6138 = vmul.f32 %v6122, %v6122
  %v6139 = vmul.f32 %v6123, %v6123
  %v6140 = vsel %vm77, %v6124, 0.0
  %6141 = vadd.xlane.f32.xlu0 %v6140
  %v6142 = vpop.xlane.xlu0 %6141
  %v6143 = vsel %vm77, %v6125, 0.0
  %6144 = vadd.xlane.f32.xlu0 %v6143
  %v6145 = vpop.xlane.xlu0 %6144
  %v6146 = vsel %vm77, %v6126, 0.0
  %6147 = vadd.xlane.f32.xlu0 %v6146
  %v6148 = vpop.xlane.xlu0 %6147
  %v6149 = vsel %vm77, %v6127, 0.0
  %6150 = vadd.xlane.f32.xlu0 %v6149
  %v6151 = vpop.xlane.xlu0 %6150
  %v6152 = vsel %vm77, %v6128, 0.0
  %6153 = vadd.xlane.f32.xlu0 %v6152
  %v6154 = vpop.xlane.xlu0 %6153
  %v6155 = vsel %vm77, %v6129, 0.0
  %6156 = vadd.xlane.f32.xlu0 %v6155
  %v6157 = vpop.xlane.xlu0 %6156
  %v6158 = vsel %vm77, %v6130, 0.0
  %6159 = vadd.xlane.f32.xlu0 %v6158
  %v6160 = vpop.xlane.xlu0 %6159
  %v6161 = vsel %vm77, %v6131, 0.0
  %6162 = vadd.xlane.f32.xlu0 %v6161
  %v6163 = vpop.xlane.xlu0 %6162
  %v6164 = vsel %vm77, %v6132, 0.0
  %6165 = vadd.xlane.f32.xlu0 %v6164
  %v6166 = vpop.xlane.xlu0 %6165
  %v6167 = vsel %vm77, %v6133, 0.0
  %6168 = vadd.xlane.f32.xlu0 %v6167
  %v6169 = vpop.xlane.xlu0 %6168
  %v6170 = vsel %vm77, %v6134, 0.0
  %6171 = vadd.xlane.f32.xlu0 %v6170
  %v6172 = vpop.xlane.xlu0 %6171
  %v6173 = vsel %vm77, %v6135, 0.0
  %6174 = vadd.xlane.f32.xlu0 %v6173
  %v6175 = vpop.xlane.xlu0 %6174
  %v6176 = vsel %vm77, %v6136, 0.0
  %6177 = vadd.xlane.f32.xlu0 %v6176
  %v6178 = vpop.xlane.xlu0 %6177
  %v6179 = vsel %vm77, %v6137, 0.0
  %6180 = vadd.xlane.f32.xlu0 %v6179
  %v6181 = vpop.xlane.xlu0 %6180
  %v6182 = vsel %vm77, %v6138, 0.0
  %6183 = vadd.xlane.f32.xlu0 %v6182
  %v6184 = vpop.xlane.xlu0 %6183
  %v6185 = vsel %vm77, %v6139, 0.0
  %6186 = vadd.xlane.f32.xlu0 %v6185
  %v6187 = vpop.xlane.xlu0 %6186
  %v6188 = vmul.f32 %v6142, %v6091
  %v6189 = vmul.f32 %v6145, %v6091
  %v6190 = vmul.f32 %v6148, %v6091
  %v6191 = vmul.f32 %v6151, %v6091
  %v6192 = vmul.f32 %v6154, %v6091
  %v6193 = vmul.f32 %v6157, %v6091
  %v6194 = vmul.f32 %v6160, %v6091
  %v6195 = vmul.f32 %v6163, %v6091
  %v6196 = vmul.f32 %v6166, %v6091
  %v6197 = vmul.f32 %v6169, %v6091
  %v6198 = vmul.f32 %v6172, %v6091
  %v6199 = vmul.f32 %v6175, %v6091
  %v6200 = vmul.f32 %v6178, %v6091
  %v6201 = vmul.f32 %v6181, %v6091
  %v6202 = vmul.f32 %v6184, %v6091
  %v6203 = vmul.f32 %v6187, %v6091
  %v6204 = vadd.f32 %v6188, 1e-05
  %v6205 = vadd.f32 %v6189, 1e-05
  %v6206 = vadd.f32 %v6190, 1e-05
  %v6207 = vadd.f32 %v6191, 1e-05
  %v6208 = vadd.f32 %v6192, 1e-05
  %v6209 = vadd.f32 %v6193, 1e-05
  %v6210 = vadd.f32 %v6194, 1e-05
  %v6211 = vadd.f32 %v6195, 1e-05
  %v6212 = vadd.f32 %v6196, 1e-05
  %v6213 = vadd.f32 %v6197, 1e-05
  %v6214 = vadd.f32 %v6198, 1e-05
  %v6215 = vadd.f32 %v6199, 1e-05
  %v6216 = vadd.f32 %v6200, 1e-05
  %v6217 = vadd.f32 %v6201, 1e-05
  %v6218 = vadd.f32 %v6202, 1e-05
  %v6219 = vadd.f32 %v6203, 1e-05
  %v6220 = vrsqrt.pop %v6204
  %v6221 = vrsqrt.pop %v6205
  %v6222 = vrsqrt.pop %v6206
  %v6223 = vrsqrt.pop %v6207
  %v6224 = vrsqrt.pop %v6208
  %v6225 = vrsqrt.pop %v6209
  %v6226 = vrsqrt.pop %v6210
  %v6227 = vrsqrt.pop %v6211
  %v6228 = vrsqrt.pop %v6212
  %v6229 = vrsqrt.pop %v6213
  %v6230 = vrsqrt.pop %v6214
  %v6231 = vrsqrt.pop %v6215
  %v6232 = vrsqrt.pop %v6216
  %v6233 = vrsqrt.pop %v6217
  %v6234 = vrsqrt.pop %v6218
  %v6235 = vrsqrt.pop %v6219
  %v6236 = vmul.f32 %v6108, %v6220
  %v6237 = vmul.f32 %v6109, %v6221
  %v6238 = vmul.f32 %v6110, %v6222
  %v6239 = vmul.f32 %v6111, %v6223
  %v6240 = vmul.f32 %v6112, %v6224
  %v6241 = vmul.f32 %v6113, %v6225
  %v6242 = vmul.f32 %v6114, %v6226
  %v6243 = vmul.f32 %v6115, %v6227
  %v6244 = vmul.f32 %v6116, %v6228
  %v6245 = vmul.f32 %v6117, %v6229
  %v6246 = vmul.f32 %v6118, %v6230
  %v6247 = vmul.f32 %v6119, %v6231
  %v6248 = vmul.f32 %v6120, %v6232
  %v6249 = vmul.f32 %v6121, %v6233
  %v6250 = vmul.f32 %v6122, %v6234
  %v6251 = vmul.f32 %v6123, %v6235
  %v6253 = vlaneseq
  %v6254 = vshrl.u32 %v6253, 7
  %v6255 = vsub.s32 0, %v6254
  %v6256 = vrot.slane %v6041, %v6255
  %v6258 = vmul.f32 %v6236, %v6256
  %v6259 = vmul.f32 %v6237, %v6256
  %v6260 = vmul.f32 %v6238, %v6256
  %v6261 = vmul.f32 %v6239, %v6256
  %v6262 = vmul.f32 %v6240, %v6256
  %v6263 = vmul.f32 %v6241, %v6256
  %v6264 = vmul.f32 %v6242, %v6256
  %v6265 = vmul.f32 %v6243, %v6256
  %v6266 = vmul.f32 %v6244, %v6256
  %v6267 = vmul.f32 %v6245, %v6256
  %v6268 = vmul.f32 %v6246, %v6256
  %v6269 = vmul.f32 %v6247, %v6256
  %v6270 = vmul.f32 %v6248, %v6256
  %v6271 = vmul.f32 %v6249, %v6256
  %v6272 = vmul.f32 %v6250, %v6256
  %v6273 = vmul.f32 %v6251, %v6256
  %v6275 = vlaneseq
  %v6276 = vshrl.u32 %v6275, 7
  %v6277 = vsub.s32 0, %v6276
  %v6278 = vrot.slane %v6042, %v6277
  %v6280 = vadd.f32 %v6258, %v6278
  %v6281 = vadd.f32 %v6259, %v6278
  %v6282 = vadd.f32 %v6260, %v6278
  %v6283 = vadd.f32 %v6261, %v6278
  %v6284 = vadd.f32 %v6262, %v6278
  %v6285 = vadd.f32 %v6263, %v6278
  %v6286 = vadd.f32 %v6264, %v6278
  %v6287 = vadd.f32 %v6265, %v6278
  %v6288 = vadd.f32 %v6266, %v6278
  %v6289 = vadd.f32 %v6267, %v6278
  %v6290 = vadd.f32 %v6268, %v6278
  %v6291 = vadd.f32 %v6269, %v6278
  %v6292 = vadd.f32 %v6270, %v6278
  %v6293 = vadd.f32 %v6271, %v6278
  %v6294 = vadd.f32 %v6272, %v6278
  %v6295 = vadd.f32 %v6273, %v6278
  %v6296 = vadd.f32 %v50, %v6280
  %v6297 = vadd.f32 %v51, %v6281
  %v6298 = vadd.f32 %v52, %v6282
  %v6299 = vadd.f32 %v53, %v6283
  %v6300 = vadd.f32 %v54, %v6284
  %v6301 = vadd.f32 %v55, %v6285
  %v6302 = vadd.f32 %v56, %v6286
  %v6303 = vadd.f32 %v57, %v6287
  %v6304 = vadd.f32 %v58, %v6288
  %v6305 = vadd.f32 %v59, %v6289
  %v6306 = vadd.f32 %v60, %v6290
  %v6307 = vadd.f32 %v61, %v6291
  %v6308 = vadd.f32 %v62, %v6292
  %v6309 = vadd.f32 %v63, %v6293
  %v6310 = vadd.f32 %v64, %v6294
  %v6311 = vadd.f32 %v65, %v6295
  %v6312 = vld [vmem:[%s11] sm:$0xff]
  %v6313 = vld [vmem:[%s11 + $0x8] sm:$0xff]
  %v6314 = vld [vmem:[%s11 + $0x10] sm:$0xff]
  %v6315 = vld [vmem:[%s11 + $0x18] sm:$0xff]
  %v6316 = vld [vmem:[%s12] sm:$0x1]
  %v6318 = vlaneseq
  %v6319 = vshrl.u32 %v6318, 7
  %v6320 = vsub.s32 0, %v6319
  %v6321 = vrot.slane %v6316, %v6320
  %v6324 = vsel %vm77, %v6296, 0
  %v6327 = vsel %vm77, %v6297, 0
  %v6330 = vsel %vm77, %v6298, 0
  %v6333 = vsel %vm77, %v6299, 0
  %v6336 = vsel %vm77, %v6300, 0
  %v6339 = vsel %vm77, %v6301, 0
  %v6342 = vsel %vm77, %v6302, 0
  %v6345 = vsel %vm77, %v6303, 0
  %v6348 = vsel %vm77, %v6304, 0
  %v6351 = vsel %vm77, %v6305, 0
  %v6354 = vsel %vm77, %v6306, 0
  %v6357 = vsel %vm77, %v6307, 0
  %v6360 = vsel %vm77, %v6308, 0
  %v6363 = vsel %vm77, %v6309, 0
  %v6366 = vsel %vm77, %v6310, 0
  %v6369 = vsel %vm77, %v6311, 0
  %6371 = vmatprep.subr.mxu0 0.0
  %6372 = vmatpush1.msra.mxu0 %v6312
  %6373 = vmatprep.subr.mxu0 0.0
  %6374 = vmatpush1.msra.mxu0 %v6313
  %6375 = vmatprep.subr.mxu0 0.0
  %6376 = vmatpush1.msra.mxu0 %v6314
  %6377 = vmatprep.subr.mxu0 0.0
  %6378 = vmatpush1.msra.mxu0 %v6315
  %6379 = vmatprep.subr.mxu0 0.0
  %6380 = vmatpush1.msra.mxu0 0.0
  %6381 = vmatprep.subr.mxu0 0.0
  %6382 = vmatpush1.msra.mxu0 0.0
  %6383 = vmatprep.subr.mxu0 0.0
  %6384 = vmatpush1.msra.mxu0 0.0
  %6385 = vmatprep.subr.mxu0 0.0
  %6386 = vmatpush1.msra.mxu0 0.0
  %6387 = vmatprep.subr.mxu0 0.0
  %6388 = vmatpush1.msra.mxu0 0.0
  %6389 = vmatprep.subr.mxu0 0.0
  %6390 = vmatpush1.msra.mxu0 0.0
  %6391 = vmatprep.subr.mxu0 0.0
  %6392 = vmatpush1.msra.mxu0 0.0
  %6393 = vmatprep.subr.mxu0 0.0
  %6394 = vmatpush1.msra.mxu0 0.0
  %6395 = vmatprep.subr.mxu0 0.0
  %6396 = vmatpush1.msra.mxu0 0.0
  %6397 = vmatprep.subr.mxu0 0.0
  %6398 = vmatpush1.msra.mxu0 0.0
  %6399 = vmatprep.subr.mxu0 0.0
  %6400 = vmatpush1.msra.mxu0 0.0
  %6401 = vmatprep.subr.mxu0 0.0
  %6402 = vmatpush1.msra.mxu0 0.0
  %6403 = vmatprep.subr.mxu0 0.0
  %6404 = vmatpush1.msra.mxu0 0.0
  %6405 = vmatprep.subr.mxu0 0.0
  %6406 = vmatpush1.msra.mxu0 0.0
  %6407 = vmatprep.subr.mxu0 0.0
  %6408 = vmatpush1.msra.mxu0 0.0
  %6409 = vmatprep.subr.mxu0 0.0
  %6410 = vmatpush1.msra.mxu0 0.0
  %6411 = vmatprep.subr.mxu0 0.0
  %6412 = vmatpush1.msra.mxu0 0.0
  %6413 = vmatprep.subr.mxu0 0.0
  %6414 = vmatpush1.msra.mxu0 0.0
  %6415 = vmatprep.subr.mxu0 0.0
  %6416 = vmatpush1.msra.mxu0 0.0
  %6417 = vmatprep.subr.mxu0 0.0
  %6418 = vmatpush1.msra.mxu0 0.0
  %6419 = vmatprep.subr.mxu0 0.0
  %6420 = vmatpush1.msra.mxu0 0.0
  %6421 = vmatprep.subr.mxu0 0.0
  %6422 = vmatpush1.msra.mxu0 0.0
  %6423 = vmatprep.subr.mxu0 0.0
  %6424 = vmatpush1.msra.mxu0 0.0
  %6425 = vmatprep.subr.mxu0 0.0
  %6426 = vmatpush1.msra.mxu0 0.0
  %6427 = vmatprep.subr.mxu0 0.0
  %6428 = vmatpush1.msra.mxu0 0.0
  %6429 = vmatprep.subr.mxu0 0.0
  %6430 = vmatpush1.msra.mxu0 0.0
  %6431 = vmatprep.subr.mxu0 0.0
  %6432 = vmatpush1.msra.mxu0 0.0
  %6433 = vmatprep.subr.mxu0 0.0
  %6434 = vmatpush1.msra.mxu0 0.0
  %6435 = vmatprep.mubr.f32.mxu0 0.0
  %6436 = vmatmul.mubr.f32.gmra.mrb[0].mxu0 %v6324
  %v6437 = vpop.f32.mrb[0].mxu0
  %v6438 = vadd.f32 %v6321, %v6437
  %v6439 = vpop.f32.mrb[0].mxu0
  %6440 = vmatprep.mubr.f32.mxu0 0.0
  %6441 = vmatmul.mubr.f32.gmra.mrb[0].mxu0 %v6327
  %v6442 = vpop.f32.mrb[0].mxu0
  %v6443 = vadd.f32 %v6321, %v6442
  %v6444 = vpop.f32.mrb[0].mxu0
  %6445 = vmatprep.mubr.f32.mxu0 0.0
  %6446 = vmatmul.mubr.f32.gmra.mrb[0].mxu0 %v6330
  %v6447 = vpop.f32.mrb[0].mxu0
  %v6448 = vadd.f32 %v6321, %v6447
  %v6449 = vpop.f32.mrb[0].mxu0
  %6450 = vmatprep.mubr.f32.mxu0 0.0
  %6451 = vmatmul.mubr.f32.gmra.mrb[0].mxu0 %v6333
  %v6452 = vpop.f32.mrb[0].mxu0
  %v6453 = vadd.f32 %v6321, %v6452
  %v6454 = vpop.f32.mrb[0].mxu0
  %6455 = vmatprep.mubr.f32.mxu0 0.0
  %6456 = vmatmul.mubr.f32.gmra.mrb[0].mxu0 %v6336
  %v6457 = vpop.f32.mrb[0].mxu0
  %v6458 = vadd.f32 %v6321, %v6457
  %v6459 = vpop.f32.mrb[0].mxu0
  %6460 = vmatprep.mubr.f32.mxu0 0.0
  %6461 = vmatmul.mubr.f32.gmra.mrb[0].mxu0 %v6339
  %v6462 = vpop.f32.mrb[0].mxu0
  %v6463 = vadd.f32 %v6321, %v6462
  %v6464 = vpop.f32.mrb[0].mxu0
  %6465 = vmatprep.mubr.f32.mxu0 0.0
  %6466 = vmatmul.mubr.f32.gmra.mrb[0].mxu0 %v6342
  %v6467 = vpop.f32.mrb[0].mxu0
  %v6468 = vadd.f32 %v6321, %v6467
  %v6469 = vpop.f32.mrb[0].mxu0
  %6470 = vmatprep.mubr.f32.mxu0 0.0
  %6471 = vmatmul.mubr.f32.gmra.mrb[0].mxu0 %v6345
  %v6472 = vpop.f32.mrb[0].mxu0
  %v6473 = vadd.f32 %v6321, %v6472
  %v6474 = vpop.f32.mrb[0].mxu0
  %6475 = vmatprep.mubr.f32.mxu0 0.0
  %6476 = vmatmul.mubr.f32.gmra.mrb[0].mxu0 %v6348
  %v6477 = vpop.f32.mrb[0].mxu0
  %v6478 = vadd.f32 %v6321, %v6477
  %v6479 = vpop.f32.mrb[0].mxu0
  %6480 = vmatprep.mubr.f32.mxu0 0.0
  %6481 = vmatmul.mubr.f32.gmra.mrb[0].mxu0 %v6351
  %v6482 = vpop.f32.mrb[0].mxu0
  %v6483 = vadd.f32 %v6321, %v6482
  %v6484 = vpop.f32.mrb[0].mxu0
  %6485 = vmatprep.mubr.f32.mxu0 0.0
  %6486 = vmatmul.mubr.f32.gmra.mrb[0].mxu0 %v6354
  %v6487 = vpop.f32.mrb[0].mxu0
  %v6488 = vadd.f32 %v6321, %v6487
  %v6489 = vpop.f32.mrb[0].mxu0
  %6490 = vmatprep.mubr.f32.mxu0 0.0
  %6491 = vmatmul.mubr.f32.gmra.mrb[0].mxu0 %v6357
  %v6492 = vpop.f32.mrb[0].mxu0
  %v6493 = vadd.f32 %v6321, %v6492
  %v6494 = vpop.f32.mrb[0].mxu0
  %6495 = vmatprep.mubr.f32.mxu0 0.0
  %6496 = vmatmul.mubr.f32.gmra.mrb[0].mxu0 %v6360
  %v6497 = vpop.f32.mrb[0].mxu0
  %v6498 = vadd.f32 %v6321, %v6497
  %v6499 = vpop.f32.mrb[0].mxu0
  %6500 = vmatprep.mubr.f32.mxu0 0.0
  %6501 = vmatmul.mubr.f32.gmra.mrb[0].mxu0 %v6363
  %v6502 = vpop.f32.mrb[0].mxu0
  %v6503 = vadd.f32 %v6321, %v6502
  %v6504 = vpop.f32.mrb[0].mxu0
  %6505 = vmatprep.mubr.f32.mxu0 0.0
  %6506 = vmatmul.mubr.f32.gmra.mrb[0].mxu0 %v6366
  %v6507 = vpop.f32.mrb[0].mxu0
  %v6508 = vadd.f32 %v6321, %v6507
  %v6509 = vpop.f32.mrb[0].mxu0
  %6510 = vmatprep.mubr.f32.mxu0 0.0
  %6511 = vmatmul.mubr.f32.gmra.mrb[0].mxu0 %v6369
  %v6512 = vpop.f32.mrb[0].mxu0
  %v6513 = vadd.f32 %v6321, %v6512
  %v6514 = vpop.f32.mrb[0].mxu0
  %6515 = vdwg.mxu0
  %v6516 = vmul.f32 %v6438, 0.5
  %v6517 = vmul.f32 %v6443, 0.5
  %v6518 = vmul.f32 %v6448, 0.5
  %v6519 = vmul.f32 %v6453, 0.5
  %v6520 = vmul.f32 %v6458, 0.5
  %v6521 = vmul.f32 %v6463, 0.5
  %v6522 = vmul.f32 %v6468, 0.5
  %v6523 = vmul.f32 %v6473, 0.5
  %v6524 = vmul.f32 %v6478, 0.5
  %v6525 = vmul.f32 %v6483, 0.5
  %v6526 = vmul.f32 %v6488, 0.5
  %v6527 = vmul.f32 %v6493, 0.5
  %v6528 = vmul.f32 %v6498, 0.5
  %v6529 = vmul.f32 %v6503, 0.5
  %v6530 = vmul.f32 %v6508, 0.5
  %v6531 = vmul.f32 %v6513, 0.5
  %v6532 = vmul.f32 %v6438, 0.70710677
  %v6533 = vmul.f32 %v6443, 0.70710677
  %v6534 = vmul.f32 %v6448, 0.70710677
  %v6535 = vmul.f32 %v6453, 0.70710677
  %v6536 = vmul.f32 %v6458, 0.70710677
  %v6537 = vmul.f32 %v6463, 0.70710677
  %v6538 = vmul.f32 %v6468, 0.70710677
  %v6539 = vmul.f32 %v6473, 0.70710677
  %v6540 = vmul.f32 %v6478, 0.70710677
  %v6541 = vmul.f32 %v6483, 0.70710677
  %v6542 = vmul.f32 %v6488, 0.70710677
  %v6543 = vmul.f32 %v6493, 0.70710677
  %v6544 = vmul.f32 %v6498, 0.70710677
  %v6545 = vmul.f32 %v6503, 0.70710677
  %v6546 = vmul.f32 %v6508, 0.70710677
  %v6547 = vmul.f32 %v6513, 0.70710677
  %v6548 = verf.f32.pop %v6532
  %v6549 = verf.f32.pop %v6533
  %v6550 = verf.f32.pop %v6534
  %v6551 = verf.f32.pop %v6535
  %v6552 = verf.f32.pop %v6536
  %v6553 = verf.f32.pop %v6537
  %v6554 = verf.f32.pop %v6538
  %v6555 = verf.f32.pop %v6539
  %v6556 = verf.f32.pop %v6540
  %v6557 = verf.f32.pop %v6541
  %v6558 = verf.f32.pop %v6542
  %v6559 = verf.f32.pop %v6543
  %v6560 = verf.f32.pop %v6544
  %v6561 = verf.f32.pop %v6545
  %v6562 = verf.f32.pop %v6546
  %v6563 = verf.f32.pop %v6547
  %v6564 = vadd.f32 %v6548, 1.0
  %v6565 = vadd.f32 %v6549, 1.0
  %v6566 = vadd.f32 %v6550, 1.0
  %v6567 = vadd.f32 %v6551, 1.0
  %v6568 = vadd.f32 %v6552, 1.0
  %v6569 = vadd.f32 %v6553, 1.0
  %v6570 = vadd.f32 %v6554, 1.0
  %v6571 = vadd.f32 %v6555, 1.0
  %v6572 = vadd.f32 %v6556, 1.0
  %v6573 = vadd.f32 %v6557, 1.0
  %v6574 = vadd.f32 %v6558, 1.0
  %v6575 = vadd.f32 %v6559, 1.0
  %v6576 = vadd.f32 %v6560, 1.0
  %v6577 = vadd.f32 %v6561, 1.0
  %v6578 = vadd.f32 %v6562, 1.0
  %v6579 = vadd.f32 %v6563, 1.0
  %v6580 = vmul.f32 %v6516, %v6564
  %v6581 = vmul.f32 %v6517, %v6565
  %v6582 = vmul.f32 %v6518, %v6566
  %v6583 = vmul.f32 %v6519, %v6567
  %v6584 = vmul.f32 %v6520, %v6568
  %v6585 = vmul.f32 %v6521, %v6569
  %v6586 = vmul.f32 %v6522, %v6570
  %v6587 = vmul.f32 %v6523, %v6571
  %v6588 = vmul.f32 %v6524, %v6572
  %v6589 = vmul.f32 %v6525, %v6573
  %v6590 = vmul.f32 %v6526, %v6574
  %v6591 = vmul.f32 %v6527, %v6575
  %v6592 = vmul.f32 %v6528, %v6576
  %v6593 = vmul.f32 %v6529, %v6577
  %v6594 = vmul.f32 %v6530, %v6578
  %v6595 = vmul.f32 %v6531, %v6579
  %v6596 = vld [vmem:[%s13] sm:$0xff]
  %v6597 = vld [vmem:[%s13 + $0x8] sm:$0xff]
  %v6598 = vld [vmem:[%s13 + $0x10] sm:$0xff]
  %v6599 = vld [vmem:[%s13 + $0x18] sm:$0xff]
  %v6600 = vld [vmem:[%s13 + $0x20] sm:$0xff]
  %v6601 = vld [vmem:[%s13 + $0x28] sm:$0xff]
  %v6602 = vld [vmem:[%s13 + $0x30] sm:$0xff]
  %v6603 = vld [vmem:[%s13 + $0x38] sm:$0xff]
  %v6604 = vld [vmem:[%s13 + $0x40] sm:$0xff]
  %v6605 = vld [vmem:[%s13 + $0x48] sm:$0xff]
  %v6606 = vld [vmem:[%s13 + $0x50] sm:$0xff]
  %v6607 = vld [vmem:[%s13 + $0x58] sm:$0xff]
  %v6608 = vld [vmem:[%s13 + $0x60] sm:$0xff]
  %v6609 = vld [vmem:[%s13 + $0x68] sm:$0xff]
  %v6610 = vld [vmem:[%s13 + $0x70] sm:$0xff]
  %v6611 = vld [vmem:[%s13 + $0x78] sm:$0xff]
  %v6612 = vld [vmem:[%s14] sm:$0x1]
  %v6614 = vlaneseq
  %v6615 = vshrl.u32 %v6614, 7
  %v6616 = vsub.s32 0, %v6615
  %v6617 = vrot.slane %v6612, %v6616
  %6619 = vmatprep.subr.mxu0 0.0
  %6620 = vmatpush1.msra.mxu0 %v6596
  %6621 = vmatprep.subr.mxu0 0.0
  %6622 = vmatpush1.msra.mxu0 %v6597
  %6623 = vmatprep.subr.mxu0 0.0
  %6624 = vmatpush1.msra.mxu0 %v6598
  %6625 = vmatprep.subr.mxu0 0.0
  %6626 = vmatpush1.msra.mxu0 %v6599
  %6627 = vmatprep.subr.mxu0 0.0
  %6628 = vmatpush1.msra.mxu0 %v6600
  %6629 = vmatprep.subr.mxu0 0.0
  %6630 = vmatpush1.msra.mxu0 %v6601
  %6631 = vmatprep.subr.mxu0 0.0
  %6632 = vmatpush1.msra.mxu0 %v6602
  %6633 = vmatprep.subr.mxu0 0.0
  %6634 = vmatpush1.msra.mxu0 %v6603
  %6635 = vmatprep.subr.mxu0 0.0
  %6636 = vmatpush1.msra.mxu0 %v6604
  %6637 = vmatprep.subr.mxu0 0.0
  %6638 = vmatpush1.msra.mxu0 %v6605
  %6639 = vmatprep.subr.mxu0 0.0
  %6640 = vmatpush1.msra.mxu0 %v6606
  %6641 = vmatprep.subr.mxu0 0.0
  %6642 = vmatpush1.msra.mxu0 %v6607
  %6643 = vmatprep.subr.mxu0 0.0
  %6644 = vmatpush1.msra.mxu0 %v6608
  %6645 = vmatprep.subr.mxu0 0.0
  %6646 = vmatpush1.msra.mxu0 %v6609
  %6647 = vmatprep.subr.mxu0 0.0
  %6648 = vmatpush1.msra.mxu0 %v6610
  %6649 = vmatprep.subr.mxu0 0.0
  %6650 = vmatpush1.msra.mxu0 %v6611
  %6651 = vmatprep.subr.mxu0 0.0
  %6652 = vmatpush1.msra.mxu0 0.0
  %6653 = vmatprep.subr.mxu0 0.0
  %6654 = vmatpush1.msra.mxu0 0.0
  %6655 = vmatprep.subr.mxu0 0.0
  %6656 = vmatpush1.msra.mxu0 0.0
  %6657 = vmatprep.subr.mxu0 0.0
  %6658 = vmatpush1.msra.mxu0 0.0
  %6659 = vmatprep.subr.mxu0 0.0
  %6660 = vmatpush1.msra.mxu0 0.0
  %6661 = vmatprep.subr.mxu0 0.0
  %6662 = vmatpush1.msra.mxu0 0.0
  %6663 = vmatprep.subr.mxu0 0.0
  %6664 = vmatpush1.msra.mxu0 0.0
  %6665 = vmatprep.subr.mxu0 0.0
  %6666 = vmatpush1.msra.mxu0 0.0
  %6667 = vmatprep.subr.mxu0 0.0
  %6668 = vmatpush1.msra.mxu0 0.0
  %6669 = vmatprep.subr.mxu0 0.0
  %6670 = vmatpush1.msra.mxu0 0.0
  %6671 = vmatprep.subr.mxu0 0.0
  %6672 = vmatpush1.msra.mxu0 0.0
  %6673 = vmatprep.subr.mxu0 0.0
  %6674 = vmatpush1.msra.mxu0 0.0
  %6675 = vmatprep.subr.mxu0 0.0
  %6676 = vmatpush1.msra.mxu0 0.0
  %6677 = vmatprep.subr.mxu0 0.0
  %6678 = vmatpush1.msra.mxu0 0.0
  %6679 = vmatprep.subr.mxu0 0.0
  %6680 = vmatpush1.msra.mxu0 0.0
  %6681 = vmatprep.subr.mxu0 0.0
  %6682 = vmatpush1.msra.mxu0 0.0
  %6683 = vmatprep.mubr.f32.mxu0 0.0
  %6684 = vmatmul.mubr.f32.gmra.mrb[0].mxu0 %v6580
  %v6685 = vpop.f32.mrb[0].mxu0
  %v6686 = vadd.f32 %v6617, %v6685
  %v6687 = vpop.f32.mrb[0].mxu0
  %6688 = vmatprep.mubr.f32.mxu0 0.0
  %6689 = vmatmul.mubr.f32.gmra.mrb[0].mxu0 %v6581
  %v6690 = vpop.f32.mrb[0].mxu0
  %v6691 = vadd.f32 %v6617, %v6690
  %v6692 = vpop.f32.mrb[0].mxu0
  %6693 = vmatprep.mubr.f32.mxu0 0.0
  %6694 = vmatmul.mubr.f32.gmra.mrb[0].mxu0 %v6582
  %v6695 = vpop.f32.mrb[0].mxu0
  %v6696 = vadd.f32 %v6617, %v6695
  %v6697 = vpop.f32.mrb[0].mxu0
  %6698 = vmatprep.mubr.f32.mxu0 0.0
  %6699 = vmatmul.mubr.f32.gmra.mrb[0].mxu0 %v6583
  %v6700 = vpop.f32.mrb[0].mxu0
  %v6701 = vadd.f32 %v6617, %v6700
  %v6702 = vpop.f32.mrb[0].mxu0
  %6703 = vmatprep.mubr.f32.mxu0 0.0
  %6704 = vmatmul.mubr.f32.gmra.mrb[0].mxu0 %v6584
  %v6705 = vpop.f32.mrb[0].mxu0
  %v6706 = vadd.f32 %v6617, %v6705
  %v6707 = vpop.f32.mrb[0].mxu0
  %6708 = vmatprep.mubr.f32.mxu0 0.0
  %6709 = vmatmul.mubr.f32.gmra.mrb[0].mxu0 %v6585
  %v6710 = vpop.f32.mrb[0].mxu0
  %v6711 = vadd.f32 %v6617, %v6710
  %v6712 = vpop.f32.mrb[0].mxu0
  %6713 = vmatprep.mubr.f32.mxu0 0.0
  %6714 = vmatmul.mubr.f32.gmra.mrb[0].mxu0 %v6586
  %v6715 = vpop.f32.mrb[0].mxu0
  %v6716 = vadd.f32 %v6617, %v6715
  %v6717 = vpop.f32.mrb[0].mxu0
  %6718 = vmatprep.mubr.f32.mxu0 0.0
  %6719 = vmatmul.mubr.f32.gmra.mrb[0].mxu0 %v6587
  %v6720 = vpop.f32.mrb[0].mxu0
  %v6721 = vadd.f32 %v6617, %v6720
  %v6722 = vpop.f32.mrb[0].mxu0
  %6723 = vmatprep.mubr.f32.mxu0 0.0
  %6724 = vmatmul.mubr.f32.gmra.mrb[0].mxu0 %v6588
  %v6725 = vpop.f32.mrb[0].mxu0
  %v6726 = vadd.f32 %v6617, %v6725
  %v6727 = vpop.f32.mrb[0].mxu0
  %6728 = vmatprep.mubr.f32.mxu0 0.0
  %6729 = vmatmul.mubr.f32.gmra.mrb[0].mxu0 %v6589
  %v6730 = vpop.f32.mrb[0].mxu0
  %v6731 = vadd.f32 %v6617, %v6730
  %v6732 = vpop.f32.mrb[0].mxu0
  %6733 = vmatprep.mubr.f32.mxu0 0.0
  %6734 = vmatmul.mubr.f32.gmra.mrb[0].mxu0 %v6590
  %v6735 = vpop.f32.mrb[0].mxu0
  %v6736 = vadd.f32 %v6617, %v6735
  %v6737 = vpop.f32.mrb[0].mxu0
  %6738 = vmatprep.mubr.f32.mxu0 0.0
  %6739 = vmatmul.mubr.f32.gmra.mrb[0].mxu0 %v6591
  %v6740 = vpop.f32.mrb[0].mxu0
  %v6741 = vadd.f32 %v6617, %v6740
  %v6742 = vpop.f32.mrb[0].mxu0
  %6743 = vmatprep.mubr.f32.mxu0 0.0
  %6744 = vmatmul.mubr.f32.gmra.mrb[0].mxu0 %v6592
  %v6745 = vpop.f32.mrb[0].mxu0
  %v6746 = vadd.f32 %v6617, %v6745
  %v6747 = vpop.f32.mrb[0].mxu0
  %6748 = vmatprep.mubr.f32.mxu0 0.0
  %6749 = vmatmul.mubr.f32.gmra.mrb[0].mxu0 %v6593
  %v6750 = vpop.f32.mrb[0].mxu0
  %v6751 = vadd.f32 %v6617, %v6750
  %v6752 = vpop.f32.mrb[0].mxu0
  %6753 = vmatprep.mubr.f32.mxu0 0.0
  %6754 = vmatmul.mubr.f32.gmra.mrb[0].mxu0 %v6594
  %v6755 = vpop.f32.mrb[0].mxu0
  %v6756 = vadd.f32 %v6617, %v6755
  %v6757 = vpop.f32.mrb[0].mxu0
  %6758 = vmatprep.mubr.f32.mxu0 0.0
  %6759 = vmatmul.mubr.f32.gmra.mrb[0].mxu0 %v6595
  %v6760 = vpop.f32.mrb[0].mxu0
  %v6761 = vadd.f32 %v6617, %v6760
  %v6762 = vpop.f32.mrb[0].mxu0
  %6763 = vdwg.mxu0
  %v6764 = vld [vmem:[%s9] sm:$0x1]
  %v6765 = vld [vmem:[%s10] sm:$0x1]
  %v6766 = vsel %vm77, %v6686, 0.0
  %6767 = vadd.xlane.f32.xlu0 %v6766
  %v6768 = vpop.xlane.xlu0 %6767
  %v6769 = vsel %vm77, %v6691, 0.0
  %6770 = vadd.xlane.f32.xlu0 %v6769
  %v6771 = vpop.xlane.xlu0 %6770
  %v6772 = vsel %vm77, %v6696, 0.0
  %6773 = vadd.xlane.f32.xlu0 %v6772
  %v6774 = vpop.xlane.xlu0 %6773
  %v6775 = vsel %vm77, %v6701, 0.0
  %6776 = vadd.xlane.f32.xlu0 %v6775
  %v6777 = vpop.xlane.xlu0 %6776
  %v6778 = vsel %vm77, %v6706, 0.0
  %6779 = vadd.xlane.f32.xlu0 %v6778
  %v6780 = vpop.xlane.xlu0 %6779
  %v6781 = vsel %vm77, %v6711, 0.0
  %6782 = vadd.xlane.f32.xlu0 %v6781
  %v6783 = vpop.xlane.xlu0 %6782
  %v6784 = vsel %vm77, %v6716, 0.0
  %6785 = vadd.xlane.f32.xlu0 %v6784
  %v6786 = vpop.xlane.xlu0 %6785
  %v6787 = vsel %vm77, %v6721, 0.0
  %6788 = vadd.xlane.f32.xlu0 %v6787
  %v6789 = vpop.xlane.xlu0 %6788
  %v6790 = vsel %vm77, %v6726, 0.0
  %6791 = vadd.xlane.f32.xlu0 %v6790
  %v6792 = vpop.xlane.xlu0 %6791
  %v6793 = vsel %vm77, %v6731, 0.0
  %6794 = vadd.xlane.f32.xlu0 %v6793
  %v6795 = vpop.xlane.xlu0 %6794
  %v6796 = vsel %vm77, %v6736, 0.0
  %6797 = vadd.xlane.f32.xlu0 %v6796
  %v6798 = vpop.xlane.xlu0 %6797
  %v6799 = vsel %vm77, %v6741, 0.0
  %6800 = vadd.xlane.f32.xlu0 %v6799
  %v6801 = vpop.xlane.xlu0 %6800
  %v6802 = vsel %vm77, %v6746, 0.0
  %6803 = vadd.xlane.f32.xlu0 %v6802
  %v6804 = vpop.xlane.xlu0 %6803
  %v6805 = vsel %vm77, %v6751, 0.0
  %6806 = vadd.xlane.f32.xlu0 %v6805
  %v6807 = vpop.xlane.xlu0 %6806
  %v6808 = vsel %vm77, %v6756, 0.0
  %6809 = vadd.xlane.f32.xlu0 %v6808
  %v6810 = vpop.xlane.xlu0 %6809
  %v6811 = vsel %vm77, %v6761, 0.0
  %6812 = vadd.xlane.f32.xlu0 %v6811
  %v6813 = vpop.xlane.xlu0 %6812
  %v6814 = vmul.f32 %v6768, %v6091
  %v6815 = vmul.f32 %v6771, %v6091
  %v6816 = vmul.f32 %v6774, %v6091
  %v6817 = vmul.f32 %v6777, %v6091
  %v6818 = vmul.f32 %v6780, %v6091
  %v6819 = vmul.f32 %v6783, %v6091
  %v6820 = vmul.f32 %v6786, %v6091
  %v6821 = vmul.f32 %v6789, %v6091
  %v6822 = vmul.f32 %v6792, %v6091
  %v6823 = vmul.f32 %v6795, %v6091
  %v6824 = vmul.f32 %v6798, %v6091
  %v6825 = vmul.f32 %v6801, %v6091
  %v6826 = vmul.f32 %v6804, %v6091
  %v6827 = vmul.f32 %v6807, %v6091
  %v6828 = vmul.f32 %v6810, %v6091
  %v6829 = vmul.f32 %v6813, %v6091
  %v6830 = vsub.f32 %v6686, %v6814
  %v6831 = vsub.f32 %v6691, %v6815
  %v6832 = vsub.f32 %v6696, %v6816
  %v6833 = vsub.f32 %v6701, %v6817
  %v6834 = vsub.f32 %v6706, %v6818
  %v6835 = vsub.f32 %v6711, %v6819
  %v6836 = vsub.f32 %v6716, %v6820
  %v6837 = vsub.f32 %v6721, %v6821
  %v6838 = vsub.f32 %v6726, %v6822
  %v6839 = vsub.f32 %v6731, %v6823
  %v6840 = vsub.f32 %v6736, %v6824
  %v6841 = vsub.f32 %v6741, %v6825
  %v6842 = vsub.f32 %v6746, %v6826
  %v6843 = vsub.f32 %v6751, %v6827
  %v6844 = vsub.f32 %v6756, %v6828
  %v6845 = vsub.f32 %v6761, %v6829
  %v6846 = vmul.f32 %v6830, %v6830
  %v6847 = vmul.f32 %v6831, %v6831
  %v6848 = vmul.f32 %v6832, %v6832
  %v6849 = vmul.f32 %v6833, %v6833
  %v6850 = vmul.f32 %v6834, %v6834
  %v6851 = vmul.f32 %v6835, %v6835
  %v6852 = vmul.f32 %v6836, %v6836
  %v6853 = vmul.f32 %v6837, %v6837
  %v6854 = vmul.f32 %v6838, %v6838
  %v6855 = vmul.f32 %v6839, %v6839
  %v6856 = vmul.f32 %v6840, %v6840
  %v6857 = vmul.f32 %v6841, %v6841
  %v6858 = vmul.f32 %v6842, %v6842
  %v6859 = vmul.f32 %v6843, %v6843
  %v6860 = vmul.f32 %v6844, %v6844
  %v6861 = vmul.f32 %v6845, %v6845
  %v6862 = vsel %vm77, %v6846, 0.0
  %6863 = vadd.xlane.f32.xlu0 %v6862
  %v6864 = vpop.xlane.xlu0 %6863
  %v6865 = vsel %vm77, %v6847, 0.0
  %6866 = vadd.xlane.f32.xlu0 %v6865
  %v6867 = vpop.xlane.xlu0 %6866
  %v6868 = vsel %vm77, %v6848, 0.0
  %6869 = vadd.xlane.f32.xlu0 %v6868
  %v6870 = vpop.xlane.xlu0 %6869
  %v6871 = vsel %vm77, %v6849, 0.0
  %6872 = vadd.xlane.f32.xlu0 %v6871
  %v6873 = vpop.xlane.xlu0 %6872
  %v6874 = vsel %vm77, %v6850, 0.0
  %6875 = vadd.xlane.f32.xlu0 %v6874
  %v6876 = vpop.xlane.xlu0 %6875
  %v6877 = vsel %vm77, %v6851, 0.0
  %6878 = vadd.xlane.f32.xlu0 %v6877
  %v6879 = vpop.xlane.xlu0 %6878
  %v6880 = vsel %vm77, %v6852, 0.0
  %6881 = vadd.xlane.f32.xlu0 %v6880
  %v6882 = vpop.xlane.xlu0 %6881
  %v6883 = vsel %vm77, %v6853, 0.0
  %6884 = vadd.xlane.f32.xlu0 %v6883
  %v6885 = vpop.xlane.xlu0 %6884
  %v6886 = vsel %vm77, %v6854, 0.0
  %6887 = vadd.xlane.f32.xlu0 %v6886
  %v6888 = vpop.xlane.xlu0 %6887
  %v6889 = vsel %vm77, %v6855, 0.0
  %6890 = vadd.xlane.f32.xlu0 %v6889
  %v6891 = vpop.xlane.xlu0 %6890
  %v6892 = vsel %vm77, %v6856, 0.0
  %6893 = vadd.xlane.f32.xlu0 %v6892
  %v6894 = vpop.xlane.xlu0 %6893
  %v6895 = vsel %vm77, %v6857, 0.0
  %6896 = vadd.xlane.f32.xlu0 %v6895
  %v6897 = vpop.xlane.xlu0 %6896
  %v6898 = vsel %vm77, %v6858, 0.0
  %6899 = vadd.xlane.f32.xlu0 %v6898
  %v6900 = vpop.xlane.xlu0 %6899
  %v6901 = vsel %vm77, %v6859, 0.0
  %6902 = vadd.xlane.f32.xlu0 %v6901
  %v6903 = vpop.xlane.xlu0 %6902
  %v6904 = vsel %vm77, %v6860, 0.0
  %6905 = vadd.xlane.f32.xlu0 %v6904
  %v6906 = vpop.xlane.xlu0 %6905
  %v6907 = vsel %vm77, %v6861, 0.0
  %6908 = vadd.xlane.f32.xlu0 %v6907
  %v6909 = vpop.xlane.xlu0 %6908
  %v6910 = vmul.f32 %v6864, %v6091
  %v6911 = vmul.f32 %v6867, %v6091
  %v6912 = vmul.f32 %v6870, %v6091
  %v6913 = vmul.f32 %v6873, %v6091
  %v6914 = vmul.f32 %v6876, %v6091
  %v6915 = vmul.f32 %v6879, %v6091
  %v6916 = vmul.f32 %v6882, %v6091
  %v6917 = vmul.f32 %v6885, %v6091
  %v6918 = vmul.f32 %v6888, %v6091
  %v6919 = vmul.f32 %v6891, %v6091
  %v6920 = vmul.f32 %v6894, %v6091
  %v6921 = vmul.f32 %v6897, %v6091
  %v6922 = vmul.f32 %v6900, %v6091
  %v6923 = vmul.f32 %v6903, %v6091
  %v6924 = vmul.f32 %v6906, %v6091
  %v6925 = vmul.f32 %v6909, %v6091
  %v6926 = vadd.f32 %v6910, 1e-05
  %v6927 = vadd.f32 %v6911, 1e-05
  %v6928 = vadd.f32 %v6912, 1e-05
  %v6929 = vadd.f32 %v6913, 1e-05
  %v6930 = vadd.f32 %v6914, 1e-05
  %v6931 = vadd.f32 %v6915, 1e-05
  %v6932 = vadd.f32 %v6916, 1e-05
  %v6933 = vadd.f32 %v6917, 1e-05
  %v6934 = vadd.f32 %v6918, 1e-05
  %v6935 = vadd.f32 %v6919, 1e-05
  %v6936 = vadd.f32 %v6920, 1e-05
  %v6937 = vadd.f32 %v6921, 1e-05
  %v6938 = vadd.f32 %v6922, 1e-05
  %v6939 = vadd.f32 %v6923, 1e-05
  %v6940 = vadd.f32 %v6924, 1e-05
  %v6941 = vadd.f32 %v6925, 1e-05
  %v6942 = vrsqrt.pop %v6926
  %v6943 = vrsqrt.pop %v6927
  %v6944 = vrsqrt.pop %v6928
  %v6945 = vrsqrt.pop %v6929
  %v6946 = vrsqrt.pop %v6930
  %v6947 = vrsqrt.pop %v6931
  %v6948 = vrsqrt.pop %v6932
  %v6949 = vrsqrt.pop %v6933
  %v6950 = vrsqrt.pop %v6934
  %v6951 = vrsqrt.pop %v6935
  %v6952 = vrsqrt.pop %v6936
  %v6953 = vrsqrt.pop %v6937
  %v6954 = vrsqrt.pop %v6938
  %v6955 = vrsqrt.pop %v6939
  %v6956 = vrsqrt.pop %v6940
  %v6957 = vrsqrt.pop %v6941
  %v6958 = vmul.f32 %v6830, %v6942
  %v6959 = vmul.f32 %v6831, %v6943
  %v6960 = vmul.f32 %v6832, %v6944
  %v6961 = vmul.f32 %v6833, %v6945
  %v6962 = vmul.f32 %v6834, %v6946
  %v6963 = vmul.f32 %v6835, %v6947
  %v6964 = vmul.f32 %v6836, %v6948
  %v6965 = vmul.f32 %v6837, %v6949
  %v6966 = vmul.f32 %v6838, %v6950
  %v6967 = vmul.f32 %v6839, %v6951
  %v6968 = vmul.f32 %v6840, %v6952
  %v6969 = vmul.f32 %v6841, %v6953
  %v6970 = vmul.f32 %v6842, %v6954
  %v6971 = vmul.f32 %v6843, %v6955
  %v6972 = vmul.f32 %v6844, %v6956
  %v6973 = vmul.f32 %v6845, %v6957
  %v6975 = vlaneseq
  %v6976 = vshrl.u32 %v6975, 7
  %v6977 = vsub.s32 0, %v6976
  %v6978 = vrot.slane %v6764, %v6977
  %v6980 = vmul.f32 %v6958, %v6978
  %v6981 = vmul.f32 %v6959, %v6978
  %v6982 = vmul.f32 %v6960, %v6978
  %v6983 = vmul.f32 %v6961, %v6978
  %v6984 = vmul.f32 %v6962, %v6978
  %v6985 = vmul.f32 %v6963, %v6978
  %v6986 = vmul.f32 %v6964, %v6978
  %v6987 = vmul.f32 %v6965, %v6978
  %v6988 = vmul.f32 %v6966, %v6978
  %v6989 = vmul.f32 %v6967, %v6978
  %v6990 = vmul.f32 %v6968, %v6978
  %v6991 = vmul.f32 %v6969, %v6978
  %v6992 = vmul.f32 %v6970, %v6978
  %v6993 = vmul.f32 %v6971, %v6978
  %v6994 = vmul.f32 %v6972, %v6978
  %v6995 = vmul.f32 %v6973, %v6978
  %v6997 = vlaneseq
  %v6998 = vshrl.u32 %v6997, 7
  %v6999 = vsub.s32 0, %v6998
  %v7000 = vrot.slane %v6765, %v6999
  %v7002 = vadd.f32 %v6980, %v7000
  %v7003 = vadd.f32 %v6981, %v7000
  %v7004 = vadd.f32 %v6982, %v7000
  %v7005 = vadd.f32 %v6983, %v7000
  %v7006 = vadd.f32 %v6984, %v7000
  %v7007 = vadd.f32 %v6985, %v7000
  %v7008 = vadd.f32 %v6986, %v7000
  %v7009 = vadd.f32 %v6987, %v7000
  %v7010 = vadd.f32 %v6988, %v7000
  %v7011 = vadd.f32 %v6989, %v7000
  %v7012 = vadd.f32 %v6990, %v7000
  %v7013 = vadd.f32 %v6991, %v7000
  %v7014 = vadd.f32 %v6992, %v7000
  %v7015 = vadd.f32 %v6993, %v7000
  %v7016 = vadd.f32 %v6994, %v7000
  %v7017 = vadd.f32 %v6995, %v7000
  %v7018 = vadd.f32 %v6296, %v7002
  %v7019 = vadd.f32 %v6297, %v7003
  %v7020 = vadd.f32 %v6298, %v7004
  %v7021 = vadd.f32 %v6299, %v7005
  %v7022 = vadd.f32 %v6300, %v7006
  %v7023 = vadd.f32 %v6301, %v7007
  %v7024 = vadd.f32 %v6302, %v7008
  %v7025 = vadd.f32 %v6303, %v7009
  %v7026 = vadd.f32 %v6304, %v7010
  %v7027 = vadd.f32 %v6305, %v7011
  %v7028 = vadd.f32 %v6306, %v7012
  %v7029 = vadd.f32 %v6307, %v7013
  %v7030 = vadd.f32 %v6308, %v7014
  %v7031 = vadd.f32 %v6309, %v7015
  %v7032 = vadd.f32 %v6310, %v7016
  %v7033 = vadd.f32 %v6311, %v7017
  %7034 = vst.msk [vmem:[%s15] sm:$0xff] %vm77, %v7018
  %7035 = vst.msk [vmem:[%s15 + $0x8] sm:$0xff] %vm77, %v7019
  %7036 = vst.msk [vmem:[%s15 + $0x10] sm:$0xff] %vm77, %v7020
  %7037 = vst.msk [vmem:[%s15 + $0x18] sm:$0xff] %vm77, %v7021
  %7038 = vst.msk [vmem:[%s15 + $0x20] sm:$0xff] %vm77, %v7022
  %7039 = vst.msk [vmem:[%s15 + $0x28] sm:$0xff] %vm77, %v7023
  %7040 = vst.msk [vmem:[%s15 + $0x30] sm:$0xff] %vm77, %v7024
  %7041 = vst.msk [vmem:[%s15 + $0x38] sm:$0xff] %vm77, %v7025
  %7042 = vst.msk [vmem:[%s15 + $0x40] sm:$0xff] %vm77, %v7026
  %7043 = vst.msk [vmem:[%s15 + $0x48] sm:$0xff] %vm77, %v7027
  %7044 = vst.msk [vmem:[%s15 + $0x50] sm:$0xff] %vm77, %v7028
  %7045 = vst.msk [vmem:[%s15 + $0x58] sm:$0xff] %vm77, %v7029
  %7046 = vst.msk [vmem:[%s15 + $0x60] sm:$0xff] %vm77, %v7030
  %7047 = vst.msk [vmem:[%s15 + $0x68] sm:$0xff] %vm77, %v7031
  %7048 = vst.msk [vmem:[%s15 + $0x70] sm:$0xff] %vm77, %v7032
  %7049 = vst.msk [vmem:[%s15 + $0x78] sm:$0xff] %vm77, %v7033
  // Predicated region
  $region62: #{swin_block_forward.1} parent=0 // pred_check
    _
  $region63: #{swin_block_forward.1} parent=0 // pred_check_branch
    %7051 = sbr.rel (0) target = $region65
  $region64: #{swin_block_forward.1} parent=0 // pred_region
    _
  $region65: #{swin_block_forward.1} parent=0 // pred_fallthru
    _
  // Predicated region
  $region66: #{swin_block_forward.1} parent=0 // pred_check
    _
  $region67: #{swin_block_forward.1} parent=0 // pred_check_branch
    %7053 = sbr.rel (0) target = $region69
  $region68: #{swin_block_forward.1} parent=0 // pred_region
    _
  $region69: #{swin_block_forward.1} parent=0 // pred_fallthru
    _

</llo_original>
